<compile_context>
chip_gen: v7x
topology: tpu7x:2x2x1
jax: 0.10.0
libtpu: 0.0.40
codegen_flags: <defaults>
</compile_context>

<pallas_src>
import functools

import numpy as np
import jax
import jax.numpy as jnp
from jax import lax
from jax.experimental import pallas as pl
from jax.experimental.pallas import tpu as pltpu

BN_EPS = 1e-5


# ----------------------------- fused block kernel -----------------------------

def _resnet_block_kernel(x_ref, w1_ref, b1_ref, w2_ref, b2_ref, *rest,
                         taps1, res_pos, ho, wo, cin, cmid, cout, has_proj):
    """Full ResNet block for one image.

    x_ref  : (P*Hph, Wph, cin) f32   padded (and, for stride 2, phase-decomposed) input
    w1_ref : (9, cin, cmid)  bf16    conv1 weights, BN folded, tap-major (dh*3+dw)
    b1_ref : (1, cmid)       f32     conv1 folded bias
    w2_ref : (9, cmid, cout) bf16    conv2 weights, BN folded
    b2_ref : (1, cout)       f32     conv2 folded bias (+ shortcut folded bias)
    wsc_ref: (cin, cout)     bf16    1x1 projection-shortcut weights (only if has_proj)
    o_ref  : (ho, wo, cout)          block output
    mid_ref: (ho+2, wo+2, cmid) f32  VMEM scratch: conv1 output, zero-padded, for conv2
    """
    if has_proj:
        wsc_ref, o_ref, mid_ref = rest
    else:
        o_ref, mid_ref = rest
    m = ho * wo

    # ---- conv1 (3x3, stride folded into the tap table) + BN + ReLU ----
    acc1 = jnp.zeros((m, cmid), jnp.float32)
    for t, (r0, c0) in enumerate(taps1):
        win = x_ref[r0:r0 + ho, c0:c0 + wo, :].reshape(m, cin).astype(jnp.bfloat16)
        acc1 = acc1 + jnp.dot(win, w1_ref[t], preferred_element_type=jnp.float32)
    h1 = jnp.maximum(acc1 + b1_ref[...], 0.0)

    # Stage conv1 output (zero-padded by 1) in VMEM so conv2's taps are plain slices.
    mid_ref[...] = jnp.zeros_like(mid_ref)
    mid_ref[1:1 + ho, 1:1 + wo, :] = h1.reshape(ho, wo, cmid)

    # ---- conv2 (3x3, stride 1) + BN ----
    acc2 = jnp.zeros((m, cout), jnp.float32)
    for t in range(9):
        dh, dw = t // 3, t % 3
        win = mid_ref[dh:dh + ho, dw:dw + wo, :].reshape(m, cmid).astype(jnp.bfloat16)
        acc2 = acc2 + jnp.dot(win, w2_ref[t], preferred_element_type=jnp.float32)

    # ---- shortcut (identity, or 1x1 conv + BN) fused into the epilogue ----
    rr, rc = res_pos
    res_win = x_ref[rr:rr + ho, rc:rc + wo, :].reshape(m, cin)
    if has_proj:
        res = jnp.dot(res_win.astype(jnp.bfloat16), wsc_ref[...],
                      preferred_element_type=jnp.float32)
    else:
        res = res_win                      # identity: cin == cout, already f32

    y = jnp.maximum(acc2 + b2_ref[...] + res, 0.0)
    o_ref[...] = y.reshape(ho, wo, cout).astype(o_ref.dtype)


# ------------------------------ wrapper / glue --------------------------------

def _fold_bn(p):
    """Fold eval-mode BatchNorm into a per-output-channel (scale, shift)."""
    scale = p["gamma"] / jnp.sqrt(p["var"] + BN_EPS)
    shift = p["beta"] + (p["b"] - p["mean"]) * scale
    return scale, shift


def _prep_phases(x_nhwc, stride):
    """Pad by 1 and (for stride 2) space-to-depth into 4 phases so every 3x3 tap is a
    unit-stride window.  Returns (N, P*Hph, Wph, C) and (Hph, Wph, P)."""
    n, h, w, c = x_nhwc.shape
    xp = jnp.pad(x_nhwc, ((0, 0), (1, 1), (1, 1), (0, 0)))
    if stride == 1:
        return xp, h + 2, w + 2, 1
    assert stride == 2 and h % 2 == 0 and w % 2 == 0
    hph, wph = h // 2 + 1, w // 2 + 1
    phases = jnp.stack([xp[:, a::2, b::2, :] for a in (0, 1) for b in (0, 1)], axis=1)
    return phases.reshape(n, 4 * hph, wph, c), hph, wph, 4


def _tap_table(stride, hph):
    """(row_start, col_start) into the phase-folded padded input for each of the 9 taps."""
    taps = []
    for dh in range(3):
        for dw in range(3):
            if stride == 1:
                taps.append((dh, dw))
            else:
                p = 2 * (dh % 2) + (dw % 2)
                taps.append((p * hph + dh // 2, dw // 2))
    return tuple(taps)


def resnet_block_apply(x_nhwc, p, *, out_dtype=jnp.float32):
    """Fused ResNetBlock forward on an NHWC activation (one pallas_call per block)."""
    stride = p["stride"]
    n, h, w, cin = x_nhwc.shape
    cmid = p["conv1"]["w"].shape[0]
    cout = p["conv2"]["w"].shape[0]
    ho = (h + 2 - 3) // stride + 1
    wo = (w + 2 - 3) // stride + 1
    has_proj = "shortcut" in p

    x_phases, hph, wph, nph = _prep_phases(x_nhwc.astype(jnp.float32), stride)
    taps1 = _tap_table(stride, hph)
    if has_proj and stride == 2:
        res_pos = (3 * hph, 0)            # phase (1,1) == x[0::2, 0::2, :]
    else:
        res_pos = (1, 1)                  # interior of the padded input == x itself

    s1, sh1 = _fold_bn(p["conv1"])
    s2, sh2 = _fold_bn(p["conv2"])
    w1 = (jnp.transpose(p["conv1"]["w"], (2, 3, 1, 0)).reshape(9, cin, cmid)
          * s1[None, None, :]).astype(jnp.bfloat16)
    w2 = (jnp.transpose(p["conv2"]["w"], (2, 3, 1, 0)).reshape(9, cmid, cout)
          * s2[None, None, :]).astype(jnp.bfloat16)
    b1 = sh1.reshape(1, cmid).astype(jnp.float32)
    if has_proj:
        ssc, shsc = _fold_bn(p["shortcut"])
        wsc = (p["shortcut"]["w"].reshape(cout, cin).T * ssc[None, :]).astype(jnp.bfloat16)
        b2 = (sh2 + shsc).reshape(1, cout).astype(jnp.float32)   # fold both biases
    else:
        assert cin == cout and stride == 1
        b2 = sh2.reshape(1, cout).astype(jnp.float32)

    in_specs = [
        pl.BlockSpec((None, nph * hph, wph, cin), lambda i: (i, 0, 0, 0)),
        pl.BlockSpec((9, cin, cmid), lambda i: (0, 0, 0)),
        pl.BlockSpec((1, cmid), lambda i: (0, 0)),
        pl.BlockSpec((9, cmid, cout), lambda i: (0, 0, 0)),
        pl.BlockSpec((1, cout), lambda i: (0, 0)),
    ]
    args = [x_phases, w1, b1, w2, b2]
    if has_proj:
        in_specs.append(pl.BlockSpec((cin, cout), lambda i: (0, 0)))
        args.append(wsc)

    kernel = functools.partial(
        _resnet_block_kernel, taps1=taps1, res_pos=res_pos,
        ho=ho, wo=wo, cin=cin, cmid=cmid, cout=cout, has_proj=has_proj)

    return pl.pallas_call(
        kernel,
        out_shape=jax.ShapeDtypeStruct((n, ho, wo, cout), out_dtype),
        grid=(n,),
        in_specs=in_specs,
        out_specs=pl.BlockSpec((None, ho, wo, cout), lambda i: (i, 0, 0, 0)),
        scratch_shapes=[pltpu.VMEM((ho + 2, wo + 2, cmid), jnp.float32)],
        compiler_params=pltpu.CompilerParams(dimension_semantics=("parallel",)),
    )(*args)


# --------------------------- pure-JAX reference (f32) --------------------------

def _ref_conv_bn(x, p, stride, relu, pad):
    y = lax.conv_general_dilated(
        x, p["w"], window_strides=(stride, stride),
        padding=((pad, pad), (pad, pad)),
        dimension_numbers=("NCHW", "OIHW", "NCHW"))
    y = y + p["b"][None, :, None, None]
    scale = p["gamma"] / jnp.sqrt(p["var"] + BN_EPS)
    y = (y - p["mean"][None, :, None, None]) * scale[None, :, None, None] \
        + p["beta"][None, :, None, None]
    return jnp.maximum(y, 0.0) if relu else y


def _ref_block(x, p):
    s = p["stride"]
    out = _ref_conv_bn(x, p["conv1"], s, True, 1)
    out = _ref_conv_bn(out, p["conv2"], 1, False, 1)
    res = _ref_conv_bn(x, p["shortcut"], s, False, 0) if "shortcut" in p else x
    return jnp.maximum(out + res, 0.0)


# ----------------------------- deterministic init ------------------------------

def init_conv_bn(key, cin, cout, k):
    ks = jax.random.split(key, 6)
    fan_in = cin * k * k
    return dict(
        w=jax.random.normal(ks[0], (cout, cin, k, k), jnp.float32) / np.sqrt(fan_in),
        b=0.01 * jax.random.normal(ks[1], (cout,), jnp.float32),
        gamma=1.0 + 0.1 * jax.random.normal(ks[2], (cout,), jnp.float32),
        beta=0.1 * jax.random.normal(ks[3], (cout,), jnp.float32),
        mean=0.1 * jax.random.normal(ks[4], (cout,), jnp.float32),
        var=1.0 + 0.1 * jax.random.uniform(ks[5], (cout,), jnp.float32),
    )


def init_block(key, cin, cout, stride):
    ks = jax.random.split(key, 3)
    p = dict(conv1=init_conv_bn(ks[0], cin, cout, 3),
             conv2=init_conv_bn(ks[1], cout, cout, 3),
             stride=stride)
    if stride != 1 or cin != cout:
        p["shortcut"] = init_conv_bn(ks[2], cin, cout, 1)
    return p


# ------------------------------------ main -------------------------------------

if __name__ == "__main__":
    key = jax.random.PRNGKey(0)
    k1, k2, kx = jax.random.split(key, 3)
    # Block A: stride=2, 64 -> 128 channels (projection-shortcut path)
    # Block B: stride=1, 128 -> 128 channels (identity-shortcut path)
    block_a = init_block(k1, 64, 128, 2)
    block_b = init_block(k2, 128, 128, 1)
    x = jax.random.normal(kx, (2, 64, 16, 16), jnp.float32)     # PyTorch NCHW input

    def forward(x_nchw):
        h = jnp.transpose(x_nchw, (0, 2, 3, 1))                 # NCHW -> NHWC
        h = resnet_block_apply(h, block_a)                      # fused Pallas block
        h = resnet_block_apply(h, block_b)                      # fused Pallas block
        return jnp.transpose(h, (0, 3, 1, 2))                   # NHWC -> NCHW

    out = jax.block_until_ready(jax.jit(forward)(x))
    assert out.shape == (2, 128, 8, 8), out.shape
    assert bool(jnp.all(jnp.isfinite(out)))

    # Validate against an f32 XLA reference (bf16 MXU operands -> relaxed tolerance).
    ref = _ref_block(_ref_block(x, block_a), block_b)
    rel_err = float(jnp.max(jnp.abs(out - ref)) / (jnp.max(jnp.abs(ref)) + 1e-6))
    assert rel_err < 0.1, rel_err

    print("KERNEL_OK")
</pallas_src>

<mosaic_0001>
module attributes {stable_mosaic.version = 11 : i64} {
  func.func @_resnet_block_kernel(%arg0: i32, %arg1: memref<1x36x9x64xf32, #tpu.memory_space<vmem>>, %arg2: memref<9x64x128xbf16, #tpu.memory_space<vmem>>, %arg3: memref<1x128xf32, #tpu.memory_space<vmem>>, %arg4: memref<9x128x128xbf16, #tpu.memory_space<vmem>>, %arg5: memref<1x128xf32, #tpu.memory_space<vmem>>, %arg6: memref<64x128xbf16, #tpu.memory_space<vmem>>, %arg7: memref<1x8x8x128xf32, #tpu.memory_space<vmem>>, %arg8: memref<10x10x128xf32, #tpu.memory_space<vmem>>) attributes {dimension_semantics = [#tpu.dimension_semantics<parallel>], iteration_bounds = array<i64: 2>, scalar_prefetch = 0 : i64, scratch_operands = 1 : i64, tpu.core_type = #tpu.core_type<tc>, window_params = [{transform_indices = @transform_0, window_bounds = array<i64: 1, 36, 9, 64>}, {pipeline_mode = #tpu.pipeline_mode<synchronous>, transform_indices = @transform_1, window_bounds = array<i64: 9, 64, 128>}, {pipeline_mode = #tpu.pipeline_mode<synchronous>, transform_indices = @transform_2, window_bounds = array<i64: 1, 128>}, {pipeline_mode = #tpu.pipeline_mode<synchronous>, transform_indices = @transform_3, window_bounds = array<i64: 9, 128, 128>}, {pipeline_mode = #tpu.pipeline_mode<synchronous>, transform_indices = @transform_4, window_bounds = array<i64: 1, 128>}, {pipeline_mode = #tpu.pipeline_mode<synchronous>, transform_indices = @transform_5, window_bounds = array<i64: 64, 128>}, {transform_indices = @transform_6, window_bounds = array<i64: 1, 8, 8, 128>}]} {
    %cst = arith.constant 0.000000e+00 : f32
    %0 = vector.broadcast %cst : f32 to vector<64x128xf32>
    %c0 = arith.constant 0 : index
    %c0_0 = arith.constant 0 : index
    %c0_1 = arith.constant 0 : index
    %c0_2 = arith.constant 0 : index
    %1 = vector.load %arg1[%c0, %c0_0, %c0_1, %c0_2] : memref<1x36x9x64xf32, #tpu.memory_space<vmem>>, vector<1x8x8x64xf32>
    %2 = vector.shape_cast %1 : vector<1x8x8x64xf32> to vector<8x8x64xf32>
    %3 = vector.shape_cast %2 : vector<8x8x64xf32> to vector<64x64xf32>
    %4 = arith.truncf %3 : vector<64x64xf32> to vector<64x64xbf16>
    %c0_3 = arith.constant 0 : index
    %c0_4 = arith.constant 0 : index
    %c0_5 = arith.constant 0 : index
    %5 = vector.load %arg2[%c0_3, %c0_4, %c0_5] : memref<9x64x128xbf16, #tpu.memory_space<vmem>>, vector<1x64x128xbf16>
    %6 = vector.shape_cast %5 : vector<1x64x128xbf16> to vector<64x128xbf16>
    %cst_6 = arith.constant dense<0.000000e+00> : vector<64x128xf32>
    %7 = tpu.matmul %4, %6, %cst_6 {dimension_numbers = #tpu.dot_dimension_numbers<[1], [0], [0], [1], [0, 0, 1, 1], [], []>} : vector<64x64xbf16>, vector<64x128xbf16>, vector<64x128xf32> -> vector<64x128xf32>
    %8 = arith.addf %0, %7 : vector<64x128xf32>
    %c0_7 = arith.constant 0 : index
    %c9 = arith.constant 9 : index
    %c0_8 = arith.constant 0 : index
    %c0_9 = arith.constant 0 : index
    %9 = vector.load %arg1[%c0_7, %c9, %c0_8, %c0_9] : memref<1x36x9x64xf32, #tpu.memory_space<vmem>>, vector<1x8x8x64xf32>
    %10 = vector.shape_cast %9 : vector<1x8x8x64xf32> to vector<8x8x64xf32>
    %11 = vector.shape_cast %10 : vector<8x8x64xf32> to vector<64x64xf32>
    %12 = arith.truncf %11 : vector<64x64xf32> to vector<64x64xbf16>
    %c1 = arith.constant 1 : index
    %c0_10 = arith.constant 0 : index
    %c0_11 = arith.constant 0 : index
    %13 = vector.load %arg2[%c1, %c0_10, %c0_11] : memref<9x64x128xbf16, #tpu.memory_space<vmem>>, vector<1x64x128xbf16>
    %14 = vector.shape_cast %13 : vector<1x64x128xbf16> to vector<64x128xbf16>
    %cst_12 = arith.constant dense<0.000000e+00> : vector<64x128xf32>
    %15 = tpu.matmul %12, %14, %cst_12 {dimension_numbers = #tpu.dot_dimension_numbers<[1], [0], [0], [1], [0, 0, 1, 1], [], []>} : vector<64x64xbf16>, vector<64x128xbf16>, vector<64x128xf32> -> vector<64x128xf32>
    %16 = arith.addf %8, %15 : vector<64x128xf32>
    %c0_13 = arith.constant 0 : index
    %c0_14 = arith.constant 0 : index
    %c1_15 = arith.constant 1 : index
    %c0_16 = arith.constant 0 : index
    %17 = vector.load %arg1[%c0_13, %c0_14, %c1_15, %c0_16] : memref<1x36x9x64xf32, #tpu.memory_space<vmem>>, vector<1x8x8x64xf32>
    %18 = vector.shape_cast %17 : vector<1x8x8x64xf32> to vector<8x8x64xf32>
    %19 = vector.shape_cast %18 : vector<8x8x64xf32> to vector<64x64xf32>
    %20 = arith.truncf %19 : vector<64x64xf32> to vector<64x64xbf16>
    %c2 = arith.constant 2 : index
    %c0_17 = arith.constant 0 : index
    %c0_18 = arith.constant 0 : index
    %21 = vector.load %arg2[%c2, %c0_17, %c0_18] : memref<9x64x128xbf16, #tpu.memory_space<vmem>>, vector<1x64x128xbf16>
    %22 = vector.shape_cast %21 : vector<1x64x128xbf16> to vector<64x128xbf16>
    %cst_19 = arith.constant dense<0.000000e+00> : vector<64x128xf32>
    %23 = tpu.matmul %20, %22, %cst_19 {dimension_numbers = #tpu.dot_dimension_numbers<[1], [0], [0], [1], [0, 0, 1, 1], [], []>} : vector<64x64xbf16>, vector<64x128xbf16>, vector<64x128xf32> -> vector<64x128xf32>
    %24 = arith.addf %16, %23 : vector<64x128xf32>
    %c0_20 = arith.constant 0 : index
    %c18 = arith.constant 18 : index
    %c0_21 = arith.constant 0 : index
    %c0_22 = arith.constant 0 : index
    %25 = vector.load %arg1[%c0_20, %c18, %c0_21, %c0_22] : memref<1x36x9x64xf32, #tpu.memory_space<vmem>>, vector<1x8x8x64xf32>
    %26 = vector.shape_cast %25 : vector<1x8x8x64xf32> to vector<8x8x64xf32>
    %27 = vector.shape_cast %26 : vector<8x8x64xf32> to vector<64x64xf32>
    %28 = arith.truncf %27 : vector<64x64xf32> to vector<64x64xbf16>
    %c3 = arith.constant 3 : index
    %c0_23 = arith.constant 0 : index
    %c0_24 = arith.constant 0 : index
    %29 = vector.load %arg2[%c3, %c0_23, %c0_24] : memref<9x64x128xbf16, #tpu.memory_space<vmem>>, vector<1x64x128xbf16>
    %30 = vector.shape_cast %29 : vector<1x64x128xbf16> to vector<64x128xbf16>
    %cst_25 = arith.constant dense<0.000000e+00> : vector<64x128xf32>
    %31 = tpu.matmul %28, %30, %cst_25 {dimension_numbers = #tpu.dot_dimension_numbers<[1], [0], [0], [1], [0, 0, 1, 1], [], []>} : vector<64x64xbf16>, vector<64x128xbf16>, vector<64x128xf32> -> vector<64x128xf32>
    %32 = arith.addf %24, %31 : vector<64x128xf32>
    %c0_26 = arith.constant 0 : index
    %c27 = arith.constant 27 : index
    %c0_27 = arith.constant 0 : index
    %c0_28 = arith.constant 0 : index
    %33 = vector.load %arg1[%c0_26, %c27, %c0_27, %c0_28] : memref<1x36x9x64xf32, #tpu.memory_space<vmem>>, vector<1x8x8x64xf32>
    %34 = vector.shape_cast %33 : vector<1x8x8x64xf32> to vector<8x8x64xf32>
    %35 = vector.shape_cast %34 : vector<8x8x64xf32> to vector<64x64xf32>
    %36 = arith.truncf %35 : vector<64x64xf32> to vector<64x64xbf16>
    %c4 = arith.constant 4 : index
    %c0_29 = arith.constant 0 : index
    %c0_30 = arith.constant 0 : index
    %37 = vector.load %arg2[%c4, %c0_29, %c0_30] : memref<9x64x128xbf16, #tpu.memory_space<vmem>>, vector<1x64x128xbf16>
    %38 = vector.shape_cast %37 : vector<1x64x128xbf16> to vector<64x128xbf16>
    %cst_31 = arith.constant dense<0.000000e+00> : vector<64x128xf32>
    %39 = tpu.matmul %36, %38, %cst_31 {dimension_numbers = #tpu.dot_dimension_numbers<[1], [0], [0], [1], [0, 0, 1, 1], [], []>} : vector<64x64xbf16>, vector<64x128xbf16>, vector<64x128xf32> -> vector<64x128xf32>
    %40 = arith.addf %32, %39 : vector<64x128xf32>
    %c0_32 = arith.constant 0 : index
    %c18_33 = arith.constant 18 : index
    %c1_34 = arith.constant 1 : index
    %c0_35 = arith.constant 0 : index
    %41 = vector.load %arg1[%c0_32, %c18_33, %c1_34, %c0_35] : memref<1x36x9x64xf32, #tpu.memory_space<vmem>>, vector<1x8x8x64xf32>
    %42 = vector.shape_cast %41 : vector<1x8x8x64xf32> to vector<8x8x64xf32>
    %43 = vector.shape_cast %42 : vector<8x8x64xf32> to vector<64x64xf32>
    %44 = arith.truncf %43 : vector<64x64xf32> to vector<64x64xbf16>
    %c5 = arith.constant 5 : index
    %c0_36 = arith.constant 0 : index
    %c0_37 = arith.constant 0 : index
    %45 = vector.load %arg2[%c5, %c0_36, %c0_37] : memref<9x64x128xbf16, #tpu.memory_space<vmem>>, vector<1x64x128xbf16>
    %46 = vector.shape_cast %45 : vector<1x64x128xbf16> to vector<64x128xbf16>
    %cst_38 = arith.constant dense<0.000000e+00> : vector<64x128xf32>
    %47 = tpu.matmul %44, %46, %cst_38 {dimension_numbers = #tpu.dot_dimension_numbers<[1], [0], [0], [1], [0, 0, 1, 1], [], []>} : vector<64x64xbf16>, vector<64x128xbf16>, vector<64x128xf32> -> vector<64x128xf32>
    %48 = arith.addf %40, %47 : vector<64x128xf32>
    %c0_39 = arith.constant 0 : index
    %c1_40 = arith.constant 1 : index
    %c0_41 = arith.constant 0 : index
    %c0_42 = arith.constant 0 : index
    %49 = vector.load %arg1[%c0_39, %c1_40, %c0_41, %c0_42] : memref<1x36x9x64xf32, #tpu.memory_space<vmem>>, vector<1x8x8x64xf32>
    %50 = vector.shape_cast %49 : vector<1x8x8x64xf32> to vector<8x8x64xf32>
    %51 = vector.shape_cast %50 : vector<8x8x64xf32> to vector<64x64xf32>
    %52 = arith.truncf %51 : vector<64x64xf32> to vector<64x64xbf16>
    %c6 = arith.constant 6 : index
    %c0_43 = arith.constant 0 : index
    %c0_44 = arith.constant 0 : index
    %53 = vector.load %arg2[%c6, %c0_43, %c0_44] : memref<9x64x128xbf16, #tpu.memory_space<vmem>>, vector<1x64x128xbf16>
    %54 = vector.shape_cast %53 : vector<1x64x128xbf16> to vector<64x128xbf16>
    %cst_45 = arith.constant dense<0.000000e+00> : vector<64x128xf32>
    %55 = tpu.matmul %52, %54, %cst_45 {dimension_numbers = #tpu.dot_dimension_numbers<[1], [0], [0], [1], [0, 0, 1, 1], [], []>} : vector<64x64xbf16>, vector<64x128xbf16>, vector<64x128xf32> -> vector<64x128xf32>
    %56 = arith.addf %48, %55 : vector<64x128xf32>
    %c0_46 = arith.constant 0 : index
    %c10 = arith.constant 10 : index
    %c0_47 = arith.constant 0 : index
    %c0_48 = arith.constant 0 : index
    %57 = vector.load %arg1[%c0_46, %c10, %c0_47, %c0_48] : memref<1x36x9x64xf32, #tpu.memory_space<vmem>>, vector<1x8x8x64xf32>
    %58 = vector.shape_cast %57 : vector<1x8x8x64xf32> to vector<8x8x64xf32>
    %59 = vector.shape_cast %58 : vector<8x8x64xf32> to vector<64x64xf32>
    %60 = arith.truncf %59 : vector<64x64xf32> to vector<64x64xbf16>
    %c7 = arith.constant 7 : index
    %c0_49 = arith.constant 0 : index
    %c0_50 = arith.constant 0 : index
    %61 = vector.load %arg2[%c7, %c0_49, %c0_50] : memref<9x64x128xbf16, #tpu.memory_space<vmem>>, vector<1x64x128xbf16>
    %62 = vector.shape_cast %61 : vector<1x64x128xbf16> to vector<64x128xbf16>
    %cst_51 = arith.constant dense<0.000000e+00> : vector<64x128xf32>
    %63 = tpu.matmul %60, %62, %cst_51 {dimension_numbers = #tpu.dot_dimension_numbers<[1], [0], [0], [1], [0, 0, 1, 1], [], []>} : vector<64x64xbf16>, vector<64x128xbf16>, vector<64x128xf32> -> vector<64x128xf32>
    %64 = arith.addf %56, %63 : vector<64x128xf32>
    %c0_52 = arith.constant 0 : index
    %c1_53 = arith.constant 1 : index
    %c1_54 = arith.constant 1 : index
    %c0_55 = arith.constant 0 : index
    %65 = vector.load %arg1[%c0_52, %c1_53, %c1_54, %c0_55] : memref<1x36x9x64xf32, #tpu.memory_space<vmem>>, vector<1x8x8x64xf32>
    %66 = vector.shape_cast %65 : vector<1x8x8x64xf32> to vector<8x8x64xf32>
    %67 = vector.shape_cast %66 : vector<8x8x64xf32> to vector<64x64xf32>
    %68 = arith.truncf %67 : vector<64x64xf32> to vector<64x64xbf16>
    %c8 = arith.constant 8 : index
    %c0_56 = arith.constant 0 : index
    %c0_57 = arith.constant 0 : index
    %69 = vector.load %arg2[%c8, %c0_56, %c0_57] : memref<9x64x128xbf16, #tpu.memory_space<vmem>>, vector<1x64x128xbf16>
    %70 = vector.shape_cast %69 : vector<1x64x128xbf16> to vector<64x128xbf16>
    %cst_58 = arith.constant dense<0.000000e+00> : vector<64x128xf32>
    %71 = tpu.matmul %68, %70, %cst_58 {dimension_numbers = #tpu.dot_dimension_numbers<[1], [0], [0], [1], [0, 0, 1, 1], [], []>} : vector<64x64xbf16>, vector<64x128xbf16>, vector<64x128xf32> -> vector<64x128xf32>
    %72 = arith.addf %64, %71 : vector<64x128xf32>
    %c0_59 = arith.constant 0 : index
    %c0_60 = arith.constant 0 : index
    %73 = vector.load %arg3[%c0_59, %c0_60] : memref<1x128xf32, #tpu.memory_space<vmem>>, vector<1x128xf32>
    %74 = vector.broadcast %73 : vector<1x128xf32> to vector<64x128xf32>
    %75 = arith.addf %72, %74 : vector<64x128xf32>
    %cst_61 = arith.constant 0.000000e+00 : f32
    %76 = vector.broadcast %cst_61 : f32 to vector<64x128xf32>
    %77 = arith.maximumf %75, %76 : vector<64x128xf32>
    %cst_62 = arith.constant 0.000000e+00 : f32
    %78 = vector.broadcast %cst_62 : f32 to vector<10x10x128xf32>
    %c0_63 = arith.constant 0 : index
    %c0_64 = arith.constant 0 : index
    %c0_65 = arith.constant 0 : index
    %79 = vector.load %arg8[%c0_63, %c0_64, %c0_65] : memref<10x10x128xf32, #tpu.memory_space<vmem>>, vector<10x10x128xf32>
    tpu.vector_store %arg8[%c0_63, %c0_64, %c0_65], %78 {strides = array<i32>} : memref<10x10x128xf32, #tpu.memory_space<vmem>>, vector<10x10x128xf32>,
    %80 = vector.shape_cast %77 : vector<64x128xf32> to vector<8x8x128xf32>
    %c1_66 = arith.constant 1 : index
    %c1_67 = arith.constant 1 : index
    %c0_68 = arith.constant 0 : index
    %81 = vector.load %arg8[%c1_66, %c1_67, %c0_68] : memref<10x10x128xf32, #tpu.memory_space<vmem>>, vector<8x8x128xf32>
    tpu.vector_store %arg8[%c1_66, %c1_67, %c0_68], %80 {strides = array<i32>} : memref<10x10x128xf32, #tpu.memory_space<vmem>>, vector<8x8x128xf32>,
    %cst_69 = arith.constant 0.000000e+00 : f32
    %82 = vector.broadcast %cst_69 : f32 to vector<64x128xf32>
    %c0_70 = arith.constant 0 : index
    %c0_71 = arith.constant 0 : index
    %c0_72 = arith.constant 0 : index
    %83 = vector.load %arg8[%c0_70, %c0_71, %c0_72] : memref<10x10x128xf32, #tpu.memory_space<vmem>>, vector<8x8x128xf32>
    %84 = vector.shape_cast %83 : vector<8x8x128xf32> to vector<64x128xf32>
    %85 = arith.truncf %84 : vector<64x128xf32> to vector<64x128xbf16>
    %c0_73 = arith.constant 0 : index
    %c0_74 = arith.constant 0 : index
    %c0_75 = arith.constant 0 : index
    %86 = vector.load %arg4[%c0_73, %c0_74, %c0_75] : memref<9x128x128xbf16, #tpu.memory_space<vmem>>, vector<1x128x128xbf16>
    %87 = vector.shape_cast %86 : vector<1x128x128xbf16> to vector<128x128xbf16>
    %cst_76 = arith.constant dense<0.000000e+00> : vector<64x128xf32>
    %88 = tpu.matmul %85, %87, %cst_76 {dimension_numbers = #tpu.dot_dimension_numbers<[1], [0], [0], [1], [0, 0, 1, 1], [], []>} : vector<64x128xbf16>, vector<128x128xbf16>, vector<64x128xf32> -> vector<64x128xf32>
    %89 = arith.addf %82, %88 : vector<64x128xf32>
    %c0_77 = arith.constant 0 : index
    %c1_78 = arith.constant 1 : index
    %c0_79 = arith.constant 0 : index
    %90 = vector.load %arg8[%c0_77, %c1_78, %c0_79] : memref<10x10x128xf32, #tpu.memory_space<vmem>>, vector<8x8x128xf32>
    %91 = vector.shape_cast %90 : vector<8x8x128xf32> to vector<64x128xf32>
    %92 = arith.truncf %91 : vector<64x128xf32> to vector<64x128xbf16>
    %c1_80 = arith.constant 1 : index
    %c0_81 = arith.constant 0 : index
    %c0_82 = arith.constant 0 : index
    %93 = vector.load %arg4[%c1_80, %c0_81, %c0_82] : memref<9x128x128xbf16, #tpu.memory_space<vmem>>, vector<1x128x128xbf16>
    %94 = vector.shape_cast %93 : vector<1x128x128xbf16> to vector<128x128xbf16>
    %cst_83 = arith.constant dense<0.000000e+00> : vector<64x128xf32>
    %95 = tpu.matmul %92, %94, %cst_83 {dimension_numbers = #tpu.dot_dimension_numbers<[1], [0], [0], [1], [0, 0, 1, 1], [], []>} : vector<64x128xbf16>, vector<128x128xbf16>, vector<64x128xf32> -> vector<64x128xf32>
    %96 = arith.addf %89, %95 : vector<64x128xf32>
    %c0_84 = arith.constant 0 : index
    %c2_85 = arith.constant 2 : index
    %c0_86 = arith.constant 0 : index
    %97 = vector.load %arg8[%c0_84, %c2_85, %c0_86] : memref<10x10x128xf32, #tpu.memory_space<vmem>>, vector<8x8x128xf32>
    %98 = vector.shape_cast %97 : vector<8x8x128xf32> to vector<64x128xf32>
    %99 = arith.truncf %98 : vector<64x128xf32> to vector<64x128xbf16>
    %c2_87 = arith.constant 2 : index
    %c0_88 = arith.constant 0 : index
    %c0_89 = arith.constant 0 : index
    %100 = vector.load %arg4[%c2_87, %c0_88, %c0_89] : memref<9x128x128xbf16, #tpu.memory_space<vmem>>, vector<1x128x128xbf16>
    %101 = vector.shape_cast %100 : vector<1x128x128xbf16> to vector<128x128xbf16>
    %cst_90 = arith.constant dense<0.000000e+00> : vector<64x128xf32>
    %102 = tpu.matmul %99, %101, %cst_90 {dimension_numbers = #tpu.dot_dimension_numbers<[1], [0], [0], [1], [0, 0, 1, 1], [], []>} : vector<64x128xbf16>, vector<128x128xbf16>, vector<64x128xf32> -> vector<64x128xf32>
    %103 = arith.addf %96, %102 : vector<64x128xf32>
    %c1_91 = arith.constant 1 : index
    %c0_92 = arith.constant 0 : index
    %c0_93 = arith.constant 0 : index
    %104 = vector.load %arg8[%c1_91, %c0_92, %c0_93] : memref<10x10x128xf32, #tpu.memory_space<vmem>>, vector<8x8x128xf32>
    %105 = vector.shape_cast %104 : vector<8x8x128xf32> to vector<64x128xf32>
    %106 = arith.truncf %105 : vector<64x128xf32> to vector<64x128xbf16>
    %c3_94 = arith.constant 3 : index
    %c0_95 = arith.constant 0 : index
    %c0_96 = arith.constant 0 : index
    %107 = vector.load %arg4[%c3_94, %c0_95, %c0_96] : memref<9x128x128xbf16, #tpu.memory_space<vmem>>, vector<1x128x128xbf16>
    %108 = vector.shape_cast %107 : vector<1x128x128xbf16> to vector<128x128xbf16>
    %cst_97 = arith.constant dense<0.000000e+00> : vector<64x128xf32>
    %109 = tpu.matmul %106, %108, %cst_97 {dimension_numbers = #tpu.dot_dimension_numbers<[1], [0], [0], [1], [0, 0, 1, 1], [], []>} : vector<64x128xbf16>, vector<128x128xbf16>, vector<64x128xf32> -> vector<64x128xf32>
    %110 = arith.addf %103, %109 : vector<64x128xf32>
    %c1_98 = arith.constant 1 : index
    %c1_99 = arith.constant 1 : index
    %c0_100 = arith.constant 0 : index
    %111 = vector.load %arg8[%c1_98, %c1_99, %c0_100] : memref<10x10x128xf32, #tpu.memory_space<vmem>>, vector<8x8x128xf32>
    %112 = vector.shape_cast %111 : vector<8x8x128xf32> to vector<64x128xf32>
    %113 = arith.truncf %112 : vector<64x128xf32> to vector<64x128xbf16>
    %c4_101 = arith.constant 4 : index
    %c0_102 = arith.constant 0 : index
    %c0_103 = arith.constant 0 : index
    %114 = vector.load %arg4[%c4_101, %c0_102, %c0_103] : memref<9x128x128xbf16, #tpu.memory_space<vmem>>, vector<1x128x128xbf16>
    %115 = vector.shape_cast %114 : vector<1x128x128xbf16> to vector<128x128xbf16>
    %cst_104 = arith.constant dense<0.000000e+00> : vector<64x128xf32>
    %116 = tpu.matmul %113, %115, %cst_104 {dimension_numbers = #tpu.dot_dimension_numbers<[1], [0], [0], [1], [0, 0, 1, 1], [], []>} : vector<64x128xbf16>, vector<128x128xbf16>, vector<64x128xf32> -> vector<64x128xf32>
    %117 = arith.addf %110, %116 : vector<64x128xf32>
    %c1_105 = arith.constant 1 : index
    %c2_106 = arith.constant 2 : index
    %c0_107 = arith.constant 0 : index
    %118 = vector.load %arg8[%c1_105, %c2_106, %c0_107] : memref<10x10x128xf32, #tpu.memory_space<vmem>>, vector<8x8x128xf32>
    %119 = vector.shape_cast %118 : vector<8x8x128xf32> to vector<64x128xf32>
    %120 = arith.truncf %119 : vector<64x128xf32> to vector<64x128xbf16>
    %c5_108 = arith.constant 5 : index
    %c0_109 = arith.constant 0 : index
    %c0_110 = arith.constant 0 : index
    %121 = vector.load %arg4[%c5_108, %c0_109, %c0_110] : memref<9x128x128xbf16, #tpu.memory_space<vmem>>, vector<1x128x128xbf16>
    %122 = vector.shape_cast %121 : vector<1x128x128xbf16> to vector<128x128xbf16>
    %cst_111 = arith.constant dense<0.000000e+00> : vector<64x128xf32>
    %123 = tpu.matmul %120, %122, %cst_111 {dimension_numbers = #tpu.dot_dimension_numbers<[1], [0], [0], [1], [0, 0, 1, 1], [], []>} : vector<64x128xbf16>, vector<128x128xbf16>, vector<64x128xf32> -> vector<64x128xf32>
    %124 = arith.addf %117, %123 : vector<64x128xf32>
    %c2_112 = arith.constant 2 : index
    %c0_113 = arith.constant 0 : index
    %c0_114 = arith.constant 0 : index
    %125 = vector.load %arg8[%c2_112, %c0_113, %c0_114] : memref<10x10x128xf32, #tpu.memory_space<vmem>>, vector<8x8x128xf32>
    %126 = vector.shape_cast %125 : vector<8x8x128xf32> to vector<64x128xf32>
    %127 = arith.truncf %126 : vector<64x128xf32> to vector<64x128xbf16>
    %c6_115 = arith.constant 6 : index
    %c0_116 = arith.constant 0 : index
    %c0_117 = arith.constant 0 : index
    %128 = vector.load %arg4[%c6_115, %c0_116, %c0_117] : memref<9x128x128xbf16, #tpu.memory_space<vmem>>, vector<1x128x128xbf16>
    %129 = vector.shape_cast %128 : vector<1x128x128xbf16> to vector<128x128xbf16>
    %cst_118 = arith.constant dense<0.000000e+00> : vector<64x128xf32>
    %130 = tpu.matmul %127, %129, %cst_118 {dimension_numbers = #tpu.dot_dimension_numbers<[1], [0], [0], [1], [0, 0, 1, 1], [], []>} : vector<64x128xbf16>, vector<128x128xbf16>, vector<64x128xf32> -> vector<64x128xf32>
    %131 = arith.addf %124, %130 : vector<64x128xf32>
    %c2_119 = arith.constant 2 : index
    %c1_120 = arith.constant 1 : index
    %c0_121 = arith.constant 0 : index
    %132 = vector.load %arg8[%c2_119, %c1_120, %c0_121] : memref<10x10x128xf32, #tpu.memory_space<vmem>>, vector<8x8x128xf32>
    %133 = vector.shape_cast %132 : vector<8x8x128xf32> to vector<64x128xf32>
    %134 = arith.truncf %133 : vector<64x128xf32> to vector<64x128xbf16>
    %c7_122 = arith.constant 7 : index
    %c0_123 = arith.constant 0 : index
    %c0_124 = arith.constant 0 : index
    %135 = vector.load %arg4[%c7_122, %c0_123, %c0_124] : memref<9x128x128xbf16, #tpu.memory_space<vmem>>, vector<1x128x128xbf16>
    %136 = vector.shape_cast %135 : vector<1x128x128xbf16> to vector<128x128xbf16>
    %cst_125 = arith.constant dense<0.000000e+00> : vector<64x128xf32>
    %137 = tpu.matmul %134, %136, %cst_125 {dimension_numbers = #tpu.dot_dimension_numbers<[1], [0], [0], [1], [0, 0, 1, 1], [], []>} : vector<64x128xbf16>, vector<128x128xbf16>, vector<64x128xf32> -> vector<64x128xf32>
    %138 = arith.addf %131, %137 : vector<64x128xf32>
    %c2_126 = arith.constant 2 : index
    %c2_127 = arith.constant 2 : index
    %c0_128 = arith.constant 0 : index
    %139 = vector.load %arg8[%c2_126, %c2_127, %c0_128] : memref<10x10x128xf32, #tpu.memory_space<vmem>>, vector<8x8x128xf32>
    %140 = vector.shape_cast %139 : vector<8x8x128xf32> to vector<64x128xf32>
    %141 = arith.truncf %140 : vector<64x128xf32> to vector<64x128xbf16>
    %c8_129 = arith.constant 8 : index
    %c0_130 = arith.constant 0 : index
    %c0_131 = arith.constant 0 : index
    %142 = vector.load %arg4[%c8_129, %c0_130, %c0_131] : memref<9x128x128xbf16, #tpu.memory_space<vmem>>, vector<1x128x128xbf16>
    %143 = vector.shape_cast %142 : vector<1x128x128xbf16> to vector<128x128xbf16>
    %cst_132 = arith.constant dense<0.000000e+00> : vector<64x128xf32>
    %144 = tpu.matmul %141, %143, %cst_132 {dimension_numbers = #tpu.dot_dimension_numbers<[1], [0], [0], [1], [0, 0, 1, 1], [], []>} : vector<64x128xbf16>, vector<128x128xbf16>, vector<64x128xf32> -> vector<64x128xf32>
    %145 = arith.addf %138, %144 : vector<64x128xf32>
    %c0_133 = arith.constant 0 : index
    %c27_134 = arith.constant 27 : index
    %c0_135 = arith.constant 0 : index
    %c0_136 = arith.constant 0 : index
    %146 = vector.load %arg1[%c0_133, %c27_134, %c0_135, %c0_136] : memref<1x36x9x64xf32, #tpu.memory_space<vmem>>, vector<1x8x8x64xf32>
    %147 = vector.shape_cast %146 : vector<1x8x8x64xf32> to vector<8x8x64xf32>
    %148 = vector.shape_cast %147 : vector<8x8x64xf32> to vector<64x64xf32>
    %149 = arith.truncf %148 : vector<64x64xf32> to vector<64x64xbf16>
    %c0_137 = arith.constant 0 : index
    %c0_138 = arith.constant 0 : index
    %150 = vector.load %arg6[%c0_137, %c0_138] : memref<64x128xbf16, #tpu.memory_space<vmem>>, vector<64x128xbf16>
    %cst_139 = arith.constant dense<0.000000e+00> : vector<64x128xf32>
    %151 = tpu.matmul %149, %150, %cst_139 {dimension_numbers = #tpu.dot_dimension_numbers<[1], [0], [0], [1], [0, 0, 1, 1], [], []>} : vector<64x64xbf16>, vector<64x128xbf16>, vector<64x128xf32> -> vector<64x128xf32>
    %c0_140 = arith.constant 0 : index
    %c0_141 = arith.constant 0 : index
    %152 = vector.load %arg5[%c0_140, %c0_141] : memref<1x128xf32, #tpu.memory_space<vmem>>, vector<1x128xf32>
    %153 = vector.broadcast %152 : vector<1x128xf32> to vector<64x128xf32>
    %154 = arith.addf %145, %153 : vector<64x128xf32>
    %155 = arith.addf %154, %151 : vector<64x128xf32>
    %cst_142 = arith.constant 0.000000e+00 : f32
    %156 = vector.broadcast %cst_142 : f32 to vector<64x128xf32>
    %157 = arith.maximumf %155, %156 : vector<64x128xf32>
    %158 = vector.shape_cast %157 : vector<64x128xf32> to vector<8x8x128xf32>
    %c0_143 = arith.constant 0 : index
    %c0_144 = arith.constant 0 : index
    %c0_145 = arith.constant 0 : index
    %c0_146 = arith.constant 0 : index
    %159 = vector.load %arg7[%c0_143, %c0_144, %c0_145, %c0_146] : memref<1x8x8x128xf32, #tpu.memory_space<vmem>>, vector<1x8x8x128xf32>
    %160 = vector.shape_cast %159 : vector<1x8x8x128xf32> to vector<8x8x128xf32>
    %161 = vector.shape_cast %158 : vector<8x8x128xf32> to vector<1x8x8x128xf32>
    tpu.vector_store %arg7[%c0_143, %c0_144, %c0_145, %c0_146], %161 {strides = array<i32>} : memref<1x8x8x128xf32, #tpu.memory_space<vmem>>, vector<1x8x8x128xf32>,
    return
  }
  func.func @transform_0(%arg0: i32) -> (i32, i32, i32, i32) {
    %c0_i32 = arith.constant 0 : i32
    %c0_i32_0 = arith.constant 0 : i32
    %c0_i32_1 = arith.constant 0 : i32
    %c0_i32_2 = arith.constant 0 : i32
    return %arg0, %c0_i32, %c0_i32_0, %c0_i32_1 : i32, i32, i32, i32
  }
  func.func @transform_1(%arg0: i32) -> (i32, i32, i32) {
    %c0_i32 = arith.constant 0 : i32
    %c0_i32_0 = arith.constant 0 : i32
    %c0_i32_1 = arith.constant 0 : i32
    %c0_i32_2 = arith.constant 0 : i32
    return %c0_i32, %c0_i32_0, %c0_i32_1 : i32, i32, i32
  }
  func.func @transform_2(%arg0: i32) -> (i32, i32) {
    %c0_i32 = arith.constant 0 : i32
    %c0_i32_0 = arith.constant 0 : i32
    %c0_i32_1 = arith.constant 0 : i32
    return %c0_i32, %c0_i32_0 : i32, i32
  }
  func.func @transform_3(%arg0: i32) -> (i32, i32, i32) {
    %c0_i32 = arith.constant 0 : i32
    %c0_i32_0 = arith.constant 0 : i32
    %c0_i32_1 = arith.constant 0 : i32
    %c0_i32_2 = arith.constant 0 : i32
    return %c0_i32, %c0_i32_0, %c0_i32_1 : i32, i32, i32
  }
  func.func @transform_4(%arg0: i32) -> (i32, i32) {
    %c0_i32 = arith.constant 0 : i32
    %c0_i32_0 = arith.constant 0 : i32
    %c0_i32_1 = arith.constant 0 : i32
    return %c0_i32, %c0_i32_0 : i32, i32
  }
  func.func @transform_5(%arg0: i32) -> (i32, i32) {
    %c0_i32 = arith.constant 0 : i32
    %c0_i32_0 = arith.constant 0 : i32
    %c0_i32_1 = arith.constant 0 : i32
    return %c0_i32, %c0_i32_0 : i32, i32
  }
  func.func @transform_6(%arg0: i32) -> (i32, i32, i32, i32) {
    %c0_i32 = arith.constant 0 : i32
    %c0_i32_0 = arith.constant 0 : i32
    %c0_i32_1 = arith.constant 0 : i32
    %c0_i32_2 = arith.constant 0 : i32
    return %arg0, %c0_i32, %c0_i32_0, %c0_i32_1 : i32, i32, i32, i32
  }
}

module attributes {stable_mosaic.version = 11 : i64} {
  func.func @_resnet_block_kernel(%arg0: i32, %arg1: memref<1x10x10x128xf32, #tpu.memory_space<vmem>>, %arg2: memref<9x128x128xbf16, #tpu.memory_space<vmem>>, %arg3: memref<1x128xf32, #tpu.memory_space<vmem>>, %arg4: memref<9x128x128xbf16, #tpu.memory_space<vmem>>, %arg5: memref<1x128xf32, #tpu.memory_space<vmem>>, %arg6: memref<1x8x8x128xf32, #tpu.memory_space<vmem>>, %arg7: memref<10x10x128xf32, #tpu.memory_space<vmem>>) attributes {dimension_semantics = [#tpu.dimension_semantics<parallel>], iteration_bounds = array<i64: 2>, scalar_prefetch = 0 : i64, scratch_operands = 1 : i64, tpu.core_type = #tpu.core_type<tc>, window_params = [{transform_indices = @transform_0, window_bounds = array<i64: 1, 10, 10, 128>}, {pipeline_mode = #tpu.pipeline_mode<synchronous>, transform_indices = @transform_1, window_bounds = array<i64: 9, 128, 128>}, {pipeline_mode = #tpu.pipeline_mode<synchronous>, transform_indices = @transform_2, window_bounds = array<i64: 1, 128>}, {pipeline_mode = #tpu.pipeline_mode<synchronous>, transform_indices = @transform_3, window_bounds = array<i64: 9, 128, 128>}, {pipeline_mode = #tpu.pipeline_mode<synchronous>, transform_indices = @transform_4, window_bounds = array<i64: 1, 128>}, {transform_indices = @transform_5, window_bounds = array<i64: 1, 8, 8, 128>}]} {
    %cst = arith.constant 0.000000e+00 : f32
    %0 = vector.broadcast %cst : f32 to vector<64x128xf32>
    %c0 = arith.constant 0 : index
    %c0_0 = arith.constant 0 : index
    %c0_1 = arith.constant 0 : index
    %c0_2 = arith.constant 0 : index
    %1 = vector.load %arg1[%c0, %c0_0, %c0_1, %c0_2] : memref<1x10x10x128xf32, #tpu.memory_space<vmem>>, vector<1x8x8x128xf32>
    %2 = vector.shape_cast %1 : vector<1x8x8x128xf32> to vector<8x8x128xf32>
    %3 = vector.shape_cast %2 : vector<8x8x128xf32> to vector<64x128xf32>
    %4 = arith.truncf %3 : vector<64x128xf32> to vector<64x128xbf16>
    %c0_3 = arith.constant 0 : index
    %c0_4 = arith.constant 0 : index
    %c0_5 = arith.constant 0 : index
    %5 = vector.load %arg2[%c0_3, %c0_4, %c0_5] : memref<9x128x128xbf16, #tpu.memory_space<vmem>>, vector<1x128x128xbf16>
    %6 = vector.shape_cast %5 : vector<1x128x128xbf16> to vector<128x128xbf16>
    %cst_6 = arith.constant dense<0.000000e+00> : vector<64x128xf32>
    %7 = tpu.matmul %4, %6, %cst_6 {dimension_numbers = #tpu.dot_dimension_numbers<[1], [0], [0], [1], [0, 0, 1, 1], [], []>} : vector<64x128xbf16>, vector<128x128xbf16>, vector<64x128xf32> -> vector<64x128xf32>
    %8 = arith.addf %0, %7 : vector<64x128xf32>
    %c0_7 = arith.constant 0 : index
    %c0_8 = arith.constant 0 : index
    %c1 = arith.constant 1 : index
    %c0_9 = arith.constant 0 : index
    %9 = vector.load %arg1[%c0_7, %c0_8, %c1, %c0_9] : memref<1x10x10x128xf32, #tpu.memory_space<vmem>>, vector<1x8x8x128xf32>
    %10 = vector.shape_cast %9 : vector<1x8x8x128xf32> to vector<8x8x128xf32>
    %11 = vector.shape_cast %10 : vector<8x8x128xf32> to vector<64x128xf32>
    %12 = arith.truncf %11 : vector<64x128xf32> to vector<64x128xbf16>
    %c1_10 = arith.constant 1 : index
    %c0_11 = arith.constant 0 : index
    %c0_12 = arith.constant 0 : index
    %13 = vector.load %arg2[%c1_10, %c0_11, %c0_12] : memref<9x128x128xbf16, #tpu.memory_space<vmem>>, vector<1x128x128xbf16>
    %14 = vector.shape_cast %13 : vector<1x128x128xbf16> to vector<128x128xbf16>
    %cst_13 = arith.constant dense<0.000000e+00> : vector<64x128xf32>
    %15 = tpu.matmul %12, %14, %cst_13 {dimension_numbers = #tpu.dot_dimension_numbers<[1], [0], [0], [1], [0, 0, 1, 1], [], []>} : vector<64x128xbf16>, vector<128x128xbf16>, vector<64x128xf32> -> vector<64x128xf32>
    %16 = arith.addf %8, %15 : vector<64x128xf32>
    %c0_14 = arith.constant 0 : index
    %c0_15 = arith.constant 0 : index
    %c2 = arith.constant 2 : index
    %c0_16 = arith.constant 0 : index
    %17 = vector.load %arg1[%c0_14, %c0_15, %c2, %c0_16] : memref<1x10x10x128xf32, #tpu.memory_space<vmem>>, vector<1x8x8x128xf32>
    %18 = vector.shape_cast %17 : vector<1x8x8x128xf32> to vector<8x8x128xf32>
    %19 = vector.shape_cast %18 : vector<8x8x128xf32> to vector<64x128xf32>
    %20 = arith.truncf %19 : vector<64x128xf32> to vector<64x128xbf16>
    %c2_17 = arith.constant 2 : index
    %c0_18 = arith.constant 0 : index
    %c0_19 = arith.constant 0 : index
    %21 = vector.load %arg2[%c2_17, %c0_18, %c0_19] : memref<9x128x128xbf16, #tpu.memory_space<vmem>>, vector<1x128x128xbf16>
    %22 = vector.shape_cast %21 : vector<1x128x128xbf16> to vector<128x128xbf16>
    %cst_20 = arith.constant dense<0.000000e+00> : vector<64x128xf32>
    %23 = tpu.matmul %20, %22, %cst_20 {dimension_numbers = #tpu.dot_dimension_numbers<[1], [0], [0], [1], [0, 0, 1, 1], [], []>} : vector<64x128xbf16>, vector<128x128xbf16>, vector<64x128xf32> -> vector<64x128xf32>
    %24 = arith.addf %16, %23 : vector<64x128xf32>
    %c0_21 = arith.constant 0 : index
    %c1_22 = arith.constant 1 : index
    %c0_23 = arith.constant 0 : index
    %c0_24 = arith.constant 0 : index
    %25 = vector.load %arg1[%c0_21, %c1_22, %c0_23, %c0_24] : memref<1x10x10x128xf32, #tpu.memory_space<vmem>>, vector<1x8x8x128xf32>
    %26 = vector.shape_cast %25 : vector<1x8x8x128xf32> to vector<8x8x128xf32>
    %27 = vector.shape_cast %26 : vector<8x8x128xf32> to vector<64x128xf32>
    %28 = arith.truncf %27 : vector<64x128xf32> to vector<64x128xbf16>
    %c3 = arith.constant 3 : index
    %c0_25 = arith.constant 0 : index
    %c0_26 = arith.constant 0 : index
    %29 = vector.load %arg2[%c3, %c0_25, %c0_26] : memref<9x128x128xbf16, #tpu.memory_space<vmem>>, vector<1x128x128xbf16>
    %30 = vector.shape_cast %29 : vector<1x128x128xbf16> to vector<128x128xbf16>
    %cst_27 = arith.constant dense<0.000000e+00> : vector<64x128xf32>
    %31 = tpu.matmul %28, %30, %cst_27 {dimension_numbers = #tpu.dot_dimension_numbers<[1], [0], [0], [1], [0, 0, 1, 1], [], []>} : vector<64x128xbf16>, vector<128x128xbf16>, vector<64x128xf32> -> vector<64x128xf32>
    %32 = arith.addf %24, %31 : vector<64x128xf32>
    %c0_28 = arith.constant 0 : index
    %c1_29 = arith.constant 1 : index
    %c1_30 = arith.constant 1 : index
    %c0_31 = arith.constant 0 : index
    %33 = vector.load %arg1[%c0_28, %c1_29, %c1_30, %c0_31] : memref<1x10x10x128xf32, #tpu.memory_space<vmem>>, vector<1x8x8x128xf32>
    %34 = vector.shape_cast %33 : vector<1x8x8x128xf32> to vector<8x8x128xf32>
    %35 = vector.shape_cast %34 : vector<8x8x128xf32> to vector<64x128xf32>
    %36 = arith.truncf %35 : vector<64x128xf32> to vector<64x128xbf16>
    %c4 = arith.constant 4 : index
    %c0_32 = arith.constant 0 : index
    %c0_33 = arith.constant 0 : index
    %37 = vector.load %arg2[%c4, %c0_32, %c0_33] : memref<9x128x128xbf16, #tpu.memory_space<vmem>>, vector<1x128x128xbf16>
    %38 = vector.shape_cast %37 : vector<1x128x128xbf16> to vector<128x128xbf16>
    %cst_34 = arith.constant dense<0.000000e+00> : vector<64x128xf32>
    %39 = tpu.matmul %36, %38, %cst_34 {dimension_numbers = #tpu.dot_dimension_numbers<[1], [0], [0], [1], [0, 0, 1, 1], [], []>} : vector<64x128xbf16>, vector<128x128xbf16>, vector<64x128xf32> -> vector<64x128xf32>
    %40 = arith.addf %32, %39 : vector<64x128xf32>
    %c0_35 = arith.constant 0 : index
    %c1_36 = arith.constant 1 : index
    %c2_37 = arith.constant 2 : index
    %c0_38 = arith.constant 0 : index
    %41 = vector.load %arg1[%c0_35, %c1_36, %c2_37, %c0_38] : memref<1x10x10x128xf32, #tpu.memory_space<vmem>>, vector<1x8x8x128xf32>
    %42 = vector.shape_cast %41 : vector<1x8x8x128xf32> to vector<8x8x128xf32>
    %43 = vector.shape_cast %42 : vector<8x8x128xf32> to vector<64x128xf32>
    %44 = arith.truncf %43 : vector<64x128xf32> to vector<64x128xbf16>
    %c5 = arith.constant 5 : index
    %c0_39 = arith.constant 0 : index
    %c0_40 = arith.constant 0 : index
    %45 = vector.load %arg2[%c5, %c0_39, %c0_40] : memref<9x128x128xbf16, #tpu.memory_space<vmem>>, vector<1x128x128xbf16>
    %46 = vector.shape_cast %45 : vector<1x128x128xbf16> to vector<128x128xbf16>
    %cst_41 = arith.constant dense<0.000000e+00> : vector<64x128xf32>
    %47 = tpu.matmul %44, %46, %cst_41 {dimension_numbers = #tpu.dot_dimension_numbers<[1], [0], [0], [1], [0, 0, 1, 1], [], []>} : vector<64x128xbf16>, vector<128x128xbf16>, vector<64x128xf32> -> vector<64x128xf32>
    %48 = arith.addf %40, %47 : vector<64x128xf32>
    %c0_42 = arith.constant 0 : index
    %c2_43 = arith.constant 2 : index
    %c0_44 = arith.constant 0 : index
    %c0_45 = arith.constant 0 : index
    %49 = vector.load %arg1[%c0_42, %c2_43, %c0_44, %c0_45] : memref<1x10x10x128xf32, #tpu.memory_space<vmem>>, vector<1x8x8x128xf32>
    %50 = vector.shape_cast %49 : vector<1x8x8x128xf32> to vector<8x8x128xf32>
    %51 = vector.shape_cast %50 : vector<8x8x128xf32> to vector<64x128xf32>
    %52 = arith.truncf %51 : vector<64x128xf32> to vector<64x128xbf16>
    %c6 = arith.constant 6 : index
    %c0_46 = arith.constant 0 : index
    %c0_47 = arith.constant 0 : index
    %53 = vector.load %arg2[%c6, %c0_46, %c0_47] : memref<9x128x128xbf16, #tpu.memory_space<vmem>>, vector<1x128x128xbf16>
    %54 = vector.shape_cast %53 : vector<1x128x128xbf16> to vector<128x128xbf16>
    %cst_48 = arith.constant dense<0.000000e+00> : vector<64x128xf32>
    %55 = tpu.matmul %52, %54, %cst_48 {dimension_numbers = #tpu.dot_dimension_numbers<[1], [0], [0], [1], [0, 0, 1, 1], [], []>} : vector<64x128xbf16>, vector<128x128xbf16>, vector<64x128xf32> -> vector<64x128xf32>
    %56 = arith.addf %48, %55 : vector<64x128xf32>
    %c0_49 = arith.constant 0 : index
    %c2_50 = arith.constant 2 : index
    %c1_51 = arith.constant 1 : index
    %c0_52 = arith.constant 0 : index
    %57 = vector.load %arg1[%c0_49, %c2_50, %c1_51, %c0_52] : memref<1x10x10x128xf32, #tpu.memory_space<vmem>>, vector<1x8x8x128xf32>
    %58 = vector.shape_cast %57 : vector<1x8x8x128xf32> to vector<8x8x128xf32>
    %59 = vector.shape_cast %58 : vector<8x8x128xf32> to vector<64x128xf32>
    %60 = arith.truncf %59 : vector<64x128xf32> to vector<64x128xbf16>
    %c7 = arith.constant 7 : index
    %c0_53 = arith.constant 0 : index
    %c0_54 = arith.constant 0 : index
    %61 = vector.load %arg2[%c7, %c0_53, %c0_54] : memref<9x128x128xbf16, #tpu.memory_space<vmem>>, vector<1x128x128xbf16>
    %62 = vector.shape_cast %61 : vector<1x128x128xbf16> to vector<128x128xbf16>
    %cst_55 = arith.constant dense<0.000000e+00> : vector<64x128xf32>
    %63 = tpu.matmul %60, %62, %cst_55 {dimension_numbers = #tpu.dot_dimension_numbers<[1], [0], [0], [1], [0, 0, 1, 1], [], []>} : vector<64x128xbf16>, vector<128x128xbf16>, vector<64x128xf32> -> vector<64x128xf32>
    %64 = arith.addf %56, %63 : vector<64x128xf32>
    %c0_56 = arith.constant 0 : index
    %c2_57 = arith.constant 2 : index
    %c2_58 = arith.constant 2 : index
    %c0_59 = arith.constant 0 : index
    %65 = vector.load %arg1[%c0_56, %c2_57, %c2_58, %c0_59] : memref<1x10x10x128xf32, #tpu.memory_space<vmem>>, vector<1x8x8x128xf32>
    %66 = vector.shape_cast %65 : vector<1x8x8x128xf32> to vector<8x8x128xf32>
    %67 = vector.shape_cast %66 : vector<8x8x128xf32> to vector<64x128xf32>
    %68 = arith.truncf %67 : vector<64x128xf32> to vector<64x128xbf16>
    %c8 = arith.constant 8 : index
    %c0_60 = arith.constant 0 : index
    %c0_61 = arith.constant 0 : index
    %69 = vector.load %arg2[%c8, %c0_60, %c0_61] : memref<9x128x128xbf16, #tpu.memory_space<vmem>>, vector<1x128x128xbf16>
    %70 = vector.shape_cast %69 : vector<1x128x128xbf16> to vector<128x128xbf16>
    %cst_62 = arith.constant dense<0.000000e+00> : vector<64x128xf32>
    %71 = tpu.matmul %68, %70, %cst_62 {dimension_numbers = #tpu.dot_dimension_numbers<[1], [0], [0], [1], [0, 0, 1, 1], [], []>} : vector<64x128xbf16>, vector<128x128xbf16>, vector<64x128xf32> -> vector<64x128xf32>
    %72 = arith.addf %64, %71 : vector<64x128xf32>
    %c0_63 = arith.constant 0 : index
    %c0_64 = arith.constant 0 : index
    %73 = vector.load %arg3[%c0_63, %c0_64] : memref<1x128xf32, #tpu.memory_space<vmem>>, vector<1x128xf32>
    %74 = vector.broadcast %73 : vector<1x128xf32> to vector<64x128xf32>
    %75 = arith.addf %72, %74 : vector<64x128xf32>
    %cst_65 = arith.constant 0.000000e+00 : f32
    %76 = vector.broadcast %cst_65 : f32 to vector<64x128xf32>
    %77 = arith.maximumf %75, %76 : vector<64x128xf32>
    %cst_66 = arith.constant 0.000000e+00 : f32
    %78 = vector.broadcast %cst_66 : f32 to vector<10x10x128xf32>
    %c0_67 = arith.constant 0 : index
    %c0_68 = arith.constant 0 : index
    %c0_69 = arith.constant 0 : index
    %79 = vector.load %arg7[%c0_67, %c0_68, %c0_69] : memref<10x10x128xf32, #tpu.memory_space<vmem>>, vector<10x10x128xf32>
    tpu.vector_store %arg7[%c0_67, %c0_68, %c0_69], %78 {strides = array<i32>} : memref<10x10x128xf32, #tpu.memory_space<vmem>>, vector<10x10x128xf32>,
    %80 = vector.shape_cast %77 : vector<64x128xf32> to vector<8x8x128xf32>
    %c1_70 = arith.constant 1 : index
    %c1_71 = arith.constant 1 : index
    %c0_72 = arith.constant 0 : index
    %81 = vector.load %arg7[%c1_70, %c1_71, %c0_72] : memref<10x10x128xf32, #tpu.memory_space<vmem>>, vector<8x8x128xf32>
    tpu.vector_store %arg7[%c1_70, %c1_71, %c0_72], %80 {strides = array<i32>} : memref<10x10x128xf32, #tpu.memory_space<vmem>>, vector<8x8x128xf32>,
    %cst_73 = arith.constant 0.000000e+00 : f32
    %82 = vector.broadcast %cst_73 : f32 to vector<64x128xf32>
    %c0_74 = arith.constant 0 : index
    %c0_75 = arith.constant 0 : index
    %c0_76 = arith.constant 0 : index
    %83 = vector.load %arg7[%c0_74, %c0_75, %c0_76] : memref<10x10x128xf32, #tpu.memory_space<vmem>>, vector<8x8x128xf32>
    %84 = vector.shape_cast %83 : vector<8x8x128xf32> to vector<64x128xf32>
    %85 = arith.truncf %84 : vector<64x128xf32> to vector<64x128xbf16>
    %c0_77 = arith.constant 0 : index
    %c0_78 = arith.constant 0 : index
    %c0_79 = arith.constant 0 : index
    %86 = vector.load %arg4[%c0_77, %c0_78, %c0_79] : memref<9x128x128xbf16, #tpu.memory_space<vmem>>, vector<1x128x128xbf16>
    %87 = vector.shape_cast %86 : vector<1x128x128xbf16> to vector<128x128xbf16>
    %cst_80 = arith.constant dense<0.000000e+00> : vector<64x128xf32>
    %88 = tpu.matmul %85, %87, %cst_80 {dimension_numbers = #tpu.dot_dimension_numbers<[1], [0], [0], [1], [0, 0, 1, 1], [], []>} : vector<64x128xbf16>, vector<128x128xbf16>, vector<64x128xf32> -> vector<64x128xf32>
    %89 = arith.addf %82, %88 : vector<64x128xf32>
    %c0_81 = arith.constant 0 : index
    %c1_82 = arith.constant 1 : index
    %c0_83 = arith.constant 0 : index
    %90 = vector.load %arg7[%c0_81, %c1_82, %c0_83] : memref<10x10x128xf32, #tpu.memory_space<vmem>>, vector<8x8x128xf32>
    %91 = vector.shape_cast %90 : vector<8x8x128xf32> to vector<64x128xf32>
    %92 = arith.truncf %91 : vector<64x128xf32> to vector<64x128xbf16>
    %c1_84 = arith.constant 1 : index
    %c0_85 = arith.constant 0 : index
    %c0_86 = arith.constant 0 : index
    %93 = vector.load %arg4[%c1_84, %c0_85, %c0_86] : memref<9x128x128xbf16, #tpu.memory_space<vmem>>, vector<1x128x128xbf16>
    %94 = vector.shape_cast %93 : vector<1x128x128xbf16> to vector<128x128xbf16>
    %cst_87 = arith.constant dense<0.000000e+00> : vector<64x128xf32>
    %95 = tpu.matmul %92, %94, %cst_87 {dimension_numbers = #tpu.dot_dimension_numbers<[1], [0], [0], [1], [0, 0, 1, 1], [], []>} : vector<64x128xbf16>, vector<128x128xbf16>, vector<64x128xf32> -> vector<64x128xf32>
    %96 = arith.addf %89, %95 : vector<64x128xf32>
    %c0_88 = arith.constant 0 : index
    %c2_89 = arith.constant 2 : index
    %c0_90 = arith.constant 0 : index
    %97 = vector.load %arg7[%c0_88, %c2_89, %c0_90] : memref<10x10x128xf32, #tpu.memory_space<vmem>>, vector<8x8x128xf32>
    %98 = vector.shape_cast %97 : vector<8x8x128xf32> to vector<64x128xf32>
    %99 = arith.truncf %98 : vector<64x128xf32> to vector<64x128xbf16>
    %c2_91 = arith.constant 2 : index
    %c0_92 = arith.constant 0 : index
    %c0_93 = arith.constant 0 : index
    %100 = vector.load %arg4[%c2_91, %c0_92, %c0_93] : memref<9x128x128xbf16, #tpu.memory_space<vmem>>, vector<1x128x128xbf16>
    %101 = vector.shape_cast %100 : vector<1x128x128xbf16> to vector<128x128xbf16>
    %cst_94 = arith.constant dense<0.000000e+00> : vector<64x128xf32>
    %102 = tpu.matmul %99, %101, %cst_94 {dimension_numbers = #tpu.dot_dimension_numbers<[1], [0], [0], [1], [0, 0, 1, 1], [], []>} : vector<64x128xbf16>, vector<128x128xbf16>, vector<64x128xf32> -> vector<64x128xf32>
    %103 = arith.addf %96, %102 : vector<64x128xf32>
    %c1_95 = arith.constant 1 : index
    %c0_96 = arith.constant 0 : index
    %c0_97 = arith.constant 0 : index
    %104 = vector.load %arg7[%c1_95, %c0_96, %c0_97] : memref<10x10x128xf32, #tpu.memory_space<vmem>>, vector<8x8x128xf32>
    %105 = vector.shape_cast %104 : vector<8x8x128xf32> to vector<64x128xf32>
    %106 = arith.truncf %105 : vector<64x128xf32> to vector<64x128xbf16>
    %c3_98 = arith.constant 3 : index
    %c0_99 = arith.constant 0 : index
    %c0_100 = arith.constant 0 : index
    %107 = vector.load %arg4[%c3_98, %c0_99, %c0_100] : memref<9x128x128xbf16, #tpu.memory_space<vmem>>, vector<1x128x128xbf16>
    %108 = vector.shape_cast %107 : vector<1x128x128xbf16> to vector<128x128xbf16>
    %cst_101 = arith.constant dense<0.000000e+00> : vector<64x128xf32>
    %109 = tpu.matmul %106, %108, %cst_101 {dimension_numbers = #tpu.dot_dimension_numbers<[1], [0], [0], [1], [0, 0, 1, 1], [], []>} : vector<64x128xbf16>, vector<128x128xbf16>, vector<64x128xf32> -> vector<64x128xf32>
    %110 = arith.addf %103, %109 : vector<64x128xf32>
    %c1_102 = arith.constant 1 : index
    %c1_103 = arith.constant 1 : index
    %c0_104 = arith.constant 0 : index
    %111 = vector.load %arg7[%c1_102, %c1_103, %c0_104] : memref<10x10x128xf32, #tpu.memory_space<vmem>>, vector<8x8x128xf32>
    %112 = vector.shape_cast %111 : vector<8x8x128xf32> to vector<64x128xf32>
    %113 = arith.truncf %112 : vector<64x128xf32> to vector<64x128xbf16>
    %c4_105 = arith.constant 4 : index
    %c0_106 = arith.constant 0 : index
    %c0_107 = arith.constant 0 : index
    %114 = vector.load %arg4[%c4_105, %c0_106, %c0_107] : memref<9x128x128xbf16, #tpu.memory_space<vmem>>, vector<1x128x128xbf16>
    %115 = vector.shape_cast %114 : vector<1x128x128xbf16> to vector<128x128xbf16>
    %cst_108 = arith.constant dense<0.000000e+00> : vector<64x128xf32>
    %116 = tpu.matmul %113, %115, %cst_108 {dimension_numbers = #tpu.dot_dimension_numbers<[1], [0], [0], [1], [0, 0, 1, 1], [], []>} : vector<64x128xbf16>, vector<128x128xbf16>, vector<64x128xf32> -> vector<64x128xf32>
    %117 = arith.addf %110, %116 : vector<64x128xf32>
    %c1_109 = arith.constant 1 : index
    %c2_110 = arith.constant 2 : index
    %c0_111 = arith.constant 0 : index
    %118 = vector.load %arg7[%c1_109, %c2_110, %c0_111] : memref<10x10x128xf32, #tpu.memory_space<vmem>>, vector<8x8x128xf32>
    %119 = vector.shape_cast %118 : vector<8x8x128xf32> to vector<64x128xf32>
    %120 = arith.truncf %119 : vector<64x128xf32> to vector<64x128xbf16>
    %c5_112 = arith.constant 5 : index
    %c0_113 = arith.constant 0 : index
    %c0_114 = arith.constant 0 : index
    %121 = vector.load %arg4[%c5_112, %c0_113, %c0_114] : memref<9x128x128xbf16, #tpu.memory_space<vmem>>, vector<1x128x128xbf16>
    %122 = vector.shape_cast %121 : vector<1x128x128xbf16> to vector<128x128xbf16>
    %cst_115 = arith.constant dense<0.000000e+00> : vector<64x128xf32>
    %123 = tpu.matmul %120, %122, %cst_115 {dimension_numbers = #tpu.dot_dimension_numbers<[1], [0], [0], [1], [0, 0, 1, 1], [], []>} : vector<64x128xbf16>, vector<128x128xbf16>, vector<64x128xf32> -> vector<64x128xf32>
    %124 = arith.addf %117, %123 : vector<64x128xf32>
    %c2_116 = arith.constant 2 : index
    %c0_117 = arith.constant 0 : index
    %c0_118 = arith.constant 0 : index
    %125 = vector.load %arg7[%c2_116, %c0_117, %c0_118] : memref<10x10x128xf32, #tpu.memory_space<vmem>>, vector<8x8x128xf32>
    %126 = vector.shape_cast %125 : vector<8x8x128xf32> to vector<64x128xf32>
    %127 = arith.truncf %126 : vector<64x128xf32> to vector<64x128xbf16>
    %c6_119 = arith.constant 6 : index
    %c0_120 = arith.constant 0 : index
    %c0_121 = arith.constant 0 : index
    %128 = vector.load %arg4[%c6_119, %c0_120, %c0_121] : memref<9x128x128xbf16, #tpu.memory_space<vmem>>, vector<1x128x128xbf16>
    %129 = vector.shape_cast %128 : vector<1x128x128xbf16> to vector<128x128xbf16>
    %cst_122 = arith.constant dense<0.000000e+00> : vector<64x128xf32>
    %130 = tpu.matmul %127, %129, %cst_122 {dimension_numbers = #tpu.dot_dimension_numbers<[1], [0], [0], [1], [0, 0, 1, 1], [], []>} : vector<64x128xbf16>, vector<128x128xbf16>, vector<64x128xf32> -> vector<64x128xf32>
    %131 = arith.addf %124, %130 : vector<64x128xf32>
    %c2_123 = arith.constant 2 : index
    %c1_124 = arith.constant 1 : index
    %c0_125 = arith.constant 0 : index
    %132 = vector.load %arg7[%c2_123, %c1_124, %c0_125] : memref<10x10x128xf32, #tpu.memory_space<vmem>>, vector<8x8x128xf32>
    %133 = vector.shape_cast %132 : vector<8x8x128xf32> to vector<64x128xf32>
    %134 = arith.truncf %133 : vector<64x128xf32> to vector<64x128xbf16>
    %c7_126 = arith.constant 7 : index
    %c0_127 = arith.constant 0 : index
    %c0_128 = arith.constant 0 : index
    %135 = vector.load %arg4[%c7_126, %c0_127, %c0_128] : memref<9x128x128xbf16, #tpu.memory_space<vmem>>, vector<1x128x128xbf16>
    %136 = vector.shape_cast %135 : vector<1x128x128xbf16> to vector<128x128xbf16>
    %cst_129 = arith.constant dense<0.000000e+00> : vector<64x128xf32>
    %137 = tpu.matmul %134, %136, %cst_129 {dimension_numbers = #tpu.dot_dimension_numbers<[1], [0], [0], [1], [0, 0, 1, 1], [], []>} : vector<64x128xbf16>, vector<128x128xbf16>, vector<64x128xf32> -> vector<64x128xf32>
    %138 = arith.addf %131, %137 : vector<64x128xf32>
    %c2_130 = arith.constant 2 : index
    %c2_131 = arith.constant 2 : index
    %c0_132 = arith.constant 0 : index
    %139 = vector.load %arg7[%c2_130, %c2_131, %c0_132] : memref<10x10x128xf32, #tpu.memory_space<vmem>>, vector<8x8x128xf32>
    %140 = vector.shape_cast %139 : vector<8x8x128xf32> to vector<64x128xf32>
    %141 = arith.truncf %140 : vector<64x128xf32> to vector<64x128xbf16>
    %c8_133 = arith.constant 8 : index
    %c0_134 = arith.constant 0 : index
    %c0_135 = arith.constant 0 : index
    %142 = vector.load %arg4[%c8_133, %c0_134, %c0_135] : memref<9x128x128xbf16, #tpu.memory_space<vmem>>, vector<1x128x128xbf16>
    %143 = vector.shape_cast %142 : vector<1x128x128xbf16> to vector<128x128xbf16>
    %cst_136 = arith.constant dense<0.000000e+00> : vector<64x128xf32>
    %144 = tpu.matmul %141, %143, %cst_136 {dimension_numbers = #tpu.dot_dimension_numbers<[1], [0], [0], [1], [0, 0, 1, 1], [], []>} : vector<64x128xbf16>, vector<128x128xbf16>, vector<64x128xf32> -> vector<64x128xf32>
    %145 = arith.addf %138, %144 : vector<64x128xf32>
    %c0_137 = arith.constant 0 : index
    %c1_138 = arith.constant 1 : index
    %c1_139 = arith.constant 1 : index
    %c0_140 = arith.constant 0 : index
    %146 = vector.load %arg1[%c0_137, %c1_138, %c1_139, %c0_140] : memref<1x10x10x128xf32, #tpu.memory_space<vmem>>, vector<1x8x8x128xf32>
    %147 = vector.shape_cast %146 : vector<1x8x8x128xf32> to vector<8x8x128xf32>
    %148 = vector.shape_cast %147 : vector<8x8x128xf32> to vector<64x128xf32>
    %c0_141 = arith.constant 0 : index
    %c0_142 = arith.constant 0 : index
    %149 = vector.load %arg5[%c0_141, %c0_142] : memref<1x128xf32, #tpu.memory_space<vmem>>, vector<1x128xf32>
    %150 = vector.broadcast %149 : vector<1x128xf32> to vector<64x128xf32>
    %151 = arith.addf %145, %150 : vector<64x128xf32>
    %152 = arith.addf %151, %148 : vector<64x128xf32>
    %cst_143 = arith.constant 0.000000e+00 : f32
    %153 = vector.broadcast %cst_143 : f32 to vector<64x128xf32>
    %154 = arith.maximumf %152, %153 : vector<64x128xf32>
    %155 = vector.shape_cast %154 : vector<64x128xf32> to vector<8x8x128xf32>
    %c0_144 = arith.constant 0 : index
    %c0_145 = arith.constant 0 : index
    %c0_146 = arith.constant 0 : index
    %c0_147 = arith.constant 0 : index
    %156 = vector.load %arg6[%c0_144, %c0_145, %c0_146, %c0_147] : memref<1x8x8x128xf32, #tpu.memory_space<vmem>>, vector<1x8x8x128xf32>
    %157 = vector.shape_cast %156 : vector<1x8x8x128xf32> to vector<8x8x128xf32>
    %158 = vector.shape_cast %155 : vector<8x8x128xf32> to vector<1x8x8x128xf32>
    tpu.vector_store %arg6[%c0_144, %c0_145, %c0_146, %c0_147], %158 {strides = array<i32>} : memref<1x8x8x128xf32, #tpu.memory_space<vmem>>, vector<1x8x8x128xf32>,
    return
  }
  func.func @transform_0(%arg0: i32) -> (i32, i32, i32, i32) {
    %c0_i32 = arith.constant 0 : i32
    %c0_i32_0 = arith.constant 0 : i32
    %c0_i32_1 = arith.constant 0 : i32
    %c0_i32_2 = arith.constant 0 : i32
    return %arg0, %c0_i32, %c0_i32_0, %c0_i32_1 : i32, i32, i32, i32
  }
  func.func @transform_1(%arg0: i32) -> (i32, i32, i32) {
    %c0_i32 = arith.constant 0 : i32
    %c0_i32_0 = arith.constant 0 : i32
    %c0_i32_1 = arith.constant 0 : i32
    %c0_i32_2 = arith.constant 0 : i32
    return %c0_i32, %c0_i32_0, %c0_i32_1 : i32, i32, i32
  }
  func.func @transform_2(%arg0: i32) -> (i32, i32) {
    %c0_i32 = arith.constant 0 : i32
    %c0_i32_0 = arith.constant 0 : i32
    %c0_i32_1 = arith.constant 0 : i32
    return %c0_i32, %c0_i32_0 : i32, i32
  }
  func.func @transform_3(%arg0: i32) -> (i32, i32, i32) {
    %c0_i32 = arith.constant 0 : i32
    %c0_i32_0 = arith.constant 0 : i32
    %c0_i32_1 = arith.constant 0 : i32
    %c0_i32_2 = arith.constant 0 : i32
    return %c0_i32, %c0_i32_0, %c0_i32_1 : i32, i32, i32
  }
  func.func @transform_4(%arg0: i32) -> (i32, i32) {
    %c0_i32 = arith.constant 0 : i32
    %c0_i32_0 = arith.constant 0 : i32
    %c0_i32_1 = arith.constant 0 : i32
    return %c0_i32, %c0_i32_0 : i32, i32
  }
  func.func @transform_5(%arg0: i32) -> (i32, i32, i32, i32) {
    %c0_i32 = arith.constant 0 : i32
    %c0_i32_0 = arith.constant 0 : i32
    %c0_i32_1 = arith.constant 0 : i32
    %c0_i32_2 = arith.constant 0 : i32
    return %arg0, %c0_i32, %c0_i32_0, %c0_i32_1 : i32, i32, i32, i32
  }
}

</mosaic_0001>

<llo_original>
// kernel: forward.2
$region0: #{forward.2}
  #allocation0 [shape = 'u32[]', space=smem, size = 0x4, offset = 0x4, fixed_abs, tag = 'smem constant byte address 0x4 - core index']
  #allocation1 [shape = 'u32[144,128]{1,0:T(1,128)}', space=vmem, size = 0x12000, scoped, tag = 'internal scratch']
  #allocation2 [shape = 'f32[10,10,128]{2,1,0:T(8,128)}', space=vmem, size = 0x14000, scoped, tag = 'scratch operand']
  %s0 = inlined_call_operand.vmem [shape: f32[2,36,9,64], index: 0, kind: input, shape index: {}]
  %s1 = inlined_call_operand.vmem [shape: bf16[9,64,128], index: 1, kind: input, shape index: {}]
  %s2 = inlined_call_operand.vmem [shape: f32[1,128], index: 2, kind: input, shape index: {}]
  %s3 = inlined_call_operand.vmem [shape: bf16[9,128,128], index: 3, kind: input, shape index: {}]
  %s4 = inlined_call_operand.vmem [shape: f32[1,128], index: 4, kind: input, shape index: {}]
  %s5 = inlined_call_operand.vmem [shape: bf16[64,128], index: 5, kind: input, shape index: {}]
  %s6 = inlined_call_operand.vmem [shape: f32[2,8,8,128], index: 6, kind: output, shape index: {}]
  %s7 = sld [smem:[#allocation0]]
  $region57: #{forward.2} parent=0
    _
  %s9 = ssub.s32 1, %s7
  %s10 = scalar_select 0, %s9, %s7
  loop: start=0, step=1, limit=4
  $region2: #{forward.2} parent=0 // loop_pre_header
    _
  $region3: #{forward.2} parent=0 // loop_header
    %s12 = sphi 0, %s16
    %p13 = scmp.ge.s32.totalorder %s12, 4
    %s22 = sphi 0, %s24
    %s25 = sphi 0, %s22
    %s26 = sphi 0, %s25
    %s42 = sphi 0, %s26
    %s46 = sphi 0, %s46
    %s48 = sphi 0, %s46
    %s49 = sphi 0, %s48
    %s63 = sphi 0, %s49
    %s67 = sphi 0, %s67
    %s69 = sphi 0, %s67
    %s70 = sphi 0, %s69
    %s84 = sphi 0, %s70
    %s88 = sphi 0, %s88
    %s90 = sphi 0, %s88
    %s91 = sphi 0, %s90
    %s105 = sphi 0, %s91
    %s109 = sphi 0, %s109
    %s111 = sphi 0, %s109
    %s112 = sphi 0, %s111
    %s126 = sphi 0, %s112
    %s130 = sphi 0, %s130
    %s132 = sphi 0, %s130
    %s133 = sphi 0, %s132
    %s147 = sphi 0, %s133
    %s153 = sphi 0, %s155
    %s156 = sphi 0, %s153
    %s157 = sphi 0, %s156
    %s173 = sphi 0, %s157
  $region4: #{forward.2} parent=0 // loop_header_branch
    %15 = sbr.rel (%p13) target = $region8
  $region5: #{forward.2} parent=0 // loop_body
    %s17 = ssub.s32 %s12, 1
    %s18 = ssub.s32 %s12, 2
    %s19 = sadd.s32 %s12, 1
    %s20 = ssub.s32 %s12, %s19
    %p21 = scmp.eq.s32.totalorder %s20, 0
    %s23 = sadd.s32 %s22, 1
    %s24 = scalar_select %p21, %s22, %s23
    %p27 = pneg %p21
    %p28 = scmp.eq.s32.totalorder %s12, 1
    %p29 = por %p27, %p28
    %p30 = scmp.ne.s32.totalorder %s22, %s25
    %p31 = scmp.eq.s32.totalorder %s12, 0
    %p32 = por %p30, %p31
    %p33 = scmp.ne.s32.totalorder %s22, %s25
    %p34 = scmp.eq.s32.totalorder %s17, 1
    %p35 = por %p33, %p34
    %p36 = scmp.ne.s32.totalorder %s25, %s26
    %p37 = scmp.eq.s32.totalorder %s17, 0
    %p38 = por %p36, %p37
    %p39 = scmp.ne.s32.totalorder %s25, %s26
    %p40 = scmp.eq.s32.totalorder %s18, 1
    %p41 = por %p39, %p40
    %p43 = scmp.ne.s32.totalorder %s26, %s42
    %p44 = scmp.eq.s32.totalorder %s18, 0
    %p45 = por %p43, %p44
    %s47 = sadd.s32 %s46, 1
    %p50 = scmp.eq.s32.totalorder %s12, 1
    %p51 = scmp.ne.s32.totalorder %s46, %s48
    %p52 = scmp.eq.s32.totalorder %s12, 0
    %p53 = por %p51, %p52
    %p54 = scmp.ne.s32.totalorder %s46, %s48
    %p55 = scmp.eq.s32.totalorder %s17, 1
    %p56 = por %p54, %p55
    %p57 = scmp.ne.s32.totalorder %s48, %s49
    %p58 = scmp.eq.s32.totalorder %s17, 0
    %p59 = por %p57, %p58
    %p60 = scmp.ne.s32.totalorder %s48, %s49
    %p61 = scmp.eq.s32.totalorder %s18, 1
    %p62 = por %p60, %p61
    %p64 = scmp.ne.s32.totalorder %s49, %s63
    %p65 = scmp.eq.s32.totalorder %s18, 0
    %p66 = por %p64, %p65
    %s68 = sadd.s32 %s67, 1
    %p71 = scmp.eq.s32.totalorder %s12, 1
    %p72 = scmp.ne.s32.totalorder %s67, %s69
    %p73 = scmp.eq.s32.totalorder %s12, 0
    %p74 = por %p72, %p73
    %p75 = scmp.ne.s32.totalorder %s67, %s69
    %p76 = scmp.eq.s32.totalorder %s17, 1
    %p77 = por %p75, %p76
    %p78 = scmp.ne.s32.totalorder %s69, %s70
    %p79 = scmp.eq.s32.totalorder %s17, 0
    %p80 = por %p78, %p79
    %p81 = scmp.ne.s32.totalorder %s69, %s70
    %p82 = scmp.eq.s32.totalorder %s18, 1
    %p83 = por %p81, %p82
    %p85 = scmp.ne.s32.totalorder %s70, %s84
    %p86 = scmp.eq.s32.totalorder %s18, 0
    %p87 = por %p85, %p86
    %s89 = sadd.s32 %s88, 1
    %p92 = scmp.eq.s32.totalorder %s12, 1
    %p93 = scmp.ne.s32.totalorder %s88, %s90
    %p94 = scmp.eq.s32.totalorder %s12, 0
    %p95 = por %p93, %p94
    %p96 = scmp.ne.s32.totalorder %s88, %s90
    %p97 = scmp.eq.s32.totalorder %s17, 1
    %p98 = por %p96, %p97
    %p99 = scmp.ne.s32.totalorder %s90, %s91
    %p100 = scmp.eq.s32.totalorder %s17, 0
    %p101 = por %p99, %p100
    %p102 = scmp.ne.s32.totalorder %s90, %s91
    %p103 = scmp.eq.s32.totalorder %s18, 1
    %p104 = por %p102, %p103
    %p106 = scmp.ne.s32.totalorder %s91, %s105
    %p107 = scmp.eq.s32.totalorder %s18, 0
    %p108 = por %p106, %p107
    %s110 = sadd.s32 %s109, 1
    %p113 = scmp.eq.s32.totalorder %s12, 1
    %p114 = scmp.ne.s32.totalorder %s109, %s111
    %p115 = scmp.eq.s32.totalorder %s12, 0
    %p116 = por %p114, %p115
    %p117 = scmp.ne.s32.totalorder %s109, %s111
    %p118 = scmp.eq.s32.totalorder %s17, 1
    %p119 = por %p117, %p118
    %p120 = scmp.ne.s32.totalorder %s111, %s112
    %p121 = scmp.eq.s32.totalorder %s17, 0
    %p122 = por %p120, %p121
    %p123 = scmp.ne.s32.totalorder %s111, %s112
    %p124 = scmp.eq.s32.totalorder %s18, 1
    %p125 = por %p123, %p124
    %p127 = scmp.ne.s32.totalorder %s112, %s126
    %p128 = scmp.eq.s32.totalorder %s18, 0
    %p129 = por %p127, %p128
    %s131 = sadd.s32 %s130, 1
    %p134 = scmp.eq.s32.totalorder %s12, 1
    %p135 = scmp.ne.s32.totalorder %s130, %s132
    %p136 = scmp.eq.s32.totalorder %s12, 0
    %p137 = por %p135, %p136
    %p138 = scmp.ne.s32.totalorder %s130, %s132
    %p139 = scmp.eq.s32.totalorder %s17, 1
    %p140 = por %p138, %p139
    %p141 = scmp.ne.s32.totalorder %s132, %s133
    %p142 = scmp.eq.s32.totalorder %s17, 0
    %p143 = por %p141, %p142
    %p144 = scmp.ne.s32.totalorder %s132, %s133
    %p145 = scmp.eq.s32.totalorder %s18, 1
    %p146 = por %p144, %p145
    %p148 = scmp.ne.s32.totalorder %s133, %s147
    %p149 = scmp.eq.s32.totalorder %s18, 0
    %p150 = por %p148, %p149
    %s151 = ssub.s32 %s12, %s19
    %p152 = scmp.eq.s32.totalorder %s151, 0
    %s154 = sadd.s32 %s153, 1
    %s155 = scalar_select %p152, %s153, %s154
    %p158 = pneg %p152
    %p159 = scmp.eq.s32.totalorder %s12, 1
    %p160 = por %p158, %p159
    %p161 = scmp.ne.s32.totalorder %s153, %s156
    %p162 = scmp.eq.s32.totalorder %s12, 0
    %p163 = por %p161, %p162
    %p164 = scmp.ne.s32.totalorder %s153, %s156
    %p165 = scmp.eq.s32.totalorder %s17, 1
    %p166 = por %p164, %p165
    %p167 = scmp.ne.s32.totalorder %s156, %s157
    %p168 = scmp.eq.s32.totalorder %s17, 0
    %p169 = por %p167, %p168
    %p170 = scmp.ne.s32.totalorder %s156, %s157
    %p171 = scmp.eq.s32.totalorder %s18, 1
    %p172 = por %p170, %p171
    %p174 = scmp.ne.s32.totalorder %s157, %s173
    %p175 = scmp.eq.s32.totalorder %s18, 0
    %p176 = por %p174, %p175
    %p177 = scmp.le.s32.totalorder 1, %s12
    %p178 = scmp.lt.s32.totalorder %s12, 3
    %p179 = pnand %p177, %p178
    %p180 = pneg %p179
    // Predicated region
    $region9: #{forward.2} parent=5 // pred_check
      _
    $region10: #{forward.2} parent=5 // pred_check_branch
      %182 = sbr.rel (%p179) target = $region12
    $region11: #{forward.2} parent=5 // pred_region
      %s183 = ssub.s32 %s12, 1
      // Predicated region
      $region13: #{forward.2} parent=11 // pred_check
        %p184 = pneg %p59
      $region14: #{forward.2} parent=11 // pred_check_branch
        %186 = sbr.rel (%p184) target = $region16
      $region15: #{forward.2} parent=11 // pred_region
        _
      $region16: #{forward.2} parent=11 // pred_fallthru
        _
      // Predicated region
      $region17: #{forward.2} parent=11 // pred_check
        %p187 = pneg %p80
      $region18: #{forward.2} parent=11 // pred_check_branch
        %189 = sbr.rel (%p187) target = $region20
      $region19: #{forward.2} parent=11 // pred_region
        _
      $region20: #{forward.2} parent=11 // pred_fallthru
        _
      // Predicated region
      $region21: #{forward.2} parent=11 // pred_check
        %p190 = pneg %p101
      $region22: #{forward.2} parent=11 // pred_check_branch
        %192 = sbr.rel (%p190) target = $region24
      $region23: #{forward.2} parent=11 // pred_region
        _
      $region24: #{forward.2} parent=11 // pred_fallthru
        _
      // Predicated region
      $region25: #{forward.2} parent=11 // pred_check
        %p193 = pneg %p122
      $region26: #{forward.2} parent=11 // pred_check_branch
        %195 = sbr.rel (%p193) target = $region28
      $region27: #{forward.2} parent=11 // pred_region
        _
      $region28: #{forward.2} parent=11 // pred_fallthru
        _
      // Predicated region
      $region29: #{forward.2} parent=11 // pred_check
        %p196 = pneg %p143
      $region30: #{forward.2} parent=11 // pred_check_branch
        %198 = sbr.rel (%p196) target = $region32
      $region31: #{forward.2} parent=11 // pred_region
        _
      $region32: #{forward.2} parent=11 // pred_fallthru
        _
    $region12: #{forward.2} parent=5 // pred_fallthru
      _
    %p199 = scmp.lt.s32.totalorder %s12, 2
    // Predicated region
    $region33: #{forward.2} parent=5 // pred_check
      %p200 = pneg %p199
    $region34: #{forward.2} parent=5 // pred_check_branch
      %202 = sbr.rel (%p200) target = $region36
    $region35: #{forward.2} parent=5 // pred_region
      // Predicated region
      $region37: #{forward.2} parent=35 // pred_check
        %p203 = pneg %p32
      $region38: #{forward.2} parent=35 // pred_check_branch
        %205 = sbr.rel (%p203) target = $region40
      $region39: #{forward.2} parent=35 // pred_region
        %p206 = scmp.lt.s32.totalorder %s12, 1
        %s207 = scalar_select %p206, %s12, 1
        %s208 = smul.addr %s207, 72
        %s209 = smul.addr %s208, 8
        %s210 = scalar_lea.vmem %s0, %s209
      $region40: #{forward.2} parent=35 // pred_fallthru
        _
    $region36: #{forward.2} parent=5 // pred_fallthru
      _
    %p211 = scmp.le.s32.totalorder 1, %s12
    %p212 = scmp.lt.s32.totalorder %s12, 3
    %p213 = pnand %p211, %p212
    %p214 = pneg %p213
    // Predicated region
    $region41: #{forward.2} parent=5 // pred_check
      _
    $region42: #{forward.2} parent=5 // pred_check_branch
      %216 = sbr.rel (%p213) target = $region44
    $region43: #{forward.2} parent=5 // pred_region
      %s217 = ssub.s32 %s12, 1
      %p218 = scmp.lt.s32.totalorder %s17, 1
      %s219 = scalar_select %p218, %s17, 1
      %s220 = smul.addr %s219, 72
      %s221 = smul.addr %s220, 8
      %s222 = scalar_lea.vmem %s0, %s221
      %p223 = pneg %p38
      %p224 = pneg %p35
      %p225 = pneg %p59
      %p226 = pneg %p56
      %p227 = pneg %p80
      %p228 = pneg %p77
      %p229 = pneg %p101
      %p230 = pneg %p98
      %p231 = pneg %p122
      %p232 = pneg %p119
      %p233 = pneg %p143
      %p234 = pneg %p140
      %p235 = pneg %p169
      %p236 = pneg %p166
      %p237 = scmp.lt.s32.totalorder %s17, 1
      %s238 = scalar_select %p237, %s17, 1
      %s239 = smul.addr %s238, 8
      %s240 = smul.addr %s239, 8
      %s241 = scalar_lea.vmem %s6, %s240
      %p242 = scmp.lt.s32.totalorder %s17, 1
      %s243 = scalar_select %p242, %s17, 1
      %s244 = smul.addr %s243, 72
      %s245 = smul.addr %s244, 8
      %s246 = scalar_lea.vmem %s0, %s245
      %p247 = scmp.lt.s32.totalorder %s17, 1
      %s248 = scalar_select %p247, %s17, 1
      %s249 = smul.addr %s248, 8
      %s250 = smul.addr %s249, 8
      %s251 = scalar_lea.vmem %s6, %s250
      %v253 = vld [vmem:[%s246] sm:$0xff]
      %v254 = vld [vmem:[%s246 + $0x10] sm:$0xff]
      %v255 = vld [vmem:[%s246 + $0x20] sm:$0xff]
      %v256 = vld [vmem:[%s246 + $0x30] sm:$0xff]
      %v257 = vld [vmem:[%s246 + $0x40] sm:$0xff]
      %v258 = vld [vmem:[%s246 + $0x50] sm:$0xff]
      %v259 = vld [vmem:[%s246 + $0x60] sm:$0xff]
      %v260 = vld [vmem:[%s246 + $0x70] sm:$0xff]
      %v261 = vpack.c.bf16 %v254, %v253
      %v262 = vpack.c.bf16 %v256, %v255
      %v263 = vpack.c.bf16 %v258, %v257
      %v264 = vpack.c.bf16 %v260, %v259
      %v265 = vld [vmem:[%s1] sm:$0xf]
      %v266 = vld [vmem:[%s1 + $0x4] sm:$0xf]
      %v267 = vld [vmem:[%s1 + $0x8] sm:$0xf]
      %v268 = vld [vmem:[%s1 + $0xc] sm:$0xf]
      %v269 = vld [vmem:[%s1 + $0x10] sm:$0xf]
      %v270 = vld [vmem:[%s1 + $0x14] sm:$0xf]
      %v271 = vld [vmem:[%s1 + $0x18] sm:$0xf]
      %v272 = vld [vmem:[%s1 + $0x1c] sm:$0xf]
      %s273 = scalar_lea.vmem %s246, 144
      %v274 = vld [vmem:[%s273] sm:$0xff]
      %v275 = vld [vmem:[%s273 + $0x10] sm:$0xff]
      %v276 = vld [vmem:[%s273 + $0x20] sm:$0xff]
      %v277 = vld [vmem:[%s273 + $0x30] sm:$0xff]
      %v278 = vld [vmem:[%s273 + $0x40] sm:$0xff]
      %v279 = vld [vmem:[%s273 + $0x50] sm:$0xff]
      %v280 = vld [vmem:[%s273 + $0x60] sm:$0xff]
      %v281 = vld [vmem:[%s273 + $0x70] sm:$0xff]
      %v282 = vpack.c.bf16 %v275, %v274
      %v283 = vpack.c.bf16 %v277, %v276
      %v284 = vpack.c.bf16 %v279, %v278
      %v285 = vpack.c.bf16 %v281, %v280
      %s286 = scalar_lea.vmem %s1, 32
      %v287 = vld [vmem:[%s286] sm:$0xf]
      %v288 = vld [vmem:[%s286 + $0x4] sm:$0xf]
      %v289 = vld [vmem:[%s286 + $0x8] sm:$0xf]
      %v290 = vld [vmem:[%s286 + $0xc] sm:$0xf]
      %v291 = vld [vmem:[%s286 + $0x10] sm:$0xf]
      %v292 = vld [vmem:[%s286 + $0x14] sm:$0xf]
      %v293 = vld [vmem:[%s286 + $0x18] sm:$0xf]
      %v294 = vld [vmem:[%s286 + $0x1c] sm:$0xf]
      %v303 = vunpack.c.l.b16 %v287
      %v304 = vunpack.c.l.b16 %v288
      %v305 = vunpack.c.l.b16 %v289
      %v306 = vunpack.c.l.b16 %v290
      %v307 = vunpack.c.l.b16 %v291
      %v308 = vunpack.c.l.b16 %v292
      %v309 = vunpack.c.l.b16 %v293
      %v310 = vunpack.c.l.b16 %v294
      %v311 = vpack.c.b16 %v304, %v303
      %v312 = vpack.c.b16 %v306, %v305
      %v313 = vpack.c.b16 %v308, %v307
      %v314 = vpack.c.b16 %v310, %v309
      %vm319 = vcmask 523264
      %v321 = vsel %vm319, %v282, 0
      %v324 = vsel %vm319, %v283, 0
      %v327 = vsel %vm319, %v284, 0
      %v330 = vsel %vm319, %v285, 0
      %332 = vmatprep.subr.bf16.mxu0 0
      %333 = vmatpush1.bf16.msra.mxu0 %v311
      %334 = vmatprep.subr.bf16.mxu0 0
      %335 = vmatpush1.bf16.msra.mxu0 %v312
      %336 = vmatprep.subr.bf16.mxu0 0
      %337 = vmatpush1.bf16.msra.mxu0 %v313
      %338 = vmatprep.subr.bf16.mxu0 0
      %339 = vmatpush1.bf16.msra.mxu0 %v314
      %340 = vmatprep.subr.bf16.mxu0 0
      %341 = vmatpush1.bf16.msra.mxu0 0
      %342 = vmatprep.subr.bf16.mxu0 0
      %343 = vmatpush1.bf16.msra.mxu0 0
      %344 = vmatprep.subr.bf16.mxu0 0
      %345 = vmatpush1.bf16.msra.mxu0 0
      %346 = vmatprep.subr.bf16.mxu0 0
      %347 = vmatpush1.bf16.msra.mxu0 0
      %348 = vmatprep.subr.bf16.mxu0 0
      %349 = vmatpush1.bf16.msra.mxu0 0
      %350 = vmatprep.subr.bf16.mxu0 0
      %351 = vmatpush1.bf16.msra.mxu0 0
      %352 = vmatprep.subr.bf16.mxu0 0
      %353 = vmatpush1.bf16.msra.mxu0 0
      %354 = vmatprep.subr.bf16.mxu0 0
      %355 = vmatpush1.bf16.msra.mxu0 0
      %356 = vmatprep.subr.bf16.mxu0 0
      %357 = vmatpush1.bf16.msra.mxu0 0
      %358 = vmatprep.subr.bf16.mxu0 0
      %359 = vmatpush1.bf16.msra.mxu0 0
      %360 = vmatprep.subr.bf16.mxu0 0
      %361 = vmatpush1.bf16.msra.mxu0 0
      %362 = vmatprep.subr.bf16.mxu0 0
      %363 = vmatpush1.bf16.msra.mxu0 0
      %364 = vmatprep.mubr.bf16.mxu0 0
      %365 = vmatmul.mubr.bf16.gmra.mrb[0].mxu0 %v321
      %v366 = vpop.f32.mrb[0].mxu0
      %v367 = vadd.f32 0.0, %v366
      %v368 = vpop.f32.mrb[0].mxu0
      %v369 = vpop.f32.mrb[0].mxu0
      %v370 = vadd.f32 0.0, %v369
      %v371 = vpop.f32.mrb[0].mxu0
      %372 = vmatprep.mubr.bf16.mxu0 0
      %373 = vmatmul.mubr.bf16.gmra.mrb[0].mxu0 %v324
      %v374 = vpop.f32.mrb[0].mxu0
      %v375 = vadd.f32 0.0, %v374
      %v376 = vpop.f32.mrb[0].mxu0
      %v377 = vpop.f32.mrb[0].mxu0
      %v378 = vadd.f32 0.0, %v377
      %v379 = vpop.f32.mrb[0].mxu0
      %380 = vmatprep.mubr.bf16.mxu0 0
      %381 = vmatmul.mubr.bf16.gmra.mrb[0].mxu0 %v327
      %v382 = vpop.f32.mrb[0].mxu0
      %v383 = vadd.f32 0.0, %v382
      %v384 = vpop.f32.mrb[0].mxu0
      %v385 = vpop.f32.mrb[0].mxu0
      %v386 = vadd.f32 0.0, %v385
      %v387 = vpop.f32.mrb[0].mxu0
      %388 = vmatprep.mubr.bf16.mxu0 0
      %389 = vmatmul.mubr.bf16.gmra.mrb[0].mxu0 %v330
      %v390 = vpop.f32.mrb[0].mxu0
      %v391 = vadd.f32 0.0, %v390
      %v392 = vpop.f32.mrb[0].mxu0
      %v393 = vpop.f32.mrb[0].mxu0
      %v394 = vadd.f32 0.0, %v393
      %v395 = vpop.f32.mrb[0].mxu0
      %396 = vdwg.mxu0
      %v405 = vunpack.c.l.b16 %v265
      %v406 = vunpack.c.l.b16 %v266
      %v407 = vunpack.c.l.b16 %v267
      %v408 = vunpack.c.l.b16 %v268
      %v409 = vunpack.c.l.b16 %v269
      %v410 = vunpack.c.l.b16 %v270
      %v411 = vunpack.c.l.b16 %v271
      %v412 = vunpack.c.l.b16 %v272
      %v413 = vpack.c.b16 %v406, %v405
      %v414 = vpack.c.b16 %v408, %v407
      %v415 = vpack.c.b16 %v410, %v409
      %v416 = vpack.c.b16 %v412, %v411
      %v422 = vsel %vm319, %v261, 0
      %v425 = vsel %vm319, %v262, 0
      %v428 = vsel %vm319, %v263, 0
      %v431 = vsel %vm319, %v264, 0
      %433 = vmatprep.subr.bf16.mxu0 0
      %434 = vmatpush1.bf16.msra.mxu0 %v413
      %435 = vmatprep.subr.bf16.mxu0 0
      %436 = vmatpush1.bf16.msra.mxu0 %v414
      %437 = vmatprep.subr.bf16.mxu0 0
      %438 = vmatpush1.bf16.msra.mxu0 %v415
      %439 = vmatprep.subr.bf16.mxu0 0
      %440 = vmatpush1.bf16.msra.mxu0 %v416
      %441 = vmatprep.subr.bf16.mxu0 0
      %442 = vmatpush1.bf16.msra.mxu0 0
      %443 = vmatprep.subr.bf16.mxu0 0
      %444 = vmatpush1.bf16.msra.mxu0 0
      %445 = vmatprep.subr.bf16.mxu0 0
      %446 = vmatpush1.bf16.msra.mxu0 0
      %447 = vmatprep.subr.bf16.mxu0 0
      %448 = vmatpush1.bf16.msra.mxu0 0
      %449 = vmatprep.subr.bf16.mxu0 0
      %450 = vmatpush1.bf16.msra.mxu0 0
      %451 = vmatprep.subr.bf16.mxu0 0
      %452 = vmatpush1.bf16.msra.mxu0 0
      %453 = vmatprep.subr.bf16.mxu0 0
      %454 = vmatpush1.bf16.msra.mxu0 0
      %455 = vmatprep.subr.bf16.mxu0 0
      %456 = vmatpush1.bf16.msra.mxu0 0
      %457 = vmatprep.subr.bf16.mxu0 0
      %458 = vmatpush1.bf16.msra.mxu0 0
      %459 = vmatprep.subr.bf16.mxu0 0
      %460 = vmatpush1.bf16.msra.mxu0 0
      %461 = vmatprep.subr.bf16.mxu0 0
      %462 = vmatpush1.bf16.msra.mxu0 0
      %463 = vmatprep.subr.bf16.mxu0 0
      %464 = vmatpush1.bf16.msra.mxu0 0
      %465 = vmatprep.mubr.bf16.mxu0 0
      %466 = vmatmul.mubr.bf16.gmra.mrb[0].mxu0 %v422
      %v467 = vpop.f32.mrb[0].mxu0
      %v468 = vadd.f32 %v367, %v467
      %v469 = vpop.f32.mrb[0].mxu0
      %v470 = vpop.f32.mrb[0].mxu0
      %v471 = vadd.f32 %v370, %v470
      %v472 = vpop.f32.mrb[0].mxu0
      %473 = vmatprep.mubr.bf16.mxu0 0
      %474 = vmatmul.mubr.bf16.gmra.mrb[0].mxu0 %v425
      %v475 = vpop.f32.mrb[0].mxu0
      %v476 = vadd.f32 %v375, %v475
      %v477 = vpop.f32.mrb[0].mxu0
      %v478 = vpop.f32.mrb[0].mxu0
      %v479 = vadd.f32 %v378, %v478
      %v480 = vpop.f32.mrb[0].mxu0
      %481 = vmatprep.mubr.bf16.mxu0 0
      %482 = vmatmul.mubr.bf16.gmra.mrb[0].mxu0 %v428
      %v483 = vpop.f32.mrb[0].mxu0
      %v484 = vadd.f32 %v383, %v483
      %v485 = vpop.f32.mrb[0].mxu0
      %v486 = vpop.f32.mrb[0].mxu0
      %v487 = vadd.f32 %v386, %v486
      %v488 = vpop.f32.mrb[0].mxu0
      %489 = vmatprep.mubr.bf16.mxu0 0
      %490 = vmatmul.mubr.bf16.gmra.mrb[0].mxu0 %v431
      %v491 = vpop.f32.mrb[0].mxu0
      %v492 = vadd.f32 %v391, %v491
      %v493 = vpop.f32.mrb[0].mxu0
      %v494 = vpop.f32.mrb[0].mxu0
      %v495 = vadd.f32 %v394, %v494
      %v496 = vpop.f32.mrb[0].mxu0
      %497 = vdwg.mxu0
      %v498 = vld [vmem:[%s246 + $0x1] sm:$0xff]
      %v499 = vld [vmem:[%s246 + $0x11] sm:$0xff]
      %v500 = vld [vmem:[%s246 + $0x21] sm:$0xff]
      %v501 = vld [vmem:[%s246 + $0x31] sm:$0xff]
      %v502 = vld [vmem:[%s246 + $0x41] sm:$0xff]
      %v503 = vld [vmem:[%s246 + $0x51] sm:$0xff]
      %v504 = vld [vmem:[%s246 + $0x61] sm:$0xff]
      %v505 = vld [vmem:[%s246 + $0x71] sm:$0xff]
      %v506 = vpack.c.bf16 %v499, %v498
      %v507 = vpack.c.bf16 %v501, %v500
      %v508 = vpack.c.bf16 %v503, %v502
      %v509 = vpack.c.bf16 %v505, %v504
      %s510 = scalar_lea.vmem %s1, 64
      %v511 = vld [vmem:[%s510] sm:$0xf]
      %v512 = vld [vmem:[%s510 + $0x4] sm:$0xf]
      %v513 = vld [vmem:[%s510 + $0x8] sm:$0xf]
      %v514 = vld [vmem:[%s510 + $0xc] sm:$0xf]
      %v515 = vld [vmem:[%s510 + $0x10] sm:$0xf]
      %v516 = vld [vmem:[%s510 + $0x14] sm:$0xf]
      %v517 = vld [vmem:[%s510 + $0x18] sm:$0xf]
      %v518 = vld [vmem:[%s510 + $0x1c] sm:$0xf]
      %v527 = vunpack.c.l.b16 %v511
      %v528 = vunpack.c.l.b16 %v512
      %v529 = vunpack.c.l.b16 %v513
      %v530 = vunpack.c.l.b16 %v514
      %v531 = vunpack.c.l.b16 %v515
      %v532 = vunpack.c.l.b16 %v516
      %v533 = vunpack.c.l.b16 %v517
      %v534 = vunpack.c.l.b16 %v518
      %v535 = vpack.c.b16 %v528, %v527
      %v536 = vpack.c.b16 %v530, %v529
      %v537 = vpack.c.b16 %v532, %v531
      %v538 = vpack.c.b16 %v534, %v533
      %v544 = vsel %vm319, %v506, 0
      %v547 = vsel %vm319, %v507, 0
      %v550 = vsel %vm319, %v508, 0
      %v553 = vsel %vm319, %v509, 0
      %555 = vmatprep.subr.bf16.mxu0 0
      %556 = vmatpush1.bf16.msra.mxu0 %v535
      %557 = vmatprep.subr.bf16.mxu0 0
      %558 = vmatpush1.bf16.msra.mxu0 %v536
      %559 = vmatprep.subr.bf16.mxu0 0
      %560 = vmatpush1.bf16.msra.mxu0 %v537
      %561 = vmatprep.subr.bf16.mxu0 0
      %562 = vmatpush1.bf16.msra.mxu0 %v538
      %563 = vmatprep.subr.bf16.mxu0 0
      %564 = vmatpush1.bf16.msra.mxu0 0
      %565 = vmatprep.subr.bf16.mxu0 0
      %566 = vmatpush1.bf16.msra.mxu0 0
      %567 = vmatprep.subr.bf16.mxu0 0
      %568 = vmatpush1.bf16.msra.mxu0 0
      %569 = vmatprep.subr.bf16.mxu0 0
      %570 = vmatpush1.bf16.msra.mxu0 0
      %571 = vmatprep.subr.bf16.mxu0 0
      %572 = vmatpush1.bf16.msra.mxu0 0
      %573 = vmatprep.subr.bf16.mxu0 0
      %574 = vmatpush1.bf16.msra.mxu0 0
      %575 = vmatprep.subr.bf16.mxu0 0
      %576 = vmatpush1.bf16.msra.mxu0 0
      %577 = vmatprep.subr.bf16.mxu0 0
      %578 = vmatpush1.bf16.msra.mxu0 0
      %579 = vmatprep.subr.bf16.mxu0 0
      %580 = vmatpush1.bf16.msra.mxu0 0
      %581 = vmatprep.subr.bf16.mxu0 0
      %582 = vmatpush1.bf16.msra.mxu0 0
      %583 = vmatprep.subr.bf16.mxu0 0
      %584 = vmatpush1.bf16.msra.mxu0 0
      %585 = vmatprep.subr.bf16.mxu0 0
      %586 = vmatpush1.bf16.msra.mxu0 0
      %587 = vmatprep.mubr.bf16.mxu0 0
      %588 = vmatmul.mubr.bf16.gmra.mrb[0].mxu0 %v544
      %v589 = vpop.f32.mrb[0].mxu0
      %v590 = vadd.f32 0.0, %v589
      %v591 = vpop.f32.mrb[0].mxu0
      %v592 = vpop.f32.mrb[0].mxu0
      %v593 = vadd.f32 0.0, %v592
      %v594 = vpop.f32.mrb[0].mxu0
      %595 = vmatprep.mubr.bf16.mxu0 0
      %596 = vmatmul.mubr.bf16.gmra.mrb[0].mxu0 %v547
      %v597 = vpop.f32.mrb[0].mxu0
      %v598 = vadd.f32 0.0, %v597
      %v599 = vpop.f32.mrb[0].mxu0
      %v600 = vpop.f32.mrb[0].mxu0
      %v601 = vadd.f32 0.0, %v600
      %v602 = vpop.f32.mrb[0].mxu0
      %603 = vmatprep.mubr.bf16.mxu0 0
      %604 = vmatmul.mubr.bf16.gmra.mrb[0].mxu0 %v550
      %v605 = vpop.f32.mrb[0].mxu0
      %v606 = vadd.f32 0.0, %v605
      %v607 = vpop.f32.mrb[0].mxu0
      %v608 = vpop.f32.mrb[0].mxu0
      %v609 = vadd.f32 0.0, %v608
      %v610 = vpop.f32.mrb[0].mxu0
      %611 = vmatprep.mubr.bf16.mxu0 0
      %612 = vmatmul.mubr.bf16.gmra.mrb[0].mxu0 %v553
      %v613 = vpop.f32.mrb[0].mxu0
      %v614 = vadd.f32 0.0, %v613
      %v615 = vpop.f32.mrb[0].mxu0
      %v616 = vpop.f32.mrb[0].mxu0
      %v617 = vadd.f32 0.0, %v616
      %v618 = vpop.f32.mrb[0].mxu0
      %619 = vdwg.mxu0
      %v620 = vadd.f32 %v468, %v590
      %v621 = vadd.f32 %v471, %v593
      %v622 = vadd.f32 %v476, %v598
      %v623 = vadd.f32 %v479, %v601
      %v624 = vadd.f32 %v484, %v606
      %v625 = vadd.f32 %v487, %v609
      %v626 = vadd.f32 %v492, %v614
      %v627 = vadd.f32 %v495, %v617
      %s628 = scalar_lea.vmem %s246, 288
      %v629 = vld [vmem:[%s628] sm:$0xff]
      %v630 = vld [vmem:[%s628 + $0x10] sm:$0xff]
      %v631 = vld [vmem:[%s628 + $0x20] sm:$0xff]
      %v632 = vld [vmem:[%s628 + $0x30] sm:$0xff]
      %v633 = vld [vmem:[%s628 + $0x40] sm:$0xff]
      %v634 = vld [vmem:[%s628 + $0x50] sm:$0xff]
      %v635 = vld [vmem:[%s628 + $0x60] sm:$0xff]
      %v636 = vld [vmem:[%s628 + $0x70] sm:$0xff]
      %v637 = vpack.c.bf16 %v630, %v629
      %v638 = vpack.c.bf16 %v632, %v631
      %v639 = vpack.c.bf16 %v634, %v633
      %v640 = vpack.c.bf16 %v636, %v635
      %s641 = scalar_lea.vmem %s1, 96
      %v642 = vld [vmem:[%s641] sm:$0xf]
      %v643 = vld [vmem:[%s641 + $0x4] sm:$0xf]
      %v644 = vld [vmem:[%s641 + $0x8] sm:$0xf]
      %v645 = vld [vmem:[%s641 + $0xc] sm:$0xf]
      %v646 = vld [vmem:[%s641 + $0x10] sm:$0xf]
      %v647 = vld [vmem:[%s641 + $0x14] sm:$0xf]
      %v648 = vld [vmem:[%s641 + $0x18] sm:$0xf]
      %v649 = vld [vmem:[%s641 + $0x1c] sm:$0xf]
      %v658 = vunpack.c.l.b16 %v642
      %v659 = vunpack.c.l.b16 %v643
      %v660 = vunpack.c.l.b16 %v644
      %v661 = vunpack.c.l.b16 %v645
      %v662 = vunpack.c.l.b16 %v646
      %v663 = vunpack.c.l.b16 %v647
      %v664 = vunpack.c.l.b16 %v648
      %v665 = vunpack.c.l.b16 %v649
      %v666 = vpack.c.b16 %v659, %v658
      %v667 = vpack.c.b16 %v661, %v660
      %v668 = vpack.c.b16 %v663, %v662
      %v669 = vpack.c.b16 %v665, %v664
      %v675 = vsel %vm319, %v637, 0
      %v678 = vsel %vm319, %v638, 0
      %v681 = vsel %vm319, %v639, 0
      %v684 = vsel %vm319, %v640, 0
      %686 = vmatprep.subr.bf16.mxu0 0
      %687 = vmatpush1.bf16.msra.mxu0 %v666
      %688 = vmatprep.subr.bf16.mxu0 0
      %689 = vmatpush1.bf16.msra.mxu0 %v667
      %690 = vmatprep.subr.bf16.mxu0 0
      %691 = vmatpush1.bf16.msra.mxu0 %v668
      %692 = vmatprep.subr.bf16.mxu0 0
      %693 = vmatpush1.bf16.msra.mxu0 %v669
      %694 = vmatprep.subr.bf16.mxu0 0
      %695 = vmatpush1.bf16.msra.mxu0 0
      %696 = vmatprep.subr.bf16.mxu0 0
      %697 = vmatpush1.bf16.msra.mxu0 0
      %698 = vmatprep.subr.bf16.mxu0 0
      %699 = vmatpush1.bf16.msra.mxu0 0
      %700 = vmatprep.subr.bf16.mxu0 0
      %701 = vmatpush1.bf16.msra.mxu0 0
      %702 = vmatprep.subr.bf16.mxu0 0
      %703 = vmatpush1.bf16.msra.mxu0 0
      %704 = vmatprep.subr.bf16.mxu0 0
      %705 = vmatpush1.bf16.msra.mxu0 0
      %706 = vmatprep.subr.bf16.mxu0 0
      %707 = vmatpush1.bf16.msra.mxu0 0
      %708 = vmatprep.subr.bf16.mxu0 0
      %709 = vmatpush1.bf16.msra.mxu0 0
      %710 = vmatprep.subr.bf16.mxu0 0
      %711 = vmatpush1.bf16.msra.mxu0 0
      %712 = vmatprep.subr.bf16.mxu0 0
      %713 = vmatpush1.bf16.msra.mxu0 0
      %714 = vmatprep.subr.bf16.mxu0 0
      %715 = vmatpush1.bf16.msra.mxu0 0
      %716 = vmatprep.subr.bf16.mxu0 0
      %717 = vmatpush1.bf16.msra.mxu0 0
      %718 = vmatprep.mubr.bf16.mxu0 0
      %719 = vmatmul.mubr.bf16.gmra.mrb[0].mxu0 %v675
      %v720 = vpop.f32.mrb[0].mxu0
      %v721 = vadd.f32 0.0, %v720
      %v722 = vpop.f32.mrb[0].mxu0
      %v723 = vpop.f32.mrb[0].mxu0
      %v724 = vadd.f32 0.0, %v723
      %v725 = vpop.f32.mrb[0].mxu0
      %726 = vmatprep.mubr.bf16.mxu0 0
      %727 = vmatmul.mubr.bf16.gmra.mrb[0].mxu0 %v678
      %v728 = vpop.f32.mrb[0].mxu0
      %v729 = vadd.f32 0.0, %v728
      %v730 = vpop.f32.mrb[0].mxu0
      %v731 = vpop.f32.mrb[0].mxu0
      %v732 = vadd.f32 0.0, %v731
      %v733 = vpop.f32.mrb[0].mxu0
      %734 = vmatprep.mubr.bf16.mxu0 0
      %735 = vmatmul.mubr.bf16.gmra.mrb[0].mxu0 %v681
      %v736 = vpop.f32.mrb[0].mxu0
      %v737 = vadd.f32 0.0, %v736
      %v738 = vpop.f32.mrb[0].mxu0
      %v739 = vpop.f32.mrb[0].mxu0
      %v740 = vadd.f32 0.0, %v739
      %v741 = vpop.f32.mrb[0].mxu0
      %742 = vmatprep.mubr.bf16.mxu0 0
      %743 = vmatmul.mubr.bf16.gmra.mrb[0].mxu0 %v684
      %v744 = vpop.f32.mrb[0].mxu0
      %v745 = vadd.f32 0.0, %v744
      %v746 = vpop.f32.mrb[0].mxu0
      %v747 = vpop.f32.mrb[0].mxu0
      %v748 = vadd.f32 0.0, %v747
      %v749 = vpop.f32.mrb[0].mxu0
      %750 = vdwg.mxu0
      %v751 = vadd.f32 %v620, %v721
      %v752 = vadd.f32 %v621, %v724
      %v753 = vadd.f32 %v622, %v729
      %v754 = vadd.f32 %v623, %v732
      %v755 = vadd.f32 %v624, %v737
      %v756 = vadd.f32 %v625, %v740
      %v757 = vadd.f32 %v626, %v745
      %v758 = vadd.f32 %v627, %v748
      %s759 = scalar_lea.vmem %s246, 432
      %v760 = vld [vmem:[%s759] sm:$0xff]
      %v761 = vld [vmem:[%s759 + $0x10] sm:$0xff]
      %v762 = vld [vmem:[%s759 + $0x20] sm:$0xff]
      %v763 = vld [vmem:[%s759 + $0x30] sm:$0xff]
      %v764 = vld [vmem:[%s759 + $0x40] sm:$0xff]
      %v765 = vld [vmem:[%s759 + $0x50] sm:$0xff]
      %v766 = vld [vmem:[%s759 + $0x60] sm:$0xff]
      %v767 = vld [vmem:[%s759 + $0x70] sm:$0xff]
      %v768 = vpack.c.bf16 %v761, %v760
      %v769 = vpack.c.bf16 %v763, %v762
      %v770 = vpack.c.bf16 %v765, %v764
      %v771 = vpack.c.bf16 %v767, %v766
      %s772 = scalar_lea.vmem %s1, 128
      %v773 = vld [vmem:[%s772] sm:$0xf]
      %v774 = vld [vmem:[%s772 + $0x4] sm:$0xf]
      %v775 = vld [vmem:[%s772 + $0x8] sm:$0xf]
      %v776 = vld [vmem:[%s772 + $0xc] sm:$0xf]
      %v777 = vld [vmem:[%s772 + $0x10] sm:$0xf]
      %v778 = vld [vmem:[%s772 + $0x14] sm:$0xf]
      %v779 = vld [vmem:[%s772 + $0x18] sm:$0xf]
      %v780 = vld [vmem:[%s772 + $0x1c] sm:$0xf]
      %v789 = vunpack.c.l.b16 %v773
      %v790 = vunpack.c.l.b16 %v774
      %v791 = vunpack.c.l.b16 %v775
      %v792 = vunpack.c.l.b16 %v776
      %v793 = vunpack.c.l.b16 %v777
      %v794 = vunpack.c.l.b16 %v778
      %v795 = vunpack.c.l.b16 %v779
      %v796 = vunpack.c.l.b16 %v780
      %v797 = vpack.c.b16 %v790, %v789
      %v798 = vpack.c.b16 %v792, %v791
      %v799 = vpack.c.b16 %v794, %v793
      %v800 = vpack.c.b16 %v796, %v795
      %v806 = vsel %vm319, %v768, 0
      %v809 = vsel %vm319, %v769, 0
      %v812 = vsel %vm319, %v770, 0
      %v815 = vsel %vm319, %v771, 0
      %817 = vmatprep.subr.bf16.mxu0 0
      %818 = vmatpush1.bf16.msra.mxu0 %v797
      %819 = vmatprep.subr.bf16.mxu0 0
      %820 = vmatpush1.bf16.msra.mxu0 %v798
      %821 = vmatprep.subr.bf16.mxu0 0
      %822 = vmatpush1.bf16.msra.mxu0 %v799
      %823 = vmatprep.subr.bf16.mxu0 0
      %824 = vmatpush1.bf16.msra.mxu0 %v800
      %825 = vmatprep.subr.bf16.mxu0 0
      %826 = vmatpush1.bf16.msra.mxu0 0
      %827 = vmatprep.subr.bf16.mxu0 0
      %828 = vmatpush1.bf16.msra.mxu0 0
      %829 = vmatprep.subr.bf16.mxu0 0
      %830 = vmatpush1.bf16.msra.mxu0 0
      %831 = vmatprep.subr.bf16.mxu0 0
      %832 = vmatpush1.bf16.msra.mxu0 0
      %833 = vmatprep.subr.bf16.mxu0 0
      %834 = vmatpush1.bf16.msra.mxu0 0
      %835 = vmatprep.subr.bf16.mxu0 0
      %836 = vmatpush1.bf16.msra.mxu0 0
      %837 = vmatprep.subr.bf16.mxu0 0
      %838 = vmatpush1.bf16.msra.mxu0 0
      %839 = vmatprep.subr.bf16.mxu0 0
      %840 = vmatpush1.bf16.msra.mxu0 0
      %841 = vmatprep.subr.bf16.mxu0 0
      %842 = vmatpush1.bf16.msra.mxu0 0
      %843 = vmatprep.subr.bf16.mxu0 0
      %844 = vmatpush1.bf16.msra.mxu0 0
      %845 = vmatprep.subr.bf16.mxu0 0
      %846 = vmatpush1.bf16.msra.mxu0 0
      %847 = vmatprep.subr.bf16.mxu0 0
      %848 = vmatpush1.bf16.msra.mxu0 0
      %849 = vmatprep.mubr.bf16.mxu0 0
      %850 = vmatmul.mubr.bf16.gmra.mrb[0].mxu0 %v806
      %v851 = vpop.f32.mrb[0].mxu0
      %v852 = vadd.f32 0.0, %v851
      %v853 = vpop.f32.mrb[0].mxu0
      %v854 = vpop.f32.mrb[0].mxu0
      %v855 = vadd.f32 0.0, %v854
      %v856 = vpop.f32.mrb[0].mxu0
      %857 = vmatprep.mubr.bf16.mxu0 0
      %858 = vmatmul.mubr.bf16.gmra.mrb[0].mxu0 %v809
      %v859 = vpop.f32.mrb[0].mxu0
      %v860 = vadd.f32 0.0, %v859
      %v861 = vpop.f32.mrb[0].mxu0
      %v862 = vpop.f32.mrb[0].mxu0
      %v863 = vadd.f32 0.0, %v862
      %v864 = vpop.f32.mrb[0].mxu0
      %865 = vmatprep.mubr.bf16.mxu0 0
      %866 = vmatmul.mubr.bf16.gmra.mrb[0].mxu0 %v812
      %v867 = vpop.f32.mrb[0].mxu0
      %v868 = vadd.f32 0.0, %v867
      %v869 = vpop.f32.mrb[0].mxu0
      %v870 = vpop.f32.mrb[0].mxu0
      %v871 = vadd.f32 0.0, %v870
      %v872 = vpop.f32.mrb[0].mxu0
      %873 = vmatprep.mubr.bf16.mxu0 0
      %874 = vmatmul.mubr.bf16.gmra.mrb[0].mxu0 %v815
      %v875 = vpop.f32.mrb[0].mxu0
      %v876 = vadd.f32 0.0, %v875
      %v877 = vpop.f32.mrb[0].mxu0
      %v878 = vpop.f32.mrb[0].mxu0
      %v879 = vadd.f32 0.0, %v878
      %v880 = vpop.f32.mrb[0].mxu0
      %881 = vdwg.mxu0
      %v882 = vadd.f32 %v751, %v852
      %v883 = vadd.f32 %v752, %v855
      %v884 = vadd.f32 %v753, %v860
      %v885 = vadd.f32 %v754, %v863
      %v886 = vadd.f32 %v755, %v868
      %v887 = vadd.f32 %v756, %v871
      %v888 = vadd.f32 %v757, %v876
      %v889 = vadd.f32 %v758, %v879
      %v890 = vld [vmem:[%s628 + $0x1] sm:$0xff]
      %v891 = vld [vmem:[%s628 + $0x11] sm:$0xff]
      %v892 = vld [vmem:[%s628 + $0x21] sm:$0xff]
      %v893 = vld [vmem:[%s628 + $0x31] sm:$0xff]
      %v894 = vld [vmem:[%s628 + $0x41] sm:$0xff]
      %v895 = vld [vmem:[%s628 + $0x51] sm:$0xff]
      %v896 = vld [vmem:[%s628 + $0x61] sm:$0xff]
      %v897 = vld [vmem:[%s628 + $0x71] sm:$0xff]
      %v898 = vpack.c.bf16 %v891, %v890
      %v899 = vpack.c.bf16 %v893, %v892
      %v900 = vpack.c.bf16 %v895, %v894
      %v901 = vpack.c.bf16 %v897, %v896
      %s902 = scalar_lea.vmem %s1, 160
      %v903 = vld [vmem:[%s902] sm:$0xf]
      %v904 = vld [vmem:[%s902 + $0x4] sm:$0xf]
      %v905 = vld [vmem:[%s902 + $0x8] sm:$0xf]
      %v906 = vld [vmem:[%s902 + $0xc] sm:$0xf]
      %v907 = vld [vmem:[%s902 + $0x10] sm:$0xf]
      %v908 = vld [vmem:[%s902 + $0x14] sm:$0xf]
      %v909 = vld [vmem:[%s902 + $0x18] sm:$0xf]
      %v910 = vld [vmem:[%s902 + $0x1c] sm:$0xf]
      %v919 = vunpack.c.l.b16 %v903
      %v920 = vunpack.c.l.b16 %v904
      %v921 = vunpack.c.l.b16 %v905
      %v922 = vunpack.c.l.b16 %v906
      %v923 = vunpack.c.l.b16 %v907
      %v924 = vunpack.c.l.b16 %v908
      %v925 = vunpack.c.l.b16 %v909
      %v926 = vunpack.c.l.b16 %v910
      %v927 = vpack.c.b16 %v920, %v919
      %v928 = vpack.c.b16 %v922, %v921
      %v929 = vpack.c.b16 %v924, %v923
      %v930 = vpack.c.b16 %v926, %v925
      %v936 = vsel %vm319, %v898, 0
      %v939 = vsel %vm319, %v899, 0
      %v942 = vsel %vm319, %v900, 0
      %v945 = vsel %vm319, %v901, 0
      %947 = vmatprep.subr.bf16.mxu0 0
      %948 = vmatpush1.bf16.msra.mxu0 %v927
      %949 = vmatprep.subr.bf16.mxu0 0
      %950 = vmatpush1.bf16.msra.mxu0 %v928
      %951 = vmatprep.subr.bf16.mxu0 0
      %952 = vmatpush1.bf16.msra.mxu0 %v929
      %953 = vmatprep.subr.bf16.mxu0 0
      %954 = vmatpush1.bf16.msra.mxu0 %v930
      %955 = vmatprep.subr.bf16.mxu0 0
      %956 = vmatpush1.bf16.msra.mxu0 0
      %957 = vmatprep.subr.bf16.mxu0 0
      %958 = vmatpush1.bf16.msra.mxu0 0
      %959 = vmatprep.subr.bf16.mxu0 0
      %960 = vmatpush1.bf16.msra.mxu0 0
      %961 = vmatprep.subr.bf16.mxu0 0
      %962 = vmatpush1.bf16.msra.mxu0 0
      %963 = vmatprep.subr.bf16.mxu0 0
      %964 = vmatpush1.bf16.msra.mxu0 0
      %965 = vmatprep.subr.bf16.mxu0 0
      %966 = vmatpush1.bf16.msra.mxu0 0
      %967 = vmatprep.subr.bf16.mxu0 0
      %968 = vmatpush1.bf16.msra.mxu0 0
      %969 = vmatprep.subr.bf16.mxu0 0
      %970 = vmatpush1.bf16.msra.mxu0 0
      %971 = vmatprep.subr.bf16.mxu0 0
      %972 = vmatpush1.bf16.msra.mxu0 0
      %973 = vmatprep.subr.bf16.mxu0 0
      %974 = vmatpush1.bf16.msra.mxu0 0
      %975 = vmatprep.subr.bf16.mxu0 0
      %976 = vmatpush1.bf16.msra.mxu0 0
      %977 = vmatprep.subr.bf16.mxu0 0
      %978 = vmatpush1.bf16.msra.mxu0 0
      %979 = vmatprep.mubr.bf16.mxu0 0
      %980 = vmatmul.mubr.bf16.gmra.mrb[0].mxu0 %v936
      %v981 = vpop.f32.mrb[0].mxu0
      %v982 = vadd.f32 0.0, %v981
      %v983 = vpop.f32.mrb[0].mxu0
      %v984 = vpop.f32.mrb[0].mxu0
      %v985 = vadd.f32 0.0, %v984
      %v986 = vpop.f32.mrb[0].mxu0
      %987 = vmatprep.mubr.bf16.mxu0 0
      %988 = vmatmul.mubr.bf16.gmra.mrb[0].mxu0 %v939
      %v989 = vpop.f32.mrb[0].mxu0
      %v990 = vadd.f32 0.0, %v989
      %v991 = vpop.f32.mrb[0].mxu0
      %v992 = vpop.f32.mrb[0].mxu0
      %v993 = vadd.f32 0.0, %v992
      %v994 = vpop.f32.mrb[0].mxu0
      %995 = vmatprep.mubr.bf16.mxu0 0
      %996 = vmatmul.mubr.bf16.gmra.mrb[0].mxu0 %v942
      %v997 = vpop.f32.mrb[0].mxu0
      %v998 = vadd.f32 0.0, %v997
      %v999 = vpop.f32.mrb[0].mxu0
      %v1000 = vpop.f32.mrb[0].mxu0
      %v1001 = vadd.f32 0.0, %v1000
      %v1002 = vpop.f32.mrb[0].mxu0
      %1003 = vmatprep.mubr.bf16.mxu0 0
      %1004 = vmatmul.mubr.bf16.gmra.mrb[0].mxu0 %v945
      %v1005 = vpop.f32.mrb[0].mxu0
      %v1006 = vadd.f32 0.0, %v1005
      %v1007 = vpop.f32.mrb[0].mxu0
      %v1008 = vpop.f32.mrb[0].mxu0
      %v1009 = vadd.f32 0.0, %v1008
      %v1010 = vpop.f32.mrb[0].mxu0
      %1011 = vdwg.mxu0
      %v1012 = vadd.f32 %v882, %v982
      %v1013 = vadd.f32 %v883, %v985
      %v1014 = vadd.f32 %v884, %v990
      %v1015 = vadd.f32 %v885, %v993
      %v1016 = vadd.f32 %v886, %v998
      %v1017 = vadd.f32 %v887, %v1001
      %v1018 = vadd.f32 %v888, %v1006
      %v1019 = vadd.f32 %v889, %v1009
      %s1020 = scalar_lea.vmem %s246, 16
      %v1021 = vld [vmem:[%s1020] sm:$0xff]
      %v1022 = vld [vmem:[%s1020 + $0x10] sm:$0xff]
      %v1023 = vld [vmem:[%s1020 + $0x20] sm:$0xff]
      %v1024 = vld [vmem:[%s1020 + $0x30] sm:$0xff]
      %v1025 = vld [vmem:[%s1020 + $0x40] sm:$0xff]
      %v1026 = vld [vmem:[%s1020 + $0x50] sm:$0xff]
      %v1027 = vld [vmem:[%s1020 + $0x60] sm:$0xff]
      %v1028 = vld [vmem:[%s1020 + $0x70] sm:$0xff]
      %v1029 = vpack.c.bf16 %v1022, %v1021
      %v1030 = vpack.c.bf16 %v1024, %v1023
      %v1031 = vpack.c.bf16 %v1026, %v1025
      %v1032 = vpack.c.bf16 %v1028, %v1027
      %s1033 = scalar_lea.vmem %s1, 192
      %v1034 = vld [vmem:[%s1033] sm:$0xf]
      %v1035 = vld [vmem:[%s1033 + $0x4] sm:$0xf]
      %v1036 = vld [vmem:[%s1033 + $0x8] sm:$0xf]
      %v1037 = vld [vmem:[%s1033 + $0xc] sm:$0xf]
      %v1038 = vld [vmem:[%s1033 + $0x10] sm:$0xf]
      %v1039 = vld [vmem:[%s1033 + $0x14] sm:$0xf]
      %v1040 = vld [vmem:[%s1033 + $0x18] sm:$0xf]
      %v1041 = vld [vmem:[%s1033 + $0x1c] sm:$0xf]
      %v1050 = vunpack.c.l.b16 %v1034
      %v1051 = vunpack.c.l.b16 %v1035
      %v1052 = vunpack.c.l.b16 %v1036
      %v1053 = vunpack.c.l.b16 %v1037
      %v1054 = vunpack.c.l.b16 %v1038
      %v1055 = vunpack.c.l.b16 %v1039
      %v1056 = vunpack.c.l.b16 %v1040
      %v1057 = vunpack.c.l.b16 %v1041
      %v1058 = vpack.c.b16 %v1051, %v1050
      %v1059 = vpack.c.b16 %v1053, %v1052
      %v1060 = vpack.c.b16 %v1055, %v1054
      %v1061 = vpack.c.b16 %v1057, %v1056
      %v1067 = vsel %vm319, %v1029, 0
      %v1070 = vsel %vm319, %v1030, 0
      %v1073 = vsel %vm319, %v1031, 0
      %v1076 = vsel %vm319, %v1032, 0
      %1078 = vmatprep.subr.bf16.mxu0 0
      %1079 = vmatpush1.bf16.msra.mxu0 %v1058
      %1080 = vmatprep.subr.bf16.mxu0 0
      %1081 = vmatpush1.bf16.msra.mxu0 %v1059
      %1082 = vmatprep.subr.bf16.mxu0 0
      %1083 = vmatpush1.bf16.msra.mxu0 %v1060
      %1084 = vmatprep.subr.bf16.mxu0 0
      %1085 = vmatpush1.bf16.msra.mxu0 %v1061
      %1086 = vmatprep.subr.bf16.mxu0 0
      %1087 = vmatpush1.bf16.msra.mxu0 0
      %1088 = vmatprep.subr.bf16.mxu0 0
      %1089 = vmatpush1.bf16.msra.mxu0 0
      %1090 = vmatprep.subr.bf16.mxu0 0
      %1091 = vmatpush1.bf16.msra.mxu0 0
      %1092 = vmatprep.subr.bf16.mxu0 0
      %1093 = vmatpush1.bf16.msra.mxu0 0
      %1094 = vmatprep.subr.bf16.mxu0 0
      %1095 = vmatpush1.bf16.msra.mxu0 0
      %1096 = vmatprep.subr.bf16.mxu0 0
      %1097 = vmatpush1.bf16.msra.mxu0 0
      %1098 = vmatprep.subr.bf16.mxu0 0
      %1099 = vmatpush1.bf16.msra.mxu0 0
      %1100 = vmatprep.subr.bf16.mxu0 0
      %1101 = vmatpush1.bf16.msra.mxu0 0
      %1102 = vmatprep.subr.bf16.mxu0 0
      %1103 = vmatpush1.bf16.msra.mxu0 0
      %1104 = vmatprep.subr.bf16.mxu0 0
      %1105 = vmatpush1.bf16.msra.mxu0 0
      %1106 = vmatprep.subr.bf16.mxu0 0
      %1107 = vmatpush1.bf16.msra.mxu0 0
      %1108 = vmatprep.subr.bf16.mxu0 0
      %1109 = vmatpush1.bf16.msra.mxu0 0
      %1110 = vmatprep.mubr.bf16.mxu0 0
      %1111 = vmatmul.mubr.bf16.gmra.mrb[0].mxu0 %v1067
      %v1112 = vpop.f32.mrb[0].mxu0
      %v1113 = vadd.f32 0.0, %v1112
      %v1114 = vpop.f32.mrb[0].mxu0
      %v1115 = vpop.f32.mrb[0].mxu0
      %v1116 = vadd.f32 0.0, %v1115
      %v1117 = vpop.f32.mrb[0].mxu0
      %1118 = vmatprep.mubr.bf16.mxu0 0
      %1119 = vmatmul.mubr.bf16.gmra.mrb[0].mxu0 %v1070
      %v1120 = vpop.f32.mrb[0].mxu0
      %v1121 = vadd.f32 0.0, %v1120
      %v1122 = vpop.f32.mrb[0].mxu0
      %v1123 = vpop.f32.mrb[0].mxu0
      %v1124 = vadd.f32 0.0, %v1123
      %v1125 = vpop.f32.mrb[0].mxu0
      %1126 = vmatprep.mubr.bf16.mxu0 0
      %1127 = vmatmul.mubr.bf16.gmra.mrb[0].mxu0 %v1073
      %v1128 = vpop.f32.mrb[0].mxu0
      %v1129 = vadd.f32 0.0, %v1128
      %v1130 = vpop.f32.mrb[0].mxu0
      %v1131 = vpop.f32.mrb[0].mxu0
      %v1132 = vadd.f32 0.0, %v1131
      %v1133 = vpop.f32.mrb[0].mxu0
      %1134 = vmatprep.mubr.bf16.mxu0 0
      %1135 = vmatmul.mubr.bf16.gmra.mrb[0].mxu0 %v1076
      %v1136 = vpop.f32.mrb[0].mxu0
      %v1137 = vadd.f32 0.0, %v1136
      %v1138 = vpop.f32.mrb[0].mxu0
      %v1139 = vpop.f32.mrb[0].mxu0
      %v1140 = vadd.f32 0.0, %v1139
      %v1141 = vpop.f32.mrb[0].mxu0
      %1142 = vdwg.mxu0
      %v1143 = vadd.f32 %v1012, %v1113
      %v1144 = vadd.f32 %v1013, %v1116
      %v1145 = vadd.f32 %v1014, %v1121
      %v1146 = vadd.f32 %v1015, %v1124
      %v1147 = vadd.f32 %v1016, %v1129
      %v1148 = vadd.f32 %v1017, %v1132
      %v1149 = vadd.f32 %v1018, %v1137
      %v1150 = vadd.f32 %v1019, %v1140
      %s1151 = scalar_lea.vmem %s246, 160
      %v1152 = vld [vmem:[%s1151] sm:$0xff]
      %v1153 = vld [vmem:[%s1151 + $0x10] sm:$0xff]
      %v1154 = vld [vmem:[%s1151 + $0x20] sm:$0xff]
      %v1155 = vld [vmem:[%s1151 + $0x30] sm:$0xff]
      %v1156 = vld [vmem:[%s1151 + $0x40] sm:$0xff]
      %v1157 = vld [vmem:[%s1151 + $0x50] sm:$0xff]
      %v1158 = vld [vmem:[%s1151 + $0x60] sm:$0xff]
      %v1159 = vld [vmem:[%s1151 + $0x70] sm:$0xff]
      %v1160 = vpack.c.bf16 %v1153, %v1152
      %v1161 = vpack.c.bf16 %v1155, %v1154
      %v1162 = vpack.c.bf16 %v1157, %v1156
      %v1163 = vpack.c.bf16 %v1159, %v1158
      %s1164 = scalar_lea.vmem %s1, 224
      %v1165 = vld [vmem:[%s1164] sm:$0xf]
      %v1166 = vld [vmem:[%s1164 + $0x4] sm:$0xf]
      %v1167 = vld [vmem:[%s1164 + $0x8] sm:$0xf]
      %v1168 = vld [vmem:[%s1164 + $0xc] sm:$0xf]
      %v1169 = vld [vmem:[%s1164 + $0x10] sm:$0xf]
      %v1170 = vld [vmem:[%s1164 + $0x14] sm:$0xf]
      %v1171 = vld [vmem:[%s1164 + $0x18] sm:$0xf]
      %v1172 = vld [vmem:[%s1164 + $0x1c] sm:$0xf]
      %v1181 = vunpack.c.l.b16 %v1165
      %v1182 = vunpack.c.l.b16 %v1166
      %v1183 = vunpack.c.l.b16 %v1167
      %v1184 = vunpack.c.l.b16 %v1168
      %v1185 = vunpack.c.l.b16 %v1169
      %v1186 = vunpack.c.l.b16 %v1170
      %v1187 = vunpack.c.l.b16 %v1171
      %v1188 = vunpack.c.l.b16 %v1172
      %v1189 = vpack.c.b16 %v1182, %v1181
      %v1190 = vpack.c.b16 %v1184, %v1183
      %v1191 = vpack.c.b16 %v1186, %v1185
      %v1192 = vpack.c.b16 %v1188, %v1187
      %v1198 = vsel %vm319, %v1160, 0
      %v1201 = vsel %vm319, %v1161, 0
      %v1204 = vsel %vm319, %v1162, 0
      %v1207 = vsel %vm319, %v1163, 0
      %1209 = vmatprep.subr.bf16.mxu0 0
      %1210 = vmatpush1.bf16.msra.mxu0 %v1189
      %1211 = vmatprep.subr.bf16.mxu0 0
      %1212 = vmatpush1.bf16.msra.mxu0 %v1190
      %1213 = vmatprep.subr.bf16.mxu0 0
      %1214 = vmatpush1.bf16.msra.mxu0 %v1191
      %1215 = vmatprep.subr.bf16.mxu0 0
      %1216 = vmatpush1.bf16.msra.mxu0 %v1192
      %1217 = vmatprep.subr.bf16.mxu0 0
      %1218 = vmatpush1.bf16.msra.mxu0 0
      %1219 = vmatprep.subr.bf16.mxu0 0
      %1220 = vmatpush1.bf16.msra.mxu0 0
      %1221 = vmatprep.subr.bf16.mxu0 0
      %1222 = vmatpush1.bf16.msra.mxu0 0
      %1223 = vmatprep.subr.bf16.mxu0 0
      %1224 = vmatpush1.bf16.msra.mxu0 0
      %1225 = vmatprep.subr.bf16.mxu0 0
      %1226 = vmatpush1.bf16.msra.mxu0 0
      %1227 = vmatprep.subr.bf16.mxu0 0
      %1228 = vmatpush1.bf16.msra.mxu0 0
      %1229 = vmatprep.subr.bf16.mxu0 0
      %1230 = vmatpush1.bf16.msra.mxu0 0
      %1231 = vmatprep.subr.bf16.mxu0 0
      %1232 = vmatpush1.bf16.msra.mxu0 0
      %1233 = vmatprep.subr.bf16.mxu0 0
      %1234 = vmatpush1.bf16.msra.mxu0 0
      %1235 = vmatprep.subr.bf16.mxu0 0
      %1236 = vmatpush1.bf16.msra.mxu0 0
      %1237 = vmatprep.subr.bf16.mxu0 0
      %1238 = vmatpush1.bf16.msra.mxu0 0
      %1239 = vmatprep.subr.bf16.mxu0 0
      %1240 = vmatpush1.bf16.msra.mxu0 0
      %1241 = vmatprep.mubr.bf16.mxu0 0
      %1242 = vmatmul.mubr.bf16.gmra.mrb[0].mxu0 %v1198
      %v1243 = vpop.f32.mrb[0].mxu0
      %v1244 = vadd.f32 0.0, %v1243
      %v1245 = vpop.f32.mrb[0].mxu0
      %v1246 = vpop.f32.mrb[0].mxu0
      %v1247 = vadd.f32 0.0, %v1246
      %v1248 = vpop.f32.mrb[0].mxu0
      %1249 = vmatprep.mubr.bf16.mxu0 0
      %1250 = vmatmul.mubr.bf16.gmra.mrb[0].mxu0 %v1201
      %v1251 = vpop.f32.mrb[0].mxu0
      %v1252 = vadd.f32 0.0, %v1251
      %v1253 = vpop.f32.mrb[0].mxu0
      %v1254 = vpop.f32.mrb[0].mxu0
      %v1255 = vadd.f32 0.0, %v1254
      %v1256 = vpop.f32.mrb[0].mxu0
      %1257 = vmatprep.mubr.bf16.mxu0 0
      %1258 = vmatmul.mubr.bf16.gmra.mrb[0].mxu0 %v1204
      %v1259 = vpop.f32.mrb[0].mxu0
      %v1260 = vadd.f32 0.0, %v1259
      %v1261 = vpop.f32.mrb[0].mxu0
      %v1262 = vpop.f32.mrb[0].mxu0
      %v1263 = vadd.f32 0.0, %v1262
      %v1264 = vpop.f32.mrb[0].mxu0
      %1265 = vmatprep.mubr.bf16.mxu0 0
      %1266 = vmatmul.mubr.bf16.gmra.mrb[0].mxu0 %v1207
      %v1267 = vpop.f32.mrb[0].mxu0
      %v1268 = vadd.f32 0.0, %v1267
      %v1269 = vpop.f32.mrb[0].mxu0
      %v1270 = vpop.f32.mrb[0].mxu0
      %v1271 = vadd.f32 0.0, %v1270
      %v1272 = vpop.f32.mrb[0].mxu0
      %1273 = vdwg.mxu0
      %v1274 = vadd.f32 %v1143, %v1244
      %v1275 = vadd.f32 %v1144, %v1247
      %v1276 = vadd.f32 %v1145, %v1252
      %v1277 = vadd.f32 %v1146, %v1255
      %v1278 = vadd.f32 %v1147, %v1260
      %v1279 = vadd.f32 %v1148, %v1263
      %v1280 = vadd.f32 %v1149, %v1268
      %v1281 = vadd.f32 %v1150, %v1271
      %v1282 = vld [vmem:[%s1020 + $0x1] sm:$0xff]
      %v1283 = vld [vmem:[%s1020 + $0x11] sm:$0xff]
      %v1284 = vld [vmem:[%s1020 + $0x21] sm:$0xff]
      %v1285 = vld [vmem:[%s1020 + $0x31] sm:$0xff]
      %v1286 = vld [vmem:[%s1020 + $0x41] sm:$0xff]
      %v1287 = vld [vmem:[%s1020 + $0x51] sm:$0xff]
      %v1288 = vld [vmem:[%s1020 + $0x61] sm:$0xff]
      %v1289 = vld [vmem:[%s1020 + $0x71] sm:$0xff]
      %v1290 = vpack.c.bf16 %v1283, %v1282
      %v1291 = vpack.c.bf16 %v1285, %v1284
      %v1292 = vpack.c.bf16 %v1287, %v1286
      %v1293 = vpack.c.bf16 %v1289, %v1288
      %s1294 = scalar_lea.vmem %s1, 256
      %v1295 = vld [vmem:[%s1294] sm:$0xf]
      %v1296 = vld [vmem:[%s1294 + $0x4] sm:$0xf]
      %v1297 = vld [vmem:[%s1294 + $0x8] sm:$0xf]
      %v1298 = vld [vmem:[%s1294 + $0xc] sm:$0xf]
      %v1299 = vld [vmem:[%s1294 + $0x10] sm:$0xf]
      %v1300 = vld [vmem:[%s1294 + $0x14] sm:$0xf]
      %v1301 = vld [vmem:[%s1294 + $0x18] sm:$0xf]
      %v1302 = vld [vmem:[%s1294 + $0x1c] sm:$0xf]
      %v1311 = vunpack.c.l.b16 %v1295
      %v1312 = vunpack.c.l.b16 %v1296
      %v1313 = vunpack.c.l.b16 %v1297
      %v1314 = vunpack.c.l.b16 %v1298
      %v1315 = vunpack.c.l.b16 %v1299
      %v1316 = vunpack.c.l.b16 %v1300
      %v1317 = vunpack.c.l.b16 %v1301
      %v1318 = vunpack.c.l.b16 %v1302
      %v1319 = vpack.c.b16 %v1312, %v1311
      %v1320 = vpack.c.b16 %v1314, %v1313
      %v1321 = vpack.c.b16 %v1316, %v1315
      %v1322 = vpack.c.b16 %v1318, %v1317
      %v1328 = vsel %vm319, %v1290, 0
      %v1331 = vsel %vm319, %v1291, 0
      %v1334 = vsel %vm319, %v1292, 0
      %v1337 = vsel %vm319, %v1293, 0
      %1339 = vmatprep.subr.bf16.mxu0 0
      %1340 = vmatpush1.bf16.msra.mxu0 %v1319
      %1341 = vmatprep.subr.bf16.mxu0 0
      %1342 = vmatpush1.bf16.msra.mxu0 %v1320
      %1343 = vmatprep.subr.bf16.mxu0 0
      %1344 = vmatpush1.bf16.msra.mxu0 %v1321
      %1345 = vmatprep.subr.bf16.mxu0 0
      %1346 = vmatpush1.bf16.msra.mxu0 %v1322
      %1347 = vmatprep.subr.bf16.mxu0 0
      %1348 = vmatpush1.bf16.msra.mxu0 0
      %1349 = vmatprep.subr.bf16.mxu0 0
      %1350 = vmatpush1.bf16.msra.mxu0 0
      %1351 = vmatprep.subr.bf16.mxu0 0
      %1352 = vmatpush1.bf16.msra.mxu0 0
      %1353 = vmatprep.subr.bf16.mxu0 0
      %1354 = vmatpush1.bf16.msra.mxu0 0
      %1355 = vmatprep.subr.bf16.mxu0 0
      %1356 = vmatpush1.bf16.msra.mxu0 0
      %1357 = vmatprep.subr.bf16.mxu0 0
      %1358 = vmatpush1.bf16.msra.mxu0 0
      %1359 = vmatprep.subr.bf16.mxu0 0
      %1360 = vmatpush1.bf16.msra.mxu0 0
      %1361 = vmatprep.subr.bf16.mxu0 0
      %1362 = vmatpush1.bf16.msra.mxu0 0
      %1363 = vmatprep.subr.bf16.mxu0 0
      %1364 = vmatpush1.bf16.msra.mxu0 0
      %1365 = vmatprep.subr.bf16.mxu0 0
      %1366 = vmatpush1.bf16.msra.mxu0 0
      %1367 = vmatprep.subr.bf16.mxu0 0
      %1368 = vmatpush1.bf16.msra.mxu0 0
      %1369 = vmatprep.subr.bf16.mxu0 0
      %1370 = vmatpush1.bf16.msra.mxu0 0
      %1371 = vmatprep.mubr.bf16.mxu0 0
      %1372 = vmatmul.mubr.bf16.gmra.mrb[0].mxu0 %v1328
      %v1373 = vpop.f32.mrb[0].mxu0
      %v1374 = vadd.f32 0.0, %v1373
      %v1375 = vpop.f32.mrb[0].mxu0
      %v1376 = vpop.f32.mrb[0].mxu0
      %v1377 = vadd.f32 0.0, %v1376
      %v1378 = vpop.f32.mrb[0].mxu0
      %1379 = vmatprep.mubr.bf16.mxu0 0
      %1380 = vmatmul.mubr.bf16.gmra.mrb[0].mxu0 %v1331
      %v1381 = vpop.f32.mrb[0].mxu0
      %v1382 = vadd.f32 0.0, %v1381
      %v1383 = vpop.f32.mrb[0].mxu0
      %v1384 = vpop.f32.mrb[0].mxu0
      %v1385 = vadd.f32 0.0, %v1384
      %v1386 = vpop.f32.mrb[0].mxu0
      %1387 = vmatprep.mubr.bf16.mxu0 0
      %1388 = vmatmul.mubr.bf16.gmra.mrb[0].mxu0 %v1334
      %v1389 = vpop.f32.mrb[0].mxu0
      %v1390 = vadd.f32 0.0, %v1389
      %v1391 = vpop.f32.mrb[0].mxu0
      %v1392 = vpop.f32.mrb[0].mxu0
      %v1393 = vadd.f32 0.0, %v1392
      %v1394 = vpop.f32.mrb[0].mxu0
      %1395 = vmatprep.mubr.bf16.mxu0 0
      %1396 = vmatmul.mubr.bf16.gmra.mrb[0].mxu0 %v1337
      %v1397 = vpop.f32.mrb[0].mxu0
      %v1398 = vadd.f32 0.0, %v1397
      %v1399 = vpop.f32.mrb[0].mxu0
      %v1400 = vpop.f32.mrb[0].mxu0
      %v1401 = vadd.f32 0.0, %v1400
      %v1402 = vpop.f32.mrb[0].mxu0
      %1403 = vdwg.mxu0
      %v1404 = vadd.f32 %v1274, %v1374
      %v1405 = vadd.f32 %v1275, %v1377
      %v1406 = vadd.f32 %v1276, %v1382
      %v1407 = vadd.f32 %v1277, %v1385
      %v1408 = vadd.f32 %v1278, %v1390
      %v1409 = vadd.f32 %v1279, %v1393
      %v1410 = vadd.f32 %v1280, %v1398
      %v1411 = vadd.f32 %v1281, %v1401
      %v1412 = vld [vmem:[%s2] sm:$0x1]
      %v1414 = vlaneseq
      %v1415 = vshrl.u32 %v1414, 7
      %v1416 = vsub.s32 0, %v1415
      %v1417 = vrot.slane %v1412, %v1416
      %v1419 = vadd.f32 %v1404, %v1417
      %v1420 = vadd.f32 %v1405, %v1417
      %v1421 = vadd.f32 %v1406, %v1417
      %v1422 = vadd.f32 %v1407, %v1417
      %v1423 = vadd.f32 %v1408, %v1417
      %v1424 = vadd.f32 %v1409, %v1417
      %v1425 = vadd.f32 %v1410, %v1417
      %v1426 = vadd.f32 %v1411, %v1417
      %v1427 = vmax.f32 %v1419, 0.0
      %v1428 = vmax.f32 %v1420, 0.0
      %v1429 = vmax.f32 %v1421, 0.0
      %v1430 = vmax.f32 %v1422, 0.0
      %v1431 = vmax.f32 %v1423, 0.0
      %v1432 = vmax.f32 %v1424, 0.0
      %v1433 = vmax.f32 %v1425, 0.0
      %v1434 = vmax.f32 %v1426, 0.0
      %1435 = vst [vmem:[#allocation2] sm:$0xff] 0.0
      %1436 = vst [vmem:[#allocation2 + $0x8] sm:$0x3] 0.0
      %1437 = vst [vmem:[#allocation2 + $0x10] sm:$0xff] 0.0
      %1438 = vst [vmem:[#allocation2 + $0x18] sm:$0x3] 0.0
      %1439 = vst [vmem:[#allocation2 + $0x20] sm:$0xff] 0.0
      %1440 = vst [vmem:[#allocation2 + $0x28] sm:$0x3] 0.0
      %1441 = vst [vmem:[#allocation2 + $0x30] sm:$0xff] 0.0
      %1442 = vst [vmem:[#allocation2 + $0x38] sm:$0x3] 0.0
      %1443 = vst [vmem:[#allocation2 + $0x40] sm:$0xff] 0.0
      %1444 = vst [vmem:[#allocation2 + $0x48] sm:$0x3] 0.0
      %1445 = vst [vmem:[#allocation2 + $0x50] sm:$0xff] 0.0
      %1446 = vst [vmem:[#allocation2 + $0x58] sm:$0x3] 0.0
      %1447 = vst [vmem:[#allocation2 + $0x60] sm:$0xff] 0.0
      %1448 = vst [vmem:[#allocation2 + $0x68] sm:$0x3] 0.0
      %1449 = vst [vmem:[#allocation2 + $0x70] sm:$0xff] 0.0
      %1450 = vst [vmem:[#allocation2 + $0x78] sm:$0x3] 0.0
      %1451 = vst [vmem:[#allocation2 + $0x80] sm:$0xff] 0.0
      %1452 = vst [vmem:[#allocation2 + $0x88] sm:$0x3] 0.0
      %1453 = vst [vmem:[#allocation2 + $0x90] sm:$0xff] 0.0
      %1454 = vst [vmem:[#allocation2 + $0x98] sm:$0x3] 0.0
      %s1455 = scalar_lea.vmem [#allocation2], 16
      %1456 = vst [vmem:[%s1455 + $0x1] sm:$0xff] %v1427
      %1457 = vst [vmem:[%s1455 + $0x11] sm:$0xff] %v1428
      %1458 = vst [vmem:[%s1455 + $0x21] sm:$0xff] %v1429
      %1459 = vst [vmem:[%s1455 + $0x31] sm:$0xff] %v1430
      %1460 = vst [vmem:[%s1455 + $0x41] sm:$0xff] %v1431
      %1461 = vst [vmem:[%s1455 + $0x51] sm:$0xff] %v1432
      %1462 = vst [vmem:[%s1455 + $0x61] sm:$0xff] %v1433
      %1463 = vst [vmem:[%s1455 + $0x71] sm:$0xff] %v1434
      %v1464 = vld [vmem:[#allocation2] sm:$0xff]
      %v1465 = vld [vmem:[#allocation2 + $0x10] sm:$0xff]
      %v1466 = vld [vmem:[#allocation2 + $0x20] sm:$0xff]
      %v1467 = vld [vmem:[#allocation2 + $0x30] sm:$0xff]
      %v1468 = vld [vmem:[#allocation2 + $0x40] sm:$0xff]
      %v1469 = vld [vmem:[#allocation2 + $0x50] sm:$0xff]
      %v1470 = vld [vmem:[#allocation2 + $0x60] sm:$0xff]
      %v1471 = vld [vmem:[#allocation2 + $0x70] sm:$0xff]
      %v1472 = vpack.c.bf16 %v1465, %v1464
      %v1473 = vpack.c.bf16 %v1467, %v1466
      %v1474 = vpack.c.bf16 %v1469, %v1468
      %v1475 = vpack.c.bf16 %v1471, %v1470
      %v1476 = vld [vmem:[%s3] sm:$0xf]
      %v1477 = vld [vmem:[%s3 + $0x4] sm:$0xf]
      %v1478 = vld [vmem:[%s3 + $0x8] sm:$0xf]
      %v1479 = vld [vmem:[%s3 + $0xc] sm:$0xf]
      %v1480 = vld [vmem:[%s3 + $0x10] sm:$0xf]
      %v1481 = vld [vmem:[%s3 + $0x14] sm:$0xf]
      %v1482 = vld [vmem:[%s3 + $0x18] sm:$0xf]
      %v1483 = vld [vmem:[%s3 + $0x1c] sm:$0xf]
      %v1484 = vld [vmem:[%s3 + $0x20] sm:$0xf]
      %v1485 = vld [vmem:[%s3 + $0x24] sm:$0xf]
      %v1486 = vld [vmem:[%s3 + $0x28] sm:$0xf]
      %v1487 = vld [vmem:[%s3 + $0x2c] sm:$0xf]
      %v1488 = vld [vmem:[%s3 + $0x30] sm:$0xf]
      %v1489 = vld [vmem:[%s3 + $0x34] sm:$0xf]
      %v1490 = vld [vmem:[%s3 + $0x38] sm:$0xf]
      %v1491 = vld [vmem:[%s3 + $0x3c] sm:$0xf]
      %v1492 = vld [vmem:[#allocation2 + $0x1] sm:$0xff]
      %v1493 = vld [vmem:[#allocation2 + $0x11] sm:$0xff]
      %v1494 = vld [vmem:[#allocation2 + $0x21] sm:$0xff]
      %v1495 = vld [vmem:[#allocation2 + $0x31] sm:$0xff]
      %v1496 = vld [vmem:[#allocation2 + $0x41] sm:$0xff]
      %v1497 = vld [vmem:[#allocation2 + $0x51] sm:$0xff]
      %v1498 = vld [vmem:[#allocation2 + $0x61] sm:$0xff]
      %v1499 = vld [vmem:[#allocation2 + $0x71] sm:$0xff]
      %v1500 = vpack.c.bf16 %v1493, %v1492
      %v1501 = vpack.c.bf16 %v1495, %v1494
      %v1502 = vpack.c.bf16 %v1497, %v1496
      %v1503 = vpack.c.bf16 %v1499, %v1498
      %s1504 = scalar_lea.vmem %s3, 64
      %v1505 = vld [vmem:[%s1504] sm:$0xf]
      %v1506 = vld [vmem:[%s1504 + $0x4] sm:$0xf]
      %v1507 = vld [vmem:[%s1504 + $0x8] sm:$0xf]
      %v1508 = vld [vmem:[%s1504 + $0xc] sm:$0xf]
      %v1509 = vld [vmem:[%s1504 + $0x10] sm:$0xf]
      %v1510 = vld [vmem:[%s1504 + $0x14] sm:$0xf]
      %v1511 = vld [vmem:[%s1504 + $0x18] sm:$0xf]
      %v1512 = vld [vmem:[%s1504 + $0x1c] sm:$0xf]
      %v1513 = vld [vmem:[%s1504 + $0x20] sm:$0xf]
      %v1514 = vld [vmem:[%s1504 + $0x24] sm:$0xf]
      %v1515 = vld [vmem:[%s1504 + $0x28] sm:$0xf]
      %v1516 = vld [vmem:[%s1504 + $0x2c] sm:$0xf]
      %v1517 = vld [vmem:[%s1504 + $0x30] sm:$0xf]
      %v1518 = vld [vmem:[%s1504 + $0x34] sm:$0xf]
      %v1519 = vld [vmem:[%s1504 + $0x38] sm:$0xf]
      %v1520 = vld [vmem:[%s1504 + $0x3c] sm:$0xf]
      %v1537 = vunpack.c.l.b16 %v1505
      %v1538 = vunpack.c.l.b16 %v1506
      %v1539 = vunpack.c.l.b16 %v1507
      %v1540 = vunpack.c.l.b16 %v1508
      %v1541 = vunpack.c.l.b16 %v1509
      %v1542 = vunpack.c.l.b16 %v1510
      %v1543 = vunpack.c.l.b16 %v1511
      %v1544 = vunpack.c.l.b16 %v1512
      %v1545 = vunpack.c.l.b16 %v1513
      %v1546 = vunpack.c.l.b16 %v1514
      %v1547 = vunpack.c.l.b16 %v1515
      %v1548 = vunpack.c.l.b16 %v1516
      %v1549 = vunpack.c.l.b16 %v1517
      %v1550 = vunpack.c.l.b16 %v1518
      %v1551 = vunpack.c.l.b16 %v1519
      %v1552 = vunpack.c.l.b16 %v1520
      %v1553 = vpack.c.b16 %v1538, %v1537
      %v1554 = vpack.c.b16 %v1540, %v1539
      %v1555 = vpack.c.b16 %v1542, %v1541
      %v1556 = vpack.c.b16 %v1544, %v1543
      %v1557 = vpack.c.b16 %v1546, %v1545
      %v1558 = vpack.c.b16 %v1548, %v1547
      %v1559 = vpack.c.b16 %v1550, %v1549
      %v1560 = vpack.c.b16 %v1552, %v1551
      %1569 = vmatprep.subr.bf16.mxu0 0
      %1570 = vmatpush1.bf16.msra.mxu0 %v1553
      %1571 = vmatprep.subr.bf16.mxu0 0
      %1572 = vmatpush1.bf16.msra.mxu0 %v1554
      %1573 = vmatprep.subr.bf16.mxu0 0
      %1574 = vmatpush1.bf16.msra.mxu0 %v1555
      %1575 = vmatprep.subr.bf16.mxu0 0
      %1576 = vmatpush1.bf16.msra.mxu0 %v1556
      %1577 = vmatprep.subr.bf16.mxu0 0
      %1578 = vmatpush1.bf16.msra.mxu0 %v1557
      %1579 = vmatprep.subr.bf16.mxu0 0
      %1580 = vmatpush1.bf16.msra.mxu0 %v1558
      %1581 = vmatprep.subr.bf16.mxu0 0
      %1582 = vmatpush1.bf16.msra.mxu0 %v1559
      %1583 = vmatprep.subr.bf16.mxu0 0
      %1584 = vmatpush1.bf16.msra.mxu0 %v1560
      %1585 = vmatprep.subr.bf16.mxu0 0
      %1586 = vmatpush1.bf16.msra.mxu0 0
      %1587 = vmatprep.subr.bf16.mxu0 0
      %1588 = vmatpush1.bf16.msra.mxu0 0
      %1589 = vmatprep.subr.bf16.mxu0 0
      %1590 = vmatpush1.bf16.msra.mxu0 0
      %1591 = vmatprep.subr.bf16.mxu0 0
      %1592 = vmatpush1.bf16.msra.mxu0 0
      %1593 = vmatprep.subr.bf16.mxu0 0
      %1594 = vmatpush1.bf16.msra.mxu0 0
      %1595 = vmatprep.subr.bf16.mxu0 0
      %1596 = vmatpush1.bf16.msra.mxu0 0
      %1597 = vmatprep.subr.bf16.mxu0 0
      %1598 = vmatpush1.bf16.msra.mxu0 0
      %1599 = vmatprep.subr.bf16.mxu0 0
      %1600 = vmatpush1.bf16.msra.mxu0 0
      %1601 = vmatprep.mubr.bf16.mxu0 0
      %1602 = vmatmul.mubr.bf16.gmra.mrb[0].mxu0 %v1500
      %v1603 = vpop.f32.mrb[0].mxu0
      %v1604 = vadd.f32 0.0, %v1603
      %v1605 = vpop.f32.mrb[0].mxu0
      %v1606 = vpop.f32.mrb[0].mxu0
      %v1607 = vadd.f32 0.0, %v1606
      %v1608 = vpop.f32.mrb[0].mxu0
      %1609 = vmatprep.mubr.bf16.mxu0 0
      %1610 = vmatmul.mubr.bf16.gmra.mrb[0].mxu0 %v1501
      %v1611 = vpop.f32.mrb[0].mxu0
      %v1612 = vadd.f32 0.0, %v1611
      %v1613 = vpop.f32.mrb[0].mxu0
      %v1614 = vpop.f32.mrb[0].mxu0
      %v1615 = vadd.f32 0.0, %v1614
      %v1616 = vpop.f32.mrb[0].mxu0
      %1617 = vmatprep.mubr.bf16.mxu0 0
      %1618 = vmatmul.mubr.bf16.gmra.mrb[0].mxu0 %v1502
      %v1619 = vpop.f32.mrb[0].mxu0
      %v1620 = vadd.f32 0.0, %v1619
      %v1621 = vpop.f32.mrb[0].mxu0
      %v1622 = vpop.f32.mrb[0].mxu0
      %v1623 = vadd.f32 0.0, %v1622
      %v1624 = vpop.f32.mrb[0].mxu0
      %1625 = vmatprep.mubr.bf16.mxu0 0
      %1626 = vmatmul.mubr.bf16.gmra.mrb[0].mxu0 %v1503
      %v1627 = vpop.f32.mrb[0].mxu0
      %v1628 = vadd.f32 0.0, %v1627
      %v1629 = vpop.f32.mrb[0].mxu0
      %v1630 = vpop.f32.mrb[0].mxu0
      %v1631 = vadd.f32 0.0, %v1630
      %v1632 = vpop.f32.mrb[0].mxu0
      %1633 = vdwg.mxu0
      %v1650 = vunpack.c.l.b16 %v1476
      %v1651 = vunpack.c.l.b16 %v1477
      %v1652 = vunpack.c.l.b16 %v1478
      %v1653 = vunpack.c.l.b16 %v1479
      %v1654 = vunpack.c.l.b16 %v1480
      %v1655 = vunpack.c.l.b16 %v1481
      %v1656 = vunpack.c.l.b16 %v1482
      %v1657 = vunpack.c.l.b16 %v1483
      %v1658 = vunpack.c.l.b16 %v1484
      %v1659 = vunpack.c.l.b16 %v1485
      %v1660 = vunpack.c.l.b16 %v1486
      %v1661 = vunpack.c.l.b16 %v1487
      %v1662 = vunpack.c.l.b16 %v1488
      %v1663 = vunpack.c.l.b16 %v1489
      %v1664 = vunpack.c.l.b16 %v1490
      %v1665 = vunpack.c.l.b16 %v1491
      %v1666 = vpack.c.b16 %v1651, %v1650
      %v1667 = vpack.c.b16 %v1653, %v1652
      %v1668 = vpack.c.b16 %v1655, %v1654
      %v1669 = vpack.c.b16 %v1657, %v1656
      %v1670 = vpack.c.b16 %v1659, %v1658
      %v1671 = vpack.c.b16 %v1661, %v1660
      %v1672 = vpack.c.b16 %v1663, %v1662
      %v1673 = vpack.c.b16 %v1665, %v1664
      %1682 = vmatprep.subr.bf16.mxu0 0
      %1683 = vmatpush1.bf16.msra.mxu0 %v1666
      %1684 = vmatprep.subr.bf16.mxu0 0
      %1685 = vmatpush1.bf16.msra.mxu0 %v1667
      %1686 = vmatprep.subr.bf16.mxu0 0
      %1687 = vmatpush1.bf16.msra.mxu0 %v1668
      %1688 = vmatprep.subr.bf16.mxu0 0
      %1689 = vmatpush1.bf16.msra.mxu0 %v1669
      %1690 = vmatprep.subr.bf16.mxu0 0
      %1691 = vmatpush1.bf16.msra.mxu0 %v1670
      %1692 = vmatprep.subr.bf16.mxu0 0
      %1693 = vmatpush1.bf16.msra.mxu0 %v1671
      %1694 = vmatprep.subr.bf16.mxu0 0
      %1695 = vmatpush1.bf16.msra.mxu0 %v1672
      %1696 = vmatprep.subr.bf16.mxu0 0
      %1697 = vmatpush1.bf16.msra.mxu0 %v1673
      %1698 = vmatprep.subr.bf16.mxu0 0
      %1699 = vmatpush1.bf16.msra.mxu0 0
      %1700 = vmatprep.subr.bf16.mxu0 0
      %1701 = vmatpush1.bf16.msra.mxu0 0
      %1702 = vmatprep.subr.bf16.mxu0 0
      %1703 = vmatpush1.bf16.msra.mxu0 0
      %1704 = vmatprep.subr.bf16.mxu0 0
      %1705 = vmatpush1.bf16.msra.mxu0 0
      %1706 = vmatprep.subr.bf16.mxu0 0
      %1707 = vmatpush1.bf16.msra.mxu0 0
      %1708 = vmatprep.subr.bf16.mxu0 0
      %1709 = vmatpush1.bf16.msra.mxu0 0
      %1710 = vmatprep.subr.bf16.mxu0 0
      %1711 = vmatpush1.bf16.msra.mxu0 0
      %1712 = vmatprep.subr.bf16.mxu0 0
      %1713 = vmatpush1.bf16.msra.mxu0 0
      %1714 = vmatprep.mubr.bf16.mxu0 0
      %1715 = vmatmul.mubr.bf16.gmra.mrb[0].mxu0 %v1472
      %v1716 = vpop.f32.mrb[0].mxu0
      %v1717 = vadd.f32 %v1604, %v1716
      %v1718 = vpop.f32.mrb[0].mxu0
      %v1719 = vpop.f32.mrb[0].mxu0
      %v1720 = vadd.f32 %v1607, %v1719
      %v1721 = vpop.f32.mrb[0].mxu0
      %1722 = vmatprep.mubr.bf16.mxu0 0
      %1723 = vmatmul.mubr.bf16.gmra.mrb[0].mxu0 %v1473
      %v1724 = vpop.f32.mrb[0].mxu0
      %v1725 = vadd.f32 %v1612, %v1724
      %v1726 = vpop.f32.mrb[0].mxu0
      %v1727 = vpop.f32.mrb[0].mxu0
      %v1728 = vadd.f32 %v1615, %v1727
      %v1729 = vpop.f32.mrb[0].mxu0
      %1730 = vmatprep.mubr.bf16.mxu0 0
      %1731 = vmatmul.mubr.bf16.gmra.mrb[0].mxu0 %v1474
      %v1732 = vpop.f32.mrb[0].mxu0
      %v1733 = vadd.f32 %v1620, %v1732
      %v1734 = vpop.f32.mrb[0].mxu0
      %v1735 = vpop.f32.mrb[0].mxu0
      %v1736 = vadd.f32 %v1623, %v1735
      %v1737 = vpop.f32.mrb[0].mxu0
      %1738 = vmatprep.mubr.bf16.mxu0 0
      %1739 = vmatmul.mubr.bf16.gmra.mrb[0].mxu0 %v1475
      %v1740 = vpop.f32.mrb[0].mxu0
      %v1741 = vadd.f32 %v1628, %v1740
      %v1742 = vpop.f32.mrb[0].mxu0
      %v1743 = vpop.f32.mrb[0].mxu0
      %v1744 = vadd.f32 %v1631, %v1743
      %v1745 = vpop.f32.mrb[0].mxu0
      %1746 = vdwg.mxu0
      %v1747 = vld [vmem:[#allocation2 + $0x2] sm:$0xff]
      %v1748 = vld [vmem:[#allocation2 + $0x12] sm:$0xff]
      %v1749 = vld [vmem:[#allocation2 + $0x22] sm:$0xff]
      %v1750 = vld [vmem:[#allocation2 + $0x32] sm:$0xff]
      %v1751 = vld [vmem:[#allocation2 + $0x42] sm:$0xff]
      %v1752 = vld [vmem:[#allocation2 + $0x52] sm:$0xff]
      %v1753 = vld [vmem:[#allocation2 + $0x62] sm:$0xff]
      %v1754 = vld [vmem:[#allocation2 + $0x72] sm:$0xff]
      %v1755 = vpack.c.bf16 %v1748, %v1747
      %v1756 = vpack.c.bf16 %v1750, %v1749
      %v1757 = vpack.c.bf16 %v1752, %v1751
      %v1758 = vpack.c.bf16 %v1754, %v1753
      %s1759 = scalar_lea.vmem %s3, 128
      %v1760 = vld [vmem:[%s1759] sm:$0xf]
      %v1761 = vld [vmem:[%s1759 + $0x4] sm:$0xf]
      %v1762 = vld [vmem:[%s1759 + $0x8] sm:$0xf]
      %v1763 = vld [vmem:[%s1759 + $0xc] sm:$0xf]
      %v1764 = vld [vmem:[%s1759 + $0x10] sm:$0xf]
      %v1765 = vld [vmem:[%s1759 + $0x14] sm:$0xf]
      %v1766 = vld [vmem:[%s1759 + $0x18] sm:$0xf]
      %v1767 = vld [vmem:[%s1759 + $0x1c] sm:$0xf]
      %v1768 = vld [vmem:[%s1759 + $0x20] sm:$0xf]
      %v1769 = vld [vmem:[%s1759 + $0x24] sm:$0xf]
      %v1770 = vld [vmem:[%s1759 + $0x28] sm:$0xf]
      %v1771 = vld [vmem:[%s1759 + $0x2c] sm:$0xf]
      %v1772 = vld [vmem:[%s1759 + $0x30] sm:$0xf]
      %v1773 = vld [vmem:[%s1759 + $0x34] sm:$0xf]
      %v1774 = vld [vmem:[%s1759 + $0x38] sm:$0xf]
      %v1775 = vld [vmem:[%s1759 + $0x3c] sm:$0xf]
      %v1792 = vunpack.c.l.b16 %v1760
      %v1793 = vunpack.c.l.b16 %v1761
      %v1794 = vunpack.c.l.b16 %v1762
      %v1795 = vunpack.c.l.b16 %v1763
      %v1796 = vunpack.c.l.b16 %v1764
      %v1797 = vunpack.c.l.b16 %v1765
      %v1798 = vunpack.c.l.b16 %v1766
      %v1799 = vunpack.c.l.b16 %v1767
      %v1800 = vunpack.c.l.b16 %v1768
      %v1801 = vunpack.c.l.b16 %v1769
      %v1802 = vunpack.c.l.b16 %v1770
      %v1803 = vunpack.c.l.b16 %v1771
      %v1804 = vunpack.c.l.b16 %v1772
      %v1805 = vunpack.c.l.b16 %v1773
      %v1806 = vunpack.c.l.b16 %v1774
      %v1807 = vunpack.c.l.b16 %v1775
      %v1808 = vpack.c.b16 %v1793, %v1792
      %v1809 = vpack.c.b16 %v1795, %v1794
      %v1810 = vpack.c.b16 %v1797, %v1796
      %v1811 = vpack.c.b16 %v1799, %v1798
      %v1812 = vpack.c.b16 %v1801, %v1800
      %v1813 = vpack.c.b16 %v1803, %v1802
      %v1814 = vpack.c.b16 %v1805, %v1804
      %v1815 = vpack.c.b16 %v1807, %v1806
      %1824 = vmatprep.subr.bf16.mxu0 0
      %1825 = vmatpush1.bf16.msra.mxu0 %v1808
      %1826 = vmatprep.subr.bf16.mxu0 0
      %1827 = vmatpush1.bf16.msra.mxu0 %v1809
      %1828 = vmatprep.subr.bf16.mxu0 0
      %1829 = vmatpush1.bf16.msra.mxu0 %v1810
      %1830 = vmatprep.subr.bf16.mxu0 0
      %1831 = vmatpush1.bf16.msra.mxu0 %v1811
      %1832 = vmatprep.subr.bf16.mxu0 0
      %1833 = vmatpush1.bf16.msra.mxu0 %v1812
      %1834 = vmatprep.subr.bf16.mxu0 0
      %1835 = vmatpush1.bf16.msra.mxu0 %v1813
      %1836 = vmatprep.subr.bf16.mxu0 0
      %1837 = vmatpush1.bf16.msra.mxu0 %v1814
      %1838 = vmatprep.subr.bf16.mxu0 0
      %1839 = vmatpush1.bf16.msra.mxu0 %v1815
      %1840 = vmatprep.subr.bf16.mxu0 0
      %1841 = vmatpush1.bf16.msra.mxu0 0
      %1842 = vmatprep.subr.bf16.mxu0 0
      %1843 = vmatpush1.bf16.msra.mxu0 0
      %1844 = vmatprep.subr.bf16.mxu0 0
      %1845 = vmatpush1.bf16.msra.mxu0 0
      %1846 = vmatprep.subr.bf16.mxu0 0
      %1847 = vmatpush1.bf16.msra.mxu0 0
      %1848 = vmatprep.subr.bf16.mxu0 0
      %1849 = vmatpush1.bf16.msra.mxu0 0
      %1850 = vmatprep.subr.bf16.mxu0 0
      %1851 = vmatpush1.bf16.msra.mxu0 0
      %1852 = vmatprep.subr.bf16.mxu0 0
      %1853 = vmatpush1.bf16.msra.mxu0 0
      %1854 = vmatprep.subr.bf16.mxu0 0
      %1855 = vmatpush1.bf16.msra.mxu0 0
      %1856 = vmatprep.mubr.bf16.mxu0 0
      %1857 = vmatmul.mubr.bf16.gmra.mrb[0].mxu0 %v1755
      %v1858 = vpop.f32.mrb[0].mxu0
      %v1859 = vadd.f32 0.0, %v1858
      %v1860 = vpop.f32.mrb[0].mxu0
      %v1861 = vpop.f32.mrb[0].mxu0
      %v1862 = vadd.f32 0.0, %v1861
      %v1863 = vpop.f32.mrb[0].mxu0
      %1864 = vmatprep.mubr.bf16.mxu0 0
      %1865 = vmatmul.mubr.bf16.gmra.mrb[0].mxu0 %v1756
      %v1866 = vpop.f32.mrb[0].mxu0
      %v1867 = vadd.f32 0.0, %v1866
      %v1868 = vpop.f32.mrb[0].mxu0
      %v1869 = vpop.f32.mrb[0].mxu0
      %v1870 = vadd.f32 0.0, %v1869
      %v1871 = vpop.f32.mrb[0].mxu0
      %1872 = vmatprep.mubr.bf16.mxu0 0
      %1873 = vmatmul.mubr.bf16.gmra.mrb[0].mxu0 %v1757
      %v1874 = vpop.f32.mrb[0].mxu0
      %v1875 = vadd.f32 0.0, %v1874
      %v1876 = vpop.f32.mrb[0].mxu0
      %v1877 = vpop.f32.mrb[0].mxu0
      %v1878 = vadd.f32 0.0, %v1877
      %v1879 = vpop.f32.mrb[0].mxu0
      %1880 = vmatprep.mubr.bf16.mxu0 0
      %1881 = vmatmul.mubr.bf16.gmra.mrb[0].mxu0 %v1758
      %v1882 = vpop.f32.mrb[0].mxu0
      %v1883 = vadd.f32 0.0, %v1882
      %v1884 = vpop.f32.mrb[0].mxu0
      %v1885 = vpop.f32.mrb[0].mxu0
      %v1886 = vadd.f32 0.0, %v1885
      %v1887 = vpop.f32.mrb[0].mxu0
      %1888 = vdwg.mxu0
      %v1889 = vadd.f32 %v1717, %v1859
      %v1890 = vadd.f32 %v1720, %v1862
      %v1891 = vadd.f32 %v1725, %v1867
      %v1892 = vadd.f32 %v1728, %v1870
      %v1893 = vadd.f32 %v1733, %v1875
      %v1894 = vadd.f32 %v1736, %v1878
      %v1895 = vadd.f32 %v1741, %v1883
      %v1896 = vadd.f32 %v1744, %v1886
      %v1897 = vld [vmem:[%s1455] sm:$0xff]
      %v1898 = vld [vmem:[%s1455 + $0x10] sm:$0xff]
      %v1899 = vld [vmem:[%s1455 + $0x20] sm:$0xff]
      %v1900 = vld [vmem:[%s1455 + $0x30] sm:$0xff]
      %v1901 = vld [vmem:[%s1455 + $0x40] sm:$0xff]
      %v1902 = vld [vmem:[%s1455 + $0x50] sm:$0xff]
      %v1903 = vld [vmem:[%s1455 + $0x60] sm:$0xff]
      %v1904 = vld [vmem:[%s1455 + $0x70] sm:$0xff]
      %v1905 = vpack.c.bf16 %v1898, %v1897
      %v1906 = vpack.c.bf16 %v1900, %v1899
      %v1907 = vpack.c.bf16 %v1902, %v1901
      %v1908 = vpack.c.bf16 %v1904, %v1903
      %s1909 = scalar_lea.vmem %s3, 192
      %v1910 = vld [vmem:[%s1909] sm:$0xf]
      %v1911 = vld [vmem:[%s1909 + $0x4] sm:$0xf]
      %v1912 = vld [vmem:[%s1909 + $0x8] sm:$0xf]
      %v1913 = vld [vmem:[%s1909 + $0xc] sm:$0xf]
      %v1914 = vld [vmem:[%s1909 + $0x10] sm:$0xf]
      %v1915 = vld [vmem:[%s1909 + $0x14] sm:$0xf]
      %v1916 = vld [vmem:[%s1909 + $0x18] sm:$0xf]
      %v1917 = vld [vmem:[%s1909 + $0x1c] sm:$0xf]
      %v1918 = vld [vmem:[%s1909 + $0x20] sm:$0xf]
      %v1919 = vld [vmem:[%s1909 + $0x24] sm:$0xf]
      %v1920 = vld [vmem:[%s1909 + $0x28] sm:$0xf]
      %v1921 = vld [vmem:[%s1909 + $0x2c] sm:$0xf]
      %v1922 = vld [vmem:[%s1909 + $0x30] sm:$0xf]
      %v1923 = vld [vmem:[%s1909 + $0x34] sm:$0xf]
      %v1924 = vld [vmem:[%s1909 + $0x38] sm:$0xf]
      %v1925 = vld [vmem:[%s1909 + $0x3c] sm:$0xf]
      %v1942 = vunpack.c.l.b16 %v1910
      %v1943 = vunpack.c.l.b16 %v1911
      %v1944 = vunpack.c.l.b16 %v1912
      %v1945 = vunpack.c.l.b16 %v1913
      %v1946 = vunpack.c.l.b16 %v1914
      %v1947 = vunpack.c.l.b16 %v1915
      %v1948 = vunpack.c.l.b16 %v1916
      %v1949 = vunpack.c.l.b16 %v1917
      %v1950 = vunpack.c.l.b16 %v1918
      %v1951 = vunpack.c.l.b16 %v1919
      %v1952 = vunpack.c.l.b16 %v1920
      %v1953 = vunpack.c.l.b16 %v1921
      %v1954 = vunpack.c.l.b16 %v1922
      %v1955 = vunpack.c.l.b16 %v1923
      %v1956 = vunpack.c.l.b16 %v1924
      %v1957 = vunpack.c.l.b16 %v1925
      %v1958 = vpack.c.b16 %v1943, %v1942
      %v1959 = vpack.c.b16 %v1945, %v1944
      %v1960 = vpack.c.b16 %v1947, %v1946
      %v1961 = vpack.c.b16 %v1949, %v1948
      %v1962 = vpack.c.b16 %v1951, %v1950
      %v1963 = vpack.c.b16 %v1953, %v1952
      %v1964 = vpack.c.b16 %v1955, %v1954
      %v1965 = vpack.c.b16 %v1957, %v1956
      %1974 = vmatprep.subr.bf16.mxu0 0
      %1975 = vmatpush1.bf16.msra.mxu0 %v1958
      %1976 = vmatprep.subr.bf16.mxu0 0
      %1977 = vmatpush1.bf16.msra.mxu0 %v1959
      %1978 = vmatprep.subr.bf16.mxu0 0
      %1979 = vmatpush1.bf16.msra.mxu0 %v1960
      %1980 = vmatprep.subr.bf16.mxu0 0
      %1981 = vmatpush1.bf16.msra.mxu0 %v1961
      %1982 = vmatprep.subr.bf16.mxu0 0
      %1983 = vmatpush1.bf16.msra.mxu0 %v1962
      %1984 = vmatprep.subr.bf16.mxu0 0
      %1985 = vmatpush1.bf16.msra.mxu0 %v1963
      %1986 = vmatprep.subr.bf16.mxu0 0
      %1987 = vmatpush1.bf16.msra.mxu0 %v1964
      %1988 = vmatprep.subr.bf16.mxu0 0
      %1989 = vmatpush1.bf16.msra.mxu0 %v1965
      %1990 = vmatprep.subr.bf16.mxu0 0
      %1991 = vmatpush1.bf16.msra.mxu0 0
      %1992 = vmatprep.subr.bf16.mxu0 0
      %1993 = vmatpush1.bf16.msra.mxu0 0
      %1994 = vmatprep.subr.bf16.mxu0 0
      %1995 = vmatpush1.bf16.msra.mxu0 0
      %1996 = vmatprep.subr.bf16.mxu0 0
      %1997 = vmatpush1.bf16.msra.mxu0 0
      %1998 = vmatprep.subr.bf16.mxu0 0
      %1999 = vmatpush1.bf16.msra.mxu0 0
      %2000 = vmatprep.subr.bf16.mxu0 0
      %2001 = vmatpush1.bf16.msra.mxu0 0
      %2002 = vmatprep.subr.bf16.mxu0 0
      %2003 = vmatpush1.bf16.msra.mxu0 0
      %2004 = vmatprep.subr.bf16.mxu0 0
      %2005 = vmatpush1.bf16.msra.mxu0 0
      %2006 = vmatprep.mubr.bf16.mxu0 0
      %2007 = vmatmul.mubr.bf16.gmra.mrb[0].mxu0 %v1905
      %v2008 = vpop.f32.mrb[0].mxu0
      %v2009 = vadd.f32 0.0, %v2008
      %v2010 = vpop.f32.mrb[0].mxu0
      %v2011 = vpop.f32.mrb[0].mxu0
      %v2012 = vadd.f32 0.0, %v2011
      %v2013 = vpop.f32.mrb[0].mxu0
      %2014 = vmatprep.mubr.bf16.mxu0 0
      %2015 = vmatmul.mubr.bf16.gmra.mrb[0].mxu0 %v1906
      %v2016 = vpop.f32.mrb[0].mxu0
      %v2017 = vadd.f32 0.0, %v2016
      %v2018 = vpop.f32.mrb[0].mxu0
      %v2019 = vpop.f32.mrb[0].mxu0
      %v2020 = vadd.f32 0.0, %v2019
      %v2021 = vpop.f32.mrb[0].mxu0
      %2022 = vmatprep.mubr.bf16.mxu0 0
      %2023 = vmatmul.mubr.bf16.gmra.mrb[0].mxu0 %v1907
      %v2024 = vpop.f32.mrb[0].mxu0
      %v2025 = vadd.f32 0.0, %v2024
      %v2026 = vpop.f32.mrb[0].mxu0
      %v2027 = vpop.f32.mrb[0].mxu0
      %v2028 = vadd.f32 0.0, %v2027
      %v2029 = vpop.f32.mrb[0].mxu0
      %2030 = vmatprep.mubr.bf16.mxu0 0
      %2031 = vmatmul.mubr.bf16.gmra.mrb[0].mxu0 %v1908
      %v2032 = vpop.f32.mrb[0].mxu0
      %v2033 = vadd.f32 0.0, %v2032
      %v2034 = vpop.f32.mrb[0].mxu0
      %v2035 = vpop.f32.mrb[0].mxu0
      %v2036 = vadd.f32 0.0, %v2035
      %v2037 = vpop.f32.mrb[0].mxu0
      %2038 = vdwg.mxu0
      %v2039 = vadd.f32 %v1889, %v2009
      %v2040 = vadd.f32 %v1890, %v2012
      %v2041 = vadd.f32 %v1891, %v2017
      %v2042 = vadd.f32 %v1892, %v2020
      %v2043 = vadd.f32 %v1893, %v2025
      %v2044 = vadd.f32 %v1894, %v2028
      %v2045 = vadd.f32 %v1895, %v2033
      %v2046 = vadd.f32 %v1896, %v2036
      %v2047 = vld [vmem:[%s1455 + $0x1] sm:$0xff]
      %v2048 = vld [vmem:[%s1455 + $0x11] sm:$0xff]
      %v2049 = vld [vmem:[%s1455 + $0x21] sm:$0xff]
      %v2050 = vld [vmem:[%s1455 + $0x31] sm:$0xff]
      %v2051 = vld [vmem:[%s1455 + $0x41] sm:$0xff]
      %v2052 = vld [vmem:[%s1455 + $0x51] sm:$0xff]
      %v2053 = vld [vmem:[%s1455 + $0x61] sm:$0xff]
      %v2054 = vld [vmem:[%s1455 + $0x71] sm:$0xff]
      %v2055 = vpack.c.bf16 %v2048, %v2047
      %v2056 = vpack.c.bf16 %v2050, %v2049
      %v2057 = vpack.c.bf16 %v2052, %v2051
      %v2058 = vpack.c.bf16 %v2054, %v2053
      %s2059 = scalar_lea.vmem %s3, 256
      %v2060 = vld [vmem:[%s2059] sm:$0xf]
      %v2061 = vld [vmem:[%s2059 + $0x4] sm:$0xf]
      %v2062 = vld [vmem:[%s2059 + $0x8] sm:$0xf]
      %v2063 = vld [vmem:[%s2059 + $0xc] sm:$0xf]
      %v2064 = vld [vmem:[%s2059 + $0x10] sm:$0xf]
      %v2065 = vld [vmem:[%s2059 + $0x14] sm:$0xf]
      %v2066 = vld [vmem:[%s2059 + $0x18] sm:$0xf]
      %v2067 = vld [vmem:[%s2059 + $0x1c] sm:$0xf]
      %v2068 = vld [vmem:[%s2059 + $0x20] sm:$0xf]
      %v2069 = vld [vmem:[%s2059 + $0x24] sm:$0xf]
      %v2070 = vld [vmem:[%s2059 + $0x28] sm:$0xf]
      %v2071 = vld [vmem:[%s2059 + $0x2c] sm:$0xf]
      %v2072 = vld [vmem:[%s2059 + $0x30] sm:$0xf]
      %v2073 = vld [vmem:[%s2059 + $0x34] sm:$0xf]
      %v2074 = vld [vmem:[%s2059 + $0x38] sm:$0xf]
      %v2075 = vld [vmem:[%s2059 + $0x3c] sm:$0xf]
      %v2092 = vunpack.c.l.b16 %v2060
      %v2093 = vunpack.c.l.b16 %v2061
      %v2094 = vunpack.c.l.b16 %v2062
      %v2095 = vunpack.c.l.b16 %v2063
      %v2096 = vunpack.c.l.b16 %v2064
      %v2097 = vunpack.c.l.b16 %v2065
      %v2098 = vunpack.c.l.b16 %v2066
      %v2099 = vunpack.c.l.b16 %v2067
      %v2100 = vunpack.c.l.b16 %v2068
      %v2101 = vunpack.c.l.b16 %v2069
      %v2102 = vunpack.c.l.b16 %v2070
      %v2103 = vunpack.c.l.b16 %v2071
      %v2104 = vunpack.c.l.b16 %v2072
      %v2105 = vunpack.c.l.b16 %v2073
      %v2106 = vunpack.c.l.b16 %v2074
      %v2107 = vunpack.c.l.b16 %v2075
      %v2108 = vpack.c.b16 %v2093, %v2092
      %v2109 = vpack.c.b16 %v2095, %v2094
      %v2110 = vpack.c.b16 %v2097, %v2096
      %v2111 = vpack.c.b16 %v2099, %v2098
      %v2112 = vpack.c.b16 %v2101, %v2100
      %v2113 = vpack.c.b16 %v2103, %v2102
      %v2114 = vpack.c.b16 %v2105, %v2104
      %v2115 = vpack.c.b16 %v2107, %v2106
      %2124 = vmatprep.subr.bf16.mxu0 0
      %2125 = vmatpush1.bf16.msra.mxu0 %v2108
      %2126 = vmatprep.subr.bf16.mxu0 0
      %2127 = vmatpush1.bf16.msra.mxu0 %v2109
      %2128 = vmatprep.subr.bf16.mxu0 0
      %2129 = vmatpush1.bf16.msra.mxu0 %v2110
      %2130 = vmatprep.subr.bf16.mxu0 0
      %2131 = vmatpush1.bf16.msra.mxu0 %v2111
      %2132 = vmatprep.subr.bf16.mxu0 0
      %2133 = vmatpush1.bf16.msra.mxu0 %v2112
      %2134 = vmatprep.subr.bf16.mxu0 0
      %2135 = vmatpush1.bf16.msra.mxu0 %v2113
      %2136 = vmatprep.subr.bf16.mxu0 0
      %2137 = vmatpush1.bf16.msra.mxu0 %v2114
      %2138 = vmatprep.subr.bf16.mxu0 0
      %2139 = vmatpush1.bf16.msra.mxu0 %v2115
      %2140 = vmatprep.subr.bf16.mxu0 0
      %2141 = vmatpush1.bf16.msra.mxu0 0
      %2142 = vmatprep.subr.bf16.mxu0 0
      %2143 = vmatpush1.bf16.msra.mxu0 0
      %2144 = vmatprep.subr.bf16.mxu0 0
      %2145 = vmatpush1.bf16.msra.mxu0 0
      %2146 = vmatprep.subr.bf16.mxu0 0
      %2147 = vmatpush1.bf16.msra.mxu0 0
      %2148 = vmatprep.subr.bf16.mxu0 0
      %2149 = vmatpush1.bf16.msra.mxu0 0
      %2150 = vmatprep.subr.bf16.mxu0 0
      %2151 = vmatpush1.bf16.msra.mxu0 0
      %2152 = vmatprep.subr.bf16.mxu0 0
      %2153 = vmatpush1.bf16.msra.mxu0 0
      %2154 = vmatprep.subr.bf16.mxu0 0
      %2155 = vmatpush1.bf16.msra.mxu0 0
      %2156 = vmatprep.mubr.bf16.mxu0 0
      %2157 = vmatmul.mubr.bf16.gmra.mrb[0].mxu0 %v2055
      %v2158 = vpop.f32.mrb[0].mxu0
      %v2159 = vadd.f32 0.0, %v2158
      %v2160 = vpop.f32.mrb[0].mxu0
      %v2161 = vpop.f32.mrb[0].mxu0
      %v2162 = vadd.f32 0.0, %v2161
      %v2163 = vpop.f32.mrb[0].mxu0
      %2164 = vmatprep.mubr.bf16.mxu0 0
      %2165 = vmatmul.mubr.bf16.gmra.mrb[0].mxu0 %v2056
      %v2166 = vpop.f32.mrb[0].mxu0
      %v2167 = vadd.f32 0.0, %v2166
      %v2168 = vpop.f32.mrb[0].mxu0
      %v2169 = vpop.f32.mrb[0].mxu0
      %v2170 = vadd.f32 0.0, %v2169
      %v2171 = vpop.f32.mrb[0].mxu0
      %2172 = vmatprep.mubr.bf16.mxu0 0
      %2173 = vmatmul.mubr.bf16.gmra.mrb[0].mxu0 %v2057
      %v2174 = vpop.f32.mrb[0].mxu0
      %v2175 = vadd.f32 0.0, %v2174
      %v2176 = vpop.f32.mrb[0].mxu0
      %v2177 = vpop.f32.mrb[0].mxu0
      %v2178 = vadd.f32 0.0, %v2177
      %v2179 = vpop.f32.mrb[0].mxu0
      %2180 = vmatprep.mubr.bf16.mxu0 0
      %2181 = vmatmul.mubr.bf16.gmra.mrb[0].mxu0 %v2058
      %v2182 = vpop.f32.mrb[0].mxu0
      %v2183 = vadd.f32 0.0, %v2182
      %v2184 = vpop.f32.mrb[0].mxu0
      %v2185 = vpop.f32.mrb[0].mxu0
      %v2186 = vadd.f32 0.0, %v2185
      %v2187 = vpop.f32.mrb[0].mxu0
      %2188 = vdwg.mxu0
      %v2189 = vadd.f32 %v2039, %v2159
      %v2190 = vadd.f32 %v2040, %v2162
      %v2191 = vadd.f32 %v2041, %v2167
      %v2192 = vadd.f32 %v2042, %v2170
      %v2193 = vadd.f32 %v2043, %v2175
      %v2194 = vadd.f32 %v2044, %v2178
      %v2195 = vadd.f32 %v2045, %v2183
      %v2196 = vadd.f32 %v2046, %v2186
      %v2197 = vld [vmem:[%s1455 + $0x2] sm:$0xff]
      %v2198 = vld [vmem:[%s1455 + $0x12] sm:$0xff]
      %v2199 = vld [vmem:[%s1455 + $0x22] sm:$0xff]
      %v2200 = vld [vmem:[%s1455 + $0x32] sm:$0xff]
      %v2201 = vld [vmem:[%s1455 + $0x42] sm:$0xff]
      %v2202 = vld [vmem:[%s1455 + $0x52] sm:$0xff]
      %v2203 = vld [vmem:[%s1455 + $0x62] sm:$0xff]
      %v2204 = vld [vmem:[%s1455 + $0x72] sm:$0xff]
      %v2205 = vpack.c.bf16 %v2198, %v2197
      %v2206 = vpack.c.bf16 %v2200, %v2199
      %v2207 = vpack.c.bf16 %v2202, %v2201
      %v2208 = vpack.c.bf16 %v2204, %v2203
      %s2209 = scalar_lea.vmem %s3, 320
      %v2210 = vld [vmem:[%s2209] sm:$0xf]
      %v2211 = vld [vmem:[%s2209 + $0x4] sm:$0xf]
      %v2212 = vld [vmem:[%s2209 + $0x8] sm:$0xf]
      %v2213 = vld [vmem:[%s2209 + $0xc] sm:$0xf]
      %v2214 = vld [vmem:[%s2209 + $0x10] sm:$0xf]
      %v2215 = vld [vmem:[%s2209 + $0x14] sm:$0xf]
      %v2216 = vld [vmem:[%s2209 + $0x18] sm:$0xf]
      %v2217 = vld [vmem:[%s2209 + $0x1c] sm:$0xf]
      %v2218 = vld [vmem:[%s2209 + $0x20] sm:$0xf]
      %v2219 = vld [vmem:[%s2209 + $0x24] sm:$0xf]
      %v2220 = vld [vmem:[%s2209 + $0x28] sm:$0xf]
      %v2221 = vld [vmem:[%s2209 + $0x2c] sm:$0xf]
      %v2222 = vld [vmem:[%s2209 + $0x30] sm:$0xf]
      %v2223 = vld [vmem:[%s2209 + $0x34] sm:$0xf]
      %v2224 = vld [vmem:[%s2209 + $0x38] sm:$0xf]
      %v2225 = vld [vmem:[%s2209 + $0x3c] sm:$0xf]
      %v2242 = vunpack.c.l.b16 %v2210
      %v2243 = vunpack.c.l.b16 %v2211
      %v2244 = vunpack.c.l.b16 %v2212
      %v2245 = vunpack.c.l.b16 %v2213
      %v2246 = vunpack.c.l.b16 %v2214
      %v2247 = vunpack.c.l.b16 %v2215
      %v2248 = vunpack.c.l.b16 %v2216
      %v2249 = vunpack.c.l.b16 %v2217
      %v2250 = vunpack.c.l.b16 %v2218
      %v2251 = vunpack.c.l.b16 %v2219
      %v2252 = vunpack.c.l.b16 %v2220
      %v2253 = vunpack.c.l.b16 %v2221
      %v2254 = vunpack.c.l.b16 %v2222
      %v2255 = vunpack.c.l.b16 %v2223
      %v2256 = vunpack.c.l.b16 %v2224
      %v2257 = vunpack.c.l.b16 %v2225
      %v2258 = vpack.c.b16 %v2243, %v2242
      %v2259 = vpack.c.b16 %v2245, %v2244
      %v2260 = vpack.c.b16 %v2247, %v2246
      %v2261 = vpack.c.b16 %v2249, %v2248
      %v2262 = vpack.c.b16 %v2251, %v2250
      %v2263 = vpack.c.b16 %v2253, %v2252
      %v2264 = vpack.c.b16 %v2255, %v2254
      %v2265 = vpack.c.b16 %v2257, %v2256
      %2274 = vmatprep.subr.bf16.mxu0 0
      %2275 = vmatpush1.bf16.msra.mxu0 %v2258
      %2276 = vmatprep.subr.bf16.mxu0 0
      %2277 = vmatpush1.bf16.msra.mxu0 %v2259
      %2278 = vmatprep.subr.bf16.mxu0 0
      %2279 = vmatpush1.bf16.msra.mxu0 %v2260
      %2280 = vmatprep.subr.bf16.mxu0 0
      %2281 = vmatpush1.bf16.msra.mxu0 %v2261
      %2282 = vmatprep.subr.bf16.mxu0 0
      %2283 = vmatpush1.bf16.msra.mxu0 %v2262
      %2284 = vmatprep.subr.bf16.mxu0 0
      %2285 = vmatpush1.bf16.msra.mxu0 %v2263
      %2286 = vmatprep.subr.bf16.mxu0 0
      %2287 = vmatpush1.bf16.msra.mxu0 %v2264
      %2288 = vmatprep.subr.bf16.mxu0 0
      %2289 = vmatpush1.bf16.msra.mxu0 %v2265
      %2290 = vmatprep.subr.bf16.mxu0 0
      %2291 = vmatpush1.bf16.msra.mxu0 0
      %2292 = vmatprep.subr.bf16.mxu0 0
      %2293 = vmatpush1.bf16.msra.mxu0 0
      %2294 = vmatprep.subr.bf16.mxu0 0
      %2295 = vmatpush1.bf16.msra.mxu0 0
      %2296 = vmatprep.subr.bf16.mxu0 0
      %2297 = vmatpush1.bf16.msra.mxu0 0
      %2298 = vmatprep.subr.bf16.mxu0 0
      %2299 = vmatpush1.bf16.msra.mxu0 0
      %2300 = vmatprep.subr.bf16.mxu0 0
      %2301 = vmatpush1.bf16.msra.mxu0 0
      %2302 = vmatprep.subr.bf16.mxu0 0
      %2303 = vmatpush1.bf16.msra.mxu0 0
      %2304 = vmatprep.subr.bf16.mxu0 0
      %2305 = vmatpush1.bf16.msra.mxu0 0
      %2306 = vmatprep.mubr.bf16.mxu0 0
      %2307 = vmatmul.mubr.bf16.gmra.mrb[0].mxu0 %v2205
      %v2308 = vpop.f32.mrb[0].mxu0
      %v2309 = vadd.f32 0.0, %v2308
      %v2310 = vpop.f32.mrb[0].mxu0
      %v2311 = vpop.f32.mrb[0].mxu0
      %v2312 = vadd.f32 0.0, %v2311
      %v2313 = vpop.f32.mrb[0].mxu0
      %2314 = vmatprep.mubr.bf16.mxu0 0
      %2315 = vmatmul.mubr.bf16.gmra.mrb[0].mxu0 %v2206
      %v2316 = vpop.f32.mrb[0].mxu0
      %v2317 = vadd.f32 0.0, %v2316
      %v2318 = vpop.f32.mrb[0].mxu0
      %v2319 = vpop.f32.mrb[0].mxu0
      %v2320 = vadd.f32 0.0, %v2319
      %v2321 = vpop.f32.mrb[0].mxu0
      %2322 = vmatprep.mubr.bf16.mxu0 0
      %2323 = vmatmul.mubr.bf16.gmra.mrb[0].mxu0 %v2207
      %v2324 = vpop.f32.mrb[0].mxu0
      %v2325 = vadd.f32 0.0, %v2324
      %v2326 = vpop.f32.mrb[0].mxu0
      %v2327 = vpop.f32.mrb[0].mxu0
      %v2328 = vadd.f32 0.0, %v2327
      %v2329 = vpop.f32.mrb[0].mxu0
      %2330 = vmatprep.mubr.bf16.mxu0 0
      %2331 = vmatmul.mubr.bf16.gmra.mrb[0].mxu0 %v2208
      %v2332 = vpop.f32.mrb[0].mxu0
      %v2333 = vadd.f32 0.0, %v2332
      %v2334 = vpop.f32.mrb[0].mxu0
      %v2335 = vpop.f32.mrb[0].mxu0
      %v2336 = vadd.f32 0.0, %v2335
      %v2337 = vpop.f32.mrb[0].mxu0
      %2338 = vdwg.mxu0
      %v2339 = vadd.f32 %v2189, %v2309
      %v2340 = vadd.f32 %v2190, %v2312
      %v2341 = vadd.f32 %v2191, %v2317
      %v2342 = vadd.f32 %v2192, %v2320
      %v2343 = vadd.f32 %v2193, %v2325
      %v2344 = vadd.f32 %v2194, %v2328
      %v2345 = vadd.f32 %v2195, %v2333
      %v2346 = vadd.f32 %v2196, %v2336
      %s2347 = scalar_lea.vmem [#allocation2], 32
      %v2348 = vld [vmem:[%s2347] sm:$0xff]
      %v2349 = vld [vmem:[%s2347 + $0x10] sm:$0xff]
      %v2350 = vld [vmem:[%s2347 + $0x20] sm:$0xff]
      %v2351 = vld [vmem:[%s2347 + $0x30] sm:$0xff]
      %v2352 = vld [vmem:[%s2347 + $0x40] sm:$0xff]
      %v2353 = vld [vmem:[%s2347 + $0x50] sm:$0xff]
      %v2354 = vld [vmem:[%s2347 + $0x60] sm:$0xff]
      %v2355 = vld [vmem:[%s2347 + $0x70] sm:$0xff]
      %v2356 = vpack.c.bf16 %v2349, %v2348
      %v2357 = vpack.c.bf16 %v2351, %v2350
      %v2358 = vpack.c.bf16 %v2353, %v2352
      %v2359 = vpack.c.bf16 %v2355, %v2354
      %s2360 = scalar_lea.vmem %s3, 384
      %v2361 = vld [vmem:[%s2360] sm:$0xf]
      %v2362 = vld [vmem:[%s2360 + $0x4] sm:$0xf]
      %v2363 = vld [vmem:[%s2360 + $0x8] sm:$0xf]
      %v2364 = vld [vmem:[%s2360 + $0xc] sm:$0xf]
      %v2365 = vld [vmem:[%s2360 + $0x10] sm:$0xf]
      %v2366 = vld [vmem:[%s2360 + $0x14] sm:$0xf]
      %v2367 = vld [vmem:[%s2360 + $0x18] sm:$0xf]
      %v2368 = vld [vmem:[%s2360 + $0x1c] sm:$0xf]
      %v2369 = vld [vmem:[%s2360 + $0x20] sm:$0xf]
      %v2370 = vld [vmem:[%s2360 + $0x24] sm:$0xf]
      %v2371 = vld [vmem:[%s2360 + $0x28] sm:$0xf]
      %v2372 = vld [vmem:[%s2360 + $0x2c] sm:$0xf]
      %v2373 = vld [vmem:[%s2360 + $0x30] sm:$0xf]
      %v2374 = vld [vmem:[%s2360 + $0x34] sm:$0xf]
      %v2375 = vld [vmem:[%s2360 + $0x38] sm:$0xf]
      %v2376 = vld [vmem:[%s2360 + $0x3c] sm:$0xf]
      %v2393 = vunpack.c.l.b16 %v2361
      %v2394 = vunpack.c.l.b16 %v2362
      %v2395 = vunpack.c.l.b16 %v2363
      %v2396 = vunpack.c.l.b16 %v2364
      %v2397 = vunpack.c.l.b16 %v2365
      %v2398 = vunpack.c.l.b16 %v2366
      %v2399 = vunpack.c.l.b16 %v2367
      %v2400 = vunpack.c.l.b16 %v2368
      %v2401 = vunpack.c.l.b16 %v2369
      %v2402 = vunpack.c.l.b16 %v2370
      %v2403 = vunpack.c.l.b16 %v2371
      %v2404 = vunpack.c.l.b16 %v2372
      %v2405 = vunpack.c.l.b16 %v2373
      %v2406 = vunpack.c.l.b16 %v2374
      %v2407 = vunpack.c.l.b16 %v2375
      %v2408 = vunpack.c.l.b16 %v2376
      %v2409 = vpack.c.b16 %v2394, %v2393
      %v2410 = vpack.c.b16 %v2396, %v2395
      %v2411 = vpack.c.b16 %v2398, %v2397
      %v2412 = vpack.c.b16 %v2400, %v2399
      %v2413 = vpack.c.b16 %v2402, %v2401
      %v2414 = vpack.c.b16 %v2404, %v2403
      %v2415 = vpack.c.b16 %v2406, %v2405
      %v2416 = vpack.c.b16 %v2408, %v2407
      %2425 = vmatprep.subr.bf16.mxu0 0
      %2426 = vmatpush1.bf16.msra.mxu0 %v2409
      %2427 = vmatprep.subr.bf16.mxu0 0
      %2428 = vmatpush1.bf16.msra.mxu0 %v2410
      %2429 = vmatprep.subr.bf16.mxu0 0
      %2430 = vmatpush1.bf16.msra.mxu0 %v2411
      %2431 = vmatprep.subr.bf16.mxu0 0
      %2432 = vmatpush1.bf16.msra.mxu0 %v2412
      %2433 = vmatprep.subr.bf16.mxu0 0
      %2434 = vmatpush1.bf16.msra.mxu0 %v2413
      %2435 = vmatprep.subr.bf16.mxu0 0
      %2436 = vmatpush1.bf16.msra.mxu0 %v2414
      %2437 = vmatprep.subr.bf16.mxu0 0
      %2438 = vmatpush1.bf16.msra.mxu0 %v2415
      %2439 = vmatprep.subr.bf16.mxu0 0
      %2440 = vmatpush1.bf16.msra.mxu0 %v2416
      %2441 = vmatprep.subr.bf16.mxu0 0
      %2442 = vmatpush1.bf16.msra.mxu0 0
      %2443 = vmatprep.subr.bf16.mxu0 0
      %2444 = vmatpush1.bf16.msra.mxu0 0
      %2445 = vmatprep.subr.bf16.mxu0 0
      %2446 = vmatpush1.bf16.msra.mxu0 0
      %2447 = vmatprep.subr.bf16.mxu0 0
      %2448 = vmatpush1.bf16.msra.mxu0 0
      %2449 = vmatprep.subr.bf16.mxu0 0
      %2450 = vmatpush1.bf16.msra.mxu0 0
      %2451 = vmatprep.subr.bf16.mxu0 0
      %2452 = vmatpush1.bf16.msra.mxu0 0
      %2453 = vmatprep.subr.bf16.mxu0 0
      %2454 = vmatpush1.bf16.msra.mxu0 0
      %2455 = vmatprep.subr.bf16.mxu0 0
      %2456 = vmatpush1.bf16.msra.mxu0 0
      %2457 = vmatprep.mubr.bf16.mxu0 0
      %2458 = vmatmul.mubr.bf16.gmra.mrb[0].mxu0 %v2356
      %v2459 = vpop.f32.mrb[0].mxu0
      %v2460 = vadd.f32 0.0, %v2459
      %v2461 = vpop.f32.mrb[0].mxu0
      %v2462 = vpop.f32.mrb[0].mxu0
      %v2463 = vadd.f32 0.0, %v2462
      %v2464 = vpop.f32.mrb[0].mxu0
      %2465 = vmatprep.mubr.bf16.mxu0 0
      %2466 = vmatmul.mubr.bf16.gmra.mrb[0].mxu0 %v2357
      %v2467 = vpop.f32.mrb[0].mxu0
      %v2468 = vadd.f32 0.0, %v2467
      %v2469 = vpop.f32.mrb[0].mxu0
      %v2470 = vpop.f32.mrb[0].mxu0
      %v2471 = vadd.f32 0.0, %v2470
      %v2472 = vpop.f32.mrb[0].mxu0
      %2473 = vmatprep.mubr.bf16.mxu0 0
      %2474 = vmatmul.mubr.bf16.gmra.mrb[0].mxu0 %v2358
      %v2475 = vpop.f32.mrb[0].mxu0
      %v2476 = vadd.f32 0.0, %v2475
      %v2477 = vpop.f32.mrb[0].mxu0
      %v2478 = vpop.f32.mrb[0].mxu0
      %v2479 = vadd.f32 0.0, %v2478
      %v2480 = vpop.f32.mrb[0].mxu0
      %2481 = vmatprep.mubr.bf16.mxu0 0
      %2482 = vmatmul.mubr.bf16.gmra.mrb[0].mxu0 %v2359
      %v2483 = vpop.f32.mrb[0].mxu0
      %v2484 = vadd.f32 0.0, %v2483
      %v2485 = vpop.f32.mrb[0].mxu0
      %v2486 = vpop.f32.mrb[0].mxu0
      %v2487 = vadd.f32 0.0, %v2486
      %v2488 = vpop.f32.mrb[0].mxu0
      %2489 = vdwg.mxu0
      %v2490 = vadd.f32 %v2339, %v2460
      %v2491 = vadd.f32 %v2340, %v2463
      %v2492 = vadd.f32 %v2341, %v2468
      %v2493 = vadd.f32 %v2342, %v2471
      %v2494 = vadd.f32 %v2343, %v2476
      %v2495 = vadd.f32 %v2344, %v2479
      %v2496 = vadd.f32 %v2345, %v2484
      %v2497 = vadd.f32 %v2346, %v2487
      %v2498 = vld [vmem:[%s2347 + $0x1] sm:$0xff]
      %v2499 = vld [vmem:[%s2347 + $0x11] sm:$0xff]
      %v2500 = vld [vmem:[%s2347 + $0x21] sm:$0xff]
      %v2501 = vld [vmem:[%s2347 + $0x31] sm:$0xff]
      %v2502 = vld [vmem:[%s2347 + $0x41] sm:$0xff]
      %v2503 = vld [vmem:[%s2347 + $0x51] sm:$0xff]
      %v2504 = vld [vmem:[%s2347 + $0x61] sm:$0xff]
      %v2505 = vld [vmem:[%s2347 + $0x71] sm:$0xff]
      %v2506 = vpack.c.bf16 %v2499, %v2498
      %v2507 = vpack.c.bf16 %v2501, %v2500
      %v2508 = vpack.c.bf16 %v2503, %v2502
      %v2509 = vpack.c.bf16 %v2505, %v2504
      %s2510 = scalar_lea.vmem %s3, 448
      %v2511 = vld [vmem:[%s2510] sm:$0xf]
      %v2512 = vld [vmem:[%s2510 + $0x4] sm:$0xf]
      %v2513 = vld [vmem:[%s2510 + $0x8] sm:$0xf]
      %v2514 = vld [vmem:[%s2510 + $0xc] sm:$0xf]
      %v2515 = vld [vmem:[%s2510 + $0x10] sm:$0xf]
      %v2516 = vld [vmem:[%s2510 + $0x14] sm:$0xf]
      %v2517 = vld [vmem:[%s2510 + $0x18] sm:$0xf]
      %v2518 = vld [vmem:[%s2510 + $0x1c] sm:$0xf]
      %v2519 = vld [vmem:[%s2510 + $0x20] sm:$0xf]
      %v2520 = vld [vmem:[%s2510 + $0x24] sm:$0xf]
      %v2521 = vld [vmem:[%s2510 + $0x28] sm:$0xf]
      %v2522 = vld [vmem:[%s2510 + $0x2c] sm:$0xf]
      %v2523 = vld [vmem:[%s2510 + $0x30] sm:$0xf]
      %v2524 = vld [vmem:[%s2510 + $0x34] sm:$0xf]
      %v2525 = vld [vmem:[%s2510 + $0x38] sm:$0xf]
      %v2526 = vld [vmem:[%s2510 + $0x3c] sm:$0xf]
      %v2543 = vunpack.c.l.b16 %v2511
      %v2544 = vunpack.c.l.b16 %v2512
      %v2545 = vunpack.c.l.b16 %v2513
      %v2546 = vunpack.c.l.b16 %v2514
      %v2547 = vunpack.c.l.b16 %v2515
      %v2548 = vunpack.c.l.b16 %v2516
      %v2549 = vunpack.c.l.b16 %v2517
      %v2550 = vunpack.c.l.b16 %v2518
      %v2551 = vunpack.c.l.b16 %v2519
      %v2552 = vunpack.c.l.b16 %v2520
      %v2553 = vunpack.c.l.b16 %v2521
      %v2554 = vunpack.c.l.b16 %v2522
      %v2555 = vunpack.c.l.b16 %v2523
      %v2556 = vunpack.c.l.b16 %v2524
      %v2557 = vunpack.c.l.b16 %v2525
      %v2558 = vunpack.c.l.b16 %v2526
      %v2559 = vpack.c.b16 %v2544, %v2543
      %v2560 = vpack.c.b16 %v2546, %v2545
      %v2561 = vpack.c.b16 %v2548, %v2547
      %v2562 = vpack.c.b16 %v2550, %v2549
      %v2563 = vpack.c.b16 %v2552, %v2551
      %v2564 = vpack.c.b16 %v2554, %v2553
      %v2565 = vpack.c.b16 %v2556, %v2555
      %v2566 = vpack.c.b16 %v2558, %v2557
      %2575 = vmatprep.subr.bf16.mxu0 0
      %2576 = vmatpush1.bf16.msra.mxu0 %v2559
      %2577 = vmatprep.subr.bf16.mxu0 0
      %2578 = vmatpush1.bf16.msra.mxu0 %v2560
      %2579 = vmatprep.subr.bf16.mxu0 0
      %2580 = vmatpush1.bf16.msra.mxu0 %v2561
      %2581 = vmatprep.subr.bf16.mxu0 0
      %2582 = vmatpush1.bf16.msra.mxu0 %v2562
      %2583 = vmatprep.subr.bf16.mxu0 0
      %2584 = vmatpush1.bf16.msra.mxu0 %v2563
      %2585 = vmatprep.subr.bf16.mxu0 0
      %2586 = vmatpush1.bf16.msra.mxu0 %v2564
      %2587 = vmatprep.subr.bf16.mxu0 0
      %2588 = vmatpush1.bf16.msra.mxu0 %v2565
      %2589 = vmatprep.subr.bf16.mxu0 0
      %2590 = vmatpush1.bf16.msra.mxu0 %v2566
      %2591 = vmatprep.subr.bf16.mxu0 0
      %2592 = vmatpush1.bf16.msra.mxu0 0
      %2593 = vmatprep.subr.bf16.mxu0 0
      %2594 = vmatpush1.bf16.msra.mxu0 0
      %2595 = vmatprep.subr.bf16.mxu0 0
      %2596 = vmatpush1.bf16.msra.mxu0 0
      %2597 = vmatprep.subr.bf16.mxu0 0
      %2598 = vmatpush1.bf16.msra.mxu0 0
      %2599 = vmatprep.subr.bf16.mxu0 0
      %2600 = vmatpush1.bf16.msra.mxu0 0
      %2601 = vmatprep.subr.bf16.mxu0 0
      %2602 = vmatpush1.bf16.msra.mxu0 0
      %2603 = vmatprep.subr.bf16.mxu0 0
      %2604 = vmatpush1.bf16.msra.mxu0 0
      %2605 = vmatprep.subr.bf16.mxu0 0
      %2606 = vmatpush1.bf16.msra.mxu0 0
      %2607 = vmatprep.mubr.bf16.mxu0 0
      %2608 = vmatmul.mubr.bf16.gmra.mrb[0].mxu0 %v2506
      %v2609 = vpop.f32.mrb[0].mxu0
      %v2610 = vadd.f32 0.0, %v2609
      %v2611 = vpop.f32.mrb[0].mxu0
      %v2612 = vpop.f32.mrb[0].mxu0
      %v2613 = vadd.f32 0.0, %v2612
      %v2614 = vpop.f32.mrb[0].mxu0
      %2615 = vmatprep.mubr.bf16.mxu0 0
      %2616 = vmatmul.mubr.bf16.gmra.mrb[0].mxu0 %v2507
      %v2617 = vpop.f32.mrb[0].mxu0
      %v2618 = vadd.f32 0.0, %v2617
      %v2619 = vpop.f32.mrb[0].mxu0
      %v2620 = vpop.f32.mrb[0].mxu0
      %v2621 = vadd.f32 0.0, %v2620
      %v2622 = vpop.f32.mrb[0].mxu0
      %2623 = vmatprep.mubr.bf16.mxu0 0
      %2624 = vmatmul.mubr.bf16.gmra.mrb[0].mxu0 %v2508
      %v2625 = vpop.f32.mrb[0].mxu0
      %v2626 = vadd.f32 0.0, %v2625
      %v2627 = vpop.f32.mrb[0].mxu0
      %v2628 = vpop.f32.mrb[0].mxu0
      %v2629 = vadd.f32 0.0, %v2628
      %v2630 = vpop.f32.mrb[0].mxu0
      %2631 = vmatprep.mubr.bf16.mxu0 0
      %2632 = vmatmul.mubr.bf16.gmra.mrb[0].mxu0 %v2509
      %v2633 = vpop.f32.mrb[0].mxu0
      %v2634 = vadd.f32 0.0, %v2633
      %v2635 = vpop.f32.mrb[0].mxu0
      %v2636 = vpop.f32.mrb[0].mxu0
      %v2637 = vadd.f32 0.0, %v2636
      %v2638 = vpop.f32.mrb[0].mxu0
      %2639 = vdwg.mxu0
      %v2640 = vadd.f32 %v2490, %v2610
      %v2641 = vadd.f32 %v2491, %v2613
      %v2642 = vadd.f32 %v2492, %v2618
      %v2643 = vadd.f32 %v2493, %v2621
      %v2644 = vadd.f32 %v2494, %v2626
      %v2645 = vadd.f32 %v2495, %v2629
      %v2646 = vadd.f32 %v2496, %v2634
      %v2647 = vadd.f32 %v2497, %v2637
      %v2648 = vld [vmem:[%s2347 + $0x2] sm:$0xff]
      %v2649 = vld [vmem:[%s2347 + $0x12] sm:$0xff]
      %v2650 = vld [vmem:[%s2347 + $0x22] sm:$0xff]
      %v2651 = vld [vmem:[%s2347 + $0x32] sm:$0xff]
      %v2652 = vld [vmem:[%s2347 + $0x42] sm:$0xff]
      %v2653 = vld [vmem:[%s2347 + $0x52] sm:$0xff]
      %v2654 = vld [vmem:[%s2347 + $0x62] sm:$0xff]
      %v2655 = vld [vmem:[%s2347 + $0x72] sm:$0xff]
      %v2656 = vpack.c.bf16 %v2649, %v2648
      %v2657 = vpack.c.bf16 %v2651, %v2650
      %v2658 = vpack.c.bf16 %v2653, %v2652
      %v2659 = vpack.c.bf16 %v2655, %v2654
      %s2660 = scalar_lea.vmem %s3, 512
      %v2661 = vld [vmem:[%s2660] sm:$0xf]
      %v2662 = vld [vmem:[%s2660 + $0x4] sm:$0xf]
      %v2663 = vld [vmem:[%s2660 + $0x8] sm:$0xf]
      %v2664 = vld [vmem:[%s2660 + $0xc] sm:$0xf]
      %v2665 = vld [vmem:[%s2660 + $0x10] sm:$0xf]
      %v2666 = vld [vmem:[%s2660 + $0x14] sm:$0xf]
      %v2667 = vld [vmem:[%s2660 + $0x18] sm:$0xf]
      %v2668 = vld [vmem:[%s2660 + $0x1c] sm:$0xf]
      %v2669 = vld [vmem:[%s2660 + $0x20] sm:$0xf]
      %v2670 = vld [vmem:[%s2660 + $0x24] sm:$0xf]
      %v2671 = vld [vmem:[%s2660 + $0x28] sm:$0xf]
      %v2672 = vld [vmem:[%s2660 + $0x2c] sm:$0xf]
      %v2673 = vld [vmem:[%s2660 + $0x30] sm:$0xf]
      %v2674 = vld [vmem:[%s2660 + $0x34] sm:$0xf]
      %v2675 = vld [vmem:[%s2660 + $0x38] sm:$0xf]
      %v2676 = vld [vmem:[%s2660 + $0x3c] sm:$0xf]
      %v2693 = vunpack.c.l.b16 %v2661
      %v2694 = vunpack.c.l.b16 %v2662
      %v2695 = vunpack.c.l.b16 %v2663
      %v2696 = vunpack.c.l.b16 %v2664
      %v2697 = vunpack.c.l.b16 %v2665
      %v2698 = vunpack.c.l.b16 %v2666
      %v2699 = vunpack.c.l.b16 %v2667
      %v2700 = vunpack.c.l.b16 %v2668
      %v2701 = vunpack.c.l.b16 %v2669
      %v2702 = vunpack.c.l.b16 %v2670
      %v2703 = vunpack.c.l.b16 %v2671
      %v2704 = vunpack.c.l.b16 %v2672
      %v2705 = vunpack.c.l.b16 %v2673
      %v2706 = vunpack.c.l.b16 %v2674
      %v2707 = vunpack.c.l.b16 %v2675
      %v2708 = vunpack.c.l.b16 %v2676
      %v2709 = vpack.c.b16 %v2694, %v2693
      %v2710 = vpack.c.b16 %v2696, %v2695
      %v2711 = vpack.c.b16 %v2698, %v2697
      %v2712 = vpack.c.b16 %v2700, %v2699
      %v2713 = vpack.c.b16 %v2702, %v2701
      %v2714 = vpack.c.b16 %v2704, %v2703
      %v2715 = vpack.c.b16 %v2706, %v2705
      %v2716 = vpack.c.b16 %v2708, %v2707
      %2725 = vmatprep.subr.bf16.mxu0 0
      %2726 = vmatpush1.bf16.msra.mxu0 %v2709
      %2727 = vmatprep.subr.bf16.mxu0 0
      %2728 = vmatpush1.bf16.msra.mxu0 %v2710
      %2729 = vmatprep.subr.bf16.mxu0 0
      %2730 = vmatpush1.bf16.msra.mxu0 %v2711
      %2731 = vmatprep.subr.bf16.mxu0 0
      %2732 = vmatpush1.bf16.msra.mxu0 %v2712
      %2733 = vmatprep.subr.bf16.mxu0 0
      %2734 = vmatpush1.bf16.msra.mxu0 %v2713
      %2735 = vmatprep.subr.bf16.mxu0 0
      %2736 = vmatpush1.bf16.msra.mxu0 %v2714
      %2737 = vmatprep.subr.bf16.mxu0 0
      %2738 = vmatpush1.bf16.msra.mxu0 %v2715
      %2739 = vmatprep.subr.bf16.mxu0 0
      %2740 = vmatpush1.bf16.msra.mxu0 %v2716
      %2741 = vmatprep.subr.bf16.mxu0 0
      %2742 = vmatpush1.bf16.msra.mxu0 0
      %2743 = vmatprep.subr.bf16.mxu0 0
      %2744 = vmatpush1.bf16.msra.mxu0 0
      %2745 = vmatprep.subr.bf16.mxu0 0
      %2746 = vmatpush1.bf16.msra.mxu0 0
      %2747 = vmatprep.subr.bf16.mxu0 0
      %2748 = vmatpush1.bf16.msra.mxu0 0
      %2749 = vmatprep.subr.bf16.mxu0 0
      %2750 = vmatpush1.bf16.msra.mxu0 0
      %2751 = vmatprep.subr.bf16.mxu0 0
      %2752 = vmatpush1.bf16.msra.mxu0 0
      %2753 = vmatprep.subr.bf16.mxu0 0
      %2754 = vmatpush1.bf16.msra.mxu0 0
      %2755 = vmatprep.subr.bf16.mxu0 0
      %2756 = vmatpush1.bf16.msra.mxu0 0
      %2757 = vmatprep.mubr.bf16.mxu0 0
      %2758 = vmatmul.mubr.bf16.gmra.mrb[0].mxu0 %v2656
      %v2759 = vpop.f32.mrb[0].mxu0
      %v2760 = vadd.f32 0.0, %v2759
      %v2761 = vpop.f32.mrb[0].mxu0
      %v2762 = vpop.f32.mrb[0].mxu0
      %v2763 = vadd.f32 0.0, %v2762
      %v2764 = vpop.f32.mrb[0].mxu0
      %2765 = vmatprep.mubr.bf16.mxu0 0
      %2766 = vmatmul.mubr.bf16.gmra.mrb[0].mxu0 %v2657
      %v2767 = vpop.f32.mrb[0].mxu0
      %v2768 = vadd.f32 0.0, %v2767
      %v2769 = vpop.f32.mrb[0].mxu0
      %v2770 = vpop.f32.mrb[0].mxu0
      %v2771 = vadd.f32 0.0, %v2770
      %v2772 = vpop.f32.mrb[0].mxu0
      %2773 = vmatprep.mubr.bf16.mxu0 0
      %2774 = vmatmul.mubr.bf16.gmra.mrb[0].mxu0 %v2658
      %v2775 = vpop.f32.mrb[0].mxu0
      %v2776 = vadd.f32 0.0, %v2775
      %v2777 = vpop.f32.mrb[0].mxu0
      %v2778 = vpop.f32.mrb[0].mxu0
      %v2779 = vadd.f32 0.0, %v2778
      %v2780 = vpop.f32.mrb[0].mxu0
      %2781 = vmatprep.mubr.bf16.mxu0 0
      %2782 = vmatmul.mubr.bf16.gmra.mrb[0].mxu0 %v2659
      %v2783 = vpop.f32.mrb[0].mxu0
      %v2784 = vadd.f32 0.0, %v2783
      %v2785 = vpop.f32.mrb[0].mxu0
      %v2786 = vpop.f32.mrb[0].mxu0
      %v2787 = vadd.f32 0.0, %v2786
      %v2788 = vpop.f32.mrb[0].mxu0
      %2789 = vdwg.mxu0
      %v2790 = vadd.f32 %v2640, %v2760
      %v2791 = vadd.f32 %v2641, %v2763
      %v2792 = vadd.f32 %v2642, %v2768
      %v2793 = vadd.f32 %v2643, %v2771
      %v2794 = vadd.f32 %v2644, %v2776
      %v2795 = vadd.f32 %v2645, %v2779
      %v2796 = vadd.f32 %v2646, %v2784
      %v2797 = vadd.f32 %v2647, %v2787
      %v2798 = vld [vmem:[%s759] sm:$0xff]
      %v2799 = vld [vmem:[%s759 + $0x10] sm:$0xff]
      %v2800 = vld [vmem:[%s759 + $0x20] sm:$0xff]
      %v2801 = vld [vmem:[%s759 + $0x30] sm:$0xff]
      %v2802 = vld [vmem:[%s759 + $0x40] sm:$0xff]
      %v2803 = vld [vmem:[%s759 + $0x50] sm:$0xff]
      %v2804 = vld [vmem:[%s759 + $0x60] sm:$0xff]
      %v2805 = vld [vmem:[%s759 + $0x70] sm:$0xff]
      %v2806 = vpack.c.bf16 %v2799, %v2798
      %v2807 = vpack.c.bf16 %v2801, %v2800
      %v2808 = vpack.c.bf16 %v2803, %v2802
      %v2809 = vpack.c.bf16 %v2805, %v2804
      %v2810 = vld [vmem:[%s5] sm:$0xf]
      %v2811 = vld [vmem:[%s5 + $0x4] sm:$0xf]
      %v2812 = vld [vmem:[%s5 + $0x8] sm:$0xf]
      %v2813 = vld [vmem:[%s5 + $0xc] sm:$0xf]
      %v2814 = vld [vmem:[%s5 + $0x10] sm:$0xf]
      %v2815 = vld [vmem:[%s5 + $0x14] sm:$0xf]
      %v2816 = vld [vmem:[%s5 + $0x18] sm:$0xf]
      %v2817 = vld [vmem:[%s5 + $0x1c] sm:$0xf]
      %v2826 = vunpack.c.l.b16 %v2810
      %v2827 = vunpack.c.l.b16 %v2811
      %v2828 = vunpack.c.l.b16 %v2812
      %v2829 = vunpack.c.l.b16 %v2813
      %v2830 = vunpack.c.l.b16 %v2814
      %v2831 = vunpack.c.l.b16 %v2815
      %v2832 = vunpack.c.l.b16 %v2816
      %v2833 = vunpack.c.l.b16 %v2817
      %v2834 = vpack.c.b16 %v2827, %v2826
      %v2835 = vpack.c.b16 %v2829, %v2828
      %v2836 = vpack.c.b16 %v2831, %v2830
      %v2837 = vpack.c.b16 %v2833, %v2832
      %v2843 = vsel %vm319, %v2806, 0
      %v2846 = vsel %vm319, %v2807, 0
      %v2849 = vsel %vm319, %v2808, 0
      %v2852 = vsel %vm319, %v2809, 0
      %2854 = vmatprep.subr.bf16.mxu0 0
      %2855 = vmatpush1.bf16.msra.mxu0 %v2834
      %2856 = vmatprep.subr.bf16.mxu0 0
      %2857 = vmatpush1.bf16.msra.mxu0 %v2835
      %2858 = vmatprep.subr.bf16.mxu0 0
      %2859 = vmatpush1.bf16.msra.mxu0 %v2836
      %2860 = vmatprep.subr.bf16.mxu0 0
      %2861 = vmatpush1.bf16.msra.mxu0 %v2837
      %2862 = vmatprep.subr.bf16.mxu0 0
      %2863 = vmatpush1.bf16.msra.mxu0 0
      %2864 = vmatprep.subr.bf16.mxu0 0
      %2865 = vmatpush1.bf16.msra.mxu0 0
      %2866 = vmatprep.subr.bf16.mxu0 0
      %2867 = vmatpush1.bf16.msra.mxu0 0
      %2868 = vmatprep.subr.bf16.mxu0 0
      %2869 = vmatpush1.bf16.msra.mxu0 0
      %2870 = vmatprep.subr.bf16.mxu0 0
      %2871 = vmatpush1.bf16.msra.mxu0 0
      %2872 = vmatprep.subr.bf16.mxu0 0
      %2873 = vmatpush1.bf16.msra.mxu0 0
      %2874 = vmatprep.subr.bf16.mxu0 0
      %2875 = vmatpush1.bf16.msra.mxu0 0
      %2876 = vmatprep.subr.bf16.mxu0 0
      %2877 = vmatpush1.bf16.msra.mxu0 0
      %2878 = vmatprep.subr.bf16.mxu0 0
      %2879 = vmatpush1.bf16.msra.mxu0 0
      %2880 = vmatprep.subr.bf16.mxu0 0
      %2881 = vmatpush1.bf16.msra.mxu0 0
      %2882 = vmatprep.subr.bf16.mxu0 0
      %2883 = vmatpush1.bf16.msra.mxu0 0
      %2884 = vmatprep.subr.bf16.mxu0 0
      %2885 = vmatpush1.bf16.msra.mxu0 0
      %2886 = vmatprep.mubr.bf16.mxu0 0
      %2887 = vmatmul.mubr.bf16.gmra.mrb[0].mxu0 %v2843
      %v2888 = vpop.f32.mrb[0].mxu0
      %v2889 = vadd.f32 0.0, %v2888
      %v2890 = vpop.f32.mrb[0].mxu0
      %v2891 = vpop.f32.mrb[0].mxu0
      %v2892 = vadd.f32 0.0, %v2891
      %v2893 = vpop.f32.mrb[0].mxu0
      %2894 = vmatprep.mubr.bf16.mxu0 0
      %2895 = vmatmul.mubr.bf16.gmra.mrb[0].mxu0 %v2846
      %v2896 = vpop.f32.mrb[0].mxu0
      %v2897 = vadd.f32 0.0, %v2896
      %v2898 = vpop.f32.mrb[0].mxu0
      %v2899 = vpop.f32.mrb[0].mxu0
      %v2900 = vadd.f32 0.0, %v2899
      %v2901 = vpop.f32.mrb[0].mxu0
      %2902 = vmatprep.mubr.bf16.mxu0 0
      %2903 = vmatmul.mubr.bf16.gmra.mrb[0].mxu0 %v2849
      %v2904 = vpop.f32.mrb[0].mxu0
      %v2905 = vadd.f32 0.0, %v2904
      %v2906 = vpop.f32.mrb[0].mxu0
      %v2907 = vpop.f32.mrb[0].mxu0
      %v2908 = vadd.f32 0.0, %v2907
      %v2909 = vpop.f32.mrb[0].mxu0
      %2910 = vmatprep.mubr.bf16.mxu0 0
      %2911 = vmatmul.mubr.bf16.gmra.mrb[0].mxu0 %v2852
      %v2912 = vpop.f32.mrb[0].mxu0
      %v2913 = vadd.f32 0.0, %v2912
      %v2914 = vpop.f32.mrb[0].mxu0
      %v2915 = vpop.f32.mrb[0].mxu0
      %v2916 = vadd.f32 0.0, %v2915
      %v2917 = vpop.f32.mrb[0].mxu0
      %2918 = vdwg.mxu0
      %v2919 = vld [vmem:[%s4] sm:$0x1]
      %v2921 = vlaneseq
      %v2922 = vshrl.u32 %v2921, 7
      %v2923 = vsub.s32 0, %v2922
      %v2924 = vrot.slane %v2919, %v2923
      %v2926 = vadd.f32 %v2790, %v2924
      %v2927 = vadd.f32 %v2791, %v2924
      %v2928 = vadd.f32 %v2792, %v2924
      %v2929 = vadd.f32 %v2793, %v2924
      %v2930 = vadd.f32 %v2794, %v2924
      %v2931 = vadd.f32 %v2795, %v2924
      %v2932 = vadd.f32 %v2796, %v2924
      %v2933 = vadd.f32 %v2797, %v2924
      %v2934 = vadd.f32 %v2926, %v2889
      %v2935 = vadd.f32 %v2927, %v2892
      %v2936 = vadd.f32 %v2928, %v2897
      %v2937 = vadd.f32 %v2929, %v2900
      %v2938 = vadd.f32 %v2930, %v2905
      %v2939 = vadd.f32 %v2931, %v2908
      %v2940 = vadd.f32 %v2932, %v2913
      %v2941 = vadd.f32 %v2933, %v2916
      %v2942 = vmax.f32 %v2934, 0.0
      %v2943 = vmax.f32 %v2935, 0.0
      %v2944 = vmax.f32 %v2936, 0.0
      %v2945 = vmax.f32 %v2937, 0.0
      %v2946 = vmax.f32 %v2938, 0.0
      %v2947 = vmax.f32 %v2939, 0.0
      %v2948 = vmax.f32 %v2940, 0.0
      %v2949 = vmax.f32 %v2941, 0.0
      %2950 = vst [vmem:[%s251] sm:$0xff] %v2942
      %2951 = vst [vmem:[%s251 + $0x8] sm:$0xff] %v2943
      %2952 = vst [vmem:[%s251 + $0x10] sm:$0xff] %v2944
      %2953 = vst [vmem:[%s251 + $0x18] sm:$0xff] %v2945
      %2954 = vst [vmem:[%s251 + $0x20] sm:$0xff] %v2946
      %2955 = vst [vmem:[%s251 + $0x28] sm:$0xff] %v2947
      %2956 = vst [vmem:[%s251 + $0x30] sm:$0xff] %v2948
      %2957 = vst [vmem:[%s251 + $0x38] sm:$0xff] %v2949
      %p2958 = scmp.lt.s32.totalorder %s17, 1
      %s2959 = scalar_select %p2958, %s17, 1
      %s2960 = smul.addr %s2959, 8
      %s2961 = smul.addr %s2960, 8
      %s2962 = scalar_lea.vmem %s6, %s2961
      // Predicated region
      $region45: #{forward.2} parent=43 // pred_check
        %p2963 = pneg %p166
      $region46: #{forward.2} parent=43 // pred_check_branch
        %2965 = sbr.rel (%p2963) target = $region48
      $region47: #{forward.2} parent=43 // pred_region
        _
      $region48: #{forward.2} parent=43 // pred_fallthru
        _
    $region44: #{forward.2} parent=5 // pred_fallthru
      _
    %p2966 = scmp.le.s32.totalorder 2, %s12
    // Predicated region
    $region49: #{forward.2} parent=5 // pred_check
      %p2967 = pneg %p2966
    $region50: #{forward.2} parent=5 // pred_check_branch
      %2969 = sbr.rel (%p2967) target = $region52
    $region51: #{forward.2} parent=5 // pred_region
      %s2970 = ssub.s32 %s12, 2
      // Predicated region
      $region53: #{forward.2} parent=51 // pred_check
        %p2971 = pneg %p172
      $region54: #{forward.2} parent=51 // pred_check_branch
        %2973 = sbr.rel (%p2971) target = $region56
      $region55: #{forward.2} parent=51 // pred_region
        %p2974 = scmp.lt.s32.totalorder %s18, 1
        %s2975 = scalar_select %p2974, %s18, 1
        %s2976 = smul.addr %s2975, 8
        %s2977 = smul.addr %s2976, 8
        %s2978 = scalar_lea.vmem %s6, %s2977
      $region56: #{forward.2} parent=51 // pred_fallthru
        _
    $region52: #{forward.2} parent=5 // pred_fallthru
      _
  $region6: #{forward.2} parent=0 // loop_footer
    %s16 = sadd.s32 1, %s12
  $region7: #{forward.2} parent=0 // loop_footer_branch
    %11 = sbr.rel target = $region3
  $region8: #{forward.2} parent=0 // loop_exit
    _

// kernel: forward.3
$region0: #{forward.3}
  #allocation0 [shape = 'u32[]', space=smem, size = 0x4, offset = 0x4, fixed_abs, tag = 'smem constant byte address 0x4 - core index']
  #allocation1 [shape = 'u32[144,128]{1,0:T(1,128)}', space=vmem, size = 0x12000, scoped, tag = 'internal scratch']
  #allocation2 [shape = 'f32[10,10,128]{2,1,0:T(8,128)}', space=vmem, size = 0x14000, scoped, tag = 'scratch operand']
  %s0 = inlined_call_operand.vmem [shape: f32[2,10,10,128], index: 0, kind: input, shape index: {}]
  %s1 = inlined_call_operand.vmem [shape: bf16[9,128,128], index: 1, kind: input, shape index: {}]
  %s2 = inlined_call_operand.vmem [shape: f32[1,128], index: 2, kind: input, shape index: {}]
  %s3 = inlined_call_operand.vmem [shape: bf16[9,128,128], index: 3, kind: input, shape index: {}]
  %s4 = inlined_call_operand.vmem [shape: f32[1,128], index: 4, kind: input, shape index: {}]
  %s5 = inlined_call_operand.hbm [shape: f32[2,8,8,128], index: 5, kind: output, shape index: {}]
  %s6 = sld [smem:[#allocation0]]
  $region53: #{forward.3} parent=0
    _
  %s8 = ssub.s32 1, %s6
  %s9 = scalar_select 0, %s8, %s6
  $region1: #{forward.3} parent=0
    #allocation3 [shape = 'u8[65536]{0}', space=vmem, size = 0x10000, scoped, tag = 'output window, operand 0']
    #allocation4 [shape = 's32[2]{0}', space=sflag, size = 0x8, scoped, tag = 'scoped memory for forward.3']
    %10 = vsyncpa [#allocation4], 0
    %s11 = scalar_lea.sflag [#allocation4], 1
    %12 = vsyncpa %s11, 0
    loop: start=0, step=1, limit=4
    $region2: #{forward.3} parent=1 // loop_pre_header
      _
    $region3: #{forward.3} parent=1 // loop_header
      %s14 = sphi 0, %s18
      %p15 = scmp.ge.s32.totalorder %s14, 4
      %s24 = sphi 0, %s26
      %s27 = sphi 0, %s24
      %s28 = sphi 0, %s27
      %s44 = sphi 0, %s28
      %s48 = sphi 0, %s48
      %s50 = sphi 0, %s48
      %s51 = sphi 0, %s50
      %s65 = sphi 0, %s51
      %s69 = sphi 0, %s69
      %s71 = sphi 0, %s69
      %s72 = sphi 0, %s71
      %s86 = sphi 0, %s72
      %s90 = sphi 0, %s90
      %s92 = sphi 0, %s90
      %s93 = sphi 0, %s92
      %s107 = sphi 0, %s93
      %s111 = sphi 0, %s111
      %s113 = sphi 0, %s111
      %s114 = sphi 0, %s113
      %s128 = sphi 0, %s114
      %s134 = sphi 0, %s136
      %s137 = sphi 0, %s134
      %s138 = sphi 0, %s137
      %s154 = sphi 0, %s138
    $region4: #{forward.3} parent=1 // loop_header_branch
      %17 = sbr.rel (%p15) target = $region8
    $region5: #{forward.3} parent=1 // loop_body
      %s19 = ssub.s32 %s14, 1
      %s20 = ssub.s32 %s14, 2
      %s21 = sadd.s32 %s14, 1
      %s22 = ssub.s32 %s14, %s21
      %p23 = scmp.eq.s32.totalorder %s22, 0
      %s25 = sadd.s32 %s24, 1
      %s26 = scalar_select %p23, %s24, %s25
      %p29 = pneg %p23
      %p30 = scmp.eq.s32.totalorder %s14, 1
      %p31 = por %p29, %p30
      %p32 = scmp.ne.s32.totalorder %s24, %s27
      %p33 = scmp.eq.s32.totalorder %s14, 0
      %p34 = por %p32, %p33
      %p35 = scmp.ne.s32.totalorder %s24, %s27
      %p36 = scmp.eq.s32.totalorder %s19, 1
      %p37 = por %p35, %p36
      %p38 = scmp.ne.s32.totalorder %s27, %s28
      %p39 = scmp.eq.s32.totalorder %s19, 0
      %p40 = por %p38, %p39
      %p41 = scmp.ne.s32.totalorder %s27, %s28
      %p42 = scmp.eq.s32.totalorder %s20, 1
      %p43 = por %p41, %p42
      %p45 = scmp.ne.s32.totalorder %s28, %s44
      %p46 = scmp.eq.s32.totalorder %s20, 0
      %p47 = por %p45, %p46
      %s49 = sadd.s32 %s48, 1
      %p52 = scmp.eq.s32.totalorder %s14, 1
      %p53 = scmp.ne.s32.totalorder %s48, %s50
      %p54 = scmp.eq.s32.totalorder %s14, 0
      %p55 = por %p53, %p54
      %p56 = scmp.ne.s32.totalorder %s48, %s50
      %p57 = scmp.eq.s32.totalorder %s19, 1
      %p58 = por %p56, %p57
      %p59 = scmp.ne.s32.totalorder %s50, %s51
      %p60 = scmp.eq.s32.totalorder %s19, 0
      %p61 = por %p59, %p60
      %p62 = scmp.ne.s32.totalorder %s50, %s51
      %p63 = scmp.eq.s32.totalorder %s20, 1
      %p64 = por %p62, %p63
      %p66 = scmp.ne.s32.totalorder %s51, %s65
      %p67 = scmp.eq.s32.totalorder %s20, 0
      %p68 = por %p66, %p67
      %s70 = sadd.s32 %s69, 1
      %p73 = scmp.eq.s32.totalorder %s14, 1
      %p74 = scmp.ne.s32.totalorder %s69, %s71
      %p75 = scmp.eq.s32.totalorder %s14, 0
      %p76 = por %p74, %p75
      %p77 = scmp.ne.s32.totalorder %s69, %s71
      %p78 = scmp.eq.s32.totalorder %s19, 1
      %p79 = por %p77, %p78
      %p80 = scmp.ne.s32.totalorder %s71, %s72
      %p81 = scmp.eq.s32.totalorder %s19, 0
      %p82 = por %p80, %p81
      %p83 = scmp.ne.s32.totalorder %s71, %s72
      %p84 = scmp.eq.s32.totalorder %s20, 1
      %p85 = por %p83, %p84
      %p87 = scmp.ne.s32.totalorder %s72, %s86
      %p88 = scmp.eq.s32.totalorder %s20, 0
      %p89 = por %p87, %p88
      %s91 = sadd.s32 %s90, 1
      %p94 = scmp.eq.s32.totalorder %s14, 1
      %p95 = scmp.ne.s32.totalorder %s90, %s92
      %p96 = scmp.eq.s32.totalorder %s14, 0
      %p97 = por %p95, %p96
      %p98 = scmp.ne.s32.totalorder %s90, %s92
      %p99 = scmp.eq.s32.totalorder %s19, 1
      %p100 = por %p98, %p99
      %p101 = scmp.ne.s32.totalorder %s92, %s93
      %p102 = scmp.eq.s32.totalorder %s19, 0
      %p103 = por %p101, %p102
      %p104 = scmp.ne.s32.totalorder %s92, %s93
      %p105 = scmp.eq.s32.totalorder %s20, 1
      %p106 = por %p104, %p105
      %p108 = scmp.ne.s32.totalorder %s93, %s107
      %p109 = scmp.eq.s32.totalorder %s20, 0
      %p110 = por %p108, %p109
      %s112 = sadd.s32 %s111, 1
      %p115 = scmp.eq.s32.totalorder %s14, 1
      %p116 = scmp.ne.s32.totalorder %s111, %s113
      %p117 = scmp.eq.s32.totalorder %s14, 0
      %p118 = por %p116, %p117
      %p119 = scmp.ne.s32.totalorder %s111, %s113
      %p120 = scmp.eq.s32.totalorder %s19, 1
      %p121 = por %p119, %p120
      %p122 = scmp.ne.s32.totalorder %s113, %s114
      %p123 = scmp.eq.s32.totalorder %s19, 0
      %p124 = por %p122, %p123
      %p125 = scmp.ne.s32.totalorder %s113, %s114
      %p126 = scmp.eq.s32.totalorder %s20, 1
      %p127 = por %p125, %p126
      %p129 = scmp.ne.s32.totalorder %s114, %s128
      %p130 = scmp.eq.s32.totalorder %s20, 0
      %p131 = por %p129, %p130
      %s132 = ssub.s32 %s14, %s21
      %p133 = scmp.eq.s32.totalorder %s132, 0
      %s135 = sadd.s32 %s134, 1
      %s136 = scalar_select %p133, %s134, %s135
      %p139 = pneg %p133
      %p140 = scmp.eq.s32.totalorder %s14, 1
      %p141 = por %p139, %p140
      %p142 = scmp.ne.s32.totalorder %s134, %s137
      %p143 = scmp.eq.s32.totalorder %s14, 0
      %p144 = por %p142, %p143
      %p145 = scmp.ne.s32.totalorder %s134, %s137
      %p146 = scmp.eq.s32.totalorder %s19, 1
      %p147 = por %p145, %p146
      %p148 = scmp.ne.s32.totalorder %s137, %s138
      %p149 = scmp.eq.s32.totalorder %s19, 0
      %p150 = por %p148, %p149
      %p151 = scmp.ne.s32.totalorder %s137, %s138
      %p152 = scmp.eq.s32.totalorder %s20, 1
      %p153 = por %p151, %p152
      %p155 = scmp.ne.s32.totalorder %s138, %s154
      %p156 = scmp.eq.s32.totalorder %s20, 0
      %p157 = por %p155, %p156
      %p158 = scmp.le.s32.totalorder 1, %s14
      %p159 = scmp.lt.s32.totalorder %s14, 3
      %p160 = pnand %p158, %p159
      %p161 = pneg %p160
      // Predicated region
      $region9: #{forward.3} parent=5 // pred_check
        _
      $region10: #{forward.3} parent=5 // pred_check_branch
        %163 = sbr.rel (%p160) target = $region12
      $region11: #{forward.3} parent=5 // pred_region
        %s164 = ssub.s32 %s14, 1
        // Predicated region
        $region13: #{forward.3} parent=11 // pred_check
          %p165 = pneg %p61
        $region14: #{forward.3} parent=11 // pred_check_branch
          %167 = sbr.rel (%p165) target = $region16
        $region15: #{forward.3} parent=11 // pred_region
          _
        $region16: #{forward.3} parent=11 // pred_fallthru
          _
        // Predicated region
        $region17: #{forward.3} parent=11 // pred_check
          %p168 = pneg %p82
        $region18: #{forward.3} parent=11 // pred_check_branch
          %170 = sbr.rel (%p168) target = $region20
        $region19: #{forward.3} parent=11 // pred_region
          _
        $region20: #{forward.3} parent=11 // pred_fallthru
          _
        // Predicated region
        $region21: #{forward.3} parent=11 // pred_check
          %p171 = pneg %p103
        $region22: #{forward.3} parent=11 // pred_check_branch
          %173 = sbr.rel (%p171) target = $region24
        $region23: #{forward.3} parent=11 // pred_region
          _
        $region24: #{forward.3} parent=11 // pred_fallthru
          _
        // Predicated region
        $region25: #{forward.3} parent=11 // pred_check
          %p174 = pneg %p124
        $region26: #{forward.3} parent=11 // pred_check_branch
          %176 = sbr.rel (%p174) target = $region28
        $region27: #{forward.3} parent=11 // pred_region
          _
        $region28: #{forward.3} parent=11 // pred_fallthru
          _
      $region12: #{forward.3} parent=5 // pred_fallthru
        _
      %p177 = scmp.lt.s32.totalorder %s14, 2
      // Predicated region
      $region29: #{forward.3} parent=5 // pred_check
        %p178 = pneg %p177
      $region30: #{forward.3} parent=5 // pred_check_branch
        %180 = sbr.rel (%p178) target = $region32
      $region31: #{forward.3} parent=5 // pred_region
        // Predicated region
        $region33: #{forward.3} parent=31 // pred_check
          %p181 = pneg %p34
        $region34: #{forward.3} parent=31 // pred_check_branch
          %183 = sbr.rel (%p181) target = $region36
        $region35: #{forward.3} parent=31 // pred_region
          %p184 = scmp.lt.s32.totalorder %s14, 1
          %s185 = scalar_select %p184, %s14, 1
          %s186 = smul.addr %s185, 20
          %s187 = smul.addr %s186, 8
          %s188 = scalar_lea.vmem %s0, %s187
        $region36: #{forward.3} parent=31 // pred_fallthru
          _
      $region32: #{forward.3} parent=5 // pred_fallthru
        _
      %p189 = scmp.le.s32.totalorder 1, %s14
      %p190 = scmp.lt.s32.totalorder %s14, 3
      %p191 = pnand %p189, %p190
      %p192 = pneg %p191
      // Predicated region
      $region37: #{forward.3} parent=5 // pred_check
        _
      $region38: #{forward.3} parent=5 // pred_check_branch
        %194 = sbr.rel (%p191) target = $region40
      $region39: #{forward.3} parent=5 // pred_region
        %s195 = ssub.s32 %s14, 1
        %p196 = scmp.lt.s32.totalorder %s19, 1
        %s197 = scalar_select %p196, %s19, 1
        %s198 = smul.addr %s197, 20
        %s199 = smul.addr %s198, 8
        %s200 = scalar_lea.vmem %s0, %s199
        %p201 = pneg %p40
        %p202 = pneg %p37
        %p203 = pneg %p61
        %p204 = pneg %p58
        %p205 = pneg %p82
        %p206 = pneg %p79
        %p207 = pneg %p103
        %p208 = pneg %p100
        %p209 = pneg %p124
        %p210 = pneg %p121
        %p211 = pneg %p150
        %p212 = pneg %p147
        %s213 = sand.u32 %s137, 1
        %s214 = scalar_lea.sflag [#allocation4], %s213
        %s215 = sand.u32 %s137, 1
        %s216 = smul.addr %s215, 64
        %s217 = scalar_lea.vmem [#allocation3], %s216
        %p218 = scmp.lt.s32.totalorder %s19, 1
        %s219 = scalar_select %p218, %s19, 1
        %s220 = smul.addr %s219, 20
        %s221 = smul.addr %s220, 8
        %s222 = scalar_lea.vmem %s0, %s221
        %v224 = vld [vmem:[%s222] sm:$0xff]
        %v225 = vld [vmem:[%s222 + $0x10] sm:$0xff]
        %v226 = vld [vmem:[%s222 + $0x20] sm:$0xff]
        %v227 = vld [vmem:[%s222 + $0x30] sm:$0xff]
        %v228 = vld [vmem:[%s222 + $0x40] sm:$0xff]
        %v229 = vld [vmem:[%s222 + $0x50] sm:$0xff]
        %v230 = vld [vmem:[%s222 + $0x60] sm:$0xff]
        %v231 = vld [vmem:[%s222 + $0x70] sm:$0xff]
        %v232 = vpack.c.bf16 %v225, %v224
        %v233 = vpack.c.bf16 %v227, %v226
        %v234 = vpack.c.bf16 %v229, %v228
        %v235 = vpack.c.bf16 %v231, %v230
        %v236 = vld [vmem:[%s1] sm:$0xf]
        %v237 = vld [vmem:[%s1 + $0x4] sm:$0xf]
        %v238 = vld [vmem:[%s1 + $0x8] sm:$0xf]
        %v239 = vld [vmem:[%s1 + $0xc] sm:$0xf]
        %v240 = vld [vmem:[%s1 + $0x10] sm:$0xf]
        %v241 = vld [vmem:[%s1 + $0x14] sm:$0xf]
        %v242 = vld [vmem:[%s1 + $0x18] sm:$0xf]
        %v243 = vld [vmem:[%s1 + $0x1c] sm:$0xf]
        %v244 = vld [vmem:[%s1 + $0x20] sm:$0xf]
        %v245 = vld [vmem:[%s1 + $0x24] sm:$0xf]
        %v246 = vld [vmem:[%s1 + $0x28] sm:$0xf]
        %v247 = vld [vmem:[%s1 + $0x2c] sm:$0xf]
        %v248 = vld [vmem:[%s1 + $0x30] sm:$0xf]
        %v249 = vld [vmem:[%s1 + $0x34] sm:$0xf]
        %v250 = vld [vmem:[%s1 + $0x38] sm:$0xf]
        %v251 = vld [vmem:[%s1 + $0x3c] sm:$0xf]
        %v252 = vld [vmem:[%s222 + $0x1] sm:$0xff]
        %v253 = vld [vmem:[%s222 + $0x11] sm:$0xff]
        %v254 = vld [vmem:[%s222 + $0x21] sm:$0xff]
        %v255 = vld [vmem:[%s222 + $0x31] sm:$0xff]
        %v256 = vld [vmem:[%s222 + $0x41] sm:$0xff]
        %v257 = vld [vmem:[%s222 + $0x51] sm:$0xff]
        %v258 = vld [vmem:[%s222 + $0x61] sm:$0xff]
        %v259 = vld [vmem:[%s222 + $0x71] sm:$0xff]
        %v260 = vpack.c.bf16 %v253, %v252
        %v261 = vpack.c.bf16 %v255, %v254
        %v262 = vpack.c.bf16 %v257, %v256
        %v263 = vpack.c.bf16 %v259, %v258
        %s264 = scalar_lea.vmem %s1, 64
        %v265 = vld [vmem:[%s264] sm:$0xf]
        %v266 = vld [vmem:[%s264 + $0x4] sm:$0xf]
        %v267 = vld [vmem:[%s264 + $0x8] sm:$0xf]
        %v268 = vld [vmem:[%s264 + $0xc] sm:$0xf]
        %v269 = vld [vmem:[%s264 + $0x10] sm:$0xf]
        %v270 = vld [vmem:[%s264 + $0x14] sm:$0xf]
        %v271 = vld [vmem:[%s264 + $0x18] sm:$0xf]
        %v272 = vld [vmem:[%s264 + $0x1c] sm:$0xf]
        %v273 = vld [vmem:[%s264 + $0x20] sm:$0xf]
        %v274 = vld [vmem:[%s264 + $0x24] sm:$0xf]
        %v275 = vld [vmem:[%s264 + $0x28] sm:$0xf]
        %v276 = vld [vmem:[%s264 + $0x2c] sm:$0xf]
        %v277 = vld [vmem:[%s264 + $0x30] sm:$0xf]
        %v278 = vld [vmem:[%s264 + $0x34] sm:$0xf]
        %v279 = vld [vmem:[%s264 + $0x38] sm:$0xf]
        %v280 = vld [vmem:[%s264 + $0x3c] sm:$0xf]
        %v297 = vunpack.c.l.b16 %v265
        %v298 = vunpack.c.l.b16 %v266
        %v299 = vunpack.c.l.b16 %v267
        %v300 = vunpack.c.l.b16 %v268
        %v301 = vunpack.c.l.b16 %v269
        %v302 = vunpack.c.l.b16 %v270
        %v303 = vunpack.c.l.b16 %v271
        %v304 = vunpack.c.l.b16 %v272
        %v305 = vunpack.c.l.b16 %v273
        %v306 = vunpack.c.l.b16 %v274
        %v307 = vunpack.c.l.b16 %v275
        %v308 = vunpack.c.l.b16 %v276
        %v309 = vunpack.c.l.b16 %v277
        %v310 = vunpack.c.l.b16 %v278
        %v311 = vunpack.c.l.b16 %v279
        %v312 = vunpack.c.l.b16 %v280
        %v313 = vpack.c.b16 %v298, %v297
        %v314 = vpack.c.b16 %v300, %v299
        %v315 = vpack.c.b16 %v302, %v301
        %v316 = vpack.c.b16 %v304, %v303
        %v317 = vpack.c.b16 %v306, %v305
        %v318 = vpack.c.b16 %v308, %v307
        %v319 = vpack.c.b16 %v310, %v309
        %v320 = vpack.c.b16 %v312, %v311
        %329 = vmatprep.subr.bf16.mxu0 0
        %330 = vmatpush1.bf16.msra.mxu0 %v313
        %331 = vmatprep.subr.bf16.mxu0 0
        %332 = vmatpush1.bf16.msra.mxu0 %v314
        %333 = vmatprep.subr.bf16.mxu0 0
        %334 = vmatpush1.bf16.msra.mxu0 %v315
        %335 = vmatprep.subr.bf16.mxu0 0
        %336 = vmatpush1.bf16.msra.mxu0 %v316
        %337 = vmatprep.subr.bf16.mxu0 0
        %338 = vmatpush1.bf16.msra.mxu0 %v317
        %339 = vmatprep.subr.bf16.mxu0 0
        %340 = vmatpush1.bf16.msra.mxu0 %v318
        %341 = vmatprep.subr.bf16.mxu0 0
        %342 = vmatpush1.bf16.msra.mxu0 %v319
        %343 = vmatprep.subr.bf16.mxu0 0
        %344 = vmatpush1.bf16.msra.mxu0 %v320
        %345 = vmatprep.subr.bf16.mxu0 0
        %346 = vmatpush1.bf16.msra.mxu0 0
        %347 = vmatprep.subr.bf16.mxu0 0
        %348 = vmatpush1.bf16.msra.mxu0 0
        %349 = vmatprep.subr.bf16.mxu0 0
        %350 = vmatpush1.bf16.msra.mxu0 0
        %351 = vmatprep.subr.bf16.mxu0 0
        %352 = vmatpush1.bf16.msra.mxu0 0
        %353 = vmatprep.subr.bf16.mxu0 0
        %354 = vmatpush1.bf16.msra.mxu0 0
        %355 = vmatprep.subr.bf16.mxu0 0
        %356 = vmatpush1.bf16.msra.mxu0 0
        %357 = vmatprep.subr.bf16.mxu0 0
        %358 = vmatpush1.bf16.msra.mxu0 0
        %359 = vmatprep.subr.bf16.mxu0 0
        %360 = vmatpush1.bf16.msra.mxu0 0
        %361 = vmatprep.mubr.bf16.mxu0 0
        %362 = vmatmul.mubr.bf16.gmra.mrb[0].mxu0 %v260
        %v363 = vpop.f32.mrb[0].mxu0
        %v364 = vadd.f32 0.0, %v363
        %v365 = vpop.f32.mrb[0].mxu0
        %v366 = vpop.f32.mrb[0].mxu0
        %v367 = vadd.f32 0.0, %v366
        %v368 = vpop.f32.mrb[0].mxu0
        %369 = vmatprep.mubr.bf16.mxu0 0
        %370 = vmatmul.mubr.bf16.gmra.mrb[0].mxu0 %v261
        %v371 = vpop.f32.mrb[0].mxu0
        %v372 = vadd.f32 0.0, %v371
        %v373 = vpop.f32.mrb[0].mxu0
        %v374 = vpop.f32.mrb[0].mxu0
        %v375 = vadd.f32 0.0, %v374
        %v376 = vpop.f32.mrb[0].mxu0
        %377 = vmatprep.mubr.bf16.mxu0 0
        %378 = vmatmul.mubr.bf16.gmra.mrb[0].mxu0 %v262
        %v379 = vpop.f32.mrb[0].mxu0
        %v380 = vadd.f32 0.0, %v379
        %v381 = vpop.f32.mrb[0].mxu0
        %v382 = vpop.f32.mrb[0].mxu0
        %v383 = vadd.f32 0.0, %v382
        %v384 = vpop.f32.mrb[0].mxu0
        %385 = vmatprep.mubr.bf16.mxu0 0
        %386 = vmatmul.mubr.bf16.gmra.mrb[0].mxu0 %v263
        %v387 = vpop.f32.mrb[0].mxu0
        %v388 = vadd.f32 0.0, %v387
        %v389 = vpop.f32.mrb[0].mxu0
        %v390 = vpop.f32.mrb[0].mxu0
        %v391 = vadd.f32 0.0, %v390
        %v392 = vpop.f32.mrb[0].mxu0
        %393 = vdwg.mxu0
        %v410 = vunpack.c.l.b16 %v236
        %v411 = vunpack.c.l.b16 %v237
        %v412 = vunpack.c.l.b16 %v238
        %v413 = vunpack.c.l.b16 %v239
        %v414 = vunpack.c.l.b16 %v240
        %v415 = vunpack.c.l.b16 %v241
        %v416 = vunpack.c.l.b16 %v242
        %v417 = vunpack.c.l.b16 %v243
        %v418 = vunpack.c.l.b16 %v244
        %v419 = vunpack.c.l.b16 %v245
        %v420 = vunpack.c.l.b16 %v246
        %v421 = vunpack.c.l.b16 %v247
        %v422 = vunpack.c.l.b16 %v248
        %v423 = vunpack.c.l.b16 %v249
        %v424 = vunpack.c.l.b16 %v250
        %v425 = vunpack.c.l.b16 %v251
        %v426 = vpack.c.b16 %v411, %v410
        %v427 = vpack.c.b16 %v413, %v412
        %v428 = vpack.c.b16 %v415, %v414
        %v429 = vpack.c.b16 %v417, %v416
        %v430 = vpack.c.b16 %v419, %v418
        %v431 = vpack.c.b16 %v421, %v420
        %v432 = vpack.c.b16 %v423, %v422
        %v433 = vpack.c.b16 %v425, %v424
        %442 = vmatprep.subr.bf16.mxu0 0
        %443 = vmatpush1.bf16.msra.mxu0 %v426
        %444 = vmatprep.subr.bf16.mxu0 0
        %445 = vmatpush1.bf16.msra.mxu0 %v427
        %446 = vmatprep.subr.bf16.mxu0 0
        %447 = vmatpush1.bf16.msra.mxu0 %v428
        %448 = vmatprep.subr.bf16.mxu0 0
        %449 = vmatpush1.bf16.msra.mxu0 %v429
        %450 = vmatprep.subr.bf16.mxu0 0
        %451 = vmatpush1.bf16.msra.mxu0 %v430
        %452 = vmatprep.subr.bf16.mxu0 0
        %453 = vmatpush1.bf16.msra.mxu0 %v431
        %454 = vmatprep.subr.bf16.mxu0 0
        %455 = vmatpush1.bf16.msra.mxu0 %v432
        %456 = vmatprep.subr.bf16.mxu0 0
        %457 = vmatpush1.bf16.msra.mxu0 %v433
        %458 = vmatprep.subr.bf16.mxu0 0
        %459 = vmatpush1.bf16.msra.mxu0 0
        %460 = vmatprep.subr.bf16.mxu0 0
        %461 = vmatpush1.bf16.msra.mxu0 0
        %462 = vmatprep.subr.bf16.mxu0 0
        %463 = vmatpush1.bf16.msra.mxu0 0
        %464 = vmatprep.subr.bf16.mxu0 0
        %465 = vmatpush1.bf16.msra.mxu0 0
        %466 = vmatprep.subr.bf16.mxu0 0
        %467 = vmatpush1.bf16.msra.mxu0 0
        %468 = vmatprep.subr.bf16.mxu0 0
        %469 = vmatpush1.bf16.msra.mxu0 0
        %470 = vmatprep.subr.bf16.mxu0 0
        %471 = vmatpush1.bf16.msra.mxu0 0
        %472 = vmatprep.subr.bf16.mxu0 0
        %473 = vmatpush1.bf16.msra.mxu0 0
        %474 = vmatprep.mubr.bf16.mxu0 0
        %475 = vmatmul.mubr.bf16.gmra.mrb[0].mxu0 %v232
        %v476 = vpop.f32.mrb[0].mxu0
        %v477 = vadd.f32 %v364, %v476
        %v478 = vpop.f32.mrb[0].mxu0
        %v479 = vpop.f32.mrb[0].mxu0
        %v480 = vadd.f32 %v367, %v479
        %v481 = vpop.f32.mrb[0].mxu0
        %482 = vmatprep.mubr.bf16.mxu0 0
        %483 = vmatmul.mubr.bf16.gmra.mrb[0].mxu0 %v233
        %v484 = vpop.f32.mrb[0].mxu0
        %v485 = vadd.f32 %v372, %v484
        %v486 = vpop.f32.mrb[0].mxu0
        %v487 = vpop.f32.mrb[0].mxu0
        %v488 = vadd.f32 %v375, %v487
        %v489 = vpop.f32.mrb[0].mxu0
        %490 = vmatprep.mubr.bf16.mxu0 0
        %491 = vmatmul.mubr.bf16.gmra.mrb[0].mxu0 %v234
        %v492 = vpop.f32.mrb[0].mxu0
        %v493 = vadd.f32 %v380, %v492
        %v494 = vpop.f32.mrb[0].mxu0
        %v495 = vpop.f32.mrb[0].mxu0
        %v496 = vadd.f32 %v383, %v495
        %v497 = vpop.f32.mrb[0].mxu0
        %498 = vmatprep.mubr.bf16.mxu0 0
        %499 = vmatmul.mubr.bf16.gmra.mrb[0].mxu0 %v235
        %v500 = vpop.f32.mrb[0].mxu0
        %v501 = vadd.f32 %v388, %v500
        %v502 = vpop.f32.mrb[0].mxu0
        %v503 = vpop.f32.mrb[0].mxu0
        %v504 = vadd.f32 %v391, %v503
        %v505 = vpop.f32.mrb[0].mxu0
        %506 = vdwg.mxu0
        %v507 = vld [vmem:[%s222 + $0x2] sm:$0xff]
        %v508 = vld [vmem:[%s222 + $0x12] sm:$0xff]
        %v509 = vld [vmem:[%s222 + $0x22] sm:$0xff]
        %v510 = vld [vmem:[%s222 + $0x32] sm:$0xff]
        %v511 = vld [vmem:[%s222 + $0x42] sm:$0xff]
        %v512 = vld [vmem:[%s222 + $0x52] sm:$0xff]
        %v513 = vld [vmem:[%s222 + $0x62] sm:$0xff]
        %v514 = vld [vmem:[%s222 + $0x72] sm:$0xff]
        %v515 = vpack.c.bf16 %v508, %v507
        %v516 = vpack.c.bf16 %v510, %v509
        %v517 = vpack.c.bf16 %v512, %v511
        %v518 = vpack.c.bf16 %v514, %v513
        %s519 = scalar_lea.vmem %s1, 128
        %v520 = vld [vmem:[%s519] sm:$0xf]
        %v521 = vld [vmem:[%s519 + $0x4] sm:$0xf]
        %v522 = vld [vmem:[%s519 + $0x8] sm:$0xf]
        %v523 = vld [vmem:[%s519 + $0xc] sm:$0xf]
        %v524 = vld [vmem:[%s519 + $0x10] sm:$0xf]
        %v525 = vld [vmem:[%s519 + $0x14] sm:$0xf]
        %v526 = vld [vmem:[%s519 + $0x18] sm:$0xf]
        %v527 = vld [vmem:[%s519 + $0x1c] sm:$0xf]
        %v528 = vld [vmem:[%s519 + $0x20] sm:$0xf]
        %v529 = vld [vmem:[%s519 + $0x24] sm:$0xf]
        %v530 = vld [vmem:[%s519 + $0x28] sm:$0xf]
        %v531 = vld [vmem:[%s519 + $0x2c] sm:$0xf]
        %v532 = vld [vmem:[%s519 + $0x30] sm:$0xf]
        %v533 = vld [vmem:[%s519 + $0x34] sm:$0xf]
        %v534 = vld [vmem:[%s519 + $0x38] sm:$0xf]
        %v535 = vld [vmem:[%s519 + $0x3c] sm:$0xf]
        %v552 = vunpack.c.l.b16 %v520
        %v553 = vunpack.c.l.b16 %v521
        %v554 = vunpack.c.l.b16 %v522
        %v555 = vunpack.c.l.b16 %v523
        %v556 = vunpack.c.l.b16 %v524
        %v557 = vunpack.c.l.b16 %v525
        %v558 = vunpack.c.l.b16 %v526
        %v559 = vunpack.c.l.b16 %v527
        %v560 = vunpack.c.l.b16 %v528
        %v561 = vunpack.c.l.b16 %v529
        %v562 = vunpack.c.l.b16 %v530
        %v563 = vunpack.c.l.b16 %v531
        %v564 = vunpack.c.l.b16 %v532
        %v565 = vunpack.c.l.b16 %v533
        %v566 = vunpack.c.l.b16 %v534
        %v567 = vunpack.c.l.b16 %v535
        %v568 = vpack.c.b16 %v553, %v552
        %v569 = vpack.c.b16 %v555, %v554
        %v570 = vpack.c.b16 %v557, %v556
        %v571 = vpack.c.b16 %v559, %v558
        %v572 = vpack.c.b16 %v561, %v560
        %v573 = vpack.c.b16 %v563, %v562
        %v574 = vpack.c.b16 %v565, %v564
        %v575 = vpack.c.b16 %v567, %v566
        %584 = vmatprep.subr.bf16.mxu0 0
        %585 = vmatpush1.bf16.msra.mxu0 %v568
        %586 = vmatprep.subr.bf16.mxu0 0
        %587 = vmatpush1.bf16.msra.mxu0 %v569
        %588 = vmatprep.subr.bf16.mxu0 0
        %589 = vmatpush1.bf16.msra.mxu0 %v570
        %590 = vmatprep.subr.bf16.mxu0 0
        %591 = vmatpush1.bf16.msra.mxu0 %v571
        %592 = vmatprep.subr.bf16.mxu0 0
        %593 = vmatpush1.bf16.msra.mxu0 %v572
        %594 = vmatprep.subr.bf16.mxu0 0
        %595 = vmatpush1.bf16.msra.mxu0 %v573
        %596 = vmatprep.subr.bf16.mxu0 0
        %597 = vmatpush1.bf16.msra.mxu0 %v574
        %598 = vmatprep.subr.bf16.mxu0 0
        %599 = vmatpush1.bf16.msra.mxu0 %v575
        %600 = vmatprep.subr.bf16.mxu0 0
        %601 = vmatpush1.bf16.msra.mxu0 0
        %602 = vmatprep.subr.bf16.mxu0 0
        %603 = vmatpush1.bf16.msra.mxu0 0
        %604 = vmatprep.subr.bf16.mxu0 0
        %605 = vmatpush1.bf16.msra.mxu0 0
        %606 = vmatprep.subr.bf16.mxu0 0
        %607 = vmatpush1.bf16.msra.mxu0 0
        %608 = vmatprep.subr.bf16.mxu0 0
        %609 = vmatpush1.bf16.msra.mxu0 0
        %610 = vmatprep.subr.bf16.mxu0 0
        %611 = vmatpush1.bf16.msra.mxu0 0
        %612 = vmatprep.subr.bf16.mxu0 0
        %613 = vmatpush1.bf16.msra.mxu0 0
        %614 = vmatprep.subr.bf16.mxu0 0
        %615 = vmatpush1.bf16.msra.mxu0 0
        %616 = vmatprep.mubr.bf16.mxu0 0
        %617 = vmatmul.mubr.bf16.gmra.mrb[0].mxu0 %v515
        %v618 = vpop.f32.mrb[0].mxu0
        %v619 = vadd.f32 0.0, %v618
        %v620 = vpop.f32.mrb[0].mxu0
        %v621 = vpop.f32.mrb[0].mxu0
        %v622 = vadd.f32 0.0, %v621
        %v623 = vpop.f32.mrb[0].mxu0
        %624 = vmatprep.mubr.bf16.mxu0 0
        %625 = vmatmul.mubr.bf16.gmra.mrb[0].mxu0 %v516
        %v626 = vpop.f32.mrb[0].mxu0
        %v627 = vadd.f32 0.0, %v626
        %v628 = vpop.f32.mrb[0].mxu0
        %v629 = vpop.f32.mrb[0].mxu0
        %v630 = vadd.f32 0.0, %v629
        %v631 = vpop.f32.mrb[0].mxu0
        %632 = vmatprep.mubr.bf16.mxu0 0
        %633 = vmatmul.mubr.bf16.gmra.mrb[0].mxu0 %v517
        %v634 = vpop.f32.mrb[0].mxu0
        %v635 = vadd.f32 0.0, %v634
        %v636 = vpop.f32.mrb[0].mxu0
        %v637 = vpop.f32.mrb[0].mxu0
        %v638 = vadd.f32 0.0, %v637
        %v639 = vpop.f32.mrb[0].mxu0
        %640 = vmatprep.mubr.bf16.mxu0 0
        %641 = vmatmul.mubr.bf16.gmra.mrb[0].mxu0 %v518
        %v642 = vpop.f32.mrb[0].mxu0
        %v643 = vadd.f32 0.0, %v642
        %v644 = vpop.f32.mrb[0].mxu0
        %v645 = vpop.f32.mrb[0].mxu0
        %v646 = vadd.f32 0.0, %v645
        %v647 = vpop.f32.mrb[0].mxu0
        %648 = vdwg.mxu0
        %v649 = vadd.f32 %v477, %v619
        %v650 = vadd.f32 %v480, %v622
        %v651 = vadd.f32 %v485, %v627
        %v652 = vadd.f32 %v488, %v630
        %v653 = vadd.f32 %v493, %v635
        %v654 = vadd.f32 %v496, %v638
        %v655 = vadd.f32 %v501, %v643
        %v656 = vadd.f32 %v504, %v646
        %s657 = scalar_lea.vmem %s222, 16
        %v658 = vld [vmem:[%s657] sm:$0xff]
        %v659 = vld [vmem:[%s657 + $0x10] sm:$0xff]
        %v660 = vld [vmem:[%s657 + $0x20] sm:$0xff]
        %v661 = vld [vmem:[%s657 + $0x30] sm:$0xff]
        %v662 = vld [vmem:[%s657 + $0x40] sm:$0xff]
        %v663 = vld [vmem:[%s657 + $0x50] sm:$0xff]
        %v664 = vld [vmem:[%s657 + $0x60] sm:$0xff]
        %v665 = vld [vmem:[%s657 + $0x70] sm:$0xff]
        %v666 = vpack.c.bf16 %v659, %v658
        %v667 = vpack.c.bf16 %v661, %v660
        %v668 = vpack.c.bf16 %v663, %v662
        %v669 = vpack.c.bf16 %v665, %v664
        %s670 = scalar_lea.vmem %s1, 192
        %v671 = vld [vmem:[%s670] sm:$0xf]
        %v672 = vld [vmem:[%s670 + $0x4] sm:$0xf]
        %v673 = vld [vmem:[%s670 + $0x8] sm:$0xf]
        %v674 = vld [vmem:[%s670 + $0xc] sm:$0xf]
        %v675 = vld [vmem:[%s670 + $0x10] sm:$0xf]
        %v676 = vld [vmem:[%s670 + $0x14] sm:$0xf]
        %v677 = vld [vmem:[%s670 + $0x18] sm:$0xf]
        %v678 = vld [vmem:[%s670 + $0x1c] sm:$0xf]
        %v679 = vld [vmem:[%s670 + $0x20] sm:$0xf]
        %v680 = vld [vmem:[%s670 + $0x24] sm:$0xf]
        %v681 = vld [vmem:[%s670 + $0x28] sm:$0xf]
        %v682 = vld [vmem:[%s670 + $0x2c] sm:$0xf]
        %v683 = vld [vmem:[%s670 + $0x30] sm:$0xf]
        %v684 = vld [vmem:[%s670 + $0x34] sm:$0xf]
        %v685 = vld [vmem:[%s670 + $0x38] sm:$0xf]
        %v686 = vld [vmem:[%s670 + $0x3c] sm:$0xf]
        %v703 = vunpack.c.l.b16 %v671
        %v704 = vunpack.c.l.b16 %v672
        %v705 = vunpack.c.l.b16 %v673
        %v706 = vunpack.c.l.b16 %v674
        %v707 = vunpack.c.l.b16 %v675
        %v708 = vunpack.c.l.b16 %v676
        %v709 = vunpack.c.l.b16 %v677
        %v710 = vunpack.c.l.b16 %v678
        %v711 = vunpack.c.l.b16 %v679
        %v712 = vunpack.c.l.b16 %v680
        %v713 = vunpack.c.l.b16 %v681
        %v714 = vunpack.c.l.b16 %v682
        %v715 = vunpack.c.l.b16 %v683
        %v716 = vunpack.c.l.b16 %v684
        %v717 = vunpack.c.l.b16 %v685
        %v718 = vunpack.c.l.b16 %v686
        %v719 = vpack.c.b16 %v704, %v703
        %v720 = vpack.c.b16 %v706, %v705
        %v721 = vpack.c.b16 %v708, %v707
        %v722 = vpack.c.b16 %v710, %v709
        %v723 = vpack.c.b16 %v712, %v711
        %v724 = vpack.c.b16 %v714, %v713
        %v725 = vpack.c.b16 %v716, %v715
        %v726 = vpack.c.b16 %v718, %v717
        %735 = vmatprep.subr.bf16.mxu0 0
        %736 = vmatpush1.bf16.msra.mxu0 %v719
        %737 = vmatprep.subr.bf16.mxu0 0
        %738 = vmatpush1.bf16.msra.mxu0 %v720
        %739 = vmatprep.subr.bf16.mxu0 0
        %740 = vmatpush1.bf16.msra.mxu0 %v721
        %741 = vmatprep.subr.bf16.mxu0 0
        %742 = vmatpush1.bf16.msra.mxu0 %v722
        %743 = vmatprep.subr.bf16.mxu0 0
        %744 = vmatpush1.bf16.msra.mxu0 %v723
        %745 = vmatprep.subr.bf16.mxu0 0
        %746 = vmatpush1.bf16.msra.mxu0 %v724
        %747 = vmatprep.subr.bf16.mxu0 0
        %748 = vmatpush1.bf16.msra.mxu0 %v725
        %749 = vmatprep.subr.bf16.mxu0 0
        %750 = vmatpush1.bf16.msra.mxu0 %v726
        %751 = vmatprep.subr.bf16.mxu0 0
        %752 = vmatpush1.bf16.msra.mxu0 0
        %753 = vmatprep.subr.bf16.mxu0 0
        %754 = vmatpush1.bf16.msra.mxu0 0
        %755 = vmatprep.subr.bf16.mxu0 0
        %756 = vmatpush1.bf16.msra.mxu0 0
        %757 = vmatprep.subr.bf16.mxu0 0
        %758 = vmatpush1.bf16.msra.mxu0 0
        %759 = vmatprep.subr.bf16.mxu0 0
        %760 = vmatpush1.bf16.msra.mxu0 0
        %761 = vmatprep.subr.bf16.mxu0 0
        %762 = vmatpush1.bf16.msra.mxu0 0
        %763 = vmatprep.subr.bf16.mxu0 0
        %764 = vmatpush1.bf16.msra.mxu0 0
        %765 = vmatprep.subr.bf16.mxu0 0
        %766 = vmatpush1.bf16.msra.mxu0 0
        %767 = vmatprep.mubr.bf16.mxu0 0
        %768 = vmatmul.mubr.bf16.gmra.mrb[0].mxu0 %v666
        %v769 = vpop.f32.mrb[0].mxu0
        %v770 = vadd.f32 0.0, %v769
        %v771 = vpop.f32.mrb[0].mxu0
        %v772 = vpop.f32.mrb[0].mxu0
        %v773 = vadd.f32 0.0, %v772
        %v774 = vpop.f32.mrb[0].mxu0
        %775 = vmatprep.mubr.bf16.mxu0 0
        %776 = vmatmul.mubr.bf16.gmra.mrb[0].mxu0 %v667
        %v777 = vpop.f32.mrb[0].mxu0
        %v778 = vadd.f32 0.0, %v777
        %v779 = vpop.f32.mrb[0].mxu0
        %v780 = vpop.f32.mrb[0].mxu0
        %v781 = vadd.f32 0.0, %v780
        %v782 = vpop.f32.mrb[0].mxu0
        %783 = vmatprep.mubr.bf16.mxu0 0
        %784 = vmatmul.mubr.bf16.gmra.mrb[0].mxu0 %v668
        %v785 = vpop.f32.mrb[0].mxu0
        %v786 = vadd.f32 0.0, %v785
        %v787 = vpop.f32.mrb[0].mxu0
        %v788 = vpop.f32.mrb[0].mxu0
        %v789 = vadd.f32 0.0, %v788
        %v790 = vpop.f32.mrb[0].mxu0
        %791 = vmatprep.mubr.bf16.mxu0 0
        %792 = vmatmul.mubr.bf16.gmra.mrb[0].mxu0 %v669
        %v793 = vpop.f32.mrb[0].mxu0
        %v794 = vadd.f32 0.0, %v793
        %v795 = vpop.f32.mrb[0].mxu0
        %v796 = vpop.f32.mrb[0].mxu0
        %v797 = vadd.f32 0.0, %v796
        %v798 = vpop.f32.mrb[0].mxu0
        %799 = vdwg.mxu0
        %v800 = vadd.f32 %v649, %v770
        %v801 = vadd.f32 %v650, %v773
        %v802 = vadd.f32 %v651, %v778
        %v803 = vadd.f32 %v652, %v781
        %v804 = vadd.f32 %v653, %v786
        %v805 = vadd.f32 %v654, %v789
        %v806 = vadd.f32 %v655, %v794
        %v807 = vadd.f32 %v656, %v797
        %v808 = vld [vmem:[%s657 + $0x1] sm:$0xff]
        %v809 = vld [vmem:[%s657 + $0x11] sm:$0xff]
        %v810 = vld [vmem:[%s657 + $0x21] sm:$0xff]
        %v811 = vld [vmem:[%s657 + $0x31] sm:$0xff]
        %v812 = vld [vmem:[%s657 + $0x41] sm:$0xff]
        %v813 = vld [vmem:[%s657 + $0x51] sm:$0xff]
        %v814 = vld [vmem:[%s657 + $0x61] sm:$0xff]
        %v815 = vld [vmem:[%s657 + $0x71] sm:$0xff]
        %v816 = vpack.c.bf16 %v809, %v808
        %v817 = vpack.c.bf16 %v811, %v810
        %v818 = vpack.c.bf16 %v813, %v812
        %v819 = vpack.c.bf16 %v815, %v814
        %s820 = scalar_lea.vmem %s1, 256
        %v821 = vld [vmem:[%s820] sm:$0xf]
        %v822 = vld [vmem:[%s820 + $0x4] sm:$0xf]
        %v823 = vld [vmem:[%s820 + $0x8] sm:$0xf]
        %v824 = vld [vmem:[%s820 + $0xc] sm:$0xf]
        %v825 = vld [vmem:[%s820 + $0x10] sm:$0xf]
        %v826 = vld [vmem:[%s820 + $0x14] sm:$0xf]
        %v827 = vld [vmem:[%s820 + $0x18] sm:$0xf]
        %v828 = vld [vmem:[%s820 + $0x1c] sm:$0xf]
        %v829 = vld [vmem:[%s820 + $0x20] sm:$0xf]
        %v830 = vld [vmem:[%s820 + $0x24] sm:$0xf]
        %v831 = vld [vmem:[%s820 + $0x28] sm:$0xf]
        %v832 = vld [vmem:[%s820 + $0x2c] sm:$0xf]
        %v833 = vld [vmem:[%s820 + $0x30] sm:$0xf]
        %v834 = vld [vmem:[%s820 + $0x34] sm:$0xf]
        %v835 = vld [vmem:[%s820 + $0x38] sm:$0xf]
        %v836 = vld [vmem:[%s820 + $0x3c] sm:$0xf]
        %v853 = vunpack.c.l.b16 %v821
        %v854 = vunpack.c.l.b16 %v822
        %v855 = vunpack.c.l.b16 %v823
        %v856 = vunpack.c.l.b16 %v824
        %v857 = vunpack.c.l.b16 %v825
        %v858 = vunpack.c.l.b16 %v826
        %v859 = vunpack.c.l.b16 %v827
        %v860 = vunpack.c.l.b16 %v828
        %v861 = vunpack.c.l.b16 %v829
        %v862 = vunpack.c.l.b16 %v830
        %v863 = vunpack.c.l.b16 %v831
        %v864 = vunpack.c.l.b16 %v832
        %v865 = vunpack.c.l.b16 %v833
        %v866 = vunpack.c.l.b16 %v834
        %v867 = vunpack.c.l.b16 %v835
        %v868 = vunpack.c.l.b16 %v836
        %v869 = vpack.c.b16 %v854, %v853
        %v870 = vpack.c.b16 %v856, %v855
        %v871 = vpack.c.b16 %v858, %v857
        %v872 = vpack.c.b16 %v860, %v859
        %v873 = vpack.c.b16 %v862, %v861
        %v874 = vpack.c.b16 %v864, %v863
        %v875 = vpack.c.b16 %v866, %v865
        %v876 = vpack.c.b16 %v868, %v867
        %885 = vmatprep.subr.bf16.mxu0 0
        %886 = vmatpush1.bf16.msra.mxu0 %v869
        %887 = vmatprep.subr.bf16.mxu0 0
        %888 = vmatpush1.bf16.msra.mxu0 %v870
        %889 = vmatprep.subr.bf16.mxu0 0
        %890 = vmatpush1.bf16.msra.mxu0 %v871
        %891 = vmatprep.subr.bf16.mxu0 0
        %892 = vmatpush1.bf16.msra.mxu0 %v872
        %893 = vmatprep.subr.bf16.mxu0 0
        %894 = vmatpush1.bf16.msra.mxu0 %v873
        %895 = vmatprep.subr.bf16.mxu0 0
        %896 = vmatpush1.bf16.msra.mxu0 %v874
        %897 = vmatprep.subr.bf16.mxu0 0
        %898 = vmatpush1.bf16.msra.mxu0 %v875
        %899 = vmatprep.subr.bf16.mxu0 0
        %900 = vmatpush1.bf16.msra.mxu0 %v876
        %901 = vmatprep.subr.bf16.mxu0 0
        %902 = vmatpush1.bf16.msra.mxu0 0
        %903 = vmatprep.subr.bf16.mxu0 0
        %904 = vmatpush1.bf16.msra.mxu0 0
        %905 = vmatprep.subr.bf16.mxu0 0
        %906 = vmatpush1.bf16.msra.mxu0 0
        %907 = vmatprep.subr.bf16.mxu0 0
        %908 = vmatpush1.bf16.msra.mxu0 0
        %909 = vmatprep.subr.bf16.mxu0 0
        %910 = vmatpush1.bf16.msra.mxu0 0
        %911 = vmatprep.subr.bf16.mxu0 0
        %912 = vmatpush1.bf16.msra.mxu0 0
        %913 = vmatprep.subr.bf16.mxu0 0
        %914 = vmatpush1.bf16.msra.mxu0 0
        %915 = vmatprep.subr.bf16.mxu0 0
        %916 = vmatpush1.bf16.msra.mxu0 0
        %917 = vmatprep.mubr.bf16.mxu0 0
        %918 = vmatmul.mubr.bf16.gmra.mrb[0].mxu0 %v816
        %v919 = vpop.f32.mrb[0].mxu0
        %v920 = vadd.f32 0.0, %v919
        %v921 = vpop.f32.mrb[0].mxu0
        %v922 = vpop.f32.mrb[0].mxu0
        %v923 = vadd.f32 0.0, %v922
        %v924 = vpop.f32.mrb[0].mxu0
        %925 = vmatprep.mubr.bf16.mxu0 0
        %926 = vmatmul.mubr.bf16.gmra.mrb[0].mxu0 %v817
        %v927 = vpop.f32.mrb[0].mxu0
        %v928 = vadd.f32 0.0, %v927
        %v929 = vpop.f32.mrb[0].mxu0
        %v930 = vpop.f32.mrb[0].mxu0
        %v931 = vadd.f32 0.0, %v930
        %v932 = vpop.f32.mrb[0].mxu0
        %933 = vmatprep.mubr.bf16.mxu0 0
        %934 = vmatmul.mubr.bf16.gmra.mrb[0].mxu0 %v818
        %v935 = vpop.f32.mrb[0].mxu0
        %v936 = vadd.f32 0.0, %v935
        %v937 = vpop.f32.mrb[0].mxu0
        %v938 = vpop.f32.mrb[0].mxu0
        %v939 = vadd.f32 0.0, %v938
        %v940 = vpop.f32.mrb[0].mxu0
        %941 = vmatprep.mubr.bf16.mxu0 0
        %942 = vmatmul.mubr.bf16.gmra.mrb[0].mxu0 %v819
        %v943 = vpop.f32.mrb[0].mxu0
        %v944 = vadd.f32 0.0, %v943
        %v945 = vpop.f32.mrb[0].mxu0
        %v946 = vpop.f32.mrb[0].mxu0
        %v947 = vadd.f32 0.0, %v946
        %v948 = vpop.f32.mrb[0].mxu0
        %949 = vdwg.mxu0
        %v950 = vadd.f32 %v800, %v920
        %v951 = vadd.f32 %v801, %v923
        %v952 = vadd.f32 %v802, %v928
        %v953 = vadd.f32 %v803, %v931
        %v954 = vadd.f32 %v804, %v936
        %v955 = vadd.f32 %v805, %v939
        %v956 = vadd.f32 %v806, %v944
        %v957 = vadd.f32 %v807, %v947
        %v958 = vld [vmem:[%s657 + $0x2] sm:$0xff]
        %v959 = vld [vmem:[%s657 + $0x12] sm:$0xff]
        %v960 = vld [vmem:[%s657 + $0x22] sm:$0xff]
        %v961 = vld [vmem:[%s657 + $0x32] sm:$0xff]
        %v962 = vld [vmem:[%s657 + $0x42] sm:$0xff]
        %v963 = vld [vmem:[%s657 + $0x52] sm:$0xff]
        %v964 = vld [vmem:[%s657 + $0x62] sm:$0xff]
        %v965 = vld [vmem:[%s657 + $0x72] sm:$0xff]
        %v966 = vpack.c.bf16 %v959, %v958
        %v967 = vpack.c.bf16 %v961, %v960
        %v968 = vpack.c.bf16 %v963, %v962
        %v969 = vpack.c.bf16 %v965, %v964
        %s970 = scalar_lea.vmem %s1, 320
        %v971 = vld [vmem:[%s970] sm:$0xf]
        %v972 = vld [vmem:[%s970 + $0x4] sm:$0xf]
        %v973 = vld [vmem:[%s970 + $0x8] sm:$0xf]
        %v974 = vld [vmem:[%s970 + $0xc] sm:$0xf]
        %v975 = vld [vmem:[%s970 + $0x10] sm:$0xf]
        %v976 = vld [vmem:[%s970 + $0x14] sm:$0xf]
        %v977 = vld [vmem:[%s970 + $0x18] sm:$0xf]
        %v978 = vld [vmem:[%s970 + $0x1c] sm:$0xf]
        %v979 = vld [vmem:[%s970 + $0x20] sm:$0xf]
        %v980 = vld [vmem:[%s970 + $0x24] sm:$0xf]
        %v981 = vld [vmem:[%s970 + $0x28] sm:$0xf]
        %v982 = vld [vmem:[%s970 + $0x2c] sm:$0xf]
        %v983 = vld [vmem:[%s970 + $0x30] sm:$0xf]
        %v984 = vld [vmem:[%s970 + $0x34] sm:$0xf]
        %v985 = vld [vmem:[%s970 + $0x38] sm:$0xf]
        %v986 = vld [vmem:[%s970 + $0x3c] sm:$0xf]
        %v1003 = vunpack.c.l.b16 %v971
        %v1004 = vunpack.c.l.b16 %v972
        %v1005 = vunpack.c.l.b16 %v973
        %v1006 = vunpack.c.l.b16 %v974
        %v1007 = vunpack.c.l.b16 %v975
        %v1008 = vunpack.c.l.b16 %v976
        %v1009 = vunpack.c.l.b16 %v977
        %v1010 = vunpack.c.l.b16 %v978
        %v1011 = vunpack.c.l.b16 %v979
        %v1012 = vunpack.c.l.b16 %v980
        %v1013 = vunpack.c.l.b16 %v981
        %v1014 = vunpack.c.l.b16 %v982
        %v1015 = vunpack.c.l.b16 %v983
        %v1016 = vunpack.c.l.b16 %v984
        %v1017 = vunpack.c.l.b16 %v985
        %v1018 = vunpack.c.l.b16 %v986
        %v1019 = vpack.c.b16 %v1004, %v1003
        %v1020 = vpack.c.b16 %v1006, %v1005
        %v1021 = vpack.c.b16 %v1008, %v1007
        %v1022 = vpack.c.b16 %v1010, %v1009
        %v1023 = vpack.c.b16 %v1012, %v1011
        %v1024 = vpack.c.b16 %v1014, %v1013
        %v1025 = vpack.c.b16 %v1016, %v1015
        %v1026 = vpack.c.b16 %v1018, %v1017
        %1035 = vmatprep.subr.bf16.mxu0 0
        %1036 = vmatpush1.bf16.msra.mxu0 %v1019
        %1037 = vmatprep.subr.bf16.mxu0 0
        %1038 = vmatpush1.bf16.msra.mxu0 %v1020
        %1039 = vmatprep.subr.bf16.mxu0 0
        %1040 = vmatpush1.bf16.msra.mxu0 %v1021
        %1041 = vmatprep.subr.bf16.mxu0 0
        %1042 = vmatpush1.bf16.msra.mxu0 %v1022
        %1043 = vmatprep.subr.bf16.mxu0 0
        %1044 = vmatpush1.bf16.msra.mxu0 %v1023
        %1045 = vmatprep.subr.bf16.mxu0 0
        %1046 = vmatpush1.bf16.msra.mxu0 %v1024
        %1047 = vmatprep.subr.bf16.mxu0 0
        %1048 = vmatpush1.bf16.msra.mxu0 %v1025
        %1049 = vmatprep.subr.bf16.mxu0 0
        %1050 = vmatpush1.bf16.msra.mxu0 %v1026
        %1051 = vmatprep.subr.bf16.mxu0 0
        %1052 = vmatpush1.bf16.msra.mxu0 0
        %1053 = vmatprep.subr.bf16.mxu0 0
        %1054 = vmatpush1.bf16.msra.mxu0 0
        %1055 = vmatprep.subr.bf16.mxu0 0
        %1056 = vmatpush1.bf16.msra.mxu0 0
        %1057 = vmatprep.subr.bf16.mxu0 0
        %1058 = vmatpush1.bf16.msra.mxu0 0
        %1059 = vmatprep.subr.bf16.mxu0 0
        %1060 = vmatpush1.bf16.msra.mxu0 0
        %1061 = vmatprep.subr.bf16.mxu0 0
        %1062 = vmatpush1.bf16.msra.mxu0 0
        %1063 = vmatprep.subr.bf16.mxu0 0
        %1064 = vmatpush1.bf16.msra.mxu0 0
        %1065 = vmatprep.subr.bf16.mxu0 0
        %1066 = vmatpush1.bf16.msra.mxu0 0
        %1067 = vmatprep.mubr.bf16.mxu0 0
        %1068 = vmatmul.mubr.bf16.gmra.mrb[0].mxu0 %v966
        %v1069 = vpop.f32.mrb[0].mxu0
        %v1070 = vadd.f32 0.0, %v1069
        %v1071 = vpop.f32.mrb[0].mxu0
        %v1072 = vpop.f32.mrb[0].mxu0
        %v1073 = vadd.f32 0.0, %v1072
        %v1074 = vpop.f32.mrb[0].mxu0
        %1075 = vmatprep.mubr.bf16.mxu0 0
        %1076 = vmatmul.mubr.bf16.gmra.mrb[0].mxu0 %v967
        %v1077 = vpop.f32.mrb[0].mxu0
        %v1078 = vadd.f32 0.0, %v1077
        %v1079 = vpop.f32.mrb[0].mxu0
        %v1080 = vpop.f32.mrb[0].mxu0
        %v1081 = vadd.f32 0.0, %v1080
        %v1082 = vpop.f32.mrb[0].mxu0
        %1083 = vmatprep.mubr.bf16.mxu0 0
        %1084 = vmatmul.mubr.bf16.gmra.mrb[0].mxu0 %v968
        %v1085 = vpop.f32.mrb[0].mxu0
        %v1086 = vadd.f32 0.0, %v1085
        %v1087 = vpop.f32.mrb[0].mxu0
        %v1088 = vpop.f32.mrb[0].mxu0
        %v1089 = vadd.f32 0.0, %v1088
        %v1090 = vpop.f32.mrb[0].mxu0
        %1091 = vmatprep.mubr.bf16.mxu0 0
        %1092 = vmatmul.mubr.bf16.gmra.mrb[0].mxu0 %v969
        %v1093 = vpop.f32.mrb[0].mxu0
        %v1094 = vadd.f32 0.0, %v1093
        %v1095 = vpop.f32.mrb[0].mxu0
        %v1096 = vpop.f32.mrb[0].mxu0
        %v1097 = vadd.f32 0.0, %v1096
        %v1098 = vpop.f32.mrb[0].mxu0
        %1099 = vdwg.mxu0
        %v1100 = vadd.f32 %v950, %v1070
        %v1101 = vadd.f32 %v951, %v1073
        %v1102 = vadd.f32 %v952, %v1078
        %v1103 = vadd.f32 %v953, %v1081
        %v1104 = vadd.f32 %v954, %v1086
        %v1105 = vadd.f32 %v955, %v1089
        %v1106 = vadd.f32 %v956, %v1094
        %v1107 = vadd.f32 %v957, %v1097
        %s1108 = scalar_lea.vmem %s222, 32
        %v1109 = vld [vmem:[%s1108] sm:$0xff]
        %v1110 = vld [vmem:[%s1108 + $0x10] sm:$0xff]
        %v1111 = vld [vmem:[%s1108 + $0x20] sm:$0xff]
        %v1112 = vld [vmem:[%s1108 + $0x30] sm:$0xff]
        %v1113 = vld [vmem:[%s1108 + $0x40] sm:$0xff]
        %v1114 = vld [vmem:[%s1108 + $0x50] sm:$0xff]
        %v1115 = vld [vmem:[%s1108 + $0x60] sm:$0xff]
        %v1116 = vld [vmem:[%s1108 + $0x70] sm:$0xff]
        %v1117 = vpack.c.bf16 %v1110, %v1109
        %v1118 = vpack.c.bf16 %v1112, %v1111
        %v1119 = vpack.c.bf16 %v1114, %v1113
        %v1120 = vpack.c.bf16 %v1116, %v1115
        %s1121 = scalar_lea.vmem %s1, 384
        %v1122 = vld [vmem:[%s1121] sm:$0xf]
        %v1123 = vld [vmem:[%s1121 + $0x4] sm:$0xf]
        %v1124 = vld [vmem:[%s1121 + $0x8] sm:$0xf]
        %v1125 = vld [vmem:[%s1121 + $0xc] sm:$0xf]
        %v1126 = vld [vmem:[%s1121 + $0x10] sm:$0xf]
        %v1127 = vld [vmem:[%s1121 + $0x14] sm:$0xf]
        %v1128 = vld [vmem:[%s1121 + $0x18] sm:$0xf]
        %v1129 = vld [vmem:[%s1121 + $0x1c] sm:$0xf]
        %v1130 = vld [vmem:[%s1121 + $0x20] sm:$0xf]
        %v1131 = vld [vmem:[%s1121 + $0x24] sm:$0xf]
        %v1132 = vld [vmem:[%s1121 + $0x28] sm:$0xf]
        %v1133 = vld [vmem:[%s1121 + $0x2c] sm:$0xf]
        %v1134 = vld [vmem:[%s1121 + $0x30] sm:$0xf]
        %v1135 = vld [vmem:[%s1121 + $0x34] sm:$0xf]
        %v1136 = vld [vmem:[%s1121 + $0x38] sm:$0xf]
        %v1137 = vld [vmem:[%s1121 + $0x3c] sm:$0xf]
        %v1154 = vunpack.c.l.b16 %v1122
        %v1155 = vunpack.c.l.b16 %v1123
        %v1156 = vunpack.c.l.b16 %v1124
        %v1157 = vunpack.c.l.b16 %v1125
        %v1158 = vunpack.c.l.b16 %v1126
        %v1159 = vunpack.c.l.b16 %v1127
        %v1160 = vunpack.c.l.b16 %v1128
        %v1161 = vunpack.c.l.b16 %v1129
        %v1162 = vunpack.c.l.b16 %v1130
        %v1163 = vunpack.c.l.b16 %v1131
        %v1164 = vunpack.c.l.b16 %v1132
        %v1165 = vunpack.c.l.b16 %v1133
        %v1166 = vunpack.c.l.b16 %v1134
        %v1167 = vunpack.c.l.b16 %v1135
        %v1168 = vunpack.c.l.b16 %v1136
        %v1169 = vunpack.c.l.b16 %v1137
        %v1170 = vpack.c.b16 %v1155, %v1154
        %v1171 = vpack.c.b16 %v1157, %v1156
        %v1172 = vpack.c.b16 %v1159, %v1158
        %v1173 = vpack.c.b16 %v1161, %v1160
        %v1174 = vpack.c.b16 %v1163, %v1162
        %v1175 = vpack.c.b16 %v1165, %v1164
        %v1176 = vpack.c.b16 %v1167, %v1166
        %v1177 = vpack.c.b16 %v1169, %v1168
        %1186 = vmatprep.subr.bf16.mxu0 0
        %1187 = vmatpush1.bf16.msra.mxu0 %v1170
        %1188 = vmatprep.subr.bf16.mxu0 0
        %1189 = vmatpush1.bf16.msra.mxu0 %v1171
        %1190 = vmatprep.subr.bf16.mxu0 0
        %1191 = vmatpush1.bf16.msra.mxu0 %v1172
        %1192 = vmatprep.subr.bf16.mxu0 0
        %1193 = vmatpush1.bf16.msra.mxu0 %v1173
        %1194 = vmatprep.subr.bf16.mxu0 0
        %1195 = vmatpush1.bf16.msra.mxu0 %v1174
        %1196 = vmatprep.subr.bf16.mxu0 0
        %1197 = vmatpush1.bf16.msra.mxu0 %v1175
        %1198 = vmatprep.subr.bf16.mxu0 0
        %1199 = vmatpush1.bf16.msra.mxu0 %v1176
        %1200 = vmatprep.subr.bf16.mxu0 0
        %1201 = vmatpush1.bf16.msra.mxu0 %v1177
        %1202 = vmatprep.subr.bf16.mxu0 0
        %1203 = vmatpush1.bf16.msra.mxu0 0
        %1204 = vmatprep.subr.bf16.mxu0 0
        %1205 = vmatpush1.bf16.msra.mxu0 0
        %1206 = vmatprep.subr.bf16.mxu0 0
        %1207 = vmatpush1.bf16.msra.mxu0 0
        %1208 = vmatprep.subr.bf16.mxu0 0
        %1209 = vmatpush1.bf16.msra.mxu0 0
        %1210 = vmatprep.subr.bf16.mxu0 0
        %1211 = vmatpush1.bf16.msra.mxu0 0
        %1212 = vmatprep.subr.bf16.mxu0 0
        %1213 = vmatpush1.bf16.msra.mxu0 0
        %1214 = vmatprep.subr.bf16.mxu0 0
        %1215 = vmatpush1.bf16.msra.mxu0 0
        %1216 = vmatprep.subr.bf16.mxu0 0
        %1217 = vmatpush1.bf16.msra.mxu0 0
        %1218 = vmatprep.mubr.bf16.mxu0 0
        %1219 = vmatmul.mubr.bf16.gmra.mrb[0].mxu0 %v1117
        %v1220 = vpop.f32.mrb[0].mxu0
        %v1221 = vadd.f32 0.0, %v1220
        %v1222 = vpop.f32.mrb[0].mxu0
        %v1223 = vpop.f32.mrb[0].mxu0
        %v1224 = vadd.f32 0.0, %v1223
        %v1225 = vpop.f32.mrb[0].mxu0
        %1226 = vmatprep.mubr.bf16.mxu0 0
        %1227 = vmatmul.mubr.bf16.gmra.mrb[0].mxu0 %v1118
        %v1228 = vpop.f32.mrb[0].mxu0
        %v1229 = vadd.f32 0.0, %v1228
        %v1230 = vpop.f32.mrb[0].mxu0
        %v1231 = vpop.f32.mrb[0].mxu0
        %v1232 = vadd.f32 0.0, %v1231
        %v1233 = vpop.f32.mrb[0].mxu0
        %1234 = vmatprep.mubr.bf16.mxu0 0
        %1235 = vmatmul.mubr.bf16.gmra.mrb[0].mxu0 %v1119
        %v1236 = vpop.f32.mrb[0].mxu0
        %v1237 = vadd.f32 0.0, %v1236
        %v1238 = vpop.f32.mrb[0].mxu0
        %v1239 = vpop.f32.mrb[0].mxu0
        %v1240 = vadd.f32 0.0, %v1239
        %v1241 = vpop.f32.mrb[0].mxu0
        %1242 = vmatprep.mubr.bf16.mxu0 0
        %1243 = vmatmul.mubr.bf16.gmra.mrb[0].mxu0 %v1120
        %v1244 = vpop.f32.mrb[0].mxu0
        %v1245 = vadd.f32 0.0, %v1244
        %v1246 = vpop.f32.mrb[0].mxu0
        %v1247 = vpop.f32.mrb[0].mxu0
        %v1248 = vadd.f32 0.0, %v1247
        %v1249 = vpop.f32.mrb[0].mxu0
        %1250 = vdwg.mxu0
        %v1251 = vadd.f32 %v1100, %v1221
        %v1252 = vadd.f32 %v1101, %v1224
        %v1253 = vadd.f32 %v1102, %v1229
        %v1254 = vadd.f32 %v1103, %v1232
        %v1255 = vadd.f32 %v1104, %v1237
        %v1256 = vadd.f32 %v1105, %v1240
        %v1257 = vadd.f32 %v1106, %v1245
        %v1258 = vadd.f32 %v1107, %v1248
        %v1259 = vld [vmem:[%s1108 + $0x1] sm:$0xff]
        %v1260 = vld [vmem:[%s1108 + $0x11] sm:$0xff]
        %v1261 = vld [vmem:[%s1108 + $0x21] sm:$0xff]
        %v1262 = vld [vmem:[%s1108 + $0x31] sm:$0xff]
        %v1263 = vld [vmem:[%s1108 + $0x41] sm:$0xff]
        %v1264 = vld [vmem:[%s1108 + $0x51] sm:$0xff]
        %v1265 = vld [vmem:[%s1108 + $0x61] sm:$0xff]
        %v1266 = vld [vmem:[%s1108 + $0x71] sm:$0xff]
        %v1267 = vpack.c.bf16 %v1260, %v1259
        %v1268 = vpack.c.bf16 %v1262, %v1261
        %v1269 = vpack.c.bf16 %v1264, %v1263
        %v1270 = vpack.c.bf16 %v1266, %v1265
        %s1271 = scalar_lea.vmem %s1, 448
        %v1272 = vld [vmem:[%s1271] sm:$0xf]
        %v1273 = vld [vmem:[%s1271 + $0x4] sm:$0xf]
        %v1274 = vld [vmem:[%s1271 + $0x8] sm:$0xf]
        %v1275 = vld [vmem:[%s1271 + $0xc] sm:$0xf]
        %v1276 = vld [vmem:[%s1271 + $0x10] sm:$0xf]
        %v1277 = vld [vmem:[%s1271 + $0x14] sm:$0xf]
        %v1278 = vld [vmem:[%s1271 + $0x18] sm:$0xf]
        %v1279 = vld [vmem:[%s1271 + $0x1c] sm:$0xf]
        %v1280 = vld [vmem:[%s1271 + $0x20] sm:$0xf]
        %v1281 = vld [vmem:[%s1271 + $0x24] sm:$0xf]
        %v1282 = vld [vmem:[%s1271 + $0x28] sm:$0xf]
        %v1283 = vld [vmem:[%s1271 + $0x2c] sm:$0xf]
        %v1284 = vld [vmem:[%s1271 + $0x30] sm:$0xf]
        %v1285 = vld [vmem:[%s1271 + $0x34] sm:$0xf]
        %v1286 = vld [vmem:[%s1271 + $0x38] sm:$0xf]
        %v1287 = vld [vmem:[%s1271 + $0x3c] sm:$0xf]
        %v1304 = vunpack.c.l.b16 %v1272
        %v1305 = vunpack.c.l.b16 %v1273
        %v1306 = vunpack.c.l.b16 %v1274
        %v1307 = vunpack.c.l.b16 %v1275
        %v1308 = vunpack.c.l.b16 %v1276
        %v1309 = vunpack.c.l.b16 %v1277
        %v1310 = vunpack.c.l.b16 %v1278
        %v1311 = vunpack.c.l.b16 %v1279
        %v1312 = vunpack.c.l.b16 %v1280
        %v1313 = vunpack.c.l.b16 %v1281
        %v1314 = vunpack.c.l.b16 %v1282
        %v1315 = vunpack.c.l.b16 %v1283
        %v1316 = vunpack.c.l.b16 %v1284
        %v1317 = vunpack.c.l.b16 %v1285
        %v1318 = vunpack.c.l.b16 %v1286
        %v1319 = vunpack.c.l.b16 %v1287
        %v1320 = vpack.c.b16 %v1305, %v1304
        %v1321 = vpack.c.b16 %v1307, %v1306
        %v1322 = vpack.c.b16 %v1309, %v1308
        %v1323 = vpack.c.b16 %v1311, %v1310
        %v1324 = vpack.c.b16 %v1313, %v1312
        %v1325 = vpack.c.b16 %v1315, %v1314
        %v1326 = vpack.c.b16 %v1317, %v1316
        %v1327 = vpack.c.b16 %v1319, %v1318
        %1336 = vmatprep.subr.bf16.mxu0 0
        %1337 = vmatpush1.bf16.msra.mxu0 %v1320
        %1338 = vmatprep.subr.bf16.mxu0 0
        %1339 = vmatpush1.bf16.msra.mxu0 %v1321
        %1340 = vmatprep.subr.bf16.mxu0 0
        %1341 = vmatpush1.bf16.msra.mxu0 %v1322
        %1342 = vmatprep.subr.bf16.mxu0 0
        %1343 = vmatpush1.bf16.msra.mxu0 %v1323
        %1344 = vmatprep.subr.bf16.mxu0 0
        %1345 = vmatpush1.bf16.msra.mxu0 %v1324
        %1346 = vmatprep.subr.bf16.mxu0 0
        %1347 = vmatpush1.bf16.msra.mxu0 %v1325
        %1348 = vmatprep.subr.bf16.mxu0 0
        %1349 = vmatpush1.bf16.msra.mxu0 %v1326
        %1350 = vmatprep.subr.bf16.mxu0 0
        %1351 = vmatpush1.bf16.msra.mxu0 %v1327
        %1352 = vmatprep.subr.bf16.mxu0 0
        %1353 = vmatpush1.bf16.msra.mxu0 0
        %1354 = vmatprep.subr.bf16.mxu0 0
        %1355 = vmatpush1.bf16.msra.mxu0 0
        %1356 = vmatprep.subr.bf16.mxu0 0
        %1357 = vmatpush1.bf16.msra.mxu0 0
        %1358 = vmatprep.subr.bf16.mxu0 0
        %1359 = vmatpush1.bf16.msra.mxu0 0
        %1360 = vmatprep.subr.bf16.mxu0 0
        %1361 = vmatpush1.bf16.msra.mxu0 0
        %1362 = vmatprep.subr.bf16.mxu0 0
        %1363 = vmatpush1.bf16.msra.mxu0 0
        %1364 = vmatprep.subr.bf16.mxu0 0
        %1365 = vmatpush1.bf16.msra.mxu0 0
        %1366 = vmatprep.subr.bf16.mxu0 0
        %1367 = vmatpush1.bf16.msra.mxu0 0
        %1368 = vmatprep.mubr.bf16.mxu0 0
        %1369 = vmatmul.mubr.bf16.gmra.mrb[0].mxu0 %v1267
        %v1370 = vpop.f32.mrb[0].mxu0
        %v1371 = vadd.f32 0.0, %v1370
        %v1372 = vpop.f32.mrb[0].mxu0
        %v1373 = vpop.f32.mrb[0].mxu0
        %v1374 = vadd.f32 0.0, %v1373
        %v1375 = vpop.f32.mrb[0].mxu0
        %1376 = vmatprep.mubr.bf16.mxu0 0
        %1377 = vmatmul.mubr.bf16.gmra.mrb[0].mxu0 %v1268
        %v1378 = vpop.f32.mrb[0].mxu0
        %v1379 = vadd.f32 0.0, %v1378
        %v1380 = vpop.f32.mrb[0].mxu0
        %v1381 = vpop.f32.mrb[0].mxu0
        %v1382 = vadd.f32 0.0, %v1381
        %v1383 = vpop.f32.mrb[0].mxu0
        %1384 = vmatprep.mubr.bf16.mxu0 0
        %1385 = vmatmul.mubr.bf16.gmra.mrb[0].mxu0 %v1269
        %v1386 = vpop.f32.mrb[0].mxu0
        %v1387 = vadd.f32 0.0, %v1386
        %v1388 = vpop.f32.mrb[0].mxu0
        %v1389 = vpop.f32.mrb[0].mxu0
        %v1390 = vadd.f32 0.0, %v1389
        %v1391 = vpop.f32.mrb[0].mxu0
        %1392 = vmatprep.mubr.bf16.mxu0 0
        %1393 = vmatmul.mubr.bf16.gmra.mrb[0].mxu0 %v1270
        %v1394 = vpop.f32.mrb[0].mxu0
        %v1395 = vadd.f32 0.0, %v1394
        %v1396 = vpop.f32.mrb[0].mxu0
        %v1397 = vpop.f32.mrb[0].mxu0
        %v1398 = vadd.f32 0.0, %v1397
        %v1399 = vpop.f32.mrb[0].mxu0
        %1400 = vdwg.mxu0
        %v1401 = vadd.f32 %v1251, %v1371
        %v1402 = vadd.f32 %v1252, %v1374
        %v1403 = vadd.f32 %v1253, %v1379
        %v1404 = vadd.f32 %v1254, %v1382
        %v1405 = vadd.f32 %v1255, %v1387
        %v1406 = vadd.f32 %v1256, %v1390
        %v1407 = vadd.f32 %v1257, %v1395
        %v1408 = vadd.f32 %v1258, %v1398
        %v1409 = vld [vmem:[%s1108 + $0x2] sm:$0xff]
        %v1410 = vld [vmem:[%s1108 + $0x12] sm:$0xff]
        %v1411 = vld [vmem:[%s1108 + $0x22] sm:$0xff]
        %v1412 = vld [vmem:[%s1108 + $0x32] sm:$0xff]
        %v1413 = vld [vmem:[%s1108 + $0x42] sm:$0xff]
        %v1414 = vld [vmem:[%s1108 + $0x52] sm:$0xff]
        %v1415 = vld [vmem:[%s1108 + $0x62] sm:$0xff]
        %v1416 = vld [vmem:[%s1108 + $0x72] sm:$0xff]
        %v1417 = vpack.c.bf16 %v1410, %v1409
        %v1418 = vpack.c.bf16 %v1412, %v1411
        %v1419 = vpack.c.bf16 %v1414, %v1413
        %v1420 = vpack.c.bf16 %v1416, %v1415
        %s1421 = scalar_lea.vmem %s1, 512
        %v1422 = vld [vmem:[%s1421] sm:$0xf]
        %v1423 = vld [vmem:[%s1421 + $0x4] sm:$0xf]
        %v1424 = vld [vmem:[%s1421 + $0x8] sm:$0xf]
        %v1425 = vld [vmem:[%s1421 + $0xc] sm:$0xf]
        %v1426 = vld [vmem:[%s1421 + $0x10] sm:$0xf]
        %v1427 = vld [vmem:[%s1421 + $0x14] sm:$0xf]
        %v1428 = vld [vmem:[%s1421 + $0x18] sm:$0xf]
        %v1429 = vld [vmem:[%s1421 + $0x1c] sm:$0xf]
        %v1430 = vld [vmem:[%s1421 + $0x20] sm:$0xf]
        %v1431 = vld [vmem:[%s1421 + $0x24] sm:$0xf]
        %v1432 = vld [vmem:[%s1421 + $0x28] sm:$0xf]
        %v1433 = vld [vmem:[%s1421 + $0x2c] sm:$0xf]
        %v1434 = vld [vmem:[%s1421 + $0x30] sm:$0xf]
        %v1435 = vld [vmem:[%s1421 + $0x34] sm:$0xf]
        %v1436 = vld [vmem:[%s1421 + $0x38] sm:$0xf]
        %v1437 = vld [vmem:[%s1421 + $0x3c] sm:$0xf]
        %v1454 = vunpack.c.l.b16 %v1422
        %v1455 = vunpack.c.l.b16 %v1423
        %v1456 = vunpack.c.l.b16 %v1424
        %v1457 = vunpack.c.l.b16 %v1425
        %v1458 = vunpack.c.l.b16 %v1426
        %v1459 = vunpack.c.l.b16 %v1427
        %v1460 = vunpack.c.l.b16 %v1428
        %v1461 = vunpack.c.l.b16 %v1429
        %v1462 = vunpack.c.l.b16 %v1430
        %v1463 = vunpack.c.l.b16 %v1431
        %v1464 = vunpack.c.l.b16 %v1432
        %v1465 = vunpack.c.l.b16 %v1433
        %v1466 = vunpack.c.l.b16 %v1434
        %v1467 = vunpack.c.l.b16 %v1435
        %v1468 = vunpack.c.l.b16 %v1436
        %v1469 = vunpack.c.l.b16 %v1437
        %v1470 = vpack.c.b16 %v1455, %v1454
        %v1471 = vpack.c.b16 %v1457, %v1456
        %v1472 = vpack.c.b16 %v1459, %v1458
        %v1473 = vpack.c.b16 %v1461, %v1460
        %v1474 = vpack.c.b16 %v1463, %v1462
        %v1475 = vpack.c.b16 %v1465, %v1464
        %v1476 = vpack.c.b16 %v1467, %v1466
        %v1477 = vpack.c.b16 %v1469, %v1468
        %1486 = vmatprep.subr.bf16.mxu0 0
        %1487 = vmatpush1.bf16.msra.mxu0 %v1470
        %1488 = vmatprep.subr.bf16.mxu0 0
        %1489 = vmatpush1.bf16.msra.mxu0 %v1471
        %1490 = vmatprep.subr.bf16.mxu0 0
        %1491 = vmatpush1.bf16.msra.mxu0 %v1472
        %1492 = vmatprep.subr.bf16.mxu0 0
        %1493 = vmatpush1.bf16.msra.mxu0 %v1473
        %1494 = vmatprep.subr.bf16.mxu0 0
        %1495 = vmatpush1.bf16.msra.mxu0 %v1474
        %1496 = vmatprep.subr.bf16.mxu0 0
        %1497 = vmatpush1.bf16.msra.mxu0 %v1475
        %1498 = vmatprep.subr.bf16.mxu0 0
        %1499 = vmatpush1.bf16.msra.mxu0 %v1476
        %1500 = vmatprep.subr.bf16.mxu0 0
        %1501 = vmatpush1.bf16.msra.mxu0 %v1477
        %1502 = vmatprep.subr.bf16.mxu0 0
        %1503 = vmatpush1.bf16.msra.mxu0 0
        %1504 = vmatprep.subr.bf16.mxu0 0
        %1505 = vmatpush1.bf16.msra.mxu0 0
        %1506 = vmatprep.subr.bf16.mxu0 0
        %1507 = vmatpush1.bf16.msra.mxu0 0
        %1508 = vmatprep.subr.bf16.mxu0 0
        %1509 = vmatpush1.bf16.msra.mxu0 0
        %1510 = vmatprep.subr.bf16.mxu0 0
        %1511 = vmatpush1.bf16.msra.mxu0 0
        %1512 = vmatprep.subr.bf16.mxu0 0
        %1513 = vmatpush1.bf16.msra.mxu0 0
        %1514 = vmatprep.subr.bf16.mxu0 0
        %1515 = vmatpush1.bf16.msra.mxu0 0
        %1516 = vmatprep.subr.bf16.mxu0 0
        %1517 = vmatpush1.bf16.msra.mxu0 0
        %1518 = vmatprep.mubr.bf16.mxu0 0
        %1519 = vmatmul.mubr.bf16.gmra.mrb[0].mxu0 %v1417
        %v1520 = vpop.f32.mrb[0].mxu0
        %v1521 = vadd.f32 0.0, %v1520
        %v1522 = vpop.f32.mrb[0].mxu0
        %v1523 = vpop.f32.mrb[0].mxu0
        %v1524 = vadd.f32 0.0, %v1523
        %v1525 = vpop.f32.mrb[0].mxu0
        %1526 = vmatprep.mubr.bf16.mxu0 0
        %1527 = vmatmul.mubr.bf16.gmra.mrb[0].mxu0 %v1418
        %v1528 = vpop.f32.mrb[0].mxu0
        %v1529 = vadd.f32 0.0, %v1528
        %v1530 = vpop.f32.mrb[0].mxu0
        %v1531 = vpop.f32.mrb[0].mxu0
        %v1532 = vadd.f32 0.0, %v1531
        %v1533 = vpop.f32.mrb[0].mxu0
        %1534 = vmatprep.mubr.bf16.mxu0 0
        %1535 = vmatmul.mubr.bf16.gmra.mrb[0].mxu0 %v1419
        %v1536 = vpop.f32.mrb[0].mxu0
        %v1537 = vadd.f32 0.0, %v1536
        %v1538 = vpop.f32.mrb[0].mxu0
        %v1539 = vpop.f32.mrb[0].mxu0
        %v1540 = vadd.f32 0.0, %v1539
        %v1541 = vpop.f32.mrb[0].mxu0
        %1542 = vmatprep.mubr.bf16.mxu0 0
        %1543 = vmatmul.mubr.bf16.gmra.mrb[0].mxu0 %v1420
        %v1544 = vpop.f32.mrb[0].mxu0
        %v1545 = vadd.f32 0.0, %v1544
        %v1546 = vpop.f32.mrb[0].mxu0
        %v1547 = vpop.f32.mrb[0].mxu0
        %v1548 = vadd.f32 0.0, %v1547
        %v1549 = vpop.f32.mrb[0].mxu0
        %1550 = vdwg.mxu0
        %v1551 = vadd.f32 %v1401, %v1521
        %v1552 = vadd.f32 %v1402, %v1524
        %v1553 = vadd.f32 %v1403, %v1529
        %v1554 = vadd.f32 %v1404, %v1532
        %v1555 = vadd.f32 %v1405, %v1537
        %v1556 = vadd.f32 %v1406, %v1540
        %v1557 = vadd.f32 %v1407, %v1545
        %v1558 = vadd.f32 %v1408, %v1548
        %v1559 = vld [vmem:[%s2] sm:$0x1]
        %v1561 = vlaneseq
        %v1562 = vshrl.u32 %v1561, 7
        %v1563 = vsub.s32 0, %v1562
        %v1564 = vrot.slane %v1559, %v1563
        %v1566 = vadd.f32 %v1551, %v1564
        %v1567 = vadd.f32 %v1552, %v1564
        %v1568 = vadd.f32 %v1553, %v1564
        %v1569 = vadd.f32 %v1554, %v1564
        %v1570 = vadd.f32 %v1555, %v1564
        %v1571 = vadd.f32 %v1556, %v1564
        %v1572 = vadd.f32 %v1557, %v1564
        %v1573 = vadd.f32 %v1558, %v1564
        %v1574 = vmax.f32 %v1566, 0.0
        %v1575 = vmax.f32 %v1567, 0.0
        %v1576 = vmax.f32 %v1568, 0.0
        %v1577 = vmax.f32 %v1569, 0.0
        %v1578 = vmax.f32 %v1570, 0.0
        %v1579 = vmax.f32 %v1571, 0.0
        %v1580 = vmax.f32 %v1572, 0.0
        %v1581 = vmax.f32 %v1573, 0.0
        %1582 = vst [vmem:[#allocation2] sm:$0xff] 0.0
        %1583 = vst [vmem:[#allocation2 + $0x8] sm:$0x3] 0.0
        %1584 = vst [vmem:[#allocation2 + $0x10] sm:$0xff] 0.0
        %1585 = vst [vmem:[#allocation2 + $0x18] sm:$0x3] 0.0
        %1586 = vst [vmem:[#allocation2 + $0x20] sm:$0xff] 0.0
        %1587 = vst [vmem:[#allocation2 + $0x28] sm:$0x3] 0.0
        %1588 = vst [vmem:[#allocation2 + $0x30] sm:$0xff] 0.0
        %1589 = vst [vmem:[#allocation2 + $0x38] sm:$0x3] 0.0
        %1590 = vst [vmem:[#allocation2 + $0x40] sm:$0xff] 0.0
        %1591 = vst [vmem:[#allocation2 + $0x48] sm:$0x3] 0.0
        %1592 = vst [vmem:[#allocation2 + $0x50] sm:$0xff] 0.0
        %1593 = vst [vmem:[#allocation2 + $0x58] sm:$0x3] 0.0
        %1594 = vst [vmem:[#allocation2 + $0x60] sm:$0xff] 0.0
        %1595 = vst [vmem:[#allocation2 + $0x68] sm:$0x3] 0.0
        %1596 = vst [vmem:[#allocation2 + $0x70] sm:$0xff] 0.0
        %1597 = vst [vmem:[#allocation2 + $0x78] sm:$0x3] 0.0
        %1598 = vst [vmem:[#allocation2 + $0x80] sm:$0xff] 0.0
        %1599 = vst [vmem:[#allocation2 + $0x88] sm:$0x3] 0.0
        %1600 = vst [vmem:[#allocation2 + $0x90] sm:$0xff] 0.0
        %1601 = vst [vmem:[#allocation2 + $0x98] sm:$0x3] 0.0
        %s1602 = scalar_lea.vmem [#allocation2], 16
        %1603 = vst [vmem:[%s1602 + $0x1] sm:$0xff] %v1574
        %1604 = vst [vmem:[%s1602 + $0x11] sm:$0xff] %v1575
        %1605 = vst [vmem:[%s1602 + $0x21] sm:$0xff] %v1576
        %1606 = vst [vmem:[%s1602 + $0x31] sm:$0xff] %v1577
        %1607 = vst [vmem:[%s1602 + $0x41] sm:$0xff] %v1578
        %1608 = vst [vmem:[%s1602 + $0x51] sm:$0xff] %v1579
        %1609 = vst [vmem:[%s1602 + $0x61] sm:$0xff] %v1580
        %1610 = vst [vmem:[%s1602 + $0x71] sm:$0xff] %v1581
        %v1611 = vld [vmem:[#allocation2] sm:$0xff]
        %v1612 = vld [vmem:[#allocation2 + $0x10] sm:$0xff]
        %v1613 = vld [vmem:[#allocation2 + $0x20] sm:$0xff]
        %v1614 = vld [vmem:[#allocation2 + $0x30] sm:$0xff]
        %v1615 = vld [vmem:[#allocation2 + $0x40] sm:$0xff]
        %v1616 = vld [vmem:[#allocation2 + $0x50] sm:$0xff]
        %v1617 = vld [vmem:[#allocation2 + $0x60] sm:$0xff]
        %v1618 = vld [vmem:[#allocation2 + $0x70] sm:$0xff]
        %v1619 = vpack.c.bf16 %v1612, %v1611
        %v1620 = vpack.c.bf16 %v1614, %v1613
        %v1621 = vpack.c.bf16 %v1616, %v1615
        %v1622 = vpack.c.bf16 %v1618, %v1617
        %v1623 = vld [vmem:[%s3] sm:$0xf]
        %v1624 = vld [vmem:[%s3 + $0x4] sm:$0xf]
        %v1625 = vld [vmem:[%s3 + $0x8] sm:$0xf]
        %v1626 = vld [vmem:[%s3 + $0xc] sm:$0xf]
        %v1627 = vld [vmem:[%s3 + $0x10] sm:$0xf]
        %v1628 = vld [vmem:[%s3 + $0x14] sm:$0xf]
        %v1629 = vld [vmem:[%s3 + $0x18] sm:$0xf]
        %v1630 = vld [vmem:[%s3 + $0x1c] sm:$0xf]
        %v1631 = vld [vmem:[%s3 + $0x20] sm:$0xf]
        %v1632 = vld [vmem:[%s3 + $0x24] sm:$0xf]
        %v1633 = vld [vmem:[%s3 + $0x28] sm:$0xf]
        %v1634 = vld [vmem:[%s3 + $0x2c] sm:$0xf]
        %v1635 = vld [vmem:[%s3 + $0x30] sm:$0xf]
        %v1636 = vld [vmem:[%s3 + $0x34] sm:$0xf]
        %v1637 = vld [vmem:[%s3 + $0x38] sm:$0xf]
        %v1638 = vld [vmem:[%s3 + $0x3c] sm:$0xf]
        %v1639 = vld [vmem:[#allocation2 + $0x1] sm:$0xff]
        %v1640 = vld [vmem:[#allocation2 + $0x11] sm:$0xff]
        %v1641 = vld [vmem:[#allocation2 + $0x21] sm:$0xff]
        %v1642 = vld [vmem:[#allocation2 + $0x31] sm:$0xff]
        %v1643 = vld [vmem:[#allocation2 + $0x41] sm:$0xff]
        %v1644 = vld [vmem:[#allocation2 + $0x51] sm:$0xff]
        %v1645 = vld [vmem:[#allocation2 + $0x61] sm:$0xff]
        %v1646 = vld [vmem:[#allocation2 + $0x71] sm:$0xff]
        %v1647 = vpack.c.bf16 %v1640, %v1639
        %v1648 = vpack.c.bf16 %v1642, %v1641
        %v1649 = vpack.c.bf16 %v1644, %v1643
        %v1650 = vpack.c.bf16 %v1646, %v1645
        %s1651 = scalar_lea.vmem %s3, 64
        %v1652 = vld [vmem:[%s1651] sm:$0xf]
        %v1653 = vld [vmem:[%s1651 + $0x4] sm:$0xf]
        %v1654 = vld [vmem:[%s1651 + $0x8] sm:$0xf]
        %v1655 = vld [vmem:[%s1651 + $0xc] sm:$0xf]
        %v1656 = vld [vmem:[%s1651 + $0x10] sm:$0xf]
        %v1657 = vld [vmem:[%s1651 + $0x14] sm:$0xf]
        %v1658 = vld [vmem:[%s1651 + $0x18] sm:$0xf]
        %v1659 = vld [vmem:[%s1651 + $0x1c] sm:$0xf]
        %v1660 = vld [vmem:[%s1651 + $0x20] sm:$0xf]
        %v1661 = vld [vmem:[%s1651 + $0x24] sm:$0xf]
        %v1662 = vld [vmem:[%s1651 + $0x28] sm:$0xf]
        %v1663 = vld [vmem:[%s1651 + $0x2c] sm:$0xf]
        %v1664 = vld [vmem:[%s1651 + $0x30] sm:$0xf]
        %v1665 = vld [vmem:[%s1651 + $0x34] sm:$0xf]
        %v1666 = vld [vmem:[%s1651 + $0x38] sm:$0xf]
        %v1667 = vld [vmem:[%s1651 + $0x3c] sm:$0xf]
        %v1684 = vunpack.c.l.b16 %v1652
        %v1685 = vunpack.c.l.b16 %v1653
        %v1686 = vunpack.c.l.b16 %v1654
        %v1687 = vunpack.c.l.b16 %v1655
        %v1688 = vunpack.c.l.b16 %v1656
        %v1689 = vunpack.c.l.b16 %v1657
        %v1690 = vunpack.c.l.b16 %v1658
        %v1691 = vunpack.c.l.b16 %v1659
        %v1692 = vunpack.c.l.b16 %v1660
        %v1693 = vunpack.c.l.b16 %v1661
        %v1694 = vunpack.c.l.b16 %v1662
        %v1695 = vunpack.c.l.b16 %v1663
        %v1696 = vunpack.c.l.b16 %v1664
        %v1697 = vunpack.c.l.b16 %v1665
        %v1698 = vunpack.c.l.b16 %v1666
        %v1699 = vunpack.c.l.b16 %v1667
        %v1700 = vpack.c.b16 %v1685, %v1684
        %v1701 = vpack.c.b16 %v1687, %v1686
        %v1702 = vpack.c.b16 %v1689, %v1688
        %v1703 = vpack.c.b16 %v1691, %v1690
        %v1704 = vpack.c.b16 %v1693, %v1692
        %v1705 = vpack.c.b16 %v1695, %v1694
        %v1706 = vpack.c.b16 %v1697, %v1696
        %v1707 = vpack.c.b16 %v1699, %v1698
        %1716 = vmatprep.subr.bf16.mxu0 0
        %1717 = vmatpush1.bf16.msra.mxu0 %v1700
        %1718 = vmatprep.subr.bf16.mxu0 0
        %1719 = vmatpush1.bf16.msra.mxu0 %v1701
        %1720 = vmatprep.subr.bf16.mxu0 0
        %1721 = vmatpush1.bf16.msra.mxu0 %v1702
        %1722 = vmatprep.subr.bf16.mxu0 0
        %1723 = vmatpush1.bf16.msra.mxu0 %v1703
        %1724 = vmatprep.subr.bf16.mxu0 0
        %1725 = vmatpush1.bf16.msra.mxu0 %v1704
        %1726 = vmatprep.subr.bf16.mxu0 0
        %1727 = vmatpush1.bf16.msra.mxu0 %v1705
        %1728 = vmatprep.subr.bf16.mxu0 0
        %1729 = vmatpush1.bf16.msra.mxu0 %v1706
        %1730 = vmatprep.subr.bf16.mxu0 0
        %1731 = vmatpush1.bf16.msra.mxu0 %v1707
        %1732 = vmatprep.subr.bf16.mxu0 0
        %1733 = vmatpush1.bf16.msra.mxu0 0
        %1734 = vmatprep.subr.bf16.mxu0 0
        %1735 = vmatpush1.bf16.msra.mxu0 0
        %1736 = vmatprep.subr.bf16.mxu0 0
        %1737 = vmatpush1.bf16.msra.mxu0 0
        %1738 = vmatprep.subr.bf16.mxu0 0
        %1739 = vmatpush1.bf16.msra.mxu0 0
        %1740 = vmatprep.subr.bf16.mxu0 0
        %1741 = vmatpush1.bf16.msra.mxu0 0
        %1742 = vmatprep.subr.bf16.mxu0 0
        %1743 = vmatpush1.bf16.msra.mxu0 0
        %1744 = vmatprep.subr.bf16.mxu0 0
        %1745 = vmatpush1.bf16.msra.mxu0 0
        %1746 = vmatprep.subr.bf16.mxu0 0
        %1747 = vmatpush1.bf16.msra.mxu0 0
        %1748 = vmatprep.mubr.bf16.mxu0 0
        %1749 = vmatmul.mubr.bf16.gmra.mrb[0].mxu0 %v1647
        %v1750 = vpop.f32.mrb[0].mxu0
        %v1751 = vadd.f32 0.0, %v1750
        %v1752 = vpop.f32.mrb[0].mxu0
        %v1753 = vpop.f32.mrb[0].mxu0
        %v1754 = vadd.f32 0.0, %v1753
        %v1755 = vpop.f32.mrb[0].mxu0
        %1756 = vmatprep.mubr.bf16.mxu0 0
        %1757 = vmatmul.mubr.bf16.gmra.mrb[0].mxu0 %v1648
        %v1758 = vpop.f32.mrb[0].mxu0
        %v1759 = vadd.f32 0.0, %v1758
        %v1760 = vpop.f32.mrb[0].mxu0
        %v1761 = vpop.f32.mrb[0].mxu0
        %v1762 = vadd.f32 0.0, %v1761
        %v1763 = vpop.f32.mrb[0].mxu0
        %1764 = vmatprep.mubr.bf16.mxu0 0
        %1765 = vmatmul.mubr.bf16.gmra.mrb[0].mxu0 %v1649
        %v1766 = vpop.f32.mrb[0].mxu0
        %v1767 = vadd.f32 0.0, %v1766
        %v1768 = vpop.f32.mrb[0].mxu0
        %v1769 = vpop.f32.mrb[0].mxu0
        %v1770 = vadd.f32 0.0, %v1769
        %v1771 = vpop.f32.mrb[0].mxu0
        %1772 = vmatprep.mubr.bf16.mxu0 0
        %1773 = vmatmul.mubr.bf16.gmra.mrb[0].mxu0 %v1650
        %v1774 = vpop.f32.mrb[0].mxu0
        %v1775 = vadd.f32 0.0, %v1774
        %v1776 = vpop.f32.mrb[0].mxu0
        %v1777 = vpop.f32.mrb[0].mxu0
        %v1778 = vadd.f32 0.0, %v1777
        %v1779 = vpop.f32.mrb[0].mxu0
        %1780 = vdwg.mxu0
        %v1797 = vunpack.c.l.b16 %v1623
        %v1798 = vunpack.c.l.b16 %v1624
        %v1799 = vunpack.c.l.b16 %v1625
        %v1800 = vunpack.c.l.b16 %v1626
        %v1801 = vunpack.c.l.b16 %v1627
        %v1802 = vunpack.c.l.b16 %v1628
        %v1803 = vunpack.c.l.b16 %v1629
        %v1804 = vunpack.c.l.b16 %v1630
        %v1805 = vunpack.c.l.b16 %v1631
        %v1806 = vunpack.c.l.b16 %v1632
        %v1807 = vunpack.c.l.b16 %v1633
        %v1808 = vunpack.c.l.b16 %v1634
        %v1809 = vunpack.c.l.b16 %v1635
        %v1810 = vunpack.c.l.b16 %v1636
        %v1811 = vunpack.c.l.b16 %v1637
        %v1812 = vunpack.c.l.b16 %v1638
        %v1813 = vpack.c.b16 %v1798, %v1797
        %v1814 = vpack.c.b16 %v1800, %v1799
        %v1815 = vpack.c.b16 %v1802, %v1801
        %v1816 = vpack.c.b16 %v1804, %v1803
        %v1817 = vpack.c.b16 %v1806, %v1805
        %v1818 = vpack.c.b16 %v1808, %v1807
        %v1819 = vpack.c.b16 %v1810, %v1809
        %v1820 = vpack.c.b16 %v1812, %v1811
        %1829 = vmatprep.subr.bf16.mxu0 0
        %1830 = vmatpush1.bf16.msra.mxu0 %v1813
        %1831 = vmatprep.subr.bf16.mxu0 0
        %1832 = vmatpush1.bf16.msra.mxu0 %v1814
        %1833 = vmatprep.subr.bf16.mxu0 0
        %1834 = vmatpush1.bf16.msra.mxu0 %v1815
        %1835 = vmatprep.subr.bf16.mxu0 0
        %1836 = vmatpush1.bf16.msra.mxu0 %v1816
        %1837 = vmatprep.subr.bf16.mxu0 0
        %1838 = vmatpush1.bf16.msra.mxu0 %v1817
        %1839 = vmatprep.subr.bf16.mxu0 0
        %1840 = vmatpush1.bf16.msra.mxu0 %v1818
        %1841 = vmatprep.subr.bf16.mxu0 0
        %1842 = vmatpush1.bf16.msra.mxu0 %v1819
        %1843 = vmatprep.subr.bf16.mxu0 0
        %1844 = vmatpush1.bf16.msra.mxu0 %v1820
        %1845 = vmatprep.subr.bf16.mxu0 0
        %1846 = vmatpush1.bf16.msra.mxu0 0
        %1847 = vmatprep.subr.bf16.mxu0 0
        %1848 = vmatpush1.bf16.msra.mxu0 0
        %1849 = vmatprep.subr.bf16.mxu0 0
        %1850 = vmatpush1.bf16.msra.mxu0 0
        %1851 = vmatprep.subr.bf16.mxu0 0
        %1852 = vmatpush1.bf16.msra.mxu0 0
        %1853 = vmatprep.subr.bf16.mxu0 0
        %1854 = vmatpush1.bf16.msra.mxu0 0
        %1855 = vmatprep.subr.bf16.mxu0 0
        %1856 = vmatpush1.bf16.msra.mxu0 0
        %1857 = vmatprep.subr.bf16.mxu0 0
        %1858 = vmatpush1.bf16.msra.mxu0 0
        %1859 = vmatprep.subr.bf16.mxu0 0
        %1860 = vmatpush1.bf16.msra.mxu0 0
        %1861 = vmatprep.mubr.bf16.mxu0 0
        %1862 = vmatmul.mubr.bf16.gmra.mrb[0].mxu0 %v1619
        %v1863 = vpop.f32.mrb[0].mxu0
        %v1864 = vadd.f32 %v1751, %v1863
        %v1865 = vpop.f32.mrb[0].mxu0
        %v1866 = vpop.f32.mrb[0].mxu0
        %v1867 = vadd.f32 %v1754, %v1866
        %v1868 = vpop.f32.mrb[0].mxu0
        %1869 = vmatprep.mubr.bf16.mxu0 0
        %1870 = vmatmul.mubr.bf16.gmra.mrb[0].mxu0 %v1620
        %v1871 = vpop.f32.mrb[0].mxu0
        %v1872 = vadd.f32 %v1759, %v1871
        %v1873 = vpop.f32.mrb[0].mxu0
        %v1874 = vpop.f32.mrb[0].mxu0
        %v1875 = vadd.f32 %v1762, %v1874
        %v1876 = vpop.f32.mrb[0].mxu0
        %1877 = vmatprep.mubr.bf16.mxu0 0
        %1878 = vmatmul.mubr.bf16.gmra.mrb[0].mxu0 %v1621
        %v1879 = vpop.f32.mrb[0].mxu0
        %v1880 = vadd.f32 %v1767, %v1879
        %v1881 = vpop.f32.mrb[0].mxu0
        %v1882 = vpop.f32.mrb[0].mxu0
        %v1883 = vadd.f32 %v1770, %v1882
        %v1884 = vpop.f32.mrb[0].mxu0
        %1885 = vmatprep.mubr.bf16.mxu0 0
        %1886 = vmatmul.mubr.bf16.gmra.mrb[0].mxu0 %v1622
        %v1887 = vpop.f32.mrb[0].mxu0
        %v1888 = vadd.f32 %v1775, %v1887
        %v1889 = vpop.f32.mrb[0].mxu0
        %v1890 = vpop.f32.mrb[0].mxu0
        %v1891 = vadd.f32 %v1778, %v1890
        %v1892 = vpop.f32.mrb[0].mxu0
        %1893 = vdwg.mxu0
        %v1894 = vld [vmem:[#allocation2 + $0x2] sm:$0xff]
        %v1895 = vld [vmem:[#allocation2 + $0x12] sm:$0xff]
        %v1896 = vld [vmem:[#allocation2 + $0x22] sm:$0xff]
        %v1897 = vld [vmem:[#allocation2 + $0x32] sm:$0xff]
        %v1898 = vld [vmem:[#allocation2 + $0x42] sm:$0xff]
        %v1899 = vld [vmem:[#allocation2 + $0x52] sm:$0xff]
        %v1900 = vld [vmem:[#allocation2 + $0x62] sm:$0xff]
        %v1901 = vld [vmem:[#allocation2 + $0x72] sm:$0xff]
        %v1902 = vpack.c.bf16 %v1895, %v1894
        %v1903 = vpack.c.bf16 %v1897, %v1896
        %v1904 = vpack.c.bf16 %v1899, %v1898
        %v1905 = vpack.c.bf16 %v1901, %v1900
        %s1906 = scalar_lea.vmem %s3, 128
        %v1907 = vld [vmem:[%s1906] sm:$0xf]
        %v1908 = vld [vmem:[%s1906 + $0x4] sm:$0xf]
        %v1909 = vld [vmem:[%s1906 + $0x8] sm:$0xf]
        %v1910 = vld [vmem:[%s1906 + $0xc] sm:$0xf]
        %v1911 = vld [vmem:[%s1906 + $0x10] sm:$0xf]
        %v1912 = vld [vmem:[%s1906 + $0x14] sm:$0xf]
        %v1913 = vld [vmem:[%s1906 + $0x18] sm:$0xf]
        %v1914 = vld [vmem:[%s1906 + $0x1c] sm:$0xf]
        %v1915 = vld [vmem:[%s1906 + $0x20] sm:$0xf]
        %v1916 = vld [vmem:[%s1906 + $0x24] sm:$0xf]
        %v1917 = vld [vmem:[%s1906 + $0x28] sm:$0xf]
        %v1918 = vld [vmem:[%s1906 + $0x2c] sm:$0xf]
        %v1919 = vld [vmem:[%s1906 + $0x30] sm:$0xf]
        %v1920 = vld [vmem:[%s1906 + $0x34] sm:$0xf]
        %v1921 = vld [vmem:[%s1906 + $0x38] sm:$0xf]
        %v1922 = vld [vmem:[%s1906 + $0x3c] sm:$0xf]
        %v1939 = vunpack.c.l.b16 %v1907
        %v1940 = vunpack.c.l.b16 %v1908
        %v1941 = vunpack.c.l.b16 %v1909
        %v1942 = vunpack.c.l.b16 %v1910
        %v1943 = vunpack.c.l.b16 %v1911
        %v1944 = vunpack.c.l.b16 %v1912
        %v1945 = vunpack.c.l.b16 %v1913
        %v1946 = vunpack.c.l.b16 %v1914
        %v1947 = vunpack.c.l.b16 %v1915
        %v1948 = vunpack.c.l.b16 %v1916
        %v1949 = vunpack.c.l.b16 %v1917
        %v1950 = vunpack.c.l.b16 %v1918
        %v1951 = vunpack.c.l.b16 %v1919
        %v1952 = vunpack.c.l.b16 %v1920
        %v1953 = vunpack.c.l.b16 %v1921
        %v1954 = vunpack.c.l.b16 %v1922
        %v1955 = vpack.c.b16 %v1940, %v1939
        %v1956 = vpack.c.b16 %v1942, %v1941
        %v1957 = vpack.c.b16 %v1944, %v1943
        %v1958 = vpack.c.b16 %v1946, %v1945
        %v1959 = vpack.c.b16 %v1948, %v1947
        %v1960 = vpack.c.b16 %v1950, %v1949
        %v1961 = vpack.c.b16 %v1952, %v1951
        %v1962 = vpack.c.b16 %v1954, %v1953
        %1971 = vmatprep.subr.bf16.mxu0 0
        %1972 = vmatpush1.bf16.msra.mxu0 %v1955
        %1973 = vmatprep.subr.bf16.mxu0 0
        %1974 = vmatpush1.bf16.msra.mxu0 %v1956
        %1975 = vmatprep.subr.bf16.mxu0 0
        %1976 = vmatpush1.bf16.msra.mxu0 %v1957
        %1977 = vmatprep.subr.bf16.mxu0 0
        %1978 = vmatpush1.bf16.msra.mxu0 %v1958
        %1979 = vmatprep.subr.bf16.mxu0 0
        %1980 = vmatpush1.bf16.msra.mxu0 %v1959
        %1981 = vmatprep.subr.bf16.mxu0 0
        %1982 = vmatpush1.bf16.msra.mxu0 %v1960
        %1983 = vmatprep.subr.bf16.mxu0 0
        %1984 = vmatpush1.bf16.msra.mxu0 %v1961
        %1985 = vmatprep.subr.bf16.mxu0 0
        %1986 = vmatpush1.bf16.msra.mxu0 %v1962
        %1987 = vmatprep.subr.bf16.mxu0 0
        %1988 = vmatpush1.bf16.msra.mxu0 0
        %1989 = vmatprep.subr.bf16.mxu0 0
        %1990 = vmatpush1.bf16.msra.mxu0 0
        %1991 = vmatprep.subr.bf16.mxu0 0
        %1992 = vmatpush1.bf16.msra.mxu0 0
        %1993 = vmatprep.subr.bf16.mxu0 0
        %1994 = vmatpush1.bf16.msra.mxu0 0
        %1995 = vmatprep.subr.bf16.mxu0 0
        %1996 = vmatpush1.bf16.msra.mxu0 0
        %1997 = vmatprep.subr.bf16.mxu0 0
        %1998 = vmatpush1.bf16.msra.mxu0 0
        %1999 = vmatprep.subr.bf16.mxu0 0
        %2000 = vmatpush1.bf16.msra.mxu0 0
        %2001 = vmatprep.subr.bf16.mxu0 0
        %2002 = vmatpush1.bf16.msra.mxu0 0
        %2003 = vmatprep.mubr.bf16.mxu0 0
        %2004 = vmatmul.mubr.bf16.gmra.mrb[0].mxu0 %v1902
        %v2005 = vpop.f32.mrb[0].mxu0
        %v2006 = vadd.f32 0.0, %v2005
        %v2007 = vpop.f32.mrb[0].mxu0
        %v2008 = vpop.f32.mrb[0].mxu0
        %v2009 = vadd.f32 0.0, %v2008
        %v2010 = vpop.f32.mrb[0].mxu0
        %2011 = vmatprep.mubr.bf16.mxu0 0
        %2012 = vmatmul.mubr.bf16.gmra.mrb[0].mxu0 %v1903
        %v2013 = vpop.f32.mrb[0].mxu0
        %v2014 = vadd.f32 0.0, %v2013
        %v2015 = vpop.f32.mrb[0].mxu0
        %v2016 = vpop.f32.mrb[0].mxu0
        %v2017 = vadd.f32 0.0, %v2016
        %v2018 = vpop.f32.mrb[0].mxu0
        %2019 = vmatprep.mubr.bf16.mxu0 0
        %2020 = vmatmul.mubr.bf16.gmra.mrb[0].mxu0 %v1904
        %v2021 = vpop.f32.mrb[0].mxu0
        %v2022 = vadd.f32 0.0, %v2021
        %v2023 = vpop.f32.mrb[0].mxu0
        %v2024 = vpop.f32.mrb[0].mxu0
        %v2025 = vadd.f32 0.0, %v2024
        %v2026 = vpop.f32.mrb[0].mxu0
        %2027 = vmatprep.mubr.bf16.mxu0 0
        %2028 = vmatmul.mubr.bf16.gmra.mrb[0].mxu0 %v1905
        %v2029 = vpop.f32.mrb[0].mxu0
        %v2030 = vadd.f32 0.0, %v2029
        %v2031 = vpop.f32.mrb[0].mxu0
        %v2032 = vpop.f32.mrb[0].mxu0
        %v2033 = vadd.f32 0.0, %v2032
        %v2034 = vpop.f32.mrb[0].mxu0
        %2035 = vdwg.mxu0
        %v2036 = vadd.f32 %v1864, %v2006
        %v2037 = vadd.f32 %v1867, %v2009
        %v2038 = vadd.f32 %v1872, %v2014
        %v2039 = vadd.f32 %v1875, %v2017
        %v2040 = vadd.f32 %v1880, %v2022
        %v2041 = vadd.f32 %v1883, %v2025
        %v2042 = vadd.f32 %v1888, %v2030
        %v2043 = vadd.f32 %v1891, %v2033
        %v2044 = vld [vmem:[%s1602] sm:$0xff]
        %v2045 = vld [vmem:[%s1602 + $0x10] sm:$0xff]
        %v2046 = vld [vmem:[%s1602 + $0x20] sm:$0xff]
        %v2047 = vld [vmem:[%s1602 + $0x30] sm:$0xff]
        %v2048 = vld [vmem:[%s1602 + $0x40] sm:$0xff]
        %v2049 = vld [vmem:[%s1602 + $0x50] sm:$0xff]
        %v2050 = vld [vmem:[%s1602 + $0x60] sm:$0xff]
        %v2051 = vld [vmem:[%s1602 + $0x70] sm:$0xff]
        %v2052 = vpack.c.bf16 %v2045, %v2044
        %v2053 = vpack.c.bf16 %v2047, %v2046
        %v2054 = vpack.c.bf16 %v2049, %v2048
        %v2055 = vpack.c.bf16 %v2051, %v2050
        %s2056 = scalar_lea.vmem %s3, 192
        %v2057 = vld [vmem:[%s2056] sm:$0xf]
        %v2058 = vld [vmem:[%s2056 + $0x4] sm:$0xf]
        %v2059 = vld [vmem:[%s2056 + $0x8] sm:$0xf]
        %v2060 = vld [vmem:[%s2056 + $0xc] sm:$0xf]
        %v2061 = vld [vmem:[%s2056 + $0x10] sm:$0xf]
        %v2062 = vld [vmem:[%s2056 + $0x14] sm:$0xf]
        %v2063 = vld [vmem:[%s2056 + $0x18] sm:$0xf]
        %v2064 = vld [vmem:[%s2056 + $0x1c] sm:$0xf]
        %v2065 = vld [vmem:[%s2056 + $0x20] sm:$0xf]
        %v2066 = vld [vmem:[%s2056 + $0x24] sm:$0xf]
        %v2067 = vld [vmem:[%s2056 + $0x28] sm:$0xf]
        %v2068 = vld [vmem:[%s2056 + $0x2c] sm:$0xf]
        %v2069 = vld [vmem:[%s2056 + $0x30] sm:$0xf]
        %v2070 = vld [vmem:[%s2056 + $0x34] sm:$0xf]
        %v2071 = vld [vmem:[%s2056 + $0x38] sm:$0xf]
        %v2072 = vld [vmem:[%s2056 + $0x3c] sm:$0xf]
        %v2089 = vunpack.c.l.b16 %v2057
        %v2090 = vunpack.c.l.b16 %v2058
        %v2091 = vunpack.c.l.b16 %v2059
        %v2092 = vunpack.c.l.b16 %v2060
        %v2093 = vunpack.c.l.b16 %v2061
        %v2094 = vunpack.c.l.b16 %v2062
        %v2095 = vunpack.c.l.b16 %v2063
        %v2096 = vunpack.c.l.b16 %v2064
        %v2097 = vunpack.c.l.b16 %v2065
        %v2098 = vunpack.c.l.b16 %v2066
        %v2099 = vunpack.c.l.b16 %v2067
        %v2100 = vunpack.c.l.b16 %v2068
        %v2101 = vunpack.c.l.b16 %v2069
        %v2102 = vunpack.c.l.b16 %v2070
        %v2103 = vunpack.c.l.b16 %v2071
        %v2104 = vunpack.c.l.b16 %v2072
        %v2105 = vpack.c.b16 %v2090, %v2089
        %v2106 = vpack.c.b16 %v2092, %v2091
        %v2107 = vpack.c.b16 %v2094, %v2093
        %v2108 = vpack.c.b16 %v2096, %v2095
        %v2109 = vpack.c.b16 %v2098, %v2097
        %v2110 = vpack.c.b16 %v2100, %v2099
        %v2111 = vpack.c.b16 %v2102, %v2101
        %v2112 = vpack.c.b16 %v2104, %v2103
        %2121 = vmatprep.subr.bf16.mxu0 0
        %2122 = vmatpush1.bf16.msra.mxu0 %v2105
        %2123 = vmatprep.subr.bf16.mxu0 0
        %2124 = vmatpush1.bf16.msra.mxu0 %v2106
        %2125 = vmatprep.subr.bf16.mxu0 0
        %2126 = vmatpush1.bf16.msra.mxu0 %v2107
        %2127 = vmatprep.subr.bf16.mxu0 0
        %2128 = vmatpush1.bf16.msra.mxu0 %v2108
        %2129 = vmatprep.subr.bf16.mxu0 0
        %2130 = vmatpush1.bf16.msra.mxu0 %v2109
        %2131 = vmatprep.subr.bf16.mxu0 0
        %2132 = vmatpush1.bf16.msra.mxu0 %v2110
        %2133 = vmatprep.subr.bf16.mxu0 0
        %2134 = vmatpush1.bf16.msra.mxu0 %v2111
        %2135 = vmatprep.subr.bf16.mxu0 0
        %2136 = vmatpush1.bf16.msra.mxu0 %v2112
        %2137 = vmatprep.subr.bf16.mxu0 0
        %2138 = vmatpush1.bf16.msra.mxu0 0
        %2139 = vmatprep.subr.bf16.mxu0 0
        %2140 = vmatpush1.bf16.msra.mxu0 0
        %2141 = vmatprep.subr.bf16.mxu0 0
        %2142 = vmatpush1.bf16.msra.mxu0 0
        %2143 = vmatprep.subr.bf16.mxu0 0
        %2144 = vmatpush1.bf16.msra.mxu0 0
        %2145 = vmatprep.subr.bf16.mxu0 0
        %2146 = vmatpush1.bf16.msra.mxu0 0
        %2147 = vmatprep.subr.bf16.mxu0 0
        %2148 = vmatpush1.bf16.msra.mxu0 0
        %2149 = vmatprep.subr.bf16.mxu0 0
        %2150 = vmatpush1.bf16.msra.mxu0 0
        %2151 = vmatprep.subr.bf16.mxu0 0
        %2152 = vmatpush1.bf16.msra.mxu0 0
        %2153 = vmatprep.mubr.bf16.mxu0 0
        %2154 = vmatmul.mubr.bf16.gmra.mrb[0].mxu0 %v2052
        %v2155 = vpop.f32.mrb[0].mxu0
        %v2156 = vadd.f32 0.0, %v2155
        %v2157 = vpop.f32.mrb[0].mxu0
        %v2158 = vpop.f32.mrb[0].mxu0
        %v2159 = vadd.f32 0.0, %v2158
        %v2160 = vpop.f32.mrb[0].mxu0
        %2161 = vmatprep.mubr.bf16.mxu0 0
        %2162 = vmatmul.mubr.bf16.gmra.mrb[0].mxu0 %v2053
        %v2163 = vpop.f32.mrb[0].mxu0
        %v2164 = vadd.f32 0.0, %v2163
        %v2165 = vpop.f32.mrb[0].mxu0
        %v2166 = vpop.f32.mrb[0].mxu0
        %v2167 = vadd.f32 0.0, %v2166
        %v2168 = vpop.f32.mrb[0].mxu0
        %2169 = vmatprep.mubr.bf16.mxu0 0
        %2170 = vmatmul.mubr.bf16.gmra.mrb[0].mxu0 %v2054
        %v2171 = vpop.f32.mrb[0].mxu0
        %v2172 = vadd.f32 0.0, %v2171
        %v2173 = vpop.f32.mrb[0].mxu0
        %v2174 = vpop.f32.mrb[0].mxu0
        %v2175 = vadd.f32 0.0, %v2174
        %v2176 = vpop.f32.mrb[0].mxu0
        %2177 = vmatprep.mubr.bf16.mxu0 0
        %2178 = vmatmul.mubr.bf16.gmra.mrb[0].mxu0 %v2055
        %v2179 = vpop.f32.mrb[0].mxu0
        %v2180 = vadd.f32 0.0, %v2179
        %v2181 = vpop.f32.mrb[0].mxu0
        %v2182 = vpop.f32.mrb[0].mxu0
        %v2183 = vadd.f32 0.0, %v2182
        %v2184 = vpop.f32.mrb[0].mxu0
        %2185 = vdwg.mxu0
        %v2186 = vadd.f32 %v2036, %v2156
        %v2187 = vadd.f32 %v2037, %v2159
        %v2188 = vadd.f32 %v2038, %v2164
        %v2189 = vadd.f32 %v2039, %v2167
        %v2190 = vadd.f32 %v2040, %v2172
        %v2191 = vadd.f32 %v2041, %v2175
        %v2192 = vadd.f32 %v2042, %v2180
        %v2193 = vadd.f32 %v2043, %v2183
        %v2194 = vld [vmem:[%s1602 + $0x1] sm:$0xff]
        %v2195 = vld [vmem:[%s1602 + $0x11] sm:$0xff]
        %v2196 = vld [vmem:[%s1602 + $0x21] sm:$0xff]
        %v2197 = vld [vmem:[%s1602 + $0x31] sm:$0xff]
        %v2198 = vld [vmem:[%s1602 + $0x41] sm:$0xff]
        %v2199 = vld [vmem:[%s1602 + $0x51] sm:$0xff]
        %v2200 = vld [vmem:[%s1602 + $0x61] sm:$0xff]
        %v2201 = vld [vmem:[%s1602 + $0x71] sm:$0xff]
        %v2202 = vpack.c.bf16 %v2195, %v2194
        %v2203 = vpack.c.bf16 %v2197, %v2196
        %v2204 = vpack.c.bf16 %v2199, %v2198
        %v2205 = vpack.c.bf16 %v2201, %v2200
        %s2206 = scalar_lea.vmem %s3, 256
        %v2207 = vld [vmem:[%s2206] sm:$0xf]
        %v2208 = vld [vmem:[%s2206 + $0x4] sm:$0xf]
        %v2209 = vld [vmem:[%s2206 + $0x8] sm:$0xf]
        %v2210 = vld [vmem:[%s2206 + $0xc] sm:$0xf]
        %v2211 = vld [vmem:[%s2206 + $0x10] sm:$0xf]
        %v2212 = vld [vmem:[%s2206 + $0x14] sm:$0xf]
        %v2213 = vld [vmem:[%s2206 + $0x18] sm:$0xf]
        %v2214 = vld [vmem:[%s2206 + $0x1c] sm:$0xf]
        %v2215 = vld [vmem:[%s2206 + $0x20] sm:$0xf]
        %v2216 = vld [vmem:[%s2206 + $0x24] sm:$0xf]
        %v2217 = vld [vmem:[%s2206 + $0x28] sm:$0xf]
        %v2218 = vld [vmem:[%s2206 + $0x2c] sm:$0xf]
        %v2219 = vld [vmem:[%s2206 + $0x30] sm:$0xf]
        %v2220 = vld [vmem:[%s2206 + $0x34] sm:$0xf]
        %v2221 = vld [vmem:[%s2206 + $0x38] sm:$0xf]
        %v2222 = vld [vmem:[%s2206 + $0x3c] sm:$0xf]
        %v2239 = vunpack.c.l.b16 %v2207
        %v2240 = vunpack.c.l.b16 %v2208
        %v2241 = vunpack.c.l.b16 %v2209
        %v2242 = vunpack.c.l.b16 %v2210
        %v2243 = vunpack.c.l.b16 %v2211
        %v2244 = vunpack.c.l.b16 %v2212
        %v2245 = vunpack.c.l.b16 %v2213
        %v2246 = vunpack.c.l.b16 %v2214
        %v2247 = vunpack.c.l.b16 %v2215
        %v2248 = vunpack.c.l.b16 %v2216
        %v2249 = vunpack.c.l.b16 %v2217
        %v2250 = vunpack.c.l.b16 %v2218
        %v2251 = vunpack.c.l.b16 %v2219
        %v2252 = vunpack.c.l.b16 %v2220
        %v2253 = vunpack.c.l.b16 %v2221
        %v2254 = vunpack.c.l.b16 %v2222
        %v2255 = vpack.c.b16 %v2240, %v2239
        %v2256 = vpack.c.b16 %v2242, %v2241
        %v2257 = vpack.c.b16 %v2244, %v2243
        %v2258 = vpack.c.b16 %v2246, %v2245
        %v2259 = vpack.c.b16 %v2248, %v2247
        %v2260 = vpack.c.b16 %v2250, %v2249
        %v2261 = vpack.c.b16 %v2252, %v2251
        %v2262 = vpack.c.b16 %v2254, %v2253
        %2271 = vmatprep.subr.bf16.mxu0 0
        %2272 = vmatpush1.bf16.msra.mxu0 %v2255
        %2273 = vmatprep.subr.bf16.mxu0 0
        %2274 = vmatpush1.bf16.msra.mxu0 %v2256
        %2275 = vmatprep.subr.bf16.mxu0 0
        %2276 = vmatpush1.bf16.msra.mxu0 %v2257
        %2277 = vmatprep.subr.bf16.mxu0 0
        %2278 = vmatpush1.bf16.msra.mxu0 %v2258
        %2279 = vmatprep.subr.bf16.mxu0 0
        %2280 = vmatpush1.bf16.msra.mxu0 %v2259
        %2281 = vmatprep.subr.bf16.mxu0 0
        %2282 = vmatpush1.bf16.msra.mxu0 %v2260
        %2283 = vmatprep.subr.bf16.mxu0 0
        %2284 = vmatpush1.bf16.msra.mxu0 %v2261
        %2285 = vmatprep.subr.bf16.mxu0 0
        %2286 = vmatpush1.bf16.msra.mxu0 %v2262
        %2287 = vmatprep.subr.bf16.mxu0 0
        %2288 = vmatpush1.bf16.msra.mxu0 0
        %2289 = vmatprep.subr.bf16.mxu0 0
        %2290 = vmatpush1.bf16.msra.mxu0 0
        %2291 = vmatprep.subr.bf16.mxu0 0
        %2292 = vmatpush1.bf16.msra.mxu0 0
        %2293 = vmatprep.subr.bf16.mxu0 0
        %2294 = vmatpush1.bf16.msra.mxu0 0
        %2295 = vmatprep.subr.bf16.mxu0 0
        %2296 = vmatpush1.bf16.msra.mxu0 0
        %2297 = vmatprep.subr.bf16.mxu0 0
        %2298 = vmatpush1.bf16.msra.mxu0 0
        %2299 = vmatprep.subr.bf16.mxu0 0
        %2300 = vmatpush1.bf16.msra.mxu0 0
        %2301 = vmatprep.subr.bf16.mxu0 0
        %2302 = vmatpush1.bf16.msra.mxu0 0
        %2303 = vmatprep.mubr.bf16.mxu0 0
        %2304 = vmatmul.mubr.bf16.gmra.mrb[0].mxu0 %v2202
        %v2305 = vpop.f32.mrb[0].mxu0
        %v2306 = vadd.f32 0.0, %v2305
        %v2307 = vpop.f32.mrb[0].mxu0
        %v2308 = vpop.f32.mrb[0].mxu0
        %v2309 = vadd.f32 0.0, %v2308
        %v2310 = vpop.f32.mrb[0].mxu0
        %2311 = vmatprep.mubr.bf16.mxu0 0
        %2312 = vmatmul.mubr.bf16.gmra.mrb[0].mxu0 %v2203
        %v2313 = vpop.f32.mrb[0].mxu0
        %v2314 = vadd.f32 0.0, %v2313
        %v2315 = vpop.f32.mrb[0].mxu0
        %v2316 = vpop.f32.mrb[0].mxu0
        %v2317 = vadd.f32 0.0, %v2316
        %v2318 = vpop.f32.mrb[0].mxu0
        %2319 = vmatprep.mubr.bf16.mxu0 0
        %2320 = vmatmul.mubr.bf16.gmra.mrb[0].mxu0 %v2204
        %v2321 = vpop.f32.mrb[0].mxu0
        %v2322 = vadd.f32 0.0, %v2321
        %v2323 = vpop.f32.mrb[0].mxu0
        %v2324 = vpop.f32.mrb[0].mxu0
        %v2325 = vadd.f32 0.0, %v2324
        %v2326 = vpop.f32.mrb[0].mxu0
        %2327 = vmatprep.mubr.bf16.mxu0 0
        %2328 = vmatmul.mubr.bf16.gmra.mrb[0].mxu0 %v2205
        %v2329 = vpop.f32.mrb[0].mxu0
        %v2330 = vadd.f32 0.0, %v2329
        %v2331 = vpop.f32.mrb[0].mxu0
        %v2332 = vpop.f32.mrb[0].mxu0
        %v2333 = vadd.f32 0.0, %v2332
        %v2334 = vpop.f32.mrb[0].mxu0
        %2335 = vdwg.mxu0
        %v2336 = vadd.f32 %v2186, %v2306
        %v2337 = vadd.f32 %v2187, %v2309
        %v2338 = vadd.f32 %v2188, %v2314
        %v2339 = vadd.f32 %v2189, %v2317
        %v2340 = vadd.f32 %v2190, %v2322
        %v2341 = vadd.f32 %v2191, %v2325
        %v2342 = vadd.f32 %v2192, %v2330
        %v2343 = vadd.f32 %v2193, %v2333
        %v2344 = vld [vmem:[%s1602 + $0x2] sm:$0xff]
        %v2345 = vld [vmem:[%s1602 + $0x12] sm:$0xff]
        %v2346 = vld [vmem:[%s1602 + $0x22] sm:$0xff]
        %v2347 = vld [vmem:[%s1602 + $0x32] sm:$0xff]
        %v2348 = vld [vmem:[%s1602 + $0x42] sm:$0xff]
        %v2349 = vld [vmem:[%s1602 + $0x52] sm:$0xff]
        %v2350 = vld [vmem:[%s1602 + $0x62] sm:$0xff]
        %v2351 = vld [vmem:[%s1602 + $0x72] sm:$0xff]
        %v2352 = vpack.c.bf16 %v2345, %v2344
        %v2353 = vpack.c.bf16 %v2347, %v2346
        %v2354 = vpack.c.bf16 %v2349, %v2348
        %v2355 = vpack.c.bf16 %v2351, %v2350
        %s2356 = scalar_lea.vmem %s3, 320
        %v2357 = vld [vmem:[%s2356] sm:$0xf]
        %v2358 = vld [vmem:[%s2356 + $0x4] sm:$0xf]
        %v2359 = vld [vmem:[%s2356 + $0x8] sm:$0xf]
        %v2360 = vld [vmem:[%s2356 + $0xc] sm:$0xf]
        %v2361 = vld [vmem:[%s2356 + $0x10] sm:$0xf]
        %v2362 = vld [vmem:[%s2356 + $0x14] sm:$0xf]
        %v2363 = vld [vmem:[%s2356 + $0x18] sm:$0xf]
        %v2364 = vld [vmem:[%s2356 + $0x1c] sm:$0xf]
        %v2365 = vld [vmem:[%s2356 + $0x20] sm:$0xf]
        %v2366 = vld [vmem:[%s2356 + $0x24] sm:$0xf]
        %v2367 = vld [vmem:[%s2356 + $0x28] sm:$0xf]
        %v2368 = vld [vmem:[%s2356 + $0x2c] sm:$0xf]
        %v2369 = vld [vmem:[%s2356 + $0x30] sm:$0xf]
        %v2370 = vld [vmem:[%s2356 + $0x34] sm:$0xf]
        %v2371 = vld [vmem:[%s2356 + $0x38] sm:$0xf]
        %v2372 = vld [vmem:[%s2356 + $0x3c] sm:$0xf]
        %v2389 = vunpack.c.l.b16 %v2357
        %v2390 = vunpack.c.l.b16 %v2358
        %v2391 = vunpack.c.l.b16 %v2359
        %v2392 = vunpack.c.l.b16 %v2360
        %v2393 = vunpack.c.l.b16 %v2361
        %v2394 = vunpack.c.l.b16 %v2362
        %v2395 = vunpack.c.l.b16 %v2363
        %v2396 = vunpack.c.l.b16 %v2364
        %v2397 = vunpack.c.l.b16 %v2365
        %v2398 = vunpack.c.l.b16 %v2366
        %v2399 = vunpack.c.l.b16 %v2367
        %v2400 = vunpack.c.l.b16 %v2368
        %v2401 = vunpack.c.l.b16 %v2369
        %v2402 = vunpack.c.l.b16 %v2370
        %v2403 = vunpack.c.l.b16 %v2371
        %v2404 = vunpack.c.l.b16 %v2372
        %v2405 = vpack.c.b16 %v2390, %v2389
        %v2406 = vpack.c.b16 %v2392, %v2391
        %v2407 = vpack.c.b16 %v2394, %v2393
        %v2408 = vpack.c.b16 %v2396, %v2395
        %v2409 = vpack.c.b16 %v2398, %v2397
        %v2410 = vpack.c.b16 %v2400, %v2399
        %v2411 = vpack.c.b16 %v2402, %v2401
        %v2412 = vpack.c.b16 %v2404, %v2403
        %2421 = vmatprep.subr.bf16.mxu0 0
        %2422 = vmatpush1.bf16.msra.mxu0 %v2405
        %2423 = vmatprep.subr.bf16.mxu0 0
        %2424 = vmatpush1.bf16.msra.mxu0 %v2406
        %2425 = vmatprep.subr.bf16.mxu0 0
        %2426 = vmatpush1.bf16.msra.mxu0 %v2407
        %2427 = vmatprep.subr.bf16.mxu0 0
        %2428 = vmatpush1.bf16.msra.mxu0 %v2408
        %2429 = vmatprep.subr.bf16.mxu0 0
        %2430 = vmatpush1.bf16.msra.mxu0 %v2409
        %2431 = vmatprep.subr.bf16.mxu0 0
        %2432 = vmatpush1.bf16.msra.mxu0 %v2410
        %2433 = vmatprep.subr.bf16.mxu0 0
        %2434 = vmatpush1.bf16.msra.mxu0 %v2411
        %2435 = vmatprep.subr.bf16.mxu0 0
        %2436 = vmatpush1.bf16.msra.mxu0 %v2412
        %2437 = vmatprep.subr.bf16.mxu0 0
        %2438 = vmatpush1.bf16.msra.mxu0 0
        %2439 = vmatprep.subr.bf16.mxu0 0
        %2440 = vmatpush1.bf16.msra.mxu0 0
        %2441 = vmatprep.subr.bf16.mxu0 0
        %2442 = vmatpush1.bf16.msra.mxu0 0
        %2443 = vmatprep.subr.bf16.mxu0 0
        %2444 = vmatpush1.bf16.msra.mxu0 0
        %2445 = vmatprep.subr.bf16.mxu0 0
        %2446 = vmatpush1.bf16.msra.mxu0 0
        %2447 = vmatprep.subr.bf16.mxu0 0
        %2448 = vmatpush1.bf16.msra.mxu0 0
        %2449 = vmatprep.subr.bf16.mxu0 0
        %2450 = vmatpush1.bf16.msra.mxu0 0
        %2451 = vmatprep.subr.bf16.mxu0 0
        %2452 = vmatpush1.bf16.msra.mxu0 0
        %2453 = vmatprep.mubr.bf16.mxu0 0
        %2454 = vmatmul.mubr.bf16.gmra.mrb[0].mxu0 %v2352
        %v2455 = vpop.f32.mrb[0].mxu0
        %v2456 = vadd.f32 0.0, %v2455
        %v2457 = vpop.f32.mrb[0].mxu0
        %v2458 = vpop.f32.mrb[0].mxu0
        %v2459 = vadd.f32 0.0, %v2458
        %v2460 = vpop.f32.mrb[0].mxu0
        %2461 = vmatprep.mubr.bf16.mxu0 0
        %2462 = vmatmul.mubr.bf16.gmra.mrb[0].mxu0 %v2353
        %v2463 = vpop.f32.mrb[0].mxu0
        %v2464 = vadd.f32 0.0, %v2463
        %v2465 = vpop.f32.mrb[0].mxu0
        %v2466 = vpop.f32.mrb[0].mxu0
        %v2467 = vadd.f32 0.0, %v2466
        %v2468 = vpop.f32.mrb[0].mxu0
        %2469 = vmatprep.mubr.bf16.mxu0 0
        %2470 = vmatmul.mubr.bf16.gmra.mrb[0].mxu0 %v2354
        %v2471 = vpop.f32.mrb[0].mxu0
        %v2472 = vadd.f32 0.0, %v2471
        %v2473 = vpop.f32.mrb[0].mxu0
        %v2474 = vpop.f32.mrb[0].mxu0
        %v2475 = vadd.f32 0.0, %v2474
        %v2476 = vpop.f32.mrb[0].mxu0
        %2477 = vmatprep.mubr.bf16.mxu0 0
        %2478 = vmatmul.mubr.bf16.gmra.mrb[0].mxu0 %v2355
        %v2479 = vpop.f32.mrb[0].mxu0
        %v2480 = vadd.f32 0.0, %v2479
        %v2481 = vpop.f32.mrb[0].mxu0
        %v2482 = vpop.f32.mrb[0].mxu0
        %v2483 = vadd.f32 0.0, %v2482
        %v2484 = vpop.f32.mrb[0].mxu0
        %2485 = vdwg.mxu0
        %v2486 = vadd.f32 %v2336, %v2456
        %v2487 = vadd.f32 %v2337, %v2459
        %v2488 = vadd.f32 %v2338, %v2464
        %v2489 = vadd.f32 %v2339, %v2467
        %v2490 = vadd.f32 %v2340, %v2472
        %v2491 = vadd.f32 %v2341, %v2475
        %v2492 = vadd.f32 %v2342, %v2480
        %v2493 = vadd.f32 %v2343, %v2483
        %s2494 = scalar_lea.vmem [#allocation2], 32
        %v2495 = vld [vmem:[%s2494] sm:$0xff]
        %v2496 = vld [vmem:[%s2494 + $0x10] sm:$0xff]
        %v2497 = vld [vmem:[%s2494 + $0x20] sm:$0xff]
        %v2498 = vld [vmem:[%s2494 + $0x30] sm:$0xff]
        %v2499 = vld [vmem:[%s2494 + $0x40] sm:$0xff]
        %v2500 = vld [vmem:[%s2494 + $0x50] sm:$0xff]
        %v2501 = vld [vmem:[%s2494 + $0x60] sm:$0xff]
        %v2502 = vld [vmem:[%s2494 + $0x70] sm:$0xff]
        %v2503 = vpack.c.bf16 %v2496, %v2495
        %v2504 = vpack.c.bf16 %v2498, %v2497
        %v2505 = vpack.c.bf16 %v2500, %v2499
        %v2506 = vpack.c.bf16 %v2502, %v2501
        %s2507 = scalar_lea.vmem %s3, 384
        %v2508 = vld [vmem:[%s2507] sm:$0xf]
        %v2509 = vld [vmem:[%s2507 + $0x4] sm:$0xf]
        %v2510 = vld [vmem:[%s2507 + $0x8] sm:$0xf]
        %v2511 = vld [vmem:[%s2507 + $0xc] sm:$0xf]
        %v2512 = vld [vmem:[%s2507 + $0x10] sm:$0xf]
        %v2513 = vld [vmem:[%s2507 + $0x14] sm:$0xf]
        %v2514 = vld [vmem:[%s2507 + $0x18] sm:$0xf]
        %v2515 = vld [vmem:[%s2507 + $0x1c] sm:$0xf]
        %v2516 = vld [vmem:[%s2507 + $0x20] sm:$0xf]
        %v2517 = vld [vmem:[%s2507 + $0x24] sm:$0xf]
        %v2518 = vld [vmem:[%s2507 + $0x28] sm:$0xf]
        %v2519 = vld [vmem:[%s2507 + $0x2c] sm:$0xf]
        %v2520 = vld [vmem:[%s2507 + $0x30] sm:$0xf]
        %v2521 = vld [vmem:[%s2507 + $0x34] sm:$0xf]
        %v2522 = vld [vmem:[%s2507 + $0x38] sm:$0xf]
        %v2523 = vld [vmem:[%s2507 + $0x3c] sm:$0xf]
        %v2540 = vunpack.c.l.b16 %v2508
        %v2541 = vunpack.c.l.b16 %v2509
        %v2542 = vunpack.c.l.b16 %v2510
        %v2543 = vunpack.c.l.b16 %v2511
        %v2544 = vunpack.c.l.b16 %v2512
        %v2545 = vunpack.c.l.b16 %v2513
        %v2546 = vunpack.c.l.b16 %v2514
        %v2547 = vunpack.c.l.b16 %v2515
        %v2548 = vunpack.c.l.b16 %v2516
        %v2549 = vunpack.c.l.b16 %v2517
        %v2550 = vunpack.c.l.b16 %v2518
        %v2551 = vunpack.c.l.b16 %v2519
        %v2552 = vunpack.c.l.b16 %v2520
        %v2553 = vunpack.c.l.b16 %v2521
        %v2554 = vunpack.c.l.b16 %v2522
        %v2555 = vunpack.c.l.b16 %v2523
        %v2556 = vpack.c.b16 %v2541, %v2540
        %v2557 = vpack.c.b16 %v2543, %v2542
        %v2558 = vpack.c.b16 %v2545, %v2544
        %v2559 = vpack.c.b16 %v2547, %v2546
        %v2560 = vpack.c.b16 %v2549, %v2548
        %v2561 = vpack.c.b16 %v2551, %v2550
        %v2562 = vpack.c.b16 %v2553, %v2552
        %v2563 = vpack.c.b16 %v2555, %v2554
        %2572 = vmatprep.subr.bf16.mxu0 0
        %2573 = vmatpush1.bf16.msra.mxu0 %v2556
        %2574 = vmatprep.subr.bf16.mxu0 0
        %2575 = vmatpush1.bf16.msra.mxu0 %v2557
        %2576 = vmatprep.subr.bf16.mxu0 0
        %2577 = vmatpush1.bf16.msra.mxu0 %v2558
        %2578 = vmatprep.subr.bf16.mxu0 0
        %2579 = vmatpush1.bf16.msra.mxu0 %v2559
        %2580 = vmatprep.subr.bf16.mxu0 0
        %2581 = vmatpush1.bf16.msra.mxu0 %v2560
        %2582 = vmatprep.subr.bf16.mxu0 0
        %2583 = vmatpush1.bf16.msra.mxu0 %v2561
        %2584 = vmatprep.subr.bf16.mxu0 0
        %2585 = vmatpush1.bf16.msra.mxu0 %v2562
        %2586 = vmatprep.subr.bf16.mxu0 0
        %2587 = vmatpush1.bf16.msra.mxu0 %v2563
        %2588 = vmatprep.subr.bf16.mxu0 0
        %2589 = vmatpush1.bf16.msra.mxu0 0
        %2590 = vmatprep.subr.bf16.mxu0 0
        %2591 = vmatpush1.bf16.msra.mxu0 0
        %2592 = vmatprep.subr.bf16.mxu0 0
        %2593 = vmatpush1.bf16.msra.mxu0 0
        %2594 = vmatprep.subr.bf16.mxu0 0
        %2595 = vmatpush1.bf16.msra.mxu0 0
        %2596 = vmatprep.subr.bf16.mxu0 0
        %2597 = vmatpush1.bf16.msra.mxu0 0
        %2598 = vmatprep.subr.bf16.mxu0 0
        %2599 = vmatpush1.bf16.msra.mxu0 0
        %2600 = vmatprep.subr.bf16.mxu0 0
        %2601 = vmatpush1.bf16.msra.mxu0 0
        %2602 = vmatprep.subr.bf16.mxu0 0
        %2603 = vmatpush1.bf16.msra.mxu0 0
        %2604 = vmatprep.mubr.bf16.mxu0 0
        %2605 = vmatmul.mubr.bf16.gmra.mrb[0].mxu0 %v2503
        %v2606 = vpop.f32.mrb[0].mxu0
        %v2607 = vadd.f32 0.0, %v2606
        %v2608 = vpop.f32.mrb[0].mxu0
        %v2609 = vpop.f32.mrb[0].mxu0
        %v2610 = vadd.f32 0.0, %v2609
        %v2611 = vpop.f32.mrb[0].mxu0
        %2612 = vmatprep.mubr.bf16.mxu0 0
        %2613 = vmatmul.mubr.bf16.gmra.mrb[0].mxu0 %v2504
        %v2614 = vpop.f32.mrb[0].mxu0
        %v2615 = vadd.f32 0.0, %v2614
        %v2616 = vpop.f32.mrb[0].mxu0
        %v2617 = vpop.f32.mrb[0].mxu0
        %v2618 = vadd.f32 0.0, %v2617
        %v2619 = vpop.f32.mrb[0].mxu0
        %2620 = vmatprep.mubr.bf16.mxu0 0
        %2621 = vmatmul.mubr.bf16.gmra.mrb[0].mxu0 %v2505
        %v2622 = vpop.f32.mrb[0].mxu0
        %v2623 = vadd.f32 0.0, %v2622
        %v2624 = vpop.f32.mrb[0].mxu0
        %v2625 = vpop.f32.mrb[0].mxu0
        %v2626 = vadd.f32 0.0, %v2625
        %v2627 = vpop.f32.mrb[0].mxu0
        %2628 = vmatprep.mubr.bf16.mxu0 0
        %2629 = vmatmul.mubr.bf16.gmra.mrb[0].mxu0 %v2506
        %v2630 = vpop.f32.mrb[0].mxu0
        %v2631 = vadd.f32 0.0, %v2630
        %v2632 = vpop.f32.mrb[0].mxu0
        %v2633 = vpop.f32.mrb[0].mxu0
        %v2634 = vadd.f32 0.0, %v2633
        %v2635 = vpop.f32.mrb[0].mxu0
        %2636 = vdwg.mxu0
        %v2637 = vadd.f32 %v2486, %v2607
        %v2638 = vadd.f32 %v2487, %v2610
        %v2639 = vadd.f32 %v2488, %v2615
        %v2640 = vadd.f32 %v2489, %v2618
        %v2641 = vadd.f32 %v2490, %v2623
        %v2642 = vadd.f32 %v2491, %v2626
        %v2643 = vadd.f32 %v2492, %v2631
        %v2644 = vadd.f32 %v2493, %v2634
        %v2645 = vld [vmem:[%s2494 + $0x1] sm:$0xff]
        %v2646 = vld [vmem:[%s2494 + $0x11] sm:$0xff]
        %v2647 = vld [vmem:[%s2494 + $0x21] sm:$0xff]
        %v2648 = vld [vmem:[%s2494 + $0x31] sm:$0xff]
        %v2649 = vld [vmem:[%s2494 + $0x41] sm:$0xff]
        %v2650 = vld [vmem:[%s2494 + $0x51] sm:$0xff]
        %v2651 = vld [vmem:[%s2494 + $0x61] sm:$0xff]
        %v2652 = vld [vmem:[%s2494 + $0x71] sm:$0xff]
        %v2653 = vpack.c.bf16 %v2646, %v2645
        %v2654 = vpack.c.bf16 %v2648, %v2647
        %v2655 = vpack.c.bf16 %v2650, %v2649
        %v2656 = vpack.c.bf16 %v2652, %v2651
        %s2657 = scalar_lea.vmem %s3, 448
        %v2658 = vld [vmem:[%s2657] sm:$0xf]
        %v2659 = vld [vmem:[%s2657 + $0x4] sm:$0xf]
        %v2660 = vld [vmem:[%s2657 + $0x8] sm:$0xf]
        %v2661 = vld [vmem:[%s2657 + $0xc] sm:$0xf]
        %v2662 = vld [vmem:[%s2657 + $0x10] sm:$0xf]
        %v2663 = vld [vmem:[%s2657 + $0x14] sm:$0xf]
        %v2664 = vld [vmem:[%s2657 + $0x18] sm:$0xf]
        %v2665 = vld [vmem:[%s2657 + $0x1c] sm:$0xf]
        %v2666 = vld [vmem:[%s2657 + $0x20] sm:$0xf]
        %v2667 = vld [vmem:[%s2657 + $0x24] sm:$0xf]
        %v2668 = vld [vmem:[%s2657 + $0x28] sm:$0xf]
        %v2669 = vld [vmem:[%s2657 + $0x2c] sm:$0xf]
        %v2670 = vld [vmem:[%s2657 + $0x30] sm:$0xf]
        %v2671 = vld [vmem:[%s2657 + $0x34] sm:$0xf]
        %v2672 = vld [vmem:[%s2657 + $0x38] sm:$0xf]
        %v2673 = vld [vmem:[%s2657 + $0x3c] sm:$0xf]
        %v2690 = vunpack.c.l.b16 %v2658
        %v2691 = vunpack.c.l.b16 %v2659
        %v2692 = vunpack.c.l.b16 %v2660
        %v2693 = vunpack.c.l.b16 %v2661
        %v2694 = vunpack.c.l.b16 %v2662
        %v2695 = vunpack.c.l.b16 %v2663
        %v2696 = vunpack.c.l.b16 %v2664
        %v2697 = vunpack.c.l.b16 %v2665
        %v2698 = vunpack.c.l.b16 %v2666
        %v2699 = vunpack.c.l.b16 %v2667
        %v2700 = vunpack.c.l.b16 %v2668
        %v2701 = vunpack.c.l.b16 %v2669
        %v2702 = vunpack.c.l.b16 %v2670
        %v2703 = vunpack.c.l.b16 %v2671
        %v2704 = vunpack.c.l.b16 %v2672
        %v2705 = vunpack.c.l.b16 %v2673
        %v2706 = vpack.c.b16 %v2691, %v2690
        %v2707 = vpack.c.b16 %v2693, %v2692
        %v2708 = vpack.c.b16 %v2695, %v2694
        %v2709 = vpack.c.b16 %v2697, %v2696
        %v2710 = vpack.c.b16 %v2699, %v2698
        %v2711 = vpack.c.b16 %v2701, %v2700
        %v2712 = vpack.c.b16 %v2703, %v2702
        %v2713 = vpack.c.b16 %v2705, %v2704
        %2722 = vmatprep.subr.bf16.mxu0 0
        %2723 = vmatpush1.bf16.msra.mxu0 %v2706
        %2724 = vmatprep.subr.bf16.mxu0 0
        %2725 = vmatpush1.bf16.msra.mxu0 %v2707
        %2726 = vmatprep.subr.bf16.mxu0 0
        %2727 = vmatpush1.bf16.msra.mxu0 %v2708
        %2728 = vmatprep.subr.bf16.mxu0 0
        %2729 = vmatpush1.bf16.msra.mxu0 %v2709
        %2730 = vmatprep.subr.bf16.mxu0 0
        %2731 = vmatpush1.bf16.msra.mxu0 %v2710
        %2732 = vmatprep.subr.bf16.mxu0 0
        %2733 = vmatpush1.bf16.msra.mxu0 %v2711
        %2734 = vmatprep.subr.bf16.mxu0 0
        %2735 = vmatpush1.bf16.msra.mxu0 %v2712
        %2736 = vmatprep.subr.bf16.mxu0 0
        %2737 = vmatpush1.bf16.msra.mxu0 %v2713
        %2738 = vmatprep.subr.bf16.mxu0 0
        %2739 = vmatpush1.bf16.msra.mxu0 0
        %2740 = vmatprep.subr.bf16.mxu0 0
        %2741 = vmatpush1.bf16.msra.mxu0 0
        %2742 = vmatprep.subr.bf16.mxu0 0
        %2743 = vmatpush1.bf16.msra.mxu0 0
        %2744 = vmatprep.subr.bf16.mxu0 0
        %2745 = vmatpush1.bf16.msra.mxu0 0
        %2746 = vmatprep.subr.bf16.mxu0 0
        %2747 = vmatpush1.bf16.msra.mxu0 0
        %2748 = vmatprep.subr.bf16.mxu0 0
        %2749 = vmatpush1.bf16.msra.mxu0 0
        %2750 = vmatprep.subr.bf16.mxu0 0
        %2751 = vmatpush1.bf16.msra.mxu0 0
        %2752 = vmatprep.subr.bf16.mxu0 0
        %2753 = vmatpush1.bf16.msra.mxu0 0
        %2754 = vmatprep.mubr.bf16.mxu0 0
        %2755 = vmatmul.mubr.bf16.gmra.mrb[0].mxu0 %v2653
        %v2756 = vpop.f32.mrb[0].mxu0
        %v2757 = vadd.f32 0.0, %v2756
        %v2758 = vpop.f32.mrb[0].mxu0
        %v2759 = vpop.f32.mrb[0].mxu0
        %v2760 = vadd.f32 0.0, %v2759
        %v2761 = vpop.f32.mrb[0].mxu0
        %2762 = vmatprep.mubr.bf16.mxu0 0
        %2763 = vmatmul.mubr.bf16.gmra.mrb[0].mxu0 %v2654
        %v2764 = vpop.f32.mrb[0].mxu0
        %v2765 = vadd.f32 0.0, %v2764
        %v2766 = vpop.f32.mrb[0].mxu0
        %v2767 = vpop.f32.mrb[0].mxu0
        %v2768 = vadd.f32 0.0, %v2767
        %v2769 = vpop.f32.mrb[0].mxu0
        %2770 = vmatprep.mubr.bf16.mxu0 0
        %2771 = vmatmul.mubr.bf16.gmra.mrb[0].mxu0 %v2655
        %v2772 = vpop.f32.mrb[0].mxu0
        %v2773 = vadd.f32 0.0, %v2772
        %v2774 = vpop.f32.mrb[0].mxu0
        %v2775 = vpop.f32.mrb[0].mxu0
        %v2776 = vadd.f32 0.0, %v2775
        %v2777 = vpop.f32.mrb[0].mxu0
        %2778 = vmatprep.mubr.bf16.mxu0 0
        %2779 = vmatmul.mubr.bf16.gmra.mrb[0].mxu0 %v2656
        %v2780 = vpop.f32.mrb[0].mxu0
        %v2781 = vadd.f32 0.0, %v2780
        %v2782 = vpop.f32.mrb[0].mxu0
        %v2783 = vpop.f32.mrb[0].mxu0
        %v2784 = vadd.f32 0.0, %v2783
        %v2785 = vpop.f32.mrb[0].mxu0
        %2786 = vdwg.mxu0
        %v2787 = vadd.f32 %v2637, %v2757
        %v2788 = vadd.f32 %v2638, %v2760
        %v2789 = vadd.f32 %v2639, %v2765
        %v2790 = vadd.f32 %v2640, %v2768
        %v2791 = vadd.f32 %v2641, %v2773
        %v2792 = vadd.f32 %v2642, %v2776
        %v2793 = vadd.f32 %v2643, %v2781
        %v2794 = vadd.f32 %v2644, %v2784
        %v2795 = vld [vmem:[%s2494 + $0x2] sm:$0xff]
        %v2796 = vld [vmem:[%s2494 + $0x12] sm:$0xff]
        %v2797 = vld [vmem:[%s2494 + $0x22] sm:$0xff]
        %v2798 = vld [vmem:[%s2494 + $0x32] sm:$0xff]
        %v2799 = vld [vmem:[%s2494 + $0x42] sm:$0xff]
        %v2800 = vld [vmem:[%s2494 + $0x52] sm:$0xff]
        %v2801 = vld [vmem:[%s2494 + $0x62] sm:$0xff]
        %v2802 = vld [vmem:[%s2494 + $0x72] sm:$0xff]
        %v2803 = vpack.c.bf16 %v2796, %v2795
        %v2804 = vpack.c.bf16 %v2798, %v2797
        %v2805 = vpack.c.bf16 %v2800, %v2799
        %v2806 = vpack.c.bf16 %v2802, %v2801
        %s2807 = scalar_lea.vmem %s3, 512
        %v2808 = vld [vmem:[%s2807] sm:$0xf]
        %v2809 = vld [vmem:[%s2807 + $0x4] sm:$0xf]
        %v2810 = vld [vmem:[%s2807 + $0x8] sm:$0xf]
        %v2811 = vld [vmem:[%s2807 + $0xc] sm:$0xf]
        %v2812 = vld [vmem:[%s2807 + $0x10] sm:$0xf]
        %v2813 = vld [vmem:[%s2807 + $0x14] sm:$0xf]
        %v2814 = vld [vmem:[%s2807 + $0x18] sm:$0xf]
        %v2815 = vld [vmem:[%s2807 + $0x1c] sm:$0xf]
        %v2816 = vld [vmem:[%s2807 + $0x20] sm:$0xf]
        %v2817 = vld [vmem:[%s2807 + $0x24] sm:$0xf]
        %v2818 = vld [vmem:[%s2807 + $0x28] sm:$0xf]
        %v2819 = vld [vmem:[%s2807 + $0x2c] sm:$0xf]
        %v2820 = vld [vmem:[%s2807 + $0x30] sm:$0xf]
        %v2821 = vld [vmem:[%s2807 + $0x34] sm:$0xf]
        %v2822 = vld [vmem:[%s2807 + $0x38] sm:$0xf]
        %v2823 = vld [vmem:[%s2807 + $0x3c] sm:$0xf]
        %v2840 = vunpack.c.l.b16 %v2808
        %v2841 = vunpack.c.l.b16 %v2809
        %v2842 = vunpack.c.l.b16 %v2810
        %v2843 = vunpack.c.l.b16 %v2811
        %v2844 = vunpack.c.l.b16 %v2812
        %v2845 = vunpack.c.l.b16 %v2813
        %v2846 = vunpack.c.l.b16 %v2814
        %v2847 = vunpack.c.l.b16 %v2815
        %v2848 = vunpack.c.l.b16 %v2816
        %v2849 = vunpack.c.l.b16 %v2817
        %v2850 = vunpack.c.l.b16 %v2818
        %v2851 = vunpack.c.l.b16 %v2819
        %v2852 = vunpack.c.l.b16 %v2820
        %v2853 = vunpack.c.l.b16 %v2821
        %v2854 = vunpack.c.l.b16 %v2822
        %v2855 = vunpack.c.l.b16 %v2823
        %v2856 = vpack.c.b16 %v2841, %v2840
        %v2857 = vpack.c.b16 %v2843, %v2842
        %v2858 = vpack.c.b16 %v2845, %v2844
        %v2859 = vpack.c.b16 %v2847, %v2846
        %v2860 = vpack.c.b16 %v2849, %v2848
        %v2861 = vpack.c.b16 %v2851, %v2850
        %v2862 = vpack.c.b16 %v2853, %v2852
        %v2863 = vpack.c.b16 %v2855, %v2854
        %2872 = vmatprep.subr.bf16.mxu0 0
        %2873 = vmatpush1.bf16.msra.mxu0 %v2856
        %2874 = vmatprep.subr.bf16.mxu0 0
        %2875 = vmatpush1.bf16.msra.mxu0 %v2857
        %2876 = vmatprep.subr.bf16.mxu0 0
        %2877 = vmatpush1.bf16.msra.mxu0 %v2858
        %2878 = vmatprep.subr.bf16.mxu0 0
        %2879 = vmatpush1.bf16.msra.mxu0 %v2859
        %2880 = vmatprep.subr.bf16.mxu0 0
        %2881 = vmatpush1.bf16.msra.mxu0 %v2860
        %2882 = vmatprep.subr.bf16.mxu0 0
        %2883 = vmatpush1.bf16.msra.mxu0 %v2861
        %2884 = vmatprep.subr.bf16.mxu0 0
        %2885 = vmatpush1.bf16.msra.mxu0 %v2862
        %2886 = vmatprep.subr.bf16.mxu0 0
        %2887 = vmatpush1.bf16.msra.mxu0 %v2863
        %2888 = vmatprep.subr.bf16.mxu0 0
        %2889 = vmatpush1.bf16.msra.mxu0 0
        %2890 = vmatprep.subr.bf16.mxu0 0
        %2891 = vmatpush1.bf16.msra.mxu0 0
        %2892 = vmatprep.subr.bf16.mxu0 0
        %2893 = vmatpush1.bf16.msra.mxu0 0
        %2894 = vmatprep.subr.bf16.mxu0 0
        %2895 = vmatpush1.bf16.msra.mxu0 0
        %2896 = vmatprep.subr.bf16.mxu0 0
        %2897 = vmatpush1.bf16.msra.mxu0 0
        %2898 = vmatprep.subr.bf16.mxu0 0
        %2899 = vmatpush1.bf16.msra.mxu0 0
        %2900 = vmatprep.subr.bf16.mxu0 0
        %2901 = vmatpush1.bf16.msra.mxu0 0
        %2902 = vmatprep.subr.bf16.mxu0 0
        %2903 = vmatpush1.bf16.msra.mxu0 0
        %2904 = vmatprep.mubr.bf16.mxu0 0
        %2905 = vmatmul.mubr.bf16.gmra.mrb[0].mxu0 %v2803
        %v2906 = vpop.f32.mrb[0].mxu0
        %v2907 = vadd.f32 0.0, %v2906
        %v2908 = vpop.f32.mrb[0].mxu0
        %v2909 = vpop.f32.mrb[0].mxu0
        %v2910 = vadd.f32 0.0, %v2909
        %v2911 = vpop.f32.mrb[0].mxu0
        %2912 = vmatprep.mubr.bf16.mxu0 0
        %2913 = vmatmul.mubr.bf16.gmra.mrb[0].mxu0 %v2804
        %v2914 = vpop.f32.mrb[0].mxu0
        %v2915 = vadd.f32 0.0, %v2914
        %v2916 = vpop.f32.mrb[0].mxu0
        %v2917 = vpop.f32.mrb[0].mxu0
        %v2918 = vadd.f32 0.0, %v2917
        %v2919 = vpop.f32.mrb[0].mxu0
        %2920 = vmatprep.mubr.bf16.mxu0 0
        %2921 = vmatmul.mubr.bf16.gmra.mrb[0].mxu0 %v2805
        %v2922 = vpop.f32.mrb[0].mxu0
        %v2923 = vadd.f32 0.0, %v2922
        %v2924 = vpop.f32.mrb[0].mxu0
        %v2925 = vpop.f32.mrb[0].mxu0
        %v2926 = vadd.f32 0.0, %v2925
        %v2927 = vpop.f32.mrb[0].mxu0
        %2928 = vmatprep.mubr.bf16.mxu0 0
        %2929 = vmatmul.mubr.bf16.gmra.mrb[0].mxu0 %v2806
        %v2930 = vpop.f32.mrb[0].mxu0
        %v2931 = vadd.f32 0.0, %v2930
        %v2932 = vpop.f32.mrb[0].mxu0
        %v2933 = vpop.f32.mrb[0].mxu0
        %v2934 = vadd.f32 0.0, %v2933
        %v2935 = vpop.f32.mrb[0].mxu0
        %2936 = vdwg.mxu0
        %v2937 = vadd.f32 %v2787, %v2907
        %v2938 = vadd.f32 %v2788, %v2910
        %v2939 = vadd.f32 %v2789, %v2915
        %v2940 = vadd.f32 %v2790, %v2918
        %v2941 = vadd.f32 %v2791, %v2923
        %v2942 = vadd.f32 %v2792, %v2926
        %v2943 = vadd.f32 %v2793, %v2931
        %v2944 = vadd.f32 %v2794, %v2934
        %v2945 = vld [vmem:[%s657 + $0x1] sm:$0xff]
        %v2946 = vld [vmem:[%s657 + $0x11] sm:$0xff]
        %v2947 = vld [vmem:[%s657 + $0x21] sm:$0xff]
        %v2948 = vld [vmem:[%s657 + $0x31] sm:$0xff]
        %v2949 = vld [vmem:[%s657 + $0x41] sm:$0xff]
        %v2950 = vld [vmem:[%s657 + $0x51] sm:$0xff]
        %v2951 = vld [vmem:[%s657 + $0x61] sm:$0xff]
        %v2952 = vld [vmem:[%s657 + $0x71] sm:$0xff]
        %v2953 = vld [vmem:[%s4] sm:$0x1]
        %v2955 = vlaneseq
        %v2956 = vshrl.u32 %v2955, 7
        %v2957 = vsub.s32 0, %v2956
        %v2958 = vrot.slane %v2953, %v2957
        %v2960 = vadd.f32 %v2937, %v2958
        %v2961 = vadd.f32 %v2938, %v2958
        %v2962 = vadd.f32 %v2939, %v2958
        %v2963 = vadd.f32 %v2940, %v2958
        %v2964 = vadd.f32 %v2941, %v2958
        %v2965 = vadd.f32 %v2942, %v2958
        %v2966 = vadd.f32 %v2943, %v2958
        %v2967 = vadd.f32 %v2944, %v2958
        %v2968 = vadd.f32 %v2960, %v2945
        %v2969 = vadd.f32 %v2961, %v2946
        %v2970 = vadd.f32 %v2962, %v2947
        %v2971 = vadd.f32 %v2963, %v2948
        %v2972 = vadd.f32 %v2964, %v2949
        %v2973 = vadd.f32 %v2965, %v2950
        %v2974 = vadd.f32 %v2966, %v2951
        %v2975 = vadd.f32 %v2967, %v2952
        %v2976 = vmax.f32 %v2968, 0.0
        %v2977 = vmax.f32 %v2969, 0.0
        %v2978 = vmax.f32 %v2970, 0.0
        %v2979 = vmax.f32 %v2971, 0.0
        %v2980 = vmax.f32 %v2972, 0.0
        %v2981 = vmax.f32 %v2973, 0.0
        %v2982 = vmax.f32 %v2974, 0.0
        %v2983 = vmax.f32 %v2975, 0.0
        %2984 = vst [vmem:[%s217] sm:$0xff] %v2976
        %2985 = vst [vmem:[%s217 + $0x8] sm:$0xff] %v2977
        %2986 = vst [vmem:[%s217 + $0x10] sm:$0xff] %v2978
        %2987 = vst [vmem:[%s217 + $0x18] sm:$0xff] %v2979
        %2988 = vst [vmem:[%s217 + $0x20] sm:$0xff] %v2980
        %2989 = vst [vmem:[%s217 + $0x28] sm:$0xff] %v2981
        %2990 = vst [vmem:[%s217 + $0x30] sm:$0xff] %v2982
        %2991 = vst [vmem:[%s217 + $0x38] sm:$0xff] %v2983
        %s2992 = sand.u32 %s137, 1
        %s2993 = scalar_lea.sflag [#allocation4], %s2992
        %s2994 = sand.u32 %s137, 1
        %s2995 = smul.addr %s2994, 64
        %s2996 = scalar_lea.vmem [#allocation3], %s2995
        // Predicated region
        $region41: #{forward.3} parent=39 // pred_check
          %p2997 = pneg %p147
        $region42: #{forward.3} parent=39 // pred_check_branch
          %2999 = sbr.rel (%p2997) target = $region44
        $region43: #{forward.3} parent=39 // pred_region
          %s3001 = ssub.s32 1024, 1024
          %3002 = vsyncadd %s2993, %s3001
          %s3003 = smul.addr %s19, 8
          %s3004 = smul.addr %s3003, 128
          %s3005 = scalar_lea.hbm %s5, %s3004
          %s3006 = sshll.u32 %s2996, 4
          %s3007 = int_to_ptr.vmem [resolvable:$true] %s3006
          %3012 = dma.vmem_to_hbm [thread:$0]  %s3007, 1024, %s3005, %s2993, 128, 128, 8
        $region44: #{forward.3} parent=39 // pred_fallthru
          _
      $region40: #{forward.3} parent=5 // pred_fallthru
        _
      %p3013 = scmp.le.s32.totalorder 2, %s14
      // Predicated region
      $region45: #{forward.3} parent=5 // pred_check
        %p3014 = pneg %p3013
      $region46: #{forward.3} parent=5 // pred_check_branch
        %3016 = sbr.rel (%p3014) target = $region48
      $region47: #{forward.3} parent=5 // pred_region
        %s3017 = ssub.s32 %s14, 2
        // Predicated region
        $region49: #{forward.3} parent=47 // pred_check
          %p3018 = pneg %p153
        $region50: #{forward.3} parent=47 // pred_check_branch
          %3020 = sbr.rel (%p3018) target = $region52
        $region51: #{forward.3} parent=47 // pred_region
          %s3021 = sand.u32 %s138, 1
          %s3022 = scalar_lea.sflag [#allocation4], %s3021
          %s3023 = sand.u32 %s138, 1
          %s3024 = smul.addr %s3023, 64
          %s3025 = scalar_lea.vmem [#allocation3], %s3024
          %3026 = dma.done %s3022, 1024
        $region52: #{forward.3} parent=47 // pred_fallthru
          _
      $region48: #{forward.3} parent=5 // pred_fallthru
        _
    $region6: #{forward.3} parent=1 // loop_footer
      %s18 = sadd.s32 1, %s14
    $region7: #{forward.3} parent=1 // loop_footer_branch
      %13 = sbr.rel target = $region3
    $region8: #{forward.3} parent=1 // loop_exit
      _
    %3027 = vsyncpa [#allocation4], 1
    %s3028 = scalar_lea.sflag [#allocation4], 1
    %3029 = vsyncpa %s3028, 1

</llo_original>
